<compile_context>
chip_gen: v7x
topology: tpu7x:2x2x1
jax: 0.10.0
libtpu: 0.0.40
codegen_flags: <defaults>
</compile_context>

<pallas_src>
import jax
import jax.numpy as jnp
from jax.experimental import pallas as pl
from jax.experimental.pallas import tpu as pltpu


# bf16 operands -> multi-x MXU throughput on v5e/v6e/v7x; accumulation stays f32.
# Use jnp.float32 to reproduce PyTorch float32 numerics bit-for-bit.
MXU_DTYPE = jnp.bfloat16


def _dot32(a, b):
    return jnp.dot(a, b, preferred_element_type=jnp.float32)


# ----------------------------------------------------------------------------
# Wrapper-side constant tables (shape-only; constant-folded under jit).
# ----------------------------------------------------------------------------
def _tap_masks(H, W):
    """(9, H*W) 0/1 masks: mask[3*dy+dx, y*W+x] = 1 iff (y+dy-1, x+dx-1) in-bounds."""
    p = jnp.arange(H * W)
    y, x = p // W, p % W
    rows = []
    for dy in range(3):
        for dx in range(3):
            rows.append((y + dy - 1 >= 0) & (y + dy - 1 < H) &
                        (x + dx - 1 >= 0) & (x + dx - 1 < W))
    return jnp.stack(rows, axis=0).astype(jnp.float32)


def _pool_select(H, W):
    """(H*W, H*W//4) 0/1 matrix selecting the top-left lane of every 2x2 block."""
    Wp = W // 2
    q = jnp.arange((H // 2) * Wp)
    src = (2 * (q // Wp)) * W + 2 * (q % Wp)
    p = jnp.arange(H * W)
    return (p[:, None] == src[None, :]).astype(jnp.float32)


# ----------------------------------------------------------------------------
# Fused per-level kernel:  DoubleConv  ->  2-layer ConvLSTM  ->  MaxPool2d(2,2)
# ----------------------------------------------------------------------------
def _make_level_kernel(B, H, W, Cin, Cout):
    S = H * W
    C = Cout
    tap_shift = [(dy - 1) * W + (dx - 1) for dy in range(3) for dx in range(3)]

    def shift_lanes(v, s):
        # out[:, p] = v[:, (p + s) % S]; the cyclic wrap is zeroed by the tap mask.
        # NOTE: on lane-multiple widths pltpu.roll(axis=-1) is the cheaper XLU path.
        s = s % S
        if s == 0:
            return v
        return jnp.concatenate([v[:, s:], v[:, :s]], axis=1)

    def patch_t(v, masks):
        # (Cv, S) -> transposed im2col patch (9*Cv, S); rows tap-major / channel-
        # minor, matching weights flattened (Cout, Cv, 3, 3) -> permute(0,2,3,1)
        # -> reshape(Cout, 9*Cv).
        return jnp.concatenate(
            [shift_lanes(v, s) * masks[k:k + 1] for k, s in enumerate(tap_shift)],
            axis=0)

    def conv_bn_relu(xs, w_ref, g_ref, b_ref, masks):
        # Conv3x3(bias=False) + training-mode BatchNorm2d (centered variance,
        # eps=1e-5) + ReLU over the whole batch (list of B (Cin_l, S) activations).
        w = w_ref[...].astype(MXU_DTYPE)
        ys = [_dot32(w, patch_t(x, masks).astype(MXU_DTYPE)) for x in xs]
        inv_n = 1.0 / float(B * S)
        mean = sum(jnp.sum(y, axis=1, keepdims=True) for y in ys) * inv_n
        var = sum(jnp.sum((y - mean) ** 2, axis=1, keepdims=True) for y in ys) * inv_n
        scale = g_ref[...] * jax.lax.rsqrt(var + 1e-5)
        shift = b_ref[...] - mean * scale
        return [jnp.maximum(y * scale + shift, 0.0) for y in ys]

    def lstm_gates(cc, c_prev):
        # PyTorch ConvLSTMCell gate order (i, f, o, g) along the channel axis.
        i = jax.nn.sigmoid(cc[0:C])
        f = jax.nn.sigmoid(cc[C:2 * C])
        o = jax.nn.sigmoid(cc[2 * C:3 * C])
        g = jnp.tanh(cc[3 * C:4 * C])
        c_next = f * c_prev + i * g
        h_next = o * jnp.tanh(c_next)
        return h_next, c_next

    def kernel(x_ref, masks_ref, sel_ref,
               w1_ref, g1_ref, b1_ref, w2_ref, g2_ref, b2_ref,
               wl0_ref, bl0_ref, wl1_ref, bl1_ref,
               seq_ref, pool_ref):
        masks = masks_ref[...]
        xs = [x_ref[b] for b in range(B)]

        # DoubleConv: (Conv3x3 no-bias -> BN(batch stats) -> ReLU) twice.
        xs = conv_bn_relu(xs, w1_ref, g1_ref, b1_ref, masks)
        xs = conv_bn_relu(xs, w2_ref, g2_ref, b2_ref, masks)

        # 2-layer ConvLSTM over the batch-as-time dim (T = B), zero initial state.
        wl0 = wl0_ref[...].astype(MXU_DTYPE)
        wl1 = wl1_ref[...].astype(MXU_DTYPE)
        bl0, bl1, sel = bl0_ref[...], bl1_ref[...], sel_ref[...]
        h0 = c0 = h1 = c1 = jnp.zeros((C, S), jnp.float32)
        for t in range(B):
            p0 = jnp.concatenate([patch_t(xs[t], masks), patch_t(h0, masks)], axis=0)
            h0, c0 = lstm_gates(_dot32(wl0, p0.astype(MXU_DTYPE)) + bl0, c0)
            p1 = jnp.concatenate([patch_t(h0, masks), patch_t(h1, masks)], axis=0)
            h1, c1 = lstm_gates(_dot32(wl1, p1.astype(MXU_DTYPE)) + bl1, c1)
            seq_ref[t] = h1                       # skip-connection output
            # Fused MaxPool2d(2, 2): pair-max along x, pair-max along y, then a
            # tiny 0/1 selection matmul picks the even-(y, x) columns (kept f32 so
            # pooled values equal the stored h exactly).
            m = jnp.maximum(h1, shift_lanes(h1, 1))
            m = jnp.maximum(m, shift_lanes(m, W))
            pool_ref[t] = _dot32(m, sel)

    return kernel


# ----------------------------------------------------------------------------
# pallas_call plumbing
# ----------------------------------------------------------------------------
def encoder_level(x_flat, p, B, H, W):
    """One encoder level. x_flat: (B, Cin, H*W).
    Returns (seq (B, Cout, H*W), pooled (B, Cout, H*W//4))."""
    assert H % 2 == 0 and W % 2 == 0, "fused 2x2 max-pool needs even H, W"
    Cin = x_flat.shape[1]
    Cout = p['conv1_w'].shape[0]
    S = H * W
    Sp = (H // 2) * (W // 2)
    # TODO(synk): whole-level VMEM residency only works while B*S*C stays small
    #             (<< 1 MiB here).  For real image sizes / batch, stream a grid
    #             over batch/time with spatial-halo tiles and re-budget for v7x's
    #             64 MiB VMEM / second TensorCore.
    return pl.pallas_call(
        _make_level_kernel(B, H, W, Cin, Cout),
        out_shape=(jax.ShapeDtypeStruct((B, Cout, S), jnp.float32),
                   jax.ShapeDtypeStruct((B, Cout, Sp), jnp.float32)),
        compiler_params=pltpu.CompilerParams(vmem_limit_bytes=32 * 1024 * 1024),
    )(x_flat, _tap_masks(H, W), _pool_select(H, W),
      p['conv1_w'], p['bn1_g'], p['bn1_b'],
      p['conv2_w'], p['bn2_g'], p['bn2_b'],
      p['lstm0_w'], p['lstm0_b'], p['lstm1_w'], p['lstm1_b'])


def encoder_forward(x_nchw, params):
    """Mirror of Encoder.forward: returns (x after the last pool, reversed skips),
    both in PyTorch NCHW layout (reshapes from (B, C, H*W) are free in HBM)."""
    x = x_nchw.astype(jnp.float32)
    B = x.shape[0]
    skips = []
    for p in params:
        _, Cin, H, W = x.shape
        Cout = p['conv1_w'].shape[0]
        seq, pooled = encoder_level(x.reshape(B, Cin, H * W), p, B, H, W)
        skips.append(seq.reshape(B, Cout, H, W))      # DoubleConv output (skip)
        x = pooled.reshape(B, Cout, H // 2, W // 2)   # MaxPool2d(2, 2) output
    return x, skips[::-1]


# ----------------------------------------------------------------------------
# Deterministic parameter init (shapes follow the PyTorch module __init__).
#
# Importing torch weights:
#   conv (OIHW (Cout, Cin, 3, 3), bias=False):
#       w.permute(0, 2, 3, 1).reshape(Cout, 9*Cin)
#   ConvLSTM cell conv ((4C, C + C, 3, 3), bias (4C,)):
#       wx = w[:, :C].permute(0, 2, 3, 1).reshape(4C, 9C)
#       wh = w[:, C:].permute(0, 2, 3, 1).reshape(4C, 9C)
#       lstm_w = concat([wx, wh], axis=1)  -> (4C, 18C);  lstm_b = b.reshape(4C, 1)
# ----------------------------------------------------------------------------
def init_encoder_params(key, in_channels, features):
    params = []
    cin = in_channels
    for feat in features:
        key, k1, k2, k3, k4 = jax.random.split(key, 5)
        params.append({
            'conv1_w': 0.1 * jax.random.normal(k1, (feat, 9 * cin), jnp.float32),
            'bn1_g': jnp.ones((feat, 1), jnp.float32),
            'bn1_b': jnp.zeros((feat, 1), jnp.float32),
            'conv2_w': 0.1 * jax.random.normal(k2, (feat, 9 * feat), jnp.float32),
            'bn2_g': jnp.ones((feat, 1), jnp.float32),
            'bn2_b': jnp.zeros((feat, 1), jnp.float32),
            'lstm0_w': 0.1 * jax.random.normal(k3, (4 * feat, 18 * feat), jnp.float32),
            'lstm0_b': jnp.zeros((4 * feat, 1), jnp.float32),
            'lstm1_w': 0.1 * jax.random.normal(k4, (4 * feat, 18 * feat), jnp.float32),
            'lstm1_b': jnp.zeros((4 * feat, 1), jnp.float32),
        })
        cin = feat
    return params


if __name__ == "__main__":
    key = jax.random.PRNGKey(0)
    kx, kp = jax.random.split(key)

    B, Cin, H, W = 2, 4, 16, 16
    features = [8, 16]

    x = jax.random.normal(kx, (B, Cin, H, W), jnp.float32)       # NCHW like PyTorch
    params = init_encoder_params(kp, Cin, features)

    fwd = jax.jit(lambda xx: encoder_forward(xx, params))
    out, skips = fwd(x)
    jax.block_until_ready(out)
    for s in skips:
        jax.block_until_ready(s)

    # expected shapes: out (2, 16, 4, 4); skips [(2, 16, 8, 8), (2, 8, 16, 16)]
    assert out.shape == (B, features[-1], H // 4, W // 4)
    assert skips[0].shape == (B, features[-1], H // 2, W // 2)
    assert skips[1].shape == (B, features[0], H, W)
    print("KERNEL_OK")
</pallas_src>

<mosaic_0001>
module attributes {stable_mosaic.version = 11 : i64} {
  func.func @kernel(%arg0: memref<2x4x256xf32, #tpu.memory_space<vmem>>, %arg1: memref<9x256xf32, #tpu.memory_space<vmem>>, %arg2: memref<256x64xf32, #tpu.memory_space<vmem>>, %arg3: memref<8x36xf32, #tpu.memory_space<vmem>>, %arg4: memref<8x1xf32, #tpu.memory_space<vmem>>, %arg5: memref<8x1xf32, #tpu.memory_space<vmem>>, %arg6: memref<8x72xf32, #tpu.memory_space<vmem>>, %arg7: memref<8x1xf32, #tpu.memory_space<vmem>>, %arg8: memref<8x1xf32, #tpu.memory_space<vmem>>, %arg9: memref<32x144xf32, #tpu.memory_space<vmem>>, %arg10: memref<32x1xf32, #tpu.memory_space<vmem>>, %arg11: memref<32x144xf32, #tpu.memory_space<vmem>>, %arg12: memref<32x1xf32, #tpu.memory_space<vmem>>, %arg13: memref<2x8x256xf32, #tpu.memory_space<vmem>>, %arg14: memref<2x8x64xf32, #tpu.memory_space<vmem>>) attributes {dimension_semantics = [], scalar_prefetch = 0 : i64, scratch_operands = 0 : i64, tpu.core_type = #tpu.core_type<tc>} {
    %c0 = arith.constant 0 : index
    %c0_0 = arith.constant 0 : index
    %0 = vector.load %arg1[%c0, %c0_0] : memref<9x256xf32, #tpu.memory_space<vmem>>, vector<9x256xf32>
    %c0_1 = arith.constant 0 : index
    %c0_2 = arith.constant 0 : index
    %c0_3 = arith.constant 0 : index
    %1 = vector.load %arg0[%c0_1, %c0_2, %c0_3] : memref<2x4x256xf32, #tpu.memory_space<vmem>>, vector<1x4x256xf32>
    %2 = vector.shape_cast %1 : vector<1x4x256xf32> to vector<4x256xf32>
    %c1 = arith.constant 1 : index
    %c0_4 = arith.constant 0 : index
    %c0_5 = arith.constant 0 : index
    %3 = vector.load %arg0[%c1, %c0_4, %c0_5] : memref<2x4x256xf32, #tpu.memory_space<vmem>>, vector<1x4x256xf32>
    %4 = vector.shape_cast %3 : vector<1x4x256xf32> to vector<4x256xf32>
    %c0_6 = arith.constant 0 : index
    %c0_7 = arith.constant 0 : index
    %5 = vector.load %arg3[%c0_6, %c0_7] : memref<8x36xf32, #tpu.memory_space<vmem>>, vector<8x36xf32>
    %6 = arith.truncf %5 : vector<8x36xf32> to vector<8x36xbf16>
    %7 = vector.extract_strided_slice %2 {offsets = [0, 239], sizes = [4, 17], strides = [1, 1]} : vector<4x256xf32> to vector<4x17xf32>
    %8 = vector.extract_strided_slice %2 {offsets = [0, 0], sizes = [4, 239], strides = [1, 1]} : vector<4x256xf32> to vector<4x239xf32>
    %9 = tpu.concatenate %7, %8 in 1 : vector<4x17xf32>, vector<4x239xf32> -> vector<4x256xf32>
    %10 = vector.extract_strided_slice %0 {offsets = [0, 0], sizes = [1, 256], strides = [1, 1]} : vector<9x256xf32> to vector<1x256xf32>
    %11 = vector.broadcast %10 : vector<1x256xf32> to vector<4x256xf32>
    %12 = arith.mulf %9, %11 : vector<4x256xf32>
    %13 = vector.extract_strided_slice %2 {offsets = [0, 240], sizes = [4, 16], strides = [1, 1]} : vector<4x256xf32> to vector<4x16xf32>
    %14 = vector.extract_strided_slice %2 {offsets = [0, 0], sizes = [4, 240], strides = [1, 1]} : vector<4x256xf32> to vector<4x240xf32>
    %15 = tpu.concatenate %13, %14 in 1 : vector<4x16xf32>, vector<4x240xf32> -> vector<4x256xf32>
    %16 = vector.extract_strided_slice %0 {offsets = [1, 0], sizes = [1, 256], strides = [1, 1]} : vector<9x256xf32> to vector<1x256xf32>
    %17 = vector.broadcast %16 : vector<1x256xf32> to vector<4x256xf32>
    %18 = arith.mulf %15, %17 : vector<4x256xf32>
    %19 = vector.extract_strided_slice %2 {offsets = [0, 241], sizes = [4, 15], strides = [1, 1]} : vector<4x256xf32> to vector<4x15xf32>
    %20 = vector.extract_strided_slice %2 {offsets = [0, 0], sizes = [4, 241], strides = [1, 1]} : vector<4x256xf32> to vector<4x241xf32>
    %21 = tpu.concatenate %19, %20 in 1 : vector<4x15xf32>, vector<4x241xf32> -> vector<4x256xf32>
    %22 = vector.extract_strided_slice %0 {offsets = [2, 0], sizes = [1, 256], strides = [1, 1]} : vector<9x256xf32> to vector<1x256xf32>
    %23 = vector.broadcast %22 : vector<1x256xf32> to vector<4x256xf32>
    %24 = arith.mulf %21, %23 : vector<4x256xf32>
    %25 = vector.extract_strided_slice %2 {offsets = [0, 255], sizes = [4, 1], strides = [1, 1]} : vector<4x256xf32> to vector<4x1xf32>
    %26 = vector.extract_strided_slice %2 {offsets = [0, 0], sizes = [4, 255], strides = [1, 1]} : vector<4x256xf32> to vector<4x255xf32>
    %27 = tpu.concatenate %25, %26 in 1 : vector<4x1xf32>, vector<4x255xf32> -> vector<4x256xf32>
    %28 = vector.extract_strided_slice %0 {offsets = [3, 0], sizes = [1, 256], strides = [1, 1]} : vector<9x256xf32> to vector<1x256xf32>
    %29 = vector.broadcast %28 : vector<1x256xf32> to vector<4x256xf32>
    %30 = arith.mulf %27, %29 : vector<4x256xf32>
    %31 = vector.extract_strided_slice %0 {offsets = [4, 0], sizes = [1, 256], strides = [1, 1]} : vector<9x256xf32> to vector<1x256xf32>
    %32 = vector.broadcast %31 : vector<1x256xf32> to vector<4x256xf32>
    %33 = arith.mulf %2, %32 : vector<4x256xf32>
    %34 = vector.extract_strided_slice %2 {offsets = [0, 1], sizes = [4, 255], strides = [1, 1]} : vector<4x256xf32> to vector<4x255xf32>
    %35 = vector.extract_strided_slice %2 {offsets = [0, 0], sizes = [4, 1], strides = [1, 1]} : vector<4x256xf32> to vector<4x1xf32>
    %36 = tpu.concatenate %34, %35 in 1 : vector<4x255xf32>, vector<4x1xf32> -> vector<4x256xf32>
    %37 = vector.extract_strided_slice %0 {offsets = [5, 0], sizes = [1, 256], strides = [1, 1]} : vector<9x256xf32> to vector<1x256xf32>
    %38 = vector.broadcast %37 : vector<1x256xf32> to vector<4x256xf32>
    %39 = arith.mulf %36, %38 : vector<4x256xf32>
    %40 = vector.extract_strided_slice %2 {offsets = [0, 15], sizes = [4, 241], strides = [1, 1]} : vector<4x256xf32> to vector<4x241xf32>
    %41 = vector.extract_strided_slice %2 {offsets = [0, 0], sizes = [4, 15], strides = [1, 1]} : vector<4x256xf32> to vector<4x15xf32>
    %42 = tpu.concatenate %40, %41 in 1 : vector<4x241xf32>, vector<4x15xf32> -> vector<4x256xf32>
    %43 = vector.extract_strided_slice %0 {offsets = [6, 0], sizes = [1, 256], strides = [1, 1]} : vector<9x256xf32> to vector<1x256xf32>
    %44 = vector.broadcast %43 : vector<1x256xf32> to vector<4x256xf32>
    %45 = arith.mulf %42, %44 : vector<4x256xf32>
    %46 = vector.extract_strided_slice %2 {offsets = [0, 16], sizes = [4, 240], strides = [1, 1]} : vector<4x256xf32> to vector<4x240xf32>
    %47 = vector.extract_strided_slice %2 {offsets = [0, 0], sizes = [4, 16], strides = [1, 1]} : vector<4x256xf32> to vector<4x16xf32>
    %48 = tpu.concatenate %46, %47 in 1 : vector<4x240xf32>, vector<4x16xf32> -> vector<4x256xf32>
    %49 = vector.extract_strided_slice %0 {offsets = [7, 0], sizes = [1, 256], strides = [1, 1]} : vector<9x256xf32> to vector<1x256xf32>
    %50 = vector.broadcast %49 : vector<1x256xf32> to vector<4x256xf32>
    %51 = arith.mulf %48, %50 : vector<4x256xf32>
    %52 = vector.extract_strided_slice %2 {offsets = [0, 17], sizes = [4, 239], strides = [1, 1]} : vector<4x256xf32> to vector<4x239xf32>
    %53 = vector.extract_strided_slice %2 {offsets = [0, 0], sizes = [4, 17], strides = [1, 1]} : vector<4x256xf32> to vector<4x17xf32>
    %54 = tpu.concatenate %52, %53 in 1 : vector<4x239xf32>, vector<4x17xf32> -> vector<4x256xf32>
    %55 = vector.extract_strided_slice %0 {offsets = [8, 0], sizes = [1, 256], strides = [1, 1]} : vector<9x256xf32> to vector<1x256xf32>
    %56 = vector.broadcast %55 : vector<1x256xf32> to vector<4x256xf32>
    %57 = arith.mulf %54, %56 : vector<4x256xf32>
    %58 = tpu.concatenate %12, %18, %24, %30, %33, %39, %45, %51, %57 in 0 : vector<4x256xf32>, vector<4x256xf32>, vector<4x256xf32>, vector<4x256xf32>, vector<4x256xf32>, vector<4x256xf32>, vector<4x256xf32>, vector<4x256xf32>, vector<4x256xf32> -> vector<36x256xf32>
    %59 = arith.truncf %58 : vector<36x256xf32> to vector<36x256xbf16>
    %cst = arith.constant dense<0.000000e+00> : vector<8x256xf32>
    %60 = tpu.matmul %6, %59, %cst {dimension_numbers = #tpu.dot_dimension_numbers<[1], [0], [0], [1], [0, 0, 1, 1], [], []>} : vector<8x36xbf16>, vector<36x256xbf16>, vector<8x256xf32> -> vector<8x256xf32>
    %61 = vector.extract_strided_slice %4 {offsets = [0, 239], sizes = [4, 17], strides = [1, 1]} : vector<4x256xf32> to vector<4x17xf32>
    %62 = vector.extract_strided_slice %4 {offsets = [0, 0], sizes = [4, 239], strides = [1, 1]} : vector<4x256xf32> to vector<4x239xf32>
    %63 = tpu.concatenate %61, %62 in 1 : vector<4x17xf32>, vector<4x239xf32> -> vector<4x256xf32>
    %64 = vector.extract_strided_slice %0 {offsets = [0, 0], sizes = [1, 256], strides = [1, 1]} : vector<9x256xf32> to vector<1x256xf32>
    %65 = vector.broadcast %64 : vector<1x256xf32> to vector<4x256xf32>
    %66 = arith.mulf %63, %65 : vector<4x256xf32>
    %67 = vector.extract_strided_slice %4 {offsets = [0, 240], sizes = [4, 16], strides = [1, 1]} : vector<4x256xf32> to vector<4x16xf32>
    %68 = vector.extract_strided_slice %4 {offsets = [0, 0], sizes = [4, 240], strides = [1, 1]} : vector<4x256xf32> to vector<4x240xf32>
    %69 = tpu.concatenate %67, %68 in 1 : vector<4x16xf32>, vector<4x240xf32> -> vector<4x256xf32>
    %70 = vector.extract_strided_slice %0 {offsets = [1, 0], sizes = [1, 256], strides = [1, 1]} : vector<9x256xf32> to vector<1x256xf32>
    %71 = vector.broadcast %70 : vector<1x256xf32> to vector<4x256xf32>
    %72 = arith.mulf %69, %71 : vector<4x256xf32>
    %73 = vector.extract_strided_slice %4 {offsets = [0, 241], sizes = [4, 15], strides = [1, 1]} : vector<4x256xf32> to vector<4x15xf32>
    %74 = vector.extract_strided_slice %4 {offsets = [0, 0], sizes = [4, 241], strides = [1, 1]} : vector<4x256xf32> to vector<4x241xf32>
    %75 = tpu.concatenate %73, %74 in 1 : vector<4x15xf32>, vector<4x241xf32> -> vector<4x256xf32>
    %76 = vector.extract_strided_slice %0 {offsets = [2, 0], sizes = [1, 256], strides = [1, 1]} : vector<9x256xf32> to vector<1x256xf32>
    %77 = vector.broadcast %76 : vector<1x256xf32> to vector<4x256xf32>
    %78 = arith.mulf %75, %77 : vector<4x256xf32>
    %79 = vector.extract_strided_slice %4 {offsets = [0, 255], sizes = [4, 1], strides = [1, 1]} : vector<4x256xf32> to vector<4x1xf32>
    %80 = vector.extract_strided_slice %4 {offsets = [0, 0], sizes = [4, 255], strides = [1, 1]} : vector<4x256xf32> to vector<4x255xf32>
    %81 = tpu.concatenate %79, %80 in 1 : vector<4x1xf32>, vector<4x255xf32> -> vector<4x256xf32>
    %82 = vector.extract_strided_slice %0 {offsets = [3, 0], sizes = [1, 256], strides = [1, 1]} : vector<9x256xf32> to vector<1x256xf32>
    %83 = vector.broadcast %82 : vector<1x256xf32> to vector<4x256xf32>
    %84 = arith.mulf %81, %83 : vector<4x256xf32>
    %85 = vector.extract_strided_slice %0 {offsets = [4, 0], sizes = [1, 256], strides = [1, 1]} : vector<9x256xf32> to vector<1x256xf32>
    %86 = vector.broadcast %85 : vector<1x256xf32> to vector<4x256xf32>
    %87 = arith.mulf %4, %86 : vector<4x256xf32>
    %88 = vector.extract_strided_slice %4 {offsets = [0, 1], sizes = [4, 255], strides = [1, 1]} : vector<4x256xf32> to vector<4x255xf32>
    %89 = vector.extract_strided_slice %4 {offsets = [0, 0], sizes = [4, 1], strides = [1, 1]} : vector<4x256xf32> to vector<4x1xf32>
    %90 = tpu.concatenate %88, %89 in 1 : vector<4x255xf32>, vector<4x1xf32> -> vector<4x256xf32>
    %91 = vector.extract_strided_slice %0 {offsets = [5, 0], sizes = [1, 256], strides = [1, 1]} : vector<9x256xf32> to vector<1x256xf32>
    %92 = vector.broadcast %91 : vector<1x256xf32> to vector<4x256xf32>
    %93 = arith.mulf %90, %92 : vector<4x256xf32>
    %94 = vector.extract_strided_slice %4 {offsets = [0, 15], sizes = [4, 241], strides = [1, 1]} : vector<4x256xf32> to vector<4x241xf32>
    %95 = vector.extract_strided_slice %4 {offsets = [0, 0], sizes = [4, 15], strides = [1, 1]} : vector<4x256xf32> to vector<4x15xf32>
    %96 = tpu.concatenate %94, %95 in 1 : vector<4x241xf32>, vector<4x15xf32> -> vector<4x256xf32>
    %97 = vector.extract_strided_slice %0 {offsets = [6, 0], sizes = [1, 256], strides = [1, 1]} : vector<9x256xf32> to vector<1x256xf32>
    %98 = vector.broadcast %97 : vector<1x256xf32> to vector<4x256xf32>
    %99 = arith.mulf %96, %98 : vector<4x256xf32>
    %100 = vector.extract_strided_slice %4 {offsets = [0, 16], sizes = [4, 240], strides = [1, 1]} : vector<4x256xf32> to vector<4x240xf32>
    %101 = vector.extract_strided_slice %4 {offsets = [0, 0], sizes = [4, 16], strides = [1, 1]} : vector<4x256xf32> to vector<4x16xf32>
    %102 = tpu.concatenate %100, %101 in 1 : vector<4x240xf32>, vector<4x16xf32> -> vector<4x256xf32>
    %103 = vector.extract_strided_slice %0 {offsets = [7, 0], sizes = [1, 256], strides = [1, 1]} : vector<9x256xf32> to vector<1x256xf32>
    %104 = vector.broadcast %103 : vector<1x256xf32> to vector<4x256xf32>
    %105 = arith.mulf %102, %104 : vector<4x256xf32>
    %106 = vector.extract_strided_slice %4 {offsets = [0, 17], sizes = [4, 239], strides = [1, 1]} : vector<4x256xf32> to vector<4x239xf32>
    %107 = vector.extract_strided_slice %4 {offsets = [0, 0], sizes = [4, 17], strides = [1, 1]} : vector<4x256xf32> to vector<4x17xf32>
    %108 = tpu.concatenate %106, %107 in 1 : vector<4x239xf32>, vector<4x17xf32> -> vector<4x256xf32>
    %109 = vector.extract_strided_slice %0 {offsets = [8, 0], sizes = [1, 256], strides = [1, 1]} : vector<9x256xf32> to vector<1x256xf32>
    %110 = vector.broadcast %109 : vector<1x256xf32> to vector<4x256xf32>
    %111 = arith.mulf %108, %110 : vector<4x256xf32>
    %112 = tpu.concatenate %66, %72, %78, %84, %87, %93, %99, %105, %111 in 0 : vector<4x256xf32>, vector<4x256xf32>, vector<4x256xf32>, vector<4x256xf32>, vector<4x256xf32>, vector<4x256xf32>, vector<4x256xf32>, vector<4x256xf32>, vector<4x256xf32> -> vector<36x256xf32>
    %113 = arith.truncf %112 : vector<36x256xf32> to vector<36x256xbf16>
    %cst_8 = arith.constant dense<0.000000e+00> : vector<8x256xf32>
    %114 = tpu.matmul %6, %113, %cst_8 {dimension_numbers = #tpu.dot_dimension_numbers<[1], [0], [0], [1], [0, 0, 1, 1], [], []>} : vector<8x36xbf16>, vector<36x256xbf16>, vector<8x256xf32> -> vector<8x256xf32>
    %cst_9 = arith.constant dense<0.000000e+00> : vector<8xf32>
    %115 = vector.multi_reduction <add>, %60, %cst_9 [1] : vector<8x256xf32> to vector<8xf32>
    %116 = vector.shape_cast %115 : vector<8xf32> to vector<8x1xf32>
    %cst_10 = arith.constant 0.000000e+00 : f32
    %117 = vector.broadcast %cst_10 : f32 to vector<8x1xf32>
    %118 = arith.addf %117, %116 : vector<8x1xf32>
    %cst_11 = arith.constant dense<0.000000e+00> : vector<8xf32>
    %119 = vector.multi_reduction <add>, %114, %cst_11 [1] : vector<8x256xf32> to vector<8xf32>
    %120 = vector.shape_cast %119 : vector<8xf32> to vector<8x1xf32>
    %121 = arith.addf %118, %120 : vector<8x1xf32>
    %cst_12 = arith.constant 0.001953125 : f32
    %122 = vector.broadcast %cst_12 : f32 to vector<8x1xf32>
    %123 = arith.mulf %121, %122 : vector<8x1xf32>
    %124 = vector.broadcast %123 : vector<8x1xf32> to vector<8x256xf32>
    %125 = arith.subf %60, %124 : vector<8x256xf32>
    %126 = arith.mulf %125, %125 : vector<8x256xf32>
    %cst_13 = arith.constant dense<0.000000e+00> : vector<8xf32>
    %127 = vector.multi_reduction <add>, %126, %cst_13 [1] : vector<8x256xf32> to vector<8xf32>
    %128 = vector.shape_cast %127 : vector<8xf32> to vector<8x1xf32>
    %cst_14 = arith.constant 0.000000e+00 : f32
    %129 = vector.broadcast %cst_14 : f32 to vector<8x1xf32>
    %130 = arith.addf %129, %128 : vector<8x1xf32>
    %131 = vector.broadcast %123 : vector<8x1xf32> to vector<8x256xf32>
    %132 = arith.subf %114, %131 : vector<8x256xf32>
    %133 = arith.mulf %132, %132 : vector<8x256xf32>
    %cst_15 = arith.constant dense<0.000000e+00> : vector<8xf32>
    %134 = vector.multi_reduction <add>, %133, %cst_15 [1] : vector<8x256xf32> to vector<8xf32>
    %135 = vector.shape_cast %134 : vector<8xf32> to vector<8x1xf32>
    %136 = arith.addf %130, %135 : vector<8x1xf32>
    %cst_16 = arith.constant 0.001953125 : f32
    %137 = vector.broadcast %cst_16 : f32 to vector<8x1xf32>
    %138 = arith.mulf %136, %137 : vector<8x1xf32>
    %c0_17 = arith.constant 0 : index
    %c0_18 = arith.constant 0 : index
    %139 = vector.load %arg4[%c0_17, %c0_18] : memref<8x1xf32, #tpu.memory_space<vmem>>, vector<8x1xf32>
    %cst_19 = arith.constant 9.99999974E-6 : f32
    %140 = vector.broadcast %cst_19 : f32 to vector<8x1xf32>
    %141 = arith.addf %138, %140 : vector<8x1xf32>
    %142 = math.rsqrt %141 : vector<8x1xf32>
    %143 = arith.mulf %139, %142 : vector<8x1xf32>
    %c0_20 = arith.constant 0 : index
    %c0_21 = arith.constant 0 : index
    %144 = vector.load %arg5[%c0_20, %c0_21] : memref<8x1xf32, #tpu.memory_space<vmem>>, vector<8x1xf32>
    %145 = arith.mulf %123, %143 : vector<8x1xf32>
    %146 = arith.subf %144, %145 : vector<8x1xf32>
    %147 = vector.broadcast %143 : vector<8x1xf32> to vector<8x256xf32>
    %148 = arith.mulf %60, %147 : vector<8x256xf32>
    %149 = vector.broadcast %146 : vector<8x1xf32> to vector<8x256xf32>
    %150 = arith.addf %148, %149 : vector<8x256xf32>
    %cst_22 = arith.constant 0.000000e+00 : f32
    %151 = vector.broadcast %cst_22 : f32 to vector<8x256xf32>
    %152 = arith.maximumf %150, %151 : vector<8x256xf32>
    %153 = vector.broadcast %143 : vector<8x1xf32> to vector<8x256xf32>
    %154 = arith.mulf %114, %153 : vector<8x256xf32>
    %155 = vector.broadcast %146 : vector<8x1xf32> to vector<8x256xf32>
    %156 = arith.addf %154, %155 : vector<8x256xf32>
    %cst_23 = arith.constant 0.000000e+00 : f32
    %157 = vector.broadcast %cst_23 : f32 to vector<8x256xf32>
    %158 = arith.maximumf %156, %157 : vector<8x256xf32>
    %c0_24 = arith.constant 0 : index
    %c0_25 = arith.constant 0 : index
    %159 = vector.load %arg6[%c0_24, %c0_25] : memref<8x72xf32, #tpu.memory_space<vmem>>, vector<8x72xf32>
    %160 = arith.truncf %159 : vector<8x72xf32> to vector<8x72xbf16>
    %161 = vector.extract_strided_slice %152 {offsets = [0, 239], sizes = [8, 17], strides = [1, 1]} : vector<8x256xf32> to vector<8x17xf32>
    %162 = vector.extract_strided_slice %152 {offsets = [0, 0], sizes = [8, 239], strides = [1, 1]} : vector<8x256xf32> to vector<8x239xf32>
    %163 = tpu.concatenate %161, %162 in 1 : vector<8x17xf32>, vector<8x239xf32> -> vector<8x256xf32>
    %164 = vector.extract_strided_slice %0 {offsets = [0, 0], sizes = [1, 256], strides = [1, 1]} : vector<9x256xf32> to vector<1x256xf32>
    %165 = vector.broadcast %164 : vector<1x256xf32> to vector<8x256xf32>
    %166 = arith.mulf %163, %165 : vector<8x256xf32>
    %167 = vector.extract_strided_slice %152 {offsets = [0, 240], sizes = [8, 16], strides = [1, 1]} : vector<8x256xf32> to vector<8x16xf32>
    %168 = vector.extract_strided_slice %152 {offsets = [0, 0], sizes = [8, 240], strides = [1, 1]} : vector<8x256xf32> to vector<8x240xf32>
    %169 = tpu.concatenate %167, %168 in 1 : vector<8x16xf32>, vector<8x240xf32> -> vector<8x256xf32>
    %170 = vector.extract_strided_slice %0 {offsets = [1, 0], sizes = [1, 256], strides = [1, 1]} : vector<9x256xf32> to vector<1x256xf32>
    %171 = vector.broadcast %170 : vector<1x256xf32> to vector<8x256xf32>
    %172 = arith.mulf %169, %171 : vector<8x256xf32>
    %173 = vector.extract_strided_slice %152 {offsets = [0, 241], sizes = [8, 15], strides = [1, 1]} : vector<8x256xf32> to vector<8x15xf32>
    %174 = vector.extract_strided_slice %152 {offsets = [0, 0], sizes = [8, 241], strides = [1, 1]} : vector<8x256xf32> to vector<8x241xf32>
    %175 = tpu.concatenate %173, %174 in 1 : vector<8x15xf32>, vector<8x241xf32> -> vector<8x256xf32>
    %176 = vector.extract_strided_slice %0 {offsets = [2, 0], sizes = [1, 256], strides = [1, 1]} : vector<9x256xf32> to vector<1x256xf32>
    %177 = vector.broadcast %176 : vector<1x256xf32> to vector<8x256xf32>
    %178 = arith.mulf %175, %177 : vector<8x256xf32>
    %179 = vector.extract_strided_slice %152 {offsets = [0, 255], sizes = [8, 1], strides = [1, 1]} : vector<8x256xf32> to vector<8x1xf32>
    %180 = vector.extract_strided_slice %152 {offsets = [0, 0], sizes = [8, 255], strides = [1, 1]} : vector<8x256xf32> to vector<8x255xf32>
    %181 = tpu.concatenate %179, %180 in 1 : vector<8x1xf32>, vector<8x255xf32> -> vector<8x256xf32>
    %182 = vector.extract_strided_slice %0 {offsets = [3, 0], sizes = [1, 256], strides = [1, 1]} : vector<9x256xf32> to vector<1x256xf32>
    %183 = vector.broadcast %182 : vector<1x256xf32> to vector<8x256xf32>
    %184 = arith.mulf %181, %183 : vector<8x256xf32>
    %185 = vector.extract_strided_slice %0 {offsets = [4, 0], sizes = [1, 256], strides = [1, 1]} : vector<9x256xf32> to vector<1x256xf32>
    %186 = vector.broadcast %185 : vector<1x256xf32> to vector<8x256xf32>
    %187 = arith.mulf %152, %186 : vector<8x256xf32>
    %188 = vector.extract_strided_slice %152 {offsets = [0, 1], sizes = [8, 255], strides = [1, 1]} : vector<8x256xf32> to vector<8x255xf32>
    %189 = vector.extract_strided_slice %152 {offsets = [0, 0], sizes = [8, 1], strides = [1, 1]} : vector<8x256xf32> to vector<8x1xf32>
    %190 = tpu.concatenate %188, %189 in 1 : vector<8x255xf32>, vector<8x1xf32> -> vector<8x256xf32>
    %191 = vector.extract_strided_slice %0 {offsets = [5, 0], sizes = [1, 256], strides = [1, 1]} : vector<9x256xf32> to vector<1x256xf32>
    %192 = vector.broadcast %191 : vector<1x256xf32> to vector<8x256xf32>
    %193 = arith.mulf %190, %192 : vector<8x256xf32>
    %194 = vector.extract_strided_slice %152 {offsets = [0, 15], sizes = [8, 241], strides = [1, 1]} : vector<8x256xf32> to vector<8x241xf32>
    %195 = vector.extract_strided_slice %152 {offsets = [0, 0], sizes = [8, 15], strides = [1, 1]} : vector<8x256xf32> to vector<8x15xf32>
    %196 = tpu.concatenate %194, %195 in 1 : vector<8x241xf32>, vector<8x15xf32> -> vector<8x256xf32>
    %197 = vector.extract_strided_slice %0 {offsets = [6, 0], sizes = [1, 256], strides = [1, 1]} : vector<9x256xf32> to vector<1x256xf32>
    %198 = vector.broadcast %197 : vector<1x256xf32> to vector<8x256xf32>
    %199 = arith.mulf %196, %198 : vector<8x256xf32>
    %200 = vector.extract_strided_slice %152 {offsets = [0, 16], sizes = [8, 240], strides = [1, 1]} : vector<8x256xf32> to vector<8x240xf32>
    %201 = vector.extract_strided_slice %152 {offsets = [0, 0], sizes = [8, 16], strides = [1, 1]} : vector<8x256xf32> to vector<8x16xf32>
    %202 = tpu.concatenate %200, %201 in 1 : vector<8x240xf32>, vector<8x16xf32> -> vector<8x256xf32>
    %203 = vector.extract_strided_slice %0 {offsets = [7, 0], sizes = [1, 256], strides = [1, 1]} : vector<9x256xf32> to vector<1x256xf32>
    %204 = vector.broadcast %203 : vector<1x256xf32> to vector<8x256xf32>
    %205 = arith.mulf %202, %204 : vector<8x256xf32>
    %206 = vector.extract_strided_slice %152 {offsets = [0, 17], sizes = [8, 239], strides = [1, 1]} : vector<8x256xf32> to vector<8x239xf32>
    %207 = vector.extract_strided_slice %152 {offsets = [0, 0], sizes = [8, 17], strides = [1, 1]} : vector<8x256xf32> to vector<8x17xf32>
    %208 = tpu.concatenate %206, %207 in 1 : vector<8x239xf32>, vector<8x17xf32> -> vector<8x256xf32>
    %209 = vector.extract_strided_slice %0 {offsets = [8, 0], sizes = [1, 256], strides = [1, 1]} : vector<9x256xf32> to vector<1x256xf32>
    %210 = vector.broadcast %209 : vector<1x256xf32> to vector<8x256xf32>
    %211 = arith.mulf %208, %210 : vector<8x256xf32>
    %212 = tpu.concatenate %166, %172, %178, %184, %187, %193, %199, %205, %211 in 0 : vector<8x256xf32>, vector<8x256xf32>, vector<8x256xf32>, vector<8x256xf32>, vector<8x256xf32>, vector<8x256xf32>, vector<8x256xf32>, vector<8x256xf32>, vector<8x256xf32> -> vector<72x256xf32>
    %213 = arith.truncf %212 : vector<72x256xf32> to vector<72x256xbf16>
    %cst_26 = arith.constant dense<0.000000e+00> : vector<8x256xf32>
    %214 = tpu.matmul %160, %213, %cst_26 {dimension_numbers = #tpu.dot_dimension_numbers<[1], [0], [0], [1], [0, 0, 1, 1], [], []>} : vector<8x72xbf16>, vector<72x256xbf16>, vector<8x256xf32> -> vector<8x256xf32>
    %215 = vector.extract_strided_slice %158 {offsets = [0, 239], sizes = [8, 17], strides = [1, 1]} : vector<8x256xf32> to vector<8x17xf32>
    %216 = vector.extract_strided_slice %158 {offsets = [0, 0], sizes = [8, 239], strides = [1, 1]} : vector<8x256xf32> to vector<8x239xf32>
    %217 = tpu.concatenate %215, %216 in 1 : vector<8x17xf32>, vector<8x239xf32> -> vector<8x256xf32>
    %218 = vector.extract_strided_slice %0 {offsets = [0, 0], sizes = [1, 256], strides = [1, 1]} : vector<9x256xf32> to vector<1x256xf32>
    %219 = vector.broadcast %218 : vector<1x256xf32> to vector<8x256xf32>
    %220 = arith.mulf %217, %219 : vector<8x256xf32>
    %221 = vector.extract_strided_slice %158 {offsets = [0, 240], sizes = [8, 16], strides = [1, 1]} : vector<8x256xf32> to vector<8x16xf32>
    %222 = vector.extract_strided_slice %158 {offsets = [0, 0], sizes = [8, 240], strides = [1, 1]} : vector<8x256xf32> to vector<8x240xf32>
    %223 = tpu.concatenate %221, %222 in 1 : vector<8x16xf32>, vector<8x240xf32> -> vector<8x256xf32>
    %224 = vector.extract_strided_slice %0 {offsets = [1, 0], sizes = [1, 256], strides = [1, 1]} : vector<9x256xf32> to vector<1x256xf32>
    %225 = vector.broadcast %224 : vector<1x256xf32> to vector<8x256xf32>
    %226 = arith.mulf %223, %225 : vector<8x256xf32>
    %227 = vector.extract_strided_slice %158 {offsets = [0, 241], sizes = [8, 15], strides = [1, 1]} : vector<8x256xf32> to vector<8x15xf32>
    %228 = vector.extract_strided_slice %158 {offsets = [0, 0], sizes = [8, 241], strides = [1, 1]} : vector<8x256xf32> to vector<8x241xf32>
    %229 = tpu.concatenate %227, %228 in 1 : vector<8x15xf32>, vector<8x241xf32> -> vector<8x256xf32>
    %230 = vector.extract_strided_slice %0 {offsets = [2, 0], sizes = [1, 256], strides = [1, 1]} : vector<9x256xf32> to vector<1x256xf32>
    %231 = vector.broadcast %230 : vector<1x256xf32> to vector<8x256xf32>
    %232 = arith.mulf %229, %231 : vector<8x256xf32>
    %233 = vector.extract_strided_slice %158 {offsets = [0, 255], sizes = [8, 1], strides = [1, 1]} : vector<8x256xf32> to vector<8x1xf32>
    %234 = vector.extract_strided_slice %158 {offsets = [0, 0], sizes = [8, 255], strides = [1, 1]} : vector<8x256xf32> to vector<8x255xf32>
    %235 = tpu.concatenate %233, %234 in 1 : vector<8x1xf32>, vector<8x255xf32> -> vector<8x256xf32>
    %236 = vector.extract_strided_slice %0 {offsets = [3, 0], sizes = [1, 256], strides = [1, 1]} : vector<9x256xf32> to vector<1x256xf32>
    %237 = vector.broadcast %236 : vector<1x256xf32> to vector<8x256xf32>
    %238 = arith.mulf %235, %237 : vector<8x256xf32>
    %239 = vector.extract_strided_slice %0 {offsets = [4, 0], sizes = [1, 256], strides = [1, 1]} : vector<9x256xf32> to vector<1x256xf32>
    %240 = vector.broadcast %239 : vector<1x256xf32> to vector<8x256xf32>
    %241 = arith.mulf %158, %240 : vector<8x256xf32>
    %242 = vector.extract_strided_slice %158 {offsets = [0, 1], sizes = [8, 255], strides = [1, 1]} : vector<8x256xf32> to vector<8x255xf32>
    %243 = vector.extract_strided_slice %158 {offsets = [0, 0], sizes = [8, 1], strides = [1, 1]} : vector<8x256xf32> to vector<8x1xf32>
    %244 = tpu.concatenate %242, %243 in 1 : vector<8x255xf32>, vector<8x1xf32> -> vector<8x256xf32>
    %245 = vector.extract_strided_slice %0 {offsets = [5, 0], sizes = [1, 256], strides = [1, 1]} : vector<9x256xf32> to vector<1x256xf32>
    %246 = vector.broadcast %245 : vector<1x256xf32> to vector<8x256xf32>
    %247 = arith.mulf %244, %246 : vector<8x256xf32>
    %248 = vector.extract_strided_slice %158 {offsets = [0, 15], sizes = [8, 241], strides = [1, 1]} : vector<8x256xf32> to vector<8x241xf32>
    %249 = vector.extract_strided_slice %158 {offsets = [0, 0], sizes = [8, 15], strides = [1, 1]} : vector<8x256xf32> to vector<8x15xf32>
    %250 = tpu.concatenate %248, %249 in 1 : vector<8x241xf32>, vector<8x15xf32> -> vector<8x256xf32>
    %251 = vector.extract_strided_slice %0 {offsets = [6, 0], sizes = [1, 256], strides = [1, 1]} : vector<9x256xf32> to vector<1x256xf32>
    %252 = vector.broadcast %251 : vector<1x256xf32> to vector<8x256xf32>
    %253 = arith.mulf %250, %252 : vector<8x256xf32>
    %254 = vector.extract_strided_slice %158 {offsets = [0, 16], sizes = [8, 240], strides = [1, 1]} : vector<8x256xf32> to vector<8x240xf32>
    %255 = vector.extract_strided_slice %158 {offsets = [0, 0], sizes = [8, 16], strides = [1, 1]} : vector<8x256xf32> to vector<8x16xf32>
    %256 = tpu.concatenate %254, %255 in 1 : vector<8x240xf32>, vector<8x16xf32> -> vector<8x256xf32>
    %257 = vector.extract_strided_slice %0 {offsets = [7, 0], sizes = [1, 256], strides = [1, 1]} : vector<9x256xf32> to vector<1x256xf32>
    %258 = vector.broadcast %257 : vector<1x256xf32> to vector<8x256xf32>
    %259 = arith.mulf %256, %258 : vector<8x256xf32>
    %260 = vector.extract_strided_slice %158 {offsets = [0, 17], sizes = [8, 239], strides = [1, 1]} : vector<8x256xf32> to vector<8x239xf32>
    %261 = vector.extract_strided_slice %158 {offsets = [0, 0], sizes = [8, 17], strides = [1, 1]} : vector<8x256xf32> to vector<8x17xf32>
    %262 = tpu.concatenate %260, %261 in 1 : vector<8x239xf32>, vector<8x17xf32> -> vector<8x256xf32>
    %263 = vector.extract_strided_slice %0 {offsets = [8, 0], sizes = [1, 256], strides = [1, 1]} : vector<9x256xf32> to vector<1x256xf32>
    %264 = vector.broadcast %263 : vector<1x256xf32> to vector<8x256xf32>
    %265 = arith.mulf %262, %264 : vector<8x256xf32>
    %266 = tpu.concatenate %220, %226, %232, %238, %241, %247, %253, %259, %265 in 0 : vector<8x256xf32>, vector<8x256xf32>, vector<8x256xf32>, vector<8x256xf32>, vector<8x256xf32>, vector<8x256xf32>, vector<8x256xf32>, vector<8x256xf32>, vector<8x256xf32> -> vector<72x256xf32>
    %267 = arith.truncf %266 : vector<72x256xf32> to vector<72x256xbf16>
    %cst_27 = arith.constant dense<0.000000e+00> : vector<8x256xf32>
    %268 = tpu.matmul %160, %267, %cst_27 {dimension_numbers = #tpu.dot_dimension_numbers<[1], [0], [0], [1], [0, 0, 1, 1], [], []>} : vector<8x72xbf16>, vector<72x256xbf16>, vector<8x256xf32> -> vector<8x256xf32>
    %cst_28 = arith.constant dense<0.000000e+00> : vector<8xf32>
    %269 = vector.multi_reduction <add>, %214, %cst_28 [1] : vector<8x256xf32> to vector<8xf32>
    %270 = vector.shape_cast %269 : vector<8xf32> to vector<8x1xf32>
    %cst_29 = arith.constant 0.000000e+00 : f32
    %271 = vector.broadcast %cst_29 : f32 to vector<8x1xf32>
    %272 = arith.addf %271, %270 : vector<8x1xf32>
    %cst_30 = arith.constant dense<0.000000e+00> : vector<8xf32>
    %273 = vector.multi_reduction <add>, %268, %cst_30 [1] : vector<8x256xf32> to vector<8xf32>
    %274 = vector.shape_cast %273 : vector<8xf32> to vector<8x1xf32>
    %275 = arith.addf %272, %274 : vector<8x1xf32>
    %cst_31 = arith.constant 0.001953125 : f32
    %276 = vector.broadcast %cst_31 : f32 to vector<8x1xf32>
    %277 = arith.mulf %275, %276 : vector<8x1xf32>
    %278 = vector.broadcast %277 : vector<8x1xf32> to vector<8x256xf32>
    %279 = arith.subf %214, %278 : vector<8x256xf32>
    %280 = arith.mulf %279, %279 : vector<8x256xf32>
    %cst_32 = arith.constant dense<0.000000e+00> : vector<8xf32>
    %281 = vector.multi_reduction <add>, %280, %cst_32 [1] : vector<8x256xf32> to vector<8xf32>
    %282 = vector.shape_cast %281 : vector<8xf32> to vector<8x1xf32>
    %cst_33 = arith.constant 0.000000e+00 : f32
    %283 = vector.broadcast %cst_33 : f32 to vector<8x1xf32>
    %284 = arith.addf %283, %282 : vector<8x1xf32>
    %285 = vector.broadcast %277 : vector<8x1xf32> to vector<8x256xf32>
    %286 = arith.subf %268, %285 : vector<8x256xf32>
    %287 = arith.mulf %286, %286 : vector<8x256xf32>
    %cst_34 = arith.constant dense<0.000000e+00> : vector<8xf32>
    %288 = vector.multi_reduction <add>, %287, %cst_34 [1] : vector<8x256xf32> to vector<8xf32>
    %289 = vector.shape_cast %288 : vector<8xf32> to vector<8x1xf32>
    %290 = arith.addf %284, %289 : vector<8x1xf32>
    %cst_35 = arith.constant 0.001953125 : f32
    %291 = vector.broadcast %cst_35 : f32 to vector<8x1xf32>
    %292 = arith.mulf %290, %291 : vector<8x1xf32>
    %c0_36 = arith.constant 0 : index
    %c0_37 = arith.constant 0 : index
    %293 = vector.load %arg7[%c0_36, %c0_37] : memref<8x1xf32, #tpu.memory_space<vmem>>, vector<8x1xf32>
    %cst_38 = arith.constant 9.99999974E-6 : f32
    %294 = vector.broadcast %cst_38 : f32 to vector<8x1xf32>
    %295 = arith.addf %292, %294 : vector<8x1xf32>
    %296 = math.rsqrt %295 : vector<8x1xf32>
    %297 = arith.mulf %293, %296 : vector<8x1xf32>
    %c0_39 = arith.constant 0 : index
    %c0_40 = arith.constant 0 : index
    %298 = vector.load %arg8[%c0_39, %c0_40] : memref<8x1xf32, #tpu.memory_space<vmem>>, vector<8x1xf32>
    %299 = arith.mulf %277, %297 : vector<8x1xf32>
    %300 = arith.subf %298, %299 : vector<8x1xf32>
    %301 = vector.broadcast %297 : vector<8x1xf32> to vector<8x256xf32>
    %302 = arith.mulf %214, %301 : vector<8x256xf32>
    %303 = vector.broadcast %300 : vector<8x1xf32> to vector<8x256xf32>
    %304 = arith.addf %302, %303 : vector<8x256xf32>
    %cst_41 = arith.constant 0.000000e+00 : f32
    %305 = vector.broadcast %cst_41 : f32 to vector<8x256xf32>
    %306 = arith.maximumf %304, %305 : vector<8x256xf32>
    %307 = vector.broadcast %297 : vector<8x1xf32> to vector<8x256xf32>
    %308 = arith.mulf %268, %307 : vector<8x256xf32>
    %309 = vector.broadcast %300 : vector<8x1xf32> to vector<8x256xf32>
    %310 = arith.addf %308, %309 : vector<8x256xf32>
    %cst_42 = arith.constant 0.000000e+00 : f32
    %311 = vector.broadcast %cst_42 : f32 to vector<8x256xf32>
    %312 = arith.maximumf %310, %311 : vector<8x256xf32>
    %c0_43 = arith.constant 0 : index
    %c0_44 = arith.constant 0 : index
    %313 = vector.load %arg9[%c0_43, %c0_44] : memref<32x144xf32, #tpu.memory_space<vmem>>, vector<32x144xf32>
    %314 = arith.truncf %313 : vector<32x144xf32> to vector<32x144xbf16>
    %c0_45 = arith.constant 0 : index
    %c0_46 = arith.constant 0 : index
    %315 = vector.load %arg11[%c0_45, %c0_46] : memref<32x144xf32, #tpu.memory_space<vmem>>, vector<32x144xf32>
    %316 = arith.truncf %315 : vector<32x144xf32> to vector<32x144xbf16>
    %c0_47 = arith.constant 0 : index
    %c0_48 = arith.constant 0 : index
    %317 = vector.load %arg10[%c0_47, %c0_48] : memref<32x1xf32, #tpu.memory_space<vmem>>, vector<32x1xf32>
    %c0_49 = arith.constant 0 : index
    %c0_50 = arith.constant 0 : index
    %318 = vector.load %arg12[%c0_49, %c0_50] : memref<32x1xf32, #tpu.memory_space<vmem>>, vector<32x1xf32>
    %c0_51 = arith.constant 0 : index
    %c0_52 = arith.constant 0 : index
    %319 = vector.load %arg2[%c0_51, %c0_52] : memref<256x64xf32, #tpu.memory_space<vmem>>, vector<256x64xf32>
    %cst_53 = arith.constant 0.000000e+00 : f32
    %320 = vector.broadcast %cst_53 : f32 to vector<8x256xf32>
    %321 = vector.extract_strided_slice %306 {offsets = [0, 239], sizes = [8, 17], strides = [1, 1]} : vector<8x256xf32> to vector<8x17xf32>
    %322 = vector.extract_strided_slice %306 {offsets = [0, 0], sizes = [8, 239], strides = [1, 1]} : vector<8x256xf32> to vector<8x239xf32>
    %323 = tpu.concatenate %321, %322 in 1 : vector<8x17xf32>, vector<8x239xf32> -> vector<8x256xf32>
    %324 = vector.extract_strided_slice %0 {offsets = [0, 0], sizes = [1, 256], strides = [1, 1]} : vector<9x256xf32> to vector<1x256xf32>
    %325 = vector.broadcast %324 : vector<1x256xf32> to vector<8x256xf32>
    %326 = arith.mulf %323, %325 : vector<8x256xf32>
    %327 = vector.extract_strided_slice %306 {offsets = [0, 240], sizes = [8, 16], strides = [1, 1]} : vector<8x256xf32> to vector<8x16xf32>
    %328 = vector.extract_strided_slice %306 {offsets = [0, 0], sizes = [8, 240], strides = [1, 1]} : vector<8x256xf32> to vector<8x240xf32>
    %329 = tpu.concatenate %327, %328 in 1 : vector<8x16xf32>, vector<8x240xf32> -> vector<8x256xf32>
    %330 = vector.extract_strided_slice %0 {offsets = [1, 0], sizes = [1, 256], strides = [1, 1]} : vector<9x256xf32> to vector<1x256xf32>
    %331 = vector.broadcast %330 : vector<1x256xf32> to vector<8x256xf32>
    %332 = arith.mulf %329, %331 : vector<8x256xf32>
    %333 = vector.extract_strided_slice %306 {offsets = [0, 241], sizes = [8, 15], strides = [1, 1]} : vector<8x256xf32> to vector<8x15xf32>
    %334 = vector.extract_strided_slice %306 {offsets = [0, 0], sizes = [8, 241], strides = [1, 1]} : vector<8x256xf32> to vector<8x241xf32>
    %335 = tpu.concatenate %333, %334 in 1 : vector<8x15xf32>, vector<8x241xf32> -> vector<8x256xf32>
    %336 = vector.extract_strided_slice %0 {offsets = [2, 0], sizes = [1, 256], strides = [1, 1]} : vector<9x256xf32> to vector<1x256xf32>
    %337 = vector.broadcast %336 : vector<1x256xf32> to vector<8x256xf32>
    %338 = arith.mulf %335, %337 : vector<8x256xf32>
    %339 = vector.extract_strided_slice %306 {offsets = [0, 255], sizes = [8, 1], strides = [1, 1]} : vector<8x256xf32> to vector<8x1xf32>
    %340 = vector.extract_strided_slice %306 {offsets = [0, 0], sizes = [8, 255], strides = [1, 1]} : vector<8x256xf32> to vector<8x255xf32>
    %341 = tpu.concatenate %339, %340 in 1 : vector<8x1xf32>, vector<8x255xf32> -> vector<8x256xf32>
    %342 = vector.extract_strided_slice %0 {offsets = [3, 0], sizes = [1, 256], strides = [1, 1]} : vector<9x256xf32> to vector<1x256xf32>
    %343 = vector.broadcast %342 : vector<1x256xf32> to vector<8x256xf32>
    %344 = arith.mulf %341, %343 : vector<8x256xf32>
    %345 = vector.extract_strided_slice %0 {offsets = [4, 0], sizes = [1, 256], strides = [1, 1]} : vector<9x256xf32> to vector<1x256xf32>
    %346 = vector.broadcast %345 : vector<1x256xf32> to vector<8x256xf32>
    %347 = arith.mulf %306, %346 : vector<8x256xf32>
    %348 = vector.extract_strided_slice %306 {offsets = [0, 1], sizes = [8, 255], strides = [1, 1]} : vector<8x256xf32> to vector<8x255xf32>
    %349 = vector.extract_strided_slice %306 {offsets = [0, 0], sizes = [8, 1], strides = [1, 1]} : vector<8x256xf32> to vector<8x1xf32>
    %350 = tpu.concatenate %348, %349 in 1 : vector<8x255xf32>, vector<8x1xf32> -> vector<8x256xf32>
    %351 = vector.extract_strided_slice %0 {offsets = [5, 0], sizes = [1, 256], strides = [1, 1]} : vector<9x256xf32> to vector<1x256xf32>
    %352 = vector.broadcast %351 : vector<1x256xf32> to vector<8x256xf32>
    %353 = arith.mulf %350, %352 : vector<8x256xf32>
    %354 = vector.extract_strided_slice %306 {offsets = [0, 15], sizes = [8, 241], strides = [1, 1]} : vector<8x256xf32> to vector<8x241xf32>
    %355 = vector.extract_strided_slice %306 {offsets = [0, 0], sizes = [8, 15], strides = [1, 1]} : vector<8x256xf32> to vector<8x15xf32>
    %356 = tpu.concatenate %354, %355 in 1 : vector<8x241xf32>, vector<8x15xf32> -> vector<8x256xf32>
    %357 = vector.extract_strided_slice %0 {offsets = [6, 0], sizes = [1, 256], strides = [1, 1]} : vector<9x256xf32> to vector<1x256xf32>
    %358 = vector.broadcast %357 : vector<1x256xf32> to vector<8x256xf32>
    %359 = arith.mulf %356, %358 : vector<8x256xf32>
    %360 = vector.extract_strided_slice %306 {offsets = [0, 16], sizes = [8, 240], strides = [1, 1]} : vector<8x256xf32> to vector<8x240xf32>
    %361 = vector.extract_strided_slice %306 {offsets = [0, 0], sizes = [8, 16], strides = [1, 1]} : vector<8x256xf32> to vector<8x16xf32>
    %362 = tpu.concatenate %360, %361 in 1 : vector<8x240xf32>, vector<8x16xf32> -> vector<8x256xf32>
    %363 = vector.extract_strided_slice %0 {offsets = [7, 0], sizes = [1, 256], strides = [1, 1]} : vector<9x256xf32> to vector<1x256xf32>
    %364 = vector.broadcast %363 : vector<1x256xf32> to vector<8x256xf32>
    %365 = arith.mulf %362, %364 : vector<8x256xf32>
    %366 = vector.extract_strided_slice %306 {offsets = [0, 17], sizes = [8, 239], strides = [1, 1]} : vector<8x256xf32> to vector<8x239xf32>
    %367 = vector.extract_strided_slice %306 {offsets = [0, 0], sizes = [8, 17], strides = [1, 1]} : vector<8x256xf32> to vector<8x17xf32>
    %368 = tpu.concatenate %366, %367 in 1 : vector<8x239xf32>, vector<8x17xf32> -> vector<8x256xf32>
    %369 = vector.extract_strided_slice %0 {offsets = [8, 0], sizes = [1, 256], strides = [1, 1]} : vector<9x256xf32> to vector<1x256xf32>
    %370 = vector.broadcast %369 : vector<1x256xf32> to vector<8x256xf32>
    %371 = arith.mulf %368, %370 : vector<8x256xf32>
    %372 = tpu.concatenate %326, %332, %338, %344, %347, %353, %359, %365, %371 in 0 : vector<8x256xf32>, vector<8x256xf32>, vector<8x256xf32>, vector<8x256xf32>, vector<8x256xf32>, vector<8x256xf32>, vector<8x256xf32>, vector<8x256xf32>, vector<8x256xf32> -> vector<72x256xf32>
    %373 = vector.extract_strided_slice %320 {offsets = [0, 239], sizes = [8, 17], strides = [1, 1]} : vector<8x256xf32> to vector<8x17xf32>
    %374 = vector.extract_strided_slice %320 {offsets = [0, 0], sizes = [8, 239], strides = [1, 1]} : vector<8x256xf32> to vector<8x239xf32>
    %375 = tpu.concatenate %373, %374 in 1 : vector<8x17xf32>, vector<8x239xf32> -> vector<8x256xf32>
    %376 = vector.extract_strided_slice %0 {offsets = [0, 0], sizes = [1, 256], strides = [1, 1]} : vector<9x256xf32> to vector<1x256xf32>
    %377 = vector.broadcast %376 : vector<1x256xf32> to vector<8x256xf32>
    %378 = arith.mulf %375, %377 : vector<8x256xf32>
    %379 = vector.extract_strided_slice %320 {offsets = [0, 240], sizes = [8, 16], strides = [1, 1]} : vector<8x256xf32> to vector<8x16xf32>
    %380 = vector.extract_strided_slice %320 {offsets = [0, 0], sizes = [8, 240], strides = [1, 1]} : vector<8x256xf32> to vector<8x240xf32>
    %381 = tpu.concatenate %379, %380 in 1 : vector<8x16xf32>, vector<8x240xf32> -> vector<8x256xf32>
    %382 = vector.extract_strided_slice %0 {offsets = [1, 0], sizes = [1, 256], strides = [1, 1]} : vector<9x256xf32> to vector<1x256xf32>
    %383 = vector.broadcast %382 : vector<1x256xf32> to vector<8x256xf32>
    %384 = arith.mulf %381, %383 : vector<8x256xf32>
    %385 = vector.extract_strided_slice %320 {offsets = [0, 241], sizes = [8, 15], strides = [1, 1]} : vector<8x256xf32> to vector<8x15xf32>
    %386 = vector.extract_strided_slice %320 {offsets = [0, 0], sizes = [8, 241], strides = [1, 1]} : vector<8x256xf32> to vector<8x241xf32>
    %387 = tpu.concatenate %385, %386 in 1 : vector<8x15xf32>, vector<8x241xf32> -> vector<8x256xf32>
    %388 = vector.extract_strided_slice %0 {offsets = [2, 0], sizes = [1, 256], strides = [1, 1]} : vector<9x256xf32> to vector<1x256xf32>
    %389 = vector.broadcast %388 : vector<1x256xf32> to vector<8x256xf32>
    %390 = arith.mulf %387, %389 : vector<8x256xf32>
    %391 = vector.extract_strided_slice %320 {offsets = [0, 255], sizes = [8, 1], strides = [1, 1]} : vector<8x256xf32> to vector<8x1xf32>
    %392 = vector.extract_strided_slice %320 {offsets = [0, 0], sizes = [8, 255], strides = [1, 1]} : vector<8x256xf32> to vector<8x255xf32>
    %393 = tpu.concatenate %391, %392 in 1 : vector<8x1xf32>, vector<8x255xf32> -> vector<8x256xf32>
    %394 = vector.extract_strided_slice %0 {offsets = [3, 0], sizes = [1, 256], strides = [1, 1]} : vector<9x256xf32> to vector<1x256xf32>
    %395 = vector.broadcast %394 : vector<1x256xf32> to vector<8x256xf32>
    %396 = arith.mulf %393, %395 : vector<8x256xf32>
    %397 = vector.extract_strided_slice %0 {offsets = [4, 0], sizes = [1, 256], strides = [1, 1]} : vector<9x256xf32> to vector<1x256xf32>
    %398 = vector.broadcast %397 : vector<1x256xf32> to vector<8x256xf32>
    %399 = arith.mulf %320, %398 : vector<8x256xf32>
    %400 = vector.extract_strided_slice %320 {offsets = [0, 1], sizes = [8, 255], strides = [1, 1]} : vector<8x256xf32> to vector<8x255xf32>
    %401 = vector.extract_strided_slice %320 {offsets = [0, 0], sizes = [8, 1], strides = [1, 1]} : vector<8x256xf32> to vector<8x1xf32>
    %402 = tpu.concatenate %400, %401 in 1 : vector<8x255xf32>, vector<8x1xf32> -> vector<8x256xf32>
    %403 = vector.extract_strided_slice %0 {offsets = [5, 0], sizes = [1, 256], strides = [1, 1]} : vector<9x256xf32> to vector<1x256xf32>
    %404 = vector.broadcast %403 : vector<1x256xf32> to vector<8x256xf32>
    %405 = arith.mulf %402, %404 : vector<8x256xf32>
    %406 = vector.extract_strided_slice %320 {offsets = [0, 15], sizes = [8, 241], strides = [1, 1]} : vector<8x256xf32> to vector<8x241xf32>
    %407 = vector.extract_strided_slice %320 {offsets = [0, 0], sizes = [8, 15], strides = [1, 1]} : vector<8x256xf32> to vector<8x15xf32>
    %408 = tpu.concatenate %406, %407 in 1 : vector<8x241xf32>, vector<8x15xf32> -> vector<8x256xf32>
    %409 = vector.extract_strided_slice %0 {offsets = [6, 0], sizes = [1, 256], strides = [1, 1]} : vector<9x256xf32> to vector<1x256xf32>
    %410 = vector.broadcast %409 : vector<1x256xf32> to vector<8x256xf32>
    %411 = arith.mulf %408, %410 : vector<8x256xf32>
    %412 = vector.extract_strided_slice %320 {offsets = [0, 16], sizes = [8, 240], strides = [1, 1]} : vector<8x256xf32> to vector<8x240xf32>
    %413 = vector.extract_strided_slice %320 {offsets = [0, 0], sizes = [8, 16], strides = [1, 1]} : vector<8x256xf32> to vector<8x16xf32>
    %414 = tpu.concatenate %412, %413 in 1 : vector<8x240xf32>, vector<8x16xf32> -> vector<8x256xf32>
    %415 = vector.extract_strided_slice %0 {offsets = [7, 0], sizes = [1, 256], strides = [1, 1]} : vector<9x256xf32> to vector<1x256xf32>
    %416 = vector.broadcast %415 : vector<1x256xf32> to vector<8x256xf32>
    %417 = arith.mulf %414, %416 : vector<8x256xf32>
    %418 = vector.extract_strided_slice %320 {offsets = [0, 17], sizes = [8, 239], strides = [1, 1]} : vector<8x256xf32> to vector<8x239xf32>
    %419 = vector.extract_strided_slice %320 {offsets = [0, 0], sizes = [8, 17], strides = [1, 1]} : vector<8x256xf32> to vector<8x17xf32>
    %420 = tpu.concatenate %418, %419 in 1 : vector<8x239xf32>, vector<8x17xf32> -> vector<8x256xf32>
    %421 = vector.extract_strided_slice %0 {offsets = [8, 0], sizes = [1, 256], strides = [1, 1]} : vector<9x256xf32> to vector<1x256xf32>
    %422 = vector.broadcast %421 : vector<1x256xf32> to vector<8x256xf32>
    %423 = arith.mulf %420, %422 : vector<8x256xf32>
    %424 = tpu.concatenate %378, %384, %390, %396, %399, %405, %411, %417, %423 in 0 : vector<8x256xf32>, vector<8x256xf32>, vector<8x256xf32>, vector<8x256xf32>, vector<8x256xf32>, vector<8x256xf32>, vector<8x256xf32>, vector<8x256xf32>, vector<8x256xf32> -> vector<72x256xf32>
    %425 = tpu.concatenate %372, %424 in 0 : vector<72x256xf32>, vector<72x256xf32> -> vector<144x256xf32>
    %426 = arith.truncf %425 : vector<144x256xf32> to vector<144x256xbf16>
    %cst_54 = arith.constant dense<0.000000e+00> : vector<32x256xf32>
    %427 = tpu.matmul %314, %426, %cst_54 {dimension_numbers = #tpu.dot_dimension_numbers<[1], [0], [0], [1], [0, 0, 1, 1], [], []>} : vector<32x144xbf16>, vector<144x256xbf16>, vector<32x256xf32> -> vector<32x256xf32>
    %428 = vector.broadcast %317 : vector<32x1xf32> to vector<32x256xf32>
    %429 = arith.addf %427, %428 : vector<32x256xf32>
    %430 = vector.extract_strided_slice %429 {offsets = [0, 0], sizes = [8, 256], strides = [1, 1]} : vector<32x256xf32> to vector<8x256xf32>
    %431 = arith.negf %430 : vector<8x256xf32>
    %432 = math.exp %431 : vector<8x256xf32>
    %cst_55 = arith.constant 1.000000e+00 : f32
    %433 = vector.broadcast %cst_55 : f32 to vector<8x256xf32>
    %434 = arith.addf %433, %432 : vector<8x256xf32>
    %435 = arith.divf %433, %434 : vector<8x256xf32>
    %436 = vector.extract_strided_slice %429 {offsets = [8, 0], sizes = [8, 256], strides = [1, 1]} : vector<32x256xf32> to vector<8x256xf32>
    %437 = arith.negf %436 : vector<8x256xf32>
    %438 = math.exp %437 : vector<8x256xf32>
    %cst_56 = arith.constant 1.000000e+00 : f32
    %439 = vector.broadcast %cst_56 : f32 to vector<8x256xf32>
    %440 = arith.addf %439, %438 : vector<8x256xf32>
    %441 = arith.divf %439, %440 : vector<8x256xf32>
    %442 = vector.extract_strided_slice %429 {offsets = [16, 0], sizes = [8, 256], strides = [1, 1]} : vector<32x256xf32> to vector<8x256xf32>
    %443 = arith.negf %442 : vector<8x256xf32>
    %444 = math.exp %443 : vector<8x256xf32>
    %cst_57 = arith.constant 1.000000e+00 : f32
    %445 = vector.broadcast %cst_57 : f32 to vector<8x256xf32>
    %446 = arith.addf %445, %444 : vector<8x256xf32>
    %447 = arith.divf %445, %446 : vector<8x256xf32>
    %448 = vector.extract_strided_slice %429 {offsets = [24, 0], sizes = [8, 256], strides = [1, 1]} : vector<32x256xf32> to vector<8x256xf32>
    %449 = math.tanh %448 : vector<8x256xf32>
    %450 = arith.mulf %441, %320 : vector<8x256xf32>
    %451 = arith.mulf %435, %449 : vector<8x256xf32>
    %452 = arith.addf %450, %451 : vector<8x256xf32>
    %453 = math.tanh %452 : vector<8x256xf32>
    %454 = arith.mulf %447, %453 : vector<8x256xf32>
    %455 = vector.extract_strided_slice %454 {offsets = [0, 239], sizes = [8, 17], strides = [1, 1]} : vector<8x256xf32> to vector<8x17xf32>
    %456 = vector.extract_strided_slice %454 {offsets = [0, 0], sizes = [8, 239], strides = [1, 1]} : vector<8x256xf32> to vector<8x239xf32>
    %457 = tpu.concatenate %455, %456 in 1 : vector<8x17xf32>, vector<8x239xf32> -> vector<8x256xf32>
    %458 = vector.extract_strided_slice %0 {offsets = [0, 0], sizes = [1, 256], strides = [1, 1]} : vector<9x256xf32> to vector<1x256xf32>
    %459 = vector.broadcast %458 : vector<1x256xf32> to vector<8x256xf32>
    %460 = arith.mulf %457, %459 : vector<8x256xf32>
    %461 = vector.extract_strided_slice %454 {offsets = [0, 240], sizes = [8, 16], strides = [1, 1]} : vector<8x256xf32> to vector<8x16xf32>
    %462 = vector.extract_strided_slice %454 {offsets = [0, 0], sizes = [8, 240], strides = [1, 1]} : vector<8x256xf32> to vector<8x240xf32>
    %463 = tpu.concatenate %461, %462 in 1 : vector<8x16xf32>, vector<8x240xf32> -> vector<8x256xf32>
    %464 = vector.extract_strided_slice %0 {offsets = [1, 0], sizes = [1, 256], strides = [1, 1]} : vector<9x256xf32> to vector<1x256xf32>
    %465 = vector.broadcast %464 : vector<1x256xf32> to vector<8x256xf32>
    %466 = arith.mulf %463, %465 : vector<8x256xf32>
    %467 = vector.extract_strided_slice %454 {offsets = [0, 241], sizes = [8, 15], strides = [1, 1]} : vector<8x256xf32> to vector<8x15xf32>
    %468 = vector.extract_strided_slice %454 {offsets = [0, 0], sizes = [8, 241], strides = [1, 1]} : vector<8x256xf32> to vector<8x241xf32>
    %469 = tpu.concatenate %467, %468 in 1 : vector<8x15xf32>, vector<8x241xf32> -> vector<8x256xf32>
    %470 = vector.extract_strided_slice %0 {offsets = [2, 0], sizes = [1, 256], strides = [1, 1]} : vector<9x256xf32> to vector<1x256xf32>
    %471 = vector.broadcast %470 : vector<1x256xf32> to vector<8x256xf32>
    %472 = arith.mulf %469, %471 : vector<8x256xf32>
    %473 = vector.extract_strided_slice %454 {offsets = [0, 255], sizes = [8, 1], strides = [1, 1]} : vector<8x256xf32> to vector<8x1xf32>
    %474 = vector.extract_strided_slice %454 {offsets = [0, 0], sizes = [8, 255], strides = [1, 1]} : vector<8x256xf32> to vector<8x255xf32>
    %475 = tpu.concatenate %473, %474 in 1 : vector<8x1xf32>, vector<8x255xf32> -> vector<8x256xf32>
    %476 = vector.extract_strided_slice %0 {offsets = [3, 0], sizes = [1, 256], strides = [1, 1]} : vector<9x256xf32> to vector<1x256xf32>
    %477 = vector.broadcast %476 : vector<1x256xf32> to vector<8x256xf32>
    %478 = arith.mulf %475, %477 : vector<8x256xf32>
    %479 = vector.extract_strided_slice %0 {offsets = [4, 0], sizes = [1, 256], strides = [1, 1]} : vector<9x256xf32> to vector<1x256xf32>
    %480 = vector.broadcast %479 : vector<1x256xf32> to vector<8x256xf32>
    %481 = arith.mulf %454, %480 : vector<8x256xf32>
    %482 = vector.extract_strided_slice %454 {offsets = [0, 1], sizes = [8, 255], strides = [1, 1]} : vector<8x256xf32> to vector<8x255xf32>
    %483 = vector.extract_strided_slice %454 {offsets = [0, 0], sizes = [8, 1], strides = [1, 1]} : vector<8x256xf32> to vector<8x1xf32>
    %484 = tpu.concatenate %482, %483 in 1 : vector<8x255xf32>, vector<8x1xf32> -> vector<8x256xf32>
    %485 = vector.extract_strided_slice %0 {offsets = [5, 0], sizes = [1, 256], strides = [1, 1]} : vector<9x256xf32> to vector<1x256xf32>
    %486 = vector.broadcast %485 : vector<1x256xf32> to vector<8x256xf32>
    %487 = arith.mulf %484, %486 : vector<8x256xf32>
    %488 = vector.extract_strided_slice %454 {offsets = [0, 15], sizes = [8, 241], strides = [1, 1]} : vector<8x256xf32> to vector<8x241xf32>
    %489 = vector.extract_strided_slice %454 {offsets = [0, 0], sizes = [8, 15], strides = [1, 1]} : vector<8x256xf32> to vector<8x15xf32>
    %490 = tpu.concatenate %488, %489 in 1 : vector<8x241xf32>, vector<8x15xf32> -> vector<8x256xf32>
    %491 = vector.extract_strided_slice %0 {offsets = [6, 0], sizes = [1, 256], strides = [1, 1]} : vector<9x256xf32> to vector<1x256xf32>
    %492 = vector.broadcast %491 : vector<1x256xf32> to vector<8x256xf32>
    %493 = arith.mulf %490, %492 : vector<8x256xf32>
    %494 = vector.extract_strided_slice %454 {offsets = [0, 16], sizes = [8, 240], strides = [1, 1]} : vector<8x256xf32> to vector<8x240xf32>
    %495 = vector.extract_strided_slice %454 {offsets = [0, 0], sizes = [8, 16], strides = [1, 1]} : vector<8x256xf32> to vector<8x16xf32>
    %496 = tpu.concatenate %494, %495 in 1 : vector<8x240xf32>, vector<8x16xf32> -> vector<8x256xf32>
    %497 = vector.extract_strided_slice %0 {offsets = [7, 0], sizes = [1, 256], strides = [1, 1]} : vector<9x256xf32> to vector<1x256xf32>
    %498 = vector.broadcast %497 : vector<1x256xf32> to vector<8x256xf32>
    %499 = arith.mulf %496, %498 : vector<8x256xf32>
    %500 = vector.extract_strided_slice %454 {offsets = [0, 17], sizes = [8, 239], strides = [1, 1]} : vector<8x256xf32> to vector<8x239xf32>
    %501 = vector.extract_strided_slice %454 {offsets = [0, 0], sizes = [8, 17], strides = [1, 1]} : vector<8x256xf32> to vector<8x17xf32>
    %502 = tpu.concatenate %500, %501 in 1 : vector<8x239xf32>, vector<8x17xf32> -> vector<8x256xf32>
    %503 = vector.extract_strided_slice %0 {offsets = [8, 0], sizes = [1, 256], strides = [1, 1]} : vector<9x256xf32> to vector<1x256xf32>
    %504 = vector.broadcast %503 : vector<1x256xf32> to vector<8x256xf32>
    %505 = arith.mulf %502, %504 : vector<8x256xf32>
    %506 = tpu.concatenate %460, %466, %472, %478, %481, %487, %493, %499, %505 in 0 : vector<8x256xf32>, vector<8x256xf32>, vector<8x256xf32>, vector<8x256xf32>, vector<8x256xf32>, vector<8x256xf32>, vector<8x256xf32>, vector<8x256xf32>, vector<8x256xf32> -> vector<72x256xf32>
    %507 = vector.extract_strided_slice %320 {offsets = [0, 239], sizes = [8, 17], strides = [1, 1]} : vector<8x256xf32> to vector<8x17xf32>
    %508 = vector.extract_strided_slice %320 {offsets = [0, 0], sizes = [8, 239], strides = [1, 1]} : vector<8x256xf32> to vector<8x239xf32>
    %509 = tpu.concatenate %507, %508 in 1 : vector<8x17xf32>, vector<8x239xf32> -> vector<8x256xf32>
    %510 = vector.extract_strided_slice %0 {offsets = [0, 0], sizes = [1, 256], strides = [1, 1]} : vector<9x256xf32> to vector<1x256xf32>
    %511 = vector.broadcast %510 : vector<1x256xf32> to vector<8x256xf32>
    %512 = arith.mulf %509, %511 : vector<8x256xf32>
    %513 = vector.extract_strided_slice %320 {offsets = [0, 240], sizes = [8, 16], strides = [1, 1]} : vector<8x256xf32> to vector<8x16xf32>
    %514 = vector.extract_strided_slice %320 {offsets = [0, 0], sizes = [8, 240], strides = [1, 1]} : vector<8x256xf32> to vector<8x240xf32>
    %515 = tpu.concatenate %513, %514 in 1 : vector<8x16xf32>, vector<8x240xf32> -> vector<8x256xf32>
    %516 = vector.extract_strided_slice %0 {offsets = [1, 0], sizes = [1, 256], strides = [1, 1]} : vector<9x256xf32> to vector<1x256xf32>
    %517 = vector.broadcast %516 : vector<1x256xf32> to vector<8x256xf32>
    %518 = arith.mulf %515, %517 : vector<8x256xf32>
    %519 = vector.extract_strided_slice %320 {offsets = [0, 241], sizes = [8, 15], strides = [1, 1]} : vector<8x256xf32> to vector<8x15xf32>
    %520 = vector.extract_strided_slice %320 {offsets = [0, 0], sizes = [8, 241], strides = [1, 1]} : vector<8x256xf32> to vector<8x241xf32>
    %521 = tpu.concatenate %519, %520 in 1 : vector<8x15xf32>, vector<8x241xf32> -> vector<8x256xf32>
    %522 = vector.extract_strided_slice %0 {offsets = [2, 0], sizes = [1, 256], strides = [1, 1]} : vector<9x256xf32> to vector<1x256xf32>
    %523 = vector.broadcast %522 : vector<1x256xf32> to vector<8x256xf32>
    %524 = arith.mulf %521, %523 : vector<8x256xf32>
    %525 = vector.extract_strided_slice %320 {offsets = [0, 255], sizes = [8, 1], strides = [1, 1]} : vector<8x256xf32> to vector<8x1xf32>
    %526 = vector.extract_strided_slice %320 {offsets = [0, 0], sizes = [8, 255], strides = [1, 1]} : vector<8x256xf32> to vector<8x255xf32>
    %527 = tpu.concatenate %525, %526 in 1 : vector<8x1xf32>, vector<8x255xf32> -> vector<8x256xf32>
    %528 = vector.extract_strided_slice %0 {offsets = [3, 0], sizes = [1, 256], strides = [1, 1]} : vector<9x256xf32> to vector<1x256xf32>
    %529 = vector.broadcast %528 : vector<1x256xf32> to vector<8x256xf32>
    %530 = arith.mulf %527, %529 : vector<8x256xf32>
    %531 = vector.extract_strided_slice %0 {offsets = [4, 0], sizes = [1, 256], strides = [1, 1]} : vector<9x256xf32> to vector<1x256xf32>
    %532 = vector.broadcast %531 : vector<1x256xf32> to vector<8x256xf32>
    %533 = arith.mulf %320, %532 : vector<8x256xf32>
    %534 = vector.extract_strided_slice %320 {offsets = [0, 1], sizes = [8, 255], strides = [1, 1]} : vector<8x256xf32> to vector<8x255xf32>
    %535 = vector.extract_strided_slice %320 {offsets = [0, 0], sizes = [8, 1], strides = [1, 1]} : vector<8x256xf32> to vector<8x1xf32>
    %536 = tpu.concatenate %534, %535 in 1 : vector<8x255xf32>, vector<8x1xf32> -> vector<8x256xf32>
    %537 = vector.extract_strided_slice %0 {offsets = [5, 0], sizes = [1, 256], strides = [1, 1]} : vector<9x256xf32> to vector<1x256xf32>
    %538 = vector.broadcast %537 : vector<1x256xf32> to vector<8x256xf32>
    %539 = arith.mulf %536, %538 : vector<8x256xf32>
    %540 = vector.extract_strided_slice %320 {offsets = [0, 15], sizes = [8, 241], strides = [1, 1]} : vector<8x256xf32> to vector<8x241xf32>
    %541 = vector.extract_strided_slice %320 {offsets = [0, 0], sizes = [8, 15], strides = [1, 1]} : vector<8x256xf32> to vector<8x15xf32>
    %542 = tpu.concatenate %540, %541 in 1 : vector<8x241xf32>, vector<8x15xf32> -> vector<8x256xf32>
    %543 = vector.extract_strided_slice %0 {offsets = [6, 0], sizes = [1, 256], strides = [1, 1]} : vector<9x256xf32> to vector<1x256xf32>
    %544 = vector.broadcast %543 : vector<1x256xf32> to vector<8x256xf32>
    %545 = arith.mulf %542, %544 : vector<8x256xf32>
    %546 = vector.extract_strided_slice %320 {offsets = [0, 16], sizes = [8, 240], strides = [1, 1]} : vector<8x256xf32> to vector<8x240xf32>
    %547 = vector.extract_strided_slice %320 {offsets = [0, 0], sizes = [8, 16], strides = [1, 1]} : vector<8x256xf32> to vector<8x16xf32>
    %548 = tpu.concatenate %546, %547 in 1 : vector<8x240xf32>, vector<8x16xf32> -> vector<8x256xf32>
    %549 = vector.extract_strided_slice %0 {offsets = [7, 0], sizes = [1, 256], strides = [1, 1]} : vector<9x256xf32> to vector<1x256xf32>
    %550 = vector.broadcast %549 : vector<1x256xf32> to vector<8x256xf32>
    %551 = arith.mulf %548, %550 : vector<8x256xf32>
    %552 = vector.extract_strided_slice %320 {offsets = [0, 17], sizes = [8, 239], strides = [1, 1]} : vector<8x256xf32> to vector<8x239xf32>
    %553 = vector.extract_strided_slice %320 {offsets = [0, 0], sizes = [8, 17], strides = [1, 1]} : vector<8x256xf32> to vector<8x17xf32>
    %554 = tpu.concatenate %552, %553 in 1 : vector<8x239xf32>, vector<8x17xf32> -> vector<8x256xf32>
    %555 = vector.extract_strided_slice %0 {offsets = [8, 0], sizes = [1, 256], strides = [1, 1]} : vector<9x256xf32> to vector<1x256xf32>
    %556 = vector.broadcast %555 : vector<1x256xf32> to vector<8x256xf32>
    %557 = arith.mulf %554, %556 : vector<8x256xf32>
    %558 = tpu.concatenate %512, %518, %524, %530, %533, %539, %545, %551, %557 in 0 : vector<8x256xf32>, vector<8x256xf32>, vector<8x256xf32>, vector<8x256xf32>, vector<8x256xf32>, vector<8x256xf32>, vector<8x256xf32>, vector<8x256xf32>, vector<8x256xf32> -> vector<72x256xf32>
    %559 = tpu.concatenate %506, %558 in 0 : vector<72x256xf32>, vector<72x256xf32> -> vector<144x256xf32>
    %560 = arith.truncf %559 : vector<144x256xf32> to vector<144x256xbf16>
    %cst_58 = arith.constant dense<0.000000e+00> : vector<32x256xf32>
    %561 = tpu.matmul %316, %560, %cst_58 {dimension_numbers = #tpu.dot_dimension_numbers<[1], [0], [0], [1], [0, 0, 1, 1], [], []>} : vector<32x144xbf16>, vector<144x256xbf16>, vector<32x256xf32> -> vector<32x256xf32>
    %562 = vector.broadcast %318 : vector<32x1xf32> to vector<32x256xf32>
    %563 = arith.addf %561, %562 : vector<32x256xf32>
    %564 = vector.extract_strided_slice %563 {offsets = [0, 0], sizes = [8, 256], strides = [1, 1]} : vector<32x256xf32> to vector<8x256xf32>
    %565 = arith.negf %564 : vector<8x256xf32>
    %566 = math.exp %565 : vector<8x256xf32>
    %cst_59 = arith.constant 1.000000e+00 : f32
    %567 = vector.broadcast %cst_59 : f32 to vector<8x256xf32>
    %568 = arith.addf %567, %566 : vector<8x256xf32>
    %569 = arith.divf %567, %568 : vector<8x256xf32>
    %570 = vector.extract_strided_slice %563 {offsets = [8, 0], sizes = [8, 256], strides = [1, 1]} : vector<32x256xf32> to vector<8x256xf32>
    %571 = arith.negf %570 : vector<8x256xf32>
    %572 = math.exp %571 : vector<8x256xf32>
    %cst_60 = arith.constant 1.000000e+00 : f32
    %573 = vector.broadcast %cst_60 : f32 to vector<8x256xf32>
    %574 = arith.addf %573, %572 : vector<8x256xf32>
    %575 = arith.divf %573, %574 : vector<8x256xf32>
    %576 = vector.extract_strided_slice %563 {offsets = [16, 0], sizes = [8, 256], strides = [1, 1]} : vector<32x256xf32> to vector<8x256xf32>
    %577 = arith.negf %576 : vector<8x256xf32>
    %578 = math.exp %577 : vector<8x256xf32>
    %cst_61 = arith.constant 1.000000e+00 : f32
    %579 = vector.broadcast %cst_61 : f32 to vector<8x256xf32>
    %580 = arith.addf %579, %578 : vector<8x256xf32>
    %581 = arith.divf %579, %580 : vector<8x256xf32>
    %582 = vector.extract_strided_slice %563 {offsets = [24, 0], sizes = [8, 256], strides = [1, 1]} : vector<32x256xf32> to vector<8x256xf32>
    %583 = math.tanh %582 : vector<8x256xf32>
    %584 = arith.mulf %575, %320 : vector<8x256xf32>
    %585 = arith.mulf %569, %583 : vector<8x256xf32>
    %586 = arith.addf %584, %585 : vector<8x256xf32>
    %587 = math.tanh %586 : vector<8x256xf32>
    %588 = arith.mulf %581, %587 : vector<8x256xf32>
    %c0_62 = arith.constant 0 : index
    %c0_63 = arith.constant 0 : index
    %c0_64 = arith.constant 0 : index
    %589 = vector.load %arg13[%c0_62, %c0_63, %c0_64] : memref<2x8x256xf32, #tpu.memory_space<vmem>>, vector<1x8x256xf32>
    %590 = vector.shape_cast %589 : vector<1x8x256xf32> to vector<8x256xf32>
    %591 = vector.shape_cast %588 : vector<8x256xf32> to vector<1x8x256xf32>
    tpu.vector_store %arg13[%c0_62, %c0_63, %c0_64], %591 {strides = array<i32>} : memref<2x8x256xf32, #tpu.memory_space<vmem>>, vector<1x8x256xf32>,
    %592 = vector.extract_strided_slice %588 {offsets = [0, 1], sizes = [8, 255], strides = [1, 1]} : vector<8x256xf32> to vector<8x255xf32>
    %593 = vector.extract_strided_slice %588 {offsets = [0, 0], sizes = [8, 1], strides = [1, 1]} : vector<8x256xf32> to vector<8x1xf32>
    %594 = tpu.concatenate %592, %593 in 1 : vector<8x255xf32>, vector<8x1xf32> -> vector<8x256xf32>
    %595 = arith.maximumf %588, %594 : vector<8x256xf32>
    %596 = vector.extract_strided_slice %595 {offsets = [0, 16], sizes = [8, 240], strides = [1, 1]} : vector<8x256xf32> to vector<8x240xf32>
    %597 = vector.extract_strided_slice %595 {offsets = [0, 0], sizes = [8, 16], strides = [1, 1]} : vector<8x256xf32> to vector<8x16xf32>
    %598 = tpu.concatenate %596, %597 in 1 : vector<8x240xf32>, vector<8x16xf32> -> vector<8x256xf32>
    %599 = arith.maximumf %595, %598 : vector<8x256xf32>
    %cst_65 = arith.constant dense<0.000000e+00> : vector<8x64xf32>
    %600 = tpu.matmul %599, %319, %cst_65 {dimension_numbers = #tpu.dot_dimension_numbers<[1], [0], [0], [1], [0, 0, 1, 1], [], []>} : vector<8x256xf32>, vector<256x64xf32>, vector<8x64xf32> -> vector<8x64xf32>
    %c0_66 = arith.constant 0 : index
    %c0_67 = arith.constant 0 : index
    %c0_68 = arith.constant 0 : index
    %601 = vector.load %arg14[%c0_66, %c0_67, %c0_68] : memref<2x8x64xf32, #tpu.memory_space<vmem>>, vector<1x8x64xf32>
    %602 = vector.shape_cast %601 : vector<1x8x64xf32> to vector<8x64xf32>
    %603 = vector.shape_cast %600 : vector<8x64xf32> to vector<1x8x64xf32>
    tpu.vector_store %arg14[%c0_66, %c0_67, %c0_68], %603 {strides = array<i32>} : memref<2x8x64xf32, #tpu.memory_space<vmem>>, vector<1x8x64xf32>,
    %604 = vector.extract_strided_slice %312 {offsets = [0, 239], sizes = [8, 17], strides = [1, 1]} : vector<8x256xf32> to vector<8x17xf32>
    %605 = vector.extract_strided_slice %312 {offsets = [0, 0], sizes = [8, 239], strides = [1, 1]} : vector<8x256xf32> to vector<8x239xf32>
    %606 = tpu.concatenate %604, %605 in 1 : vector<8x17xf32>, vector<8x239xf32> -> vector<8x256xf32>
    %607 = vector.extract_strided_slice %0 {offsets = [0, 0], sizes = [1, 256], strides = [1, 1]} : vector<9x256xf32> to vector<1x256xf32>
    %608 = vector.broadcast %607 : vector<1x256xf32> to vector<8x256xf32>
    %609 = arith.mulf %606, %608 : vector<8x256xf32>
    %610 = vector.extract_strided_slice %312 {offsets = [0, 240], sizes = [8, 16], strides = [1, 1]} : vector<8x256xf32> to vector<8x16xf32>
    %611 = vector.extract_strided_slice %312 {offsets = [0, 0], sizes = [8, 240], strides = [1, 1]} : vector<8x256xf32> to vector<8x240xf32>
    %612 = tpu.concatenate %610, %611 in 1 : vector<8x16xf32>, vector<8x240xf32> -> vector<8x256xf32>
    %613 = vector.extract_strided_slice %0 {offsets = [1, 0], sizes = [1, 256], strides = [1, 1]} : vector<9x256xf32> to vector<1x256xf32>
    %614 = vector.broadcast %613 : vector<1x256xf32> to vector<8x256xf32>
    %615 = arith.mulf %612, %614 : vector<8x256xf32>
    %616 = vector.extract_strided_slice %312 {offsets = [0, 241], sizes = [8, 15], strides = [1, 1]} : vector<8x256xf32> to vector<8x15xf32>
    %617 = vector.extract_strided_slice %312 {offsets = [0, 0], sizes = [8, 241], strides = [1, 1]} : vector<8x256xf32> to vector<8x241xf32>
    %618 = tpu.concatenate %616, %617 in 1 : vector<8x15xf32>, vector<8x241xf32> -> vector<8x256xf32>
    %619 = vector.extract_strided_slice %0 {offsets = [2, 0], sizes = [1, 256], strides = [1, 1]} : vector<9x256xf32> to vector<1x256xf32>
    %620 = vector.broadcast %619 : vector<1x256xf32> to vector<8x256xf32>
    %621 = arith.mulf %618, %620 : vector<8x256xf32>
    %622 = vector.extract_strided_slice %312 {offsets = [0, 255], sizes = [8, 1], strides = [1, 1]} : vector<8x256xf32> to vector<8x1xf32>
    %623 = vector.extract_strided_slice %312 {offsets = [0, 0], sizes = [8, 255], strides = [1, 1]} : vector<8x256xf32> to vector<8x255xf32>
    %624 = tpu.concatenate %622, %623 in 1 : vector<8x1xf32>, vector<8x255xf32> -> vector<8x256xf32>
    %625 = vector.extract_strided_slice %0 {offsets = [3, 0], sizes = [1, 256], strides = [1, 1]} : vector<9x256xf32> to vector<1x256xf32>
    %626 = vector.broadcast %625 : vector<1x256xf32> to vector<8x256xf32>
    %627 = arith.mulf %624, %626 : vector<8x256xf32>
    %628 = vector.extract_strided_slice %0 {offsets = [4, 0], sizes = [1, 256], strides = [1, 1]} : vector<9x256xf32> to vector<1x256xf32>
    %629 = vector.broadcast %628 : vector<1x256xf32> to vector<8x256xf32>
    %630 = arith.mulf %312, %629 : vector<8x256xf32>
    %631 = vector.extract_strided_slice %312 {offsets = [0, 1], sizes = [8, 255], strides = [1, 1]} : vector<8x256xf32> to vector<8x255xf32>
    %632 = vector.extract_strided_slice %312 {offsets = [0, 0], sizes = [8, 1], strides = [1, 1]} : vector<8x256xf32> to vector<8x1xf32>
    %633 = tpu.concatenate %631, %632 in 1 : vector<8x255xf32>, vector<8x1xf32> -> vector<8x256xf32>
    %634 = vector.extract_strided_slice %0 {offsets = [5, 0], sizes = [1, 256], strides = [1, 1]} : vector<9x256xf32> to vector<1x256xf32>
    %635 = vector.broadcast %634 : vector<1x256xf32> to vector<8x256xf32>
    %636 = arith.mulf %633, %635 : vector<8x256xf32>
    %637 = vector.extract_strided_slice %312 {offsets = [0, 15], sizes = [8, 241], strides = [1, 1]} : vector<8x256xf32> to vector<8x241xf32>
    %638 = vector.extract_strided_slice %312 {offsets = [0, 0], sizes = [8, 15], strides = [1, 1]} : vector<8x256xf32> to vector<8x15xf32>
    %639 = tpu.concatenate %637, %638 in 1 : vector<8x241xf32>, vector<8x15xf32> -> vector<8x256xf32>
    %640 = vector.extract_strided_slice %0 {offsets = [6, 0], sizes = [1, 256], strides = [1, 1]} : vector<9x256xf32> to vector<1x256xf32>
    %641 = vector.broadcast %640 : vector<1x256xf32> to vector<8x256xf32>
    %642 = arith.mulf %639, %641 : vector<8x256xf32>
    %643 = vector.extract_strided_slice %312 {offsets = [0, 16], sizes = [8, 240], strides = [1, 1]} : vector<8x256xf32> to vector<8x240xf32>
    %644 = vector.extract_strided_slice %312 {offsets = [0, 0], sizes = [8, 16], strides = [1, 1]} : vector<8x256xf32> to vector<8x16xf32>
    %645 = tpu.concatenate %643, %644 in 1 : vector<8x240xf32>, vector<8x16xf32> -> vector<8x256xf32>
    %646 = vector.extract_strided_slice %0 {offsets = [7, 0], sizes = [1, 256], strides = [1, 1]} : vector<9x256xf32> to vector<1x256xf32>
    %647 = vector.broadcast %646 : vector<1x256xf32> to vector<8x256xf32>
    %648 = arith.mulf %645, %647 : vector<8x256xf32>
    %649 = vector.extract_strided_slice %312 {offsets = [0, 17], sizes = [8, 239], strides = [1, 1]} : vector<8x256xf32> to vector<8x239xf32>
    %650 = vector.extract_strided_slice %312 {offsets = [0, 0], sizes = [8, 17], strides = [1, 1]} : vector<8x256xf32> to vector<8x17xf32>
    %651 = tpu.concatenate %649, %650 in 1 : vector<8x239xf32>, vector<8x17xf32> -> vector<8x256xf32>
    %652 = vector.extract_strided_slice %0 {offsets = [8, 0], sizes = [1, 256], strides = [1, 1]} : vector<9x256xf32> to vector<1x256xf32>
    %653 = vector.broadcast %652 : vector<1x256xf32> to vector<8x256xf32>
    %654 = arith.mulf %651, %653 : vector<8x256xf32>
    %655 = tpu.concatenate %609, %615, %621, %627, %630, %636, %642, %648, %654 in 0 : vector<8x256xf32>, vector<8x256xf32>, vector<8x256xf32>, vector<8x256xf32>, vector<8x256xf32>, vector<8x256xf32>, vector<8x256xf32>, vector<8x256xf32>, vector<8x256xf32> -> vector<72x256xf32>
    %656 = vector.extract_strided_slice %454 {offsets = [0, 239], sizes = [8, 17], strides = [1, 1]} : vector<8x256xf32> to vector<8x17xf32>
    %657 = vector.extract_strided_slice %454 {offsets = [0, 0], sizes = [8, 239], strides = [1, 1]} : vector<8x256xf32> to vector<8x239xf32>
    %658 = tpu.concatenate %656, %657 in 1 : vector<8x17xf32>, vector<8x239xf32> -> vector<8x256xf32>
    %659 = vector.extract_strided_slice %0 {offsets = [0, 0], sizes = [1, 256], strides = [1, 1]} : vector<9x256xf32> to vector<1x256xf32>
    %660 = vector.broadcast %659 : vector<1x256xf32> to vector<8x256xf32>
    %661 = arith.mulf %658, %660 : vector<8x256xf32>
    %662 = vector.extract_strided_slice %454 {offsets = [0, 240], sizes = [8, 16], strides = [1, 1]} : vector<8x256xf32> to vector<8x16xf32>
    %663 = vector.extract_strided_slice %454 {offsets = [0, 0], sizes = [8, 240], strides = [1, 1]} : vector<8x256xf32> to vector<8x240xf32>
    %664 = tpu.concatenate %662, %663 in 1 : vector<8x16xf32>, vector<8x240xf32> -> vector<8x256xf32>
    %665 = vector.extract_strided_slice %0 {offsets = [1, 0], sizes = [1, 256], strides = [1, 1]} : vector<9x256xf32> to vector<1x256xf32>
    %666 = vector.broadcast %665 : vector<1x256xf32> to vector<8x256xf32>
    %667 = arith.mulf %664, %666 : vector<8x256xf32>
    %668 = vector.extract_strided_slice %454 {offsets = [0, 241], sizes = [8, 15], strides = [1, 1]} : vector<8x256xf32> to vector<8x15xf32>
    %669 = vector.extract_strided_slice %454 {offsets = [0, 0], sizes = [8, 241], strides = [1, 1]} : vector<8x256xf32> to vector<8x241xf32>
    %670 = tpu.concatenate %668, %669 in 1 : vector<8x15xf32>, vector<8x241xf32> -> vector<8x256xf32>
    %671 = vector.extract_strided_slice %0 {offsets = [2, 0], sizes = [1, 256], strides = [1, 1]} : vector<9x256xf32> to vector<1x256xf32>
    %672 = vector.broadcast %671 : vector<1x256xf32> to vector<8x256xf32>
    %673 = arith.mulf %670, %672 : vector<8x256xf32>
    %674 = vector.extract_strided_slice %454 {offsets = [0, 255], sizes = [8, 1], strides = [1, 1]} : vector<8x256xf32> to vector<8x1xf32>
    %675 = vector.extract_strided_slice %454 {offsets = [0, 0], sizes = [8, 255], strides = [1, 1]} : vector<8x256xf32> to vector<8x255xf32>
    %676 = tpu.concatenate %674, %675 in 1 : vector<8x1xf32>, vector<8x255xf32> -> vector<8x256xf32>
    %677 = vector.extract_strided_slice %0 {offsets = [3, 0], sizes = [1, 256], strides = [1, 1]} : vector<9x256xf32> to vector<1x256xf32>
    %678 = vector.broadcast %677 : vector<1x256xf32> to vector<8x256xf32>
    %679 = arith.mulf %676, %678 : vector<8x256xf32>
    %680 = vector.extract_strided_slice %0 {offsets = [4, 0], sizes = [1, 256], strides = [1, 1]} : vector<9x256xf32> to vector<1x256xf32>
    %681 = vector.broadcast %680 : vector<1x256xf32> to vector<8x256xf32>
    %682 = arith.mulf %454, %681 : vector<8x256xf32>
    %683 = vector.extract_strided_slice %454 {offsets = [0, 1], sizes = [8, 255], strides = [1, 1]} : vector<8x256xf32> to vector<8x255xf32>
    %684 = vector.extract_strided_slice %454 {offsets = [0, 0], sizes = [8, 1], strides = [1, 1]} : vector<8x256xf32> to vector<8x1xf32>
    %685 = tpu.concatenate %683, %684 in 1 : vector<8x255xf32>, vector<8x1xf32> -> vector<8x256xf32>
    %686 = vector.extract_strided_slice %0 {offsets = [5, 0], sizes = [1, 256], strides = [1, 1]} : vector<9x256xf32> to vector<1x256xf32>
    %687 = vector.broadcast %686 : vector<1x256xf32> to vector<8x256xf32>
    %688 = arith.mulf %685, %687 : vector<8x256xf32>
    %689 = vector.extract_strided_slice %454 {offsets = [0, 15], sizes = [8, 241], strides = [1, 1]} : vector<8x256xf32> to vector<8x241xf32>
    %690 = vector.extract_strided_slice %454 {offsets = [0, 0], sizes = [8, 15], strides = [1, 1]} : vector<8x256xf32> to vector<8x15xf32>
    %691 = tpu.concatenate %689, %690 in 1 : vector<8x241xf32>, vector<8x15xf32> -> vector<8x256xf32>
    %692 = vector.extract_strided_slice %0 {offsets = [6, 0], sizes = [1, 256], strides = [1, 1]} : vector<9x256xf32> to vector<1x256xf32>
    %693 = vector.broadcast %692 : vector<1x256xf32> to vector<8x256xf32>
    %694 = arith.mulf %691, %693 : vector<8x256xf32>
    %695 = vector.extract_strided_slice %454 {offsets = [0, 16], sizes = [8, 240], strides = [1, 1]} : vector<8x256xf32> to vector<8x240xf32>
    %696 = vector.extract_strided_slice %454 {offsets = [0, 0], sizes = [8, 16], strides = [1, 1]} : vector<8x256xf32> to vector<8x16xf32>
    %697 = tpu.concatenate %695, %696 in 1 : vector<8x240xf32>, vector<8x16xf32> -> vector<8x256xf32>
    %698 = vector.extract_strided_slice %0 {offsets = [7, 0], sizes = [1, 256], strides = [1, 1]} : vector<9x256xf32> to vector<1x256xf32>
    %699 = vector.broadcast %698 : vector<1x256xf32> to vector<8x256xf32>
    %700 = arith.mulf %697, %699 : vector<8x256xf32>
    %701 = vector.extract_strided_slice %454 {offsets = [0, 17], sizes = [8, 239], strides = [1, 1]} : vector<8x256xf32> to vector<8x239xf32>
    %702 = vector.extract_strided_slice %454 {offsets = [0, 0], sizes = [8, 17], strides = [1, 1]} : vector<8x256xf32> to vector<8x17xf32>
    %703 = tpu.concatenate %701, %702 in 1 : vector<8x239xf32>, vector<8x17xf32> -> vector<8x256xf32>
    %704 = vector.extract_strided_slice %0 {offsets = [8, 0], sizes = [1, 256], strides = [1, 1]} : vector<9x256xf32> to vector<1x256xf32>
    %705 = vector.broadcast %704 : vector<1x256xf32> to vector<8x256xf32>
    %706 = arith.mulf %703, %705 : vector<8x256xf32>
    %707 = tpu.concatenate %661, %667, %673, %679, %682, %688, %694, %700, %706 in 0 : vector<8x256xf32>, vector<8x256xf32>, vector<8x256xf32>, vector<8x256xf32>, vector<8x256xf32>, vector<8x256xf32>, vector<8x256xf32>, vector<8x256xf32>, vector<8x256xf32> -> vector<72x256xf32>
    %708 = tpu.concatenate %655, %707 in 0 : vector<72x256xf32>, vector<72x256xf32> -> vector<144x256xf32>
    %709 = arith.truncf %708 : vector<144x256xf32> to vector<144x256xbf16>
    %cst_69 = arith.constant dense<0.000000e+00> : vector<32x256xf32>
    %710 = tpu.matmul %314, %709, %cst_69 {dimension_numbers = #tpu.dot_dimension_numbers<[1], [0], [0], [1], [0, 0, 1, 1], [], []>} : vector<32x144xbf16>, vector<144x256xbf16>, vector<32x256xf32> -> vector<32x256xf32>
    %711 = vector.broadcast %317 : vector<32x1xf32> to vector<32x256xf32>
    %712 = arith.addf %710, %711 : vector<32x256xf32>
    %713 = vector.extract_strided_slice %712 {offsets = [0, 0], sizes = [8, 256], strides = [1, 1]} : vector<32x256xf32> to vector<8x256xf32>
    %714 = arith.negf %713 : vector<8x256xf32>
    %715 = math.exp %714 : vector<8x256xf32>
    %cst_70 = arith.constant 1.000000e+00 : f32
    %716 = vector.broadcast %cst_70 : f32 to vector<8x256xf32>
    %717 = arith.addf %716, %715 : vector<8x256xf32>
    %718 = arith.divf %716, %717 : vector<8x256xf32>
    %719 = vector.extract_strided_slice %712 {offsets = [8, 0], sizes = [8, 256], strides = [1, 1]} : vector<32x256xf32> to vector<8x256xf32>
    %720 = arith.negf %719 : vector<8x256xf32>
    %721 = math.exp %720 : vector<8x256xf32>
    %cst_71 = arith.constant 1.000000e+00 : f32
    %722 = vector.broadcast %cst_71 : f32 to vector<8x256xf32>
    %723 = arith.addf %722, %721 : vector<8x256xf32>
    %724 = arith.divf %722, %723 : vector<8x256xf32>
    %725 = vector.extract_strided_slice %712 {offsets = [16, 0], sizes = [8, 256], strides = [1, 1]} : vector<32x256xf32> to vector<8x256xf32>
    %726 = arith.negf %725 : vector<8x256xf32>
    %727 = math.exp %726 : vector<8x256xf32>
    %cst_72 = arith.constant 1.000000e+00 : f32
    %728 = vector.broadcast %cst_72 : f32 to vector<8x256xf32>
    %729 = arith.addf %728, %727 : vector<8x256xf32>
    %730 = arith.divf %728, %729 : vector<8x256xf32>
    %731 = vector.extract_strided_slice %712 {offsets = [24, 0], sizes = [8, 256], strides = [1, 1]} : vector<32x256xf32> to vector<8x256xf32>
    %732 = math.tanh %731 : vector<8x256xf32>
    %733 = arith.mulf %724, %452 : vector<8x256xf32>
    %734 = arith.mulf %718, %732 : vector<8x256xf32>
    %735 = arith.addf %733, %734 : vector<8x256xf32>
    %736 = math.tanh %735 : vector<8x256xf32>
    %737 = arith.mulf %730, %736 : vector<8x256xf32>
    %738 = vector.extract_strided_slice %737 {offsets = [0, 239], sizes = [8, 17], strides = [1, 1]} : vector<8x256xf32> to vector<8x17xf32>
    %739 = vector.extract_strided_slice %737 {offsets = [0, 0], sizes = [8, 239], strides = [1, 1]} : vector<8x256xf32> to vector<8x239xf32>
    %740 = tpu.concatenate %738, %739 in 1 : vector<8x17xf32>, vector<8x239xf32> -> vector<8x256xf32>
    %741 = vector.extract_strided_slice %0 {offsets = [0, 0], sizes = [1, 256], strides = [1, 1]} : vector<9x256xf32> to vector<1x256xf32>
    %742 = vector.broadcast %741 : vector<1x256xf32> to vector<8x256xf32>
    %743 = arith.mulf %740, %742 : vector<8x256xf32>
    %744 = vector.extract_strided_slice %737 {offsets = [0, 240], sizes = [8, 16], strides = [1, 1]} : vector<8x256xf32> to vector<8x16xf32>
    %745 = vector.extract_strided_slice %737 {offsets = [0, 0], sizes = [8, 240], strides = [1, 1]} : vector<8x256xf32> to vector<8x240xf32>
    %746 = tpu.concatenate %744, %745 in 1 : vector<8x16xf32>, vector<8x240xf32> -> vector<8x256xf32>
    %747 = vector.extract_strided_slice %0 {offsets = [1, 0], sizes = [1, 256], strides = [1, 1]} : vector<9x256xf32> to vector<1x256xf32>
    %748 = vector.broadcast %747 : vector<1x256xf32> to vector<8x256xf32>
    %749 = arith.mulf %746, %748 : vector<8x256xf32>
    %750 = vector.extract_strided_slice %737 {offsets = [0, 241], sizes = [8, 15], strides = [1, 1]} : vector<8x256xf32> to vector<8x15xf32>
    %751 = vector.extract_strided_slice %737 {offsets = [0, 0], sizes = [8, 241], strides = [1, 1]} : vector<8x256xf32> to vector<8x241xf32>
    %752 = tpu.concatenate %750, %751 in 1 : vector<8x15xf32>, vector<8x241xf32> -> vector<8x256xf32>
    %753 = vector.extract_strided_slice %0 {offsets = [2, 0], sizes = [1, 256], strides = [1, 1]} : vector<9x256xf32> to vector<1x256xf32>
    %754 = vector.broadcast %753 : vector<1x256xf32> to vector<8x256xf32>
    %755 = arith.mulf %752, %754 : vector<8x256xf32>
    %756 = vector.extract_strided_slice %737 {offsets = [0, 255], sizes = [8, 1], strides = [1, 1]} : vector<8x256xf32> to vector<8x1xf32>
    %757 = vector.extract_strided_slice %737 {offsets = [0, 0], sizes = [8, 255], strides = [1, 1]} : vector<8x256xf32> to vector<8x255xf32>
    %758 = tpu.concatenate %756, %757 in 1 : vector<8x1xf32>, vector<8x255xf32> -> vector<8x256xf32>
    %759 = vector.extract_strided_slice %0 {offsets = [3, 0], sizes = [1, 256], strides = [1, 1]} : vector<9x256xf32> to vector<1x256xf32>
    %760 = vector.broadcast %759 : vector<1x256xf32> to vector<8x256xf32>
    %761 = arith.mulf %758, %760 : vector<8x256xf32>
    %762 = vector.extract_strided_slice %0 {offsets = [4, 0], sizes = [1, 256], strides = [1, 1]} : vector<9x256xf32> to vector<1x256xf32>
    %763 = vector.broadcast %762 : vector<1x256xf32> to vector<8x256xf32>
    %764 = arith.mulf %737, %763 : vector<8x256xf32>
    %765 = vector.extract_strided_slice %737 {offsets = [0, 1], sizes = [8, 255], strides = [1, 1]} : vector<8x256xf32> to vector<8x255xf32>
    %766 = vector.extract_strided_slice %737 {offsets = [0, 0], sizes = [8, 1], strides = [1, 1]} : vector<8x256xf32> to vector<8x1xf32>
    %767 = tpu.concatenate %765, %766 in 1 : vector<8x255xf32>, vector<8x1xf32> -> vector<8x256xf32>
    %768 = vector.extract_strided_slice %0 {offsets = [5, 0], sizes = [1, 256], strides = [1, 1]} : vector<9x256xf32> to vector<1x256xf32>
    %769 = vector.broadcast %768 : vector<1x256xf32> to vector<8x256xf32>
    %770 = arith.mulf %767, %769 : vector<8x256xf32>
    %771 = vector.extract_strided_slice %737 {offsets = [0, 15], sizes = [8, 241], strides = [1, 1]} : vector<8x256xf32> to vector<8x241xf32>
    %772 = vector.extract_strided_slice %737 {offsets = [0, 0], sizes = [8, 15], strides = [1, 1]} : vector<8x256xf32> to vector<8x15xf32>
    %773 = tpu.concatenate %771, %772 in 1 : vector<8x241xf32>, vector<8x15xf32> -> vector<8x256xf32>
    %774 = vector.extract_strided_slice %0 {offsets = [6, 0], sizes = [1, 256], strides = [1, 1]} : vector<9x256xf32> to vector<1x256xf32>
    %775 = vector.broadcast %774 : vector<1x256xf32> to vector<8x256xf32>
    %776 = arith.mulf %773, %775 : vector<8x256xf32>
    %777 = vector.extract_strided_slice %737 {offsets = [0, 16], sizes = [8, 240], strides = [1, 1]} : vector<8x256xf32> to vector<8x240xf32>
    %778 = vector.extract_strided_slice %737 {offsets = [0, 0], sizes = [8, 16], strides = [1, 1]} : vector<8x256xf32> to vector<8x16xf32>
    %779 = tpu.concatenate %777, %778 in 1 : vector<8x240xf32>, vector<8x16xf32> -> vector<8x256xf32>
    %780 = vector.extract_strided_slice %0 {offsets = [7, 0], sizes = [1, 256], strides = [1, 1]} : vector<9x256xf32> to vector<1x256xf32>
    %781 = vector.broadcast %780 : vector<1x256xf32> to vector<8x256xf32>
    %782 = arith.mulf %779, %781 : vector<8x256xf32>
    %783 = vector.extract_strided_slice %737 {offsets = [0, 17], sizes = [8, 239], strides = [1, 1]} : vector<8x256xf32> to vector<8x239xf32>
    %784 = vector.extract_strided_slice %737 {offsets = [0, 0], sizes = [8, 17], strides = [1, 1]} : vector<8x256xf32> to vector<8x17xf32>
    %785 = tpu.concatenate %783, %784 in 1 : vector<8x239xf32>, vector<8x17xf32> -> vector<8x256xf32>
    %786 = vector.extract_strided_slice %0 {offsets = [8, 0], sizes = [1, 256], strides = [1, 1]} : vector<9x256xf32> to vector<1x256xf32>
    %787 = vector.broadcast %786 : vector<1x256xf32> to vector<8x256xf32>
    %788 = arith.mulf %785, %787 : vector<8x256xf32>
    %789 = tpu.concatenate %743, %749, %755, %761, %764, %770, %776, %782, %788 in 0 : vector<8x256xf32>, vector<8x256xf32>, vector<8x256xf32>, vector<8x256xf32>, vector<8x256xf32>, vector<8x256xf32>, vector<8x256xf32>, vector<8x256xf32>, vector<8x256xf32> -> vector<72x256xf32>
    %790 = vector.extract_strided_slice %588 {offsets = [0, 239], sizes = [8, 17], strides = [1, 1]} : vector<8x256xf32> to vector<8x17xf32>
    %791 = vector.extract_strided_slice %588 {offsets = [0, 0], sizes = [8, 239], strides = [1, 1]} : vector<8x256xf32> to vector<8x239xf32>
    %792 = tpu.concatenate %790, %791 in 1 : vector<8x17xf32>, vector<8x239xf32> -> vector<8x256xf32>
    %793 = vector.extract_strided_slice %0 {offsets = [0, 0], sizes = [1, 256], strides = [1, 1]} : vector<9x256xf32> to vector<1x256xf32>
    %794 = vector.broadcast %793 : vector<1x256xf32> to vector<8x256xf32>
    %795 = arith.mulf %792, %794 : vector<8x256xf32>
    %796 = vector.extract_strided_slice %588 {offsets = [0, 240], sizes = [8, 16], strides = [1, 1]} : vector<8x256xf32> to vector<8x16xf32>
    %797 = vector.extract_strided_slice %588 {offsets = [0, 0], sizes = [8, 240], strides = [1, 1]} : vector<8x256xf32> to vector<8x240xf32>
    %798 = tpu.concatenate %796, %797 in 1 : vector<8x16xf32>, vector<8x240xf32> -> vector<8x256xf32>
    %799 = vector.extract_strided_slice %0 {offsets = [1, 0], sizes = [1, 256], strides = [1, 1]} : vector<9x256xf32> to vector<1x256xf32>
    %800 = vector.broadcast %799 : vector<1x256xf32> to vector<8x256xf32>
    %801 = arith.mulf %798, %800 : vector<8x256xf32>
    %802 = vector.extract_strided_slice %588 {offsets = [0, 241], sizes = [8, 15], strides = [1, 1]} : vector<8x256xf32> to vector<8x15xf32>
    %803 = vector.extract_strided_slice %588 {offsets = [0, 0], sizes = [8, 241], strides = [1, 1]} : vector<8x256xf32> to vector<8x241xf32>
    %804 = tpu.concatenate %802, %803 in 1 : vector<8x15xf32>, vector<8x241xf32> -> vector<8x256xf32>
    %805 = vector.extract_strided_slice %0 {offsets = [2, 0], sizes = [1, 256], strides = [1, 1]} : vector<9x256xf32> to vector<1x256xf32>
    %806 = vector.broadcast %805 : vector<1x256xf32> to vector<8x256xf32>
    %807 = arith.mulf %804, %806 : vector<8x256xf32>
    %808 = vector.extract_strided_slice %588 {offsets = [0, 255], sizes = [8, 1], strides = [1, 1]} : vector<8x256xf32> to vector<8x1xf32>
    %809 = vector.extract_strided_slice %588 {offsets = [0, 0], sizes = [8, 255], strides = [1, 1]} : vector<8x256xf32> to vector<8x255xf32>
    %810 = tpu.concatenate %808, %809 in 1 : vector<8x1xf32>, vector<8x255xf32> -> vector<8x256xf32>
    %811 = vector.extract_strided_slice %0 {offsets = [3, 0], sizes = [1, 256], strides = [1, 1]} : vector<9x256xf32> to vector<1x256xf32>
    %812 = vector.broadcast %811 : vector<1x256xf32> to vector<8x256xf32>
    %813 = arith.mulf %810, %812 : vector<8x256xf32>
    %814 = vector.extract_strided_slice %0 {offsets = [4, 0], sizes = [1, 256], strides = [1, 1]} : vector<9x256xf32> to vector<1x256xf32>
    %815 = vector.broadcast %814 : vector<1x256xf32> to vector<8x256xf32>
    %816 = arith.mulf %588, %815 : vector<8x256xf32>
    %817 = vector.extract_strided_slice %588 {offsets = [0, 1], sizes = [8, 255], strides = [1, 1]} : vector<8x256xf32> to vector<8x255xf32>
    %818 = vector.extract_strided_slice %588 {offsets = [0, 0], sizes = [8, 1], strides = [1, 1]} : vector<8x256xf32> to vector<8x1xf32>
    %819 = tpu.concatenate %817, %818 in 1 : vector<8x255xf32>, vector<8x1xf32> -> vector<8x256xf32>
    %820 = vector.extract_strided_slice %0 {offsets = [5, 0], sizes = [1, 256], strides = [1, 1]} : vector<9x256xf32> to vector<1x256xf32>
    %821 = vector.broadcast %820 : vector<1x256xf32> to vector<8x256xf32>
    %822 = arith.mulf %819, %821 : vector<8x256xf32>
    %823 = vector.extract_strided_slice %588 {offsets = [0, 15], sizes = [8, 241], strides = [1, 1]} : vector<8x256xf32> to vector<8x241xf32>
    %824 = vector.extract_strided_slice %588 {offsets = [0, 0], sizes = [8, 15], strides = [1, 1]} : vector<8x256xf32> to vector<8x15xf32>
    %825 = tpu.concatenate %823, %824 in 1 : vector<8x241xf32>, vector<8x15xf32> -> vector<8x256xf32>
    %826 = vector.extract_strided_slice %0 {offsets = [6, 0], sizes = [1, 256], strides = [1, 1]} : vector<9x256xf32> to vector<1x256xf32>
    %827 = vector.broadcast %826 : vector<1x256xf32> to vector<8x256xf32>
    %828 = arith.mulf %825, %827 : vector<8x256xf32>
    %829 = vector.extract_strided_slice %588 {offsets = [0, 16], sizes = [8, 240], strides = [1, 1]} : vector<8x256xf32> to vector<8x240xf32>
    %830 = vector.extract_strided_slice %588 {offsets = [0, 0], sizes = [8, 16], strides = [1, 1]} : vector<8x256xf32> to vector<8x16xf32>
    %831 = tpu.concatenate %829, %830 in 1 : vector<8x240xf32>, vector<8x16xf32> -> vector<8x256xf32>
    %832 = vector.extract_strided_slice %0 {offsets = [7, 0], sizes = [1, 256], strides = [1, 1]} : vector<9x256xf32> to vector<1x256xf32>
    %833 = vector.broadcast %832 : vector<1x256xf32> to vector<8x256xf32>
    %834 = arith.mulf %831, %833 : vector<8x256xf32>
    %835 = vector.extract_strided_slice %588 {offsets = [0, 17], sizes = [8, 239], strides = [1, 1]} : vector<8x256xf32> to vector<8x239xf32>
    %836 = vector.extract_strided_slice %588 {offsets = [0, 0], sizes = [8, 17], strides = [1, 1]} : vector<8x256xf32> to vector<8x17xf32>
    %837 = tpu.concatenate %835, %836 in 1 : vector<8x239xf32>, vector<8x17xf32> -> vector<8x256xf32>
    %838 = vector.extract_strided_slice %0 {offsets = [8, 0], sizes = [1, 256], strides = [1, 1]} : vector<9x256xf32> to vector<1x256xf32>
    %839 = vector.broadcast %838 : vector<1x256xf32> to vector<8x256xf32>
    %840 = arith.mulf %837, %839 : vector<8x256xf32>
    %841 = tpu.concatenate %795, %801, %807, %813, %816, %822, %828, %834, %840 in 0 : vector<8x256xf32>, vector<8x256xf32>, vector<8x256xf32>, vector<8x256xf32>, vector<8x256xf32>, vector<8x256xf32>, vector<8x256xf32>, vector<8x256xf32>, vector<8x256xf32> -> vector<72x256xf32>
    %842 = tpu.concatenate %789, %841 in 0 : vector<72x256xf32>, vector<72x256xf32> -> vector<144x256xf32>
    %843 = arith.truncf %842 : vector<144x256xf32> to vector<144x256xbf16>
    %cst_73 = arith.constant dense<0.000000e+00> : vector<32x256xf32>
    %844 = tpu.matmul %316, %843, %cst_73 {dimension_numbers = #tpu.dot_dimension_numbers<[1], [0], [0], [1], [0, 0, 1, 1], [], []>} : vector<32x144xbf16>, vector<144x256xbf16>, vector<32x256xf32> -> vector<32x256xf32>
    %845 = vector.broadcast %318 : vector<32x1xf32> to vector<32x256xf32>
    %846 = arith.addf %844, %845 : vector<32x256xf32>
    %847 = vector.extract_strided_slice %846 {offsets = [0, 0], sizes = [8, 256], strides = [1, 1]} : vector<32x256xf32> to vector<8x256xf32>
    %848 = arith.negf %847 : vector<8x256xf32>
    %849 = math.exp %848 : vector<8x256xf32>
    %cst_74 = arith.constant 1.000000e+00 : f32
    %850 = vector.broadcast %cst_74 : f32 to vector<8x256xf32>
    %851 = arith.addf %850, %849 : vector<8x256xf32>
    %852 = arith.divf %850, %851 : vector<8x256xf32>
    %853 = vector.extract_strided_slice %846 {offsets = [8, 0], sizes = [8, 256], strides = [1, 1]} : vector<32x256xf32> to vector<8x256xf32>
    %854 = arith.negf %853 : vector<8x256xf32>
    %855 = math.exp %854 : vector<8x256xf32>
    %cst_75 = arith.constant 1.000000e+00 : f32
    %856 = vector.broadcast %cst_75 : f32 to vector<8x256xf32>
    %857 = arith.addf %856, %855 : vector<8x256xf32>
    %858 = arith.divf %856, %857 : vector<8x256xf32>
    %859 = vector.extract_strided_slice %846 {offsets = [16, 0], sizes = [8, 256], strides = [1, 1]} : vector<32x256xf32> to vector<8x256xf32>
    %860 = arith.negf %859 : vector<8x256xf32>
    %861 = math.exp %860 : vector<8x256xf32>
    %cst_76 = arith.constant 1.000000e+00 : f32
    %862 = vector.broadcast %cst_76 : f32 to vector<8x256xf32>
    %863 = arith.addf %862, %861 : vector<8x256xf32>
    %864 = arith.divf %862, %863 : vector<8x256xf32>
    %865 = vector.extract_strided_slice %846 {offsets = [24, 0], sizes = [8, 256], strides = [1, 1]} : vector<32x256xf32> to vector<8x256xf32>
    %866 = math.tanh %865 : vector<8x256xf32>
    %867 = arith.mulf %858, %586 : vector<8x256xf32>
    %868 = arith.mulf %852, %866 : vector<8x256xf32>
    %869 = arith.addf %867, %868 : vector<8x256xf32>
    %870 = math.tanh %869 : vector<8x256xf32>
    %871 = arith.mulf %864, %870 : vector<8x256xf32>
    %c1_77 = arith.constant 1 : index
    %c0_78 = arith.constant 0 : index
    %c0_79 = arith.constant 0 : index
    %872 = vector.load %arg13[%c1_77, %c0_78, %c0_79] : memref<2x8x256xf32, #tpu.memory_space<vmem>>, vector<1x8x256xf32>
    %873 = vector.shape_cast %872 : vector<1x8x256xf32> to vector<8x256xf32>
    %874 = vector.shape_cast %871 : vector<8x256xf32> to vector<1x8x256xf32>
    tpu.vector_store %arg13[%c1_77, %c0_78, %c0_79], %874 {strides = array<i32>} : memref<2x8x256xf32, #tpu.memory_space<vmem>>, vector<1x8x256xf32>,
    %875 = vector.extract_strided_slice %871 {offsets = [0, 1], sizes = [8, 255], strides = [1, 1]} : vector<8x256xf32> to vector<8x255xf32>
    %876 = vector.extract_strided_slice %871 {offsets = [0, 0], sizes = [8, 1], strides = [1, 1]} : vector<8x256xf32> to vector<8x1xf32>
    %877 = tpu.concatenate %875, %876 in 1 : vector<8x255xf32>, vector<8x1xf32> -> vector<8x256xf32>
    %878 = arith.maximumf %871, %877 : vector<8x256xf32>
    %879 = vector.extract_strided_slice %878 {offsets = [0, 16], sizes = [8, 240], strides = [1, 1]} : vector<8x256xf32> to vector<8x240xf32>
    %880 = vector.extract_strided_slice %878 {offsets = [0, 0], sizes = [8, 16], strides = [1, 1]} : vector<8x256xf32> to vector<8x16xf32>
    %881 = tpu.concatenate %879, %880 in 1 : vector<8x240xf32>, vector<8x16xf32> -> vector<8x256xf32>
    %882 = arith.maximumf %878, %881 : vector<8x256xf32>
    %cst_80 = arith.constant dense<0.000000e+00> : vector<8x64xf32>
    %883 = tpu.matmul %882, %319, %cst_80 {dimension_numbers = #tpu.dot_dimension_numbers<[1], [0], [0], [1], [0, 0, 1, 1], [], []>} : vector<8x256xf32>, vector<256x64xf32>, vector<8x64xf32> -> vector<8x64xf32>
    %c1_81 = arith.constant 1 : index
    %c0_82 = arith.constant 0 : index
    %c0_83 = arith.constant 0 : index
    %884 = vector.load %arg14[%c1_81, %c0_82, %c0_83] : memref<2x8x64xf32, #tpu.memory_space<vmem>>, vector<1x8x64xf32>
    %885 = vector.shape_cast %884 : vector<1x8x64xf32> to vector<8x64xf32>
    %886 = vector.shape_cast %883 : vector<8x64xf32> to vector<1x8x64xf32>
    tpu.vector_store %arg14[%c1_81, %c0_82, %c0_83], %886 {strides = array<i32>} : memref<2x8x64xf32, #tpu.memory_space<vmem>>, vector<1x8x64xf32>,
    return
  }
}

module attributes {stable_mosaic.version = 11 : i64} {
  func.func @kernel(%arg0: memref<2x8x64xf32, #tpu.memory_space<vmem>>, %arg1: memref<9x64xf32, #tpu.memory_space<vmem>>, %arg2: memref<64x16xf32, #tpu.memory_space<vmem>>, %arg3: memref<16x72xf32, #tpu.memory_space<vmem>>, %arg4: memref<16x1xf32, #tpu.memory_space<vmem>>, %arg5: memref<16x1xf32, #tpu.memory_space<vmem>>, %arg6: memref<16x144xf32, #tpu.memory_space<vmem>>, %arg7: memref<16x1xf32, #tpu.memory_space<vmem>>, %arg8: memref<16x1xf32, #tpu.memory_space<vmem>>, %arg9: memref<64x288xf32, #tpu.memory_space<vmem>>, %arg10: memref<64x1xf32, #tpu.memory_space<vmem>>, %arg11: memref<64x288xf32, #tpu.memory_space<vmem>>, %arg12: memref<64x1xf32, #tpu.memory_space<vmem>>, %arg13: memref<2x16x64xf32, #tpu.memory_space<vmem>>, %arg14: memref<2x16x16xf32, #tpu.memory_space<vmem>>) attributes {dimension_semantics = [], scalar_prefetch = 0 : i64, scratch_operands = 0 : i64, tpu.core_type = #tpu.core_type<tc>} {
    %c0 = arith.constant 0 : index
    %c0_0 = arith.constant 0 : index
    %0 = vector.load %arg1[%c0, %c0_0] : memref<9x64xf32, #tpu.memory_space<vmem>>, vector<9x64xf32>
    %c0_1 = arith.constant 0 : index
    %c0_2 = arith.constant 0 : index
    %c0_3 = arith.constant 0 : index
    %1 = vector.load %arg0[%c0_1, %c0_2, %c0_3] : memref<2x8x64xf32, #tpu.memory_space<vmem>>, vector<1x8x64xf32>
    %2 = vector.shape_cast %1 : vector<1x8x64xf32> to vector<8x64xf32>
    %c1 = arith.constant 1 : index
    %c0_4 = arith.constant 0 : index
    %c0_5 = arith.constant 0 : index
    %3 = vector.load %arg0[%c1, %c0_4, %c0_5] : memref<2x8x64xf32, #tpu.memory_space<vmem>>, vector<1x8x64xf32>
    %4 = vector.shape_cast %3 : vector<1x8x64xf32> to vector<8x64xf32>
    %c0_6 = arith.constant 0 : index
    %c0_7 = arith.constant 0 : index
    %5 = vector.load %arg3[%c0_6, %c0_7] : memref<16x72xf32, #tpu.memory_space<vmem>>, vector<16x72xf32>
    %6 = arith.truncf %5 : vector<16x72xf32> to vector<16x72xbf16>
    %7 = vector.extract_strided_slice %2 {offsets = [0, 55], sizes = [8, 9], strides = [1, 1]} : vector<8x64xf32> to vector<8x9xf32>
    %8 = vector.extract_strided_slice %2 {offsets = [0, 0], sizes = [8, 55], strides = [1, 1]} : vector<8x64xf32> to vector<8x55xf32>
    %9 = tpu.concatenate %7, %8 in 1 : vector<8x9xf32>, vector<8x55xf32> -> vector<8x64xf32>
    %10 = vector.extract_strided_slice %0 {offsets = [0, 0], sizes = [1, 64], strides = [1, 1]} : vector<9x64xf32> to vector<1x64xf32>
    %11 = vector.broadcast %10 : vector<1x64xf32> to vector<8x64xf32>
    %12 = arith.mulf %9, %11 : vector<8x64xf32>
    %13 = vector.extract_strided_slice %2 {offsets = [0, 56], sizes = [8, 8], strides = [1, 1]} : vector<8x64xf32> to vector<8x8xf32>
    %14 = vector.extract_strided_slice %2 {offsets = [0, 0], sizes = [8, 56], strides = [1, 1]} : vector<8x64xf32> to vector<8x56xf32>
    %15 = tpu.concatenate %13, %14 in 1 : vector<8x8xf32>, vector<8x56xf32> -> vector<8x64xf32>
    %16 = vector.extract_strided_slice %0 {offsets = [1, 0], sizes = [1, 64], strides = [1, 1]} : vector<9x64xf32> to vector<1x64xf32>
    %17 = vector.broadcast %16 : vector<1x64xf32> to vector<8x64xf32>
    %18 = arith.mulf %15, %17 : vector<8x64xf32>
    %19 = vector.extract_strided_slice %2 {offsets = [0, 57], sizes = [8, 7], strides = [1, 1]} : vector<8x64xf32> to vector<8x7xf32>
    %20 = vector.extract_strided_slice %2 {offsets = [0, 0], sizes = [8, 57], strides = [1, 1]} : vector<8x64xf32> to vector<8x57xf32>
    %21 = tpu.concatenate %19, %20 in 1 : vector<8x7xf32>, vector<8x57xf32> -> vector<8x64xf32>
    %22 = vector.extract_strided_slice %0 {offsets = [2, 0], sizes = [1, 64], strides = [1, 1]} : vector<9x64xf32> to vector<1x64xf32>
    %23 = vector.broadcast %22 : vector<1x64xf32> to vector<8x64xf32>
    %24 = arith.mulf %21, %23 : vector<8x64xf32>
    %25 = vector.extract_strided_slice %2 {offsets = [0, 63], sizes = [8, 1], strides = [1, 1]} : vector<8x64xf32> to vector<8x1xf32>
    %26 = vector.extract_strided_slice %2 {offsets = [0, 0], sizes = [8, 63], strides = [1, 1]} : vector<8x64xf32> to vector<8x63xf32>
    %27 = tpu.concatenate %25, %26 in 1 : vector<8x1xf32>, vector<8x63xf32> -> vector<8x64xf32>
    %28 = vector.extract_strided_slice %0 {offsets = [3, 0], sizes = [1, 64], strides = [1, 1]} : vector<9x64xf32> to vector<1x64xf32>
    %29 = vector.broadcast %28 : vector<1x64xf32> to vector<8x64xf32>
    %30 = arith.mulf %27, %29 : vector<8x64xf32>
    %31 = vector.extract_strided_slice %0 {offsets = [4, 0], sizes = [1, 64], strides = [1, 1]} : vector<9x64xf32> to vector<1x64xf32>
    %32 = vector.broadcast %31 : vector<1x64xf32> to vector<8x64xf32>
    %33 = arith.mulf %2, %32 : vector<8x64xf32>
    %34 = vector.extract_strided_slice %2 {offsets = [0, 1], sizes = [8, 63], strides = [1, 1]} : vector<8x64xf32> to vector<8x63xf32>
    %35 = vector.extract_strided_slice %2 {offsets = [0, 0], sizes = [8, 1], strides = [1, 1]} : vector<8x64xf32> to vector<8x1xf32>
    %36 = tpu.concatenate %34, %35 in 1 : vector<8x63xf32>, vector<8x1xf32> -> vector<8x64xf32>
    %37 = vector.extract_strided_slice %0 {offsets = [5, 0], sizes = [1, 64], strides = [1, 1]} : vector<9x64xf32> to vector<1x64xf32>
    %38 = vector.broadcast %37 : vector<1x64xf32> to vector<8x64xf32>
    %39 = arith.mulf %36, %38 : vector<8x64xf32>
    %40 = vector.extract_strided_slice %2 {offsets = [0, 7], sizes = [8, 57], strides = [1, 1]} : vector<8x64xf32> to vector<8x57xf32>
    %41 = vector.extract_strided_slice %2 {offsets = [0, 0], sizes = [8, 7], strides = [1, 1]} : vector<8x64xf32> to vector<8x7xf32>
    %42 = tpu.concatenate %40, %41 in 1 : vector<8x57xf32>, vector<8x7xf32> -> vector<8x64xf32>
    %43 = vector.extract_strided_slice %0 {offsets = [6, 0], sizes = [1, 64], strides = [1, 1]} : vector<9x64xf32> to vector<1x64xf32>
    %44 = vector.broadcast %43 : vector<1x64xf32> to vector<8x64xf32>
    %45 = arith.mulf %42, %44 : vector<8x64xf32>
    %46 = vector.extract_strided_slice %2 {offsets = [0, 8], sizes = [8, 56], strides = [1, 1]} : vector<8x64xf32> to vector<8x56xf32>
    %47 = vector.extract_strided_slice %2 {offsets = [0, 0], sizes = [8, 8], strides = [1, 1]} : vector<8x64xf32> to vector<8x8xf32>
    %48 = tpu.concatenate %46, %47 in 1 : vector<8x56xf32>, vector<8x8xf32> -> vector<8x64xf32>
    %49 = vector.extract_strided_slice %0 {offsets = [7, 0], sizes = [1, 64], strides = [1, 1]} : vector<9x64xf32> to vector<1x64xf32>
    %50 = vector.broadcast %49 : vector<1x64xf32> to vector<8x64xf32>
    %51 = arith.mulf %48, %50 : vector<8x64xf32>
    %52 = vector.extract_strided_slice %2 {offsets = [0, 9], sizes = [8, 55], strides = [1, 1]} : vector<8x64xf32> to vector<8x55xf32>
    %53 = vector.extract_strided_slice %2 {offsets = [0, 0], sizes = [8, 9], strides = [1, 1]} : vector<8x64xf32> to vector<8x9xf32>
    %54 = tpu.concatenate %52, %53 in 1 : vector<8x55xf32>, vector<8x9xf32> -> vector<8x64xf32>
    %55 = vector.extract_strided_slice %0 {offsets = [8, 0], sizes = [1, 64], strides = [1, 1]} : vector<9x64xf32> to vector<1x64xf32>
    %56 = vector.broadcast %55 : vector<1x64xf32> to vector<8x64xf32>
    %57 = arith.mulf %54, %56 : vector<8x64xf32>
    %58 = tpu.concatenate %12, %18, %24, %30, %33, %39, %45, %51, %57 in 0 : vector<8x64xf32>, vector<8x64xf32>, vector<8x64xf32>, vector<8x64xf32>, vector<8x64xf32>, vector<8x64xf32>, vector<8x64xf32>, vector<8x64xf32>, vector<8x64xf32> -> vector<72x64xf32>
    %59 = arith.truncf %58 : vector<72x64xf32> to vector<72x64xbf16>
    %cst = arith.constant dense<0.000000e+00> : vector<16x64xf32>
    %60 = tpu.matmul %6, %59, %cst {dimension_numbers = #tpu.dot_dimension_numbers<[1], [0], [0], [1], [0, 0, 1, 1], [], []>} : vector<16x72xbf16>, vector<72x64xbf16>, vector<16x64xf32> -> vector<16x64xf32>
    %61 = vector.extract_strided_slice %4 {offsets = [0, 55], sizes = [8, 9], strides = [1, 1]} : vector<8x64xf32> to vector<8x9xf32>
    %62 = vector.extract_strided_slice %4 {offsets = [0, 0], sizes = [8, 55], strides = [1, 1]} : vector<8x64xf32> to vector<8x55xf32>
    %63 = tpu.concatenate %61, %62 in 1 : vector<8x9xf32>, vector<8x55xf32> -> vector<8x64xf32>
    %64 = vector.extract_strided_slice %0 {offsets = [0, 0], sizes = [1, 64], strides = [1, 1]} : vector<9x64xf32> to vector<1x64xf32>
    %65 = vector.broadcast %64 : vector<1x64xf32> to vector<8x64xf32>
    %66 = arith.mulf %63, %65 : vector<8x64xf32>
    %67 = vector.extract_strided_slice %4 {offsets = [0, 56], sizes = [8, 8], strides = [1, 1]} : vector<8x64xf32> to vector<8x8xf32>
    %68 = vector.extract_strided_slice %4 {offsets = [0, 0], sizes = [8, 56], strides = [1, 1]} : vector<8x64xf32> to vector<8x56xf32>
    %69 = tpu.concatenate %67, %68 in 1 : vector<8x8xf32>, vector<8x56xf32> -> vector<8x64xf32>
    %70 = vector.extract_strided_slice %0 {offsets = [1, 0], sizes = [1, 64], strides = [1, 1]} : vector<9x64xf32> to vector<1x64xf32>
    %71 = vector.broadcast %70 : vector<1x64xf32> to vector<8x64xf32>
    %72 = arith.mulf %69, %71 : vector<8x64xf32>
    %73 = vector.extract_strided_slice %4 {offsets = [0, 57], sizes = [8, 7], strides = [1, 1]} : vector<8x64xf32> to vector<8x7xf32>
    %74 = vector.extract_strided_slice %4 {offsets = [0, 0], sizes = [8, 57], strides = [1, 1]} : vector<8x64xf32> to vector<8x57xf32>
    %75 = tpu.concatenate %73, %74 in 1 : vector<8x7xf32>, vector<8x57xf32> -> vector<8x64xf32>
    %76 = vector.extract_strided_slice %0 {offsets = [2, 0], sizes = [1, 64], strides = [1, 1]} : vector<9x64xf32> to vector<1x64xf32>
    %77 = vector.broadcast %76 : vector<1x64xf32> to vector<8x64xf32>
    %78 = arith.mulf %75, %77 : vector<8x64xf32>
    %79 = vector.extract_strided_slice %4 {offsets = [0, 63], sizes = [8, 1], strides = [1, 1]} : vector<8x64xf32> to vector<8x1xf32>
    %80 = vector.extract_strided_slice %4 {offsets = [0, 0], sizes = [8, 63], strides = [1, 1]} : vector<8x64xf32> to vector<8x63xf32>
    %81 = tpu.concatenate %79, %80 in 1 : vector<8x1xf32>, vector<8x63xf32> -> vector<8x64xf32>
    %82 = vector.extract_strided_slice %0 {offsets = [3, 0], sizes = [1, 64], strides = [1, 1]} : vector<9x64xf32> to vector<1x64xf32>
    %83 = vector.broadcast %82 : vector<1x64xf32> to vector<8x64xf32>
    %84 = arith.mulf %81, %83 : vector<8x64xf32>
    %85 = vector.extract_strided_slice %0 {offsets = [4, 0], sizes = [1, 64], strides = [1, 1]} : vector<9x64xf32> to vector<1x64xf32>
    %86 = vector.broadcast %85 : vector<1x64xf32> to vector<8x64xf32>
    %87 = arith.mulf %4, %86 : vector<8x64xf32>
    %88 = vector.extract_strided_slice %4 {offsets = [0, 1], sizes = [8, 63], strides = [1, 1]} : vector<8x64xf32> to vector<8x63xf32>
    %89 = vector.extract_strided_slice %4 {offsets = [0, 0], sizes = [8, 1], strides = [1, 1]} : vector<8x64xf32> to vector<8x1xf32>
    %90 = tpu.concatenate %88, %89 in 1 : vector<8x63xf32>, vector<8x1xf32> -> vector<8x64xf32>
    %91 = vector.extract_strided_slice %0 {offsets = [5, 0], sizes = [1, 64], strides = [1, 1]} : vector<9x64xf32> to vector<1x64xf32>
    %92 = vector.broadcast %91 : vector<1x64xf32> to vector<8x64xf32>
    %93 = arith.mulf %90, %92 : vector<8x64xf32>
    %94 = vector.extract_strided_slice %4 {offsets = [0, 7], sizes = [8, 57], strides = [1, 1]} : vector<8x64xf32> to vector<8x57xf32>
    %95 = vector.extract_strided_slice %4 {offsets = [0, 0], sizes = [8, 7], strides = [1, 1]} : vector<8x64xf32> to vector<8x7xf32>
    %96 = tpu.concatenate %94, %95 in 1 : vector<8x57xf32>, vector<8x7xf32> -> vector<8x64xf32>
    %97 = vector.extract_strided_slice %0 {offsets = [6, 0], sizes = [1, 64], strides = [1, 1]} : vector<9x64xf32> to vector<1x64xf32>
    %98 = vector.broadcast %97 : vector<1x64xf32> to vector<8x64xf32>
    %99 = arith.mulf %96, %98 : vector<8x64xf32>
    %100 = vector.extract_strided_slice %4 {offsets = [0, 8], sizes = [8, 56], strides = [1, 1]} : vector<8x64xf32> to vector<8x56xf32>
    %101 = vector.extract_strided_slice %4 {offsets = [0, 0], sizes = [8, 8], strides = [1, 1]} : vector<8x64xf32> to vector<8x8xf32>
    %102 = tpu.concatenate %100, %101 in 1 : vector<8x56xf32>, vector<8x8xf32> -> vector<8x64xf32>
    %103 = vector.extract_strided_slice %0 {offsets = [7, 0], sizes = [1, 64], strides = [1, 1]} : vector<9x64xf32> to vector<1x64xf32>
    %104 = vector.broadcast %103 : vector<1x64xf32> to vector<8x64xf32>
    %105 = arith.mulf %102, %104 : vector<8x64xf32>
    %106 = vector.extract_strided_slice %4 {offsets = [0, 9], sizes = [8, 55], strides = [1, 1]} : vector<8x64xf32> to vector<8x55xf32>
    %107 = vector.extract_strided_slice %4 {offsets = [0, 0], sizes = [8, 9], strides = [1, 1]} : vector<8x64xf32> to vector<8x9xf32>
    %108 = tpu.concatenate %106, %107 in 1 : vector<8x55xf32>, vector<8x9xf32> -> vector<8x64xf32>
    %109 = vector.extract_strided_slice %0 {offsets = [8, 0], sizes = [1, 64], strides = [1, 1]} : vector<9x64xf32> to vector<1x64xf32>
    %110 = vector.broadcast %109 : vector<1x64xf32> to vector<8x64xf32>
    %111 = arith.mulf %108, %110 : vector<8x64xf32>
    %112 = tpu.concatenate %66, %72, %78, %84, %87, %93, %99, %105, %111 in 0 : vector<8x64xf32>, vector<8x64xf32>, vector<8x64xf32>, vector<8x64xf32>, vector<8x64xf32>, vector<8x64xf32>, vector<8x64xf32>, vector<8x64xf32>, vector<8x64xf32> -> vector<72x64xf32>
    %113 = arith.truncf %112 : vector<72x64xf32> to vector<72x64xbf16>
    %cst_8 = arith.constant dense<0.000000e+00> : vector<16x64xf32>
    %114 = tpu.matmul %6, %113, %cst_8 {dimension_numbers = #tpu.dot_dimension_numbers<[1], [0], [0], [1], [0, 0, 1, 1], [], []>} : vector<16x72xbf16>, vector<72x64xbf16>, vector<16x64xf32> -> vector<16x64xf32>
    %cst_9 = arith.constant dense<0.000000e+00> : vector<16xf32>
    %115 = vector.multi_reduction <add>, %60, %cst_9 [1] : vector<16x64xf32> to vector<16xf32>
    %116 = vector.shape_cast %115 : vector<16xf32> to vector<16x1xf32>
    %cst_10 = arith.constant 0.000000e+00 : f32
    %117 = vector.broadcast %cst_10 : f32 to vector<16x1xf32>
    %118 = arith.addf %117, %116 : vector<16x1xf32>
    %cst_11 = arith.constant dense<0.000000e+00> : vector<16xf32>
    %119 = vector.multi_reduction <add>, %114, %cst_11 [1] : vector<16x64xf32> to vector<16xf32>
    %120 = vector.shape_cast %119 : vector<16xf32> to vector<16x1xf32>
    %121 = arith.addf %118, %120 : vector<16x1xf32>
    %cst_12 = arith.constant 7.812500e-03 : f32
    %122 = vector.broadcast %cst_12 : f32 to vector<16x1xf32>
    %123 = arith.mulf %121, %122 : vector<16x1xf32>
    %124 = vector.broadcast %123 : vector<16x1xf32> to vector<16x64xf32>
    %125 = arith.subf %60, %124 : vector<16x64xf32>
    %126 = arith.mulf %125, %125 : vector<16x64xf32>
    %cst_13 = arith.constant dense<0.000000e+00> : vector<16xf32>
    %127 = vector.multi_reduction <add>, %126, %cst_13 [1] : vector<16x64xf32> to vector<16xf32>
    %128 = vector.shape_cast %127 : vector<16xf32> to vector<16x1xf32>
    %cst_14 = arith.constant 0.000000e+00 : f32
    %129 = vector.broadcast %cst_14 : f32 to vector<16x1xf32>
    %130 = arith.addf %129, %128 : vector<16x1xf32>
    %131 = vector.broadcast %123 : vector<16x1xf32> to vector<16x64xf32>
    %132 = arith.subf %114, %131 : vector<16x64xf32>
    %133 = arith.mulf %132, %132 : vector<16x64xf32>
    %cst_15 = arith.constant dense<0.000000e+00> : vector<16xf32>
    %134 = vector.multi_reduction <add>, %133, %cst_15 [1] : vector<16x64xf32> to vector<16xf32>
    %135 = vector.shape_cast %134 : vector<16xf32> to vector<16x1xf32>
    %136 = arith.addf %130, %135 : vector<16x1xf32>
    %cst_16 = arith.constant 7.812500e-03 : f32
    %137 = vector.broadcast %cst_16 : f32 to vector<16x1xf32>
    %138 = arith.mulf %136, %137 : vector<16x1xf32>
    %c0_17 = arith.constant 0 : index
    %c0_18 = arith.constant 0 : index
    %139 = vector.load %arg4[%c0_17, %c0_18] : memref<16x1xf32, #tpu.memory_space<vmem>>, vector<16x1xf32>
    %cst_19 = arith.constant 9.99999974E-6 : f32
    %140 = vector.broadcast %cst_19 : f32 to vector<16x1xf32>
    %141 = arith.addf %138, %140 : vector<16x1xf32>
    %142 = math.rsqrt %141 : vector<16x1xf32>
    %143 = arith.mulf %139, %142 : vector<16x1xf32>
    %c0_20 = arith.constant 0 : index
    %c0_21 = arith.constant 0 : index
    %144 = vector.load %arg5[%c0_20, %c0_21] : memref<16x1xf32, #tpu.memory_space<vmem>>, vector<16x1xf32>
    %145 = arith.mulf %123, %143 : vector<16x1xf32>
    %146 = arith.subf %144, %145 : vector<16x1xf32>
    %147 = vector.broadcast %143 : vector<16x1xf32> to vector<16x64xf32>
    %148 = arith.mulf %60, %147 : vector<16x64xf32>
    %149 = vector.broadcast %146 : vector<16x1xf32> to vector<16x64xf32>
    %150 = arith.addf %148, %149 : vector<16x64xf32>
    %cst_22 = arith.constant 0.000000e+00 : f32
    %151 = vector.broadcast %cst_22 : f32 to vector<16x64xf32>
    %152 = arith.maximumf %150, %151 : vector<16x64xf32>
    %153 = vector.broadcast %143 : vector<16x1xf32> to vector<16x64xf32>
    %154 = arith.mulf %114, %153 : vector<16x64xf32>
    %155 = vector.broadcast %146 : vector<16x1xf32> to vector<16x64xf32>
    %156 = arith.addf %154, %155 : vector<16x64xf32>
    %cst_23 = arith.constant 0.000000e+00 : f32
    %157 = vector.broadcast %cst_23 : f32 to vector<16x64xf32>
    %158 = arith.maximumf %156, %157 : vector<16x64xf32>
    %c0_24 = arith.constant 0 : index
    %c0_25 = arith.constant 0 : index
    %159 = vector.load %arg6[%c0_24, %c0_25] : memref<16x144xf32, #tpu.memory_space<vmem>>, vector<16x144xf32>
    %160 = arith.truncf %159 : vector<16x144xf32> to vector<16x144xbf16>
    %161 = vector.extract_strided_slice %152 {offsets = [0, 55], sizes = [16, 9], strides = [1, 1]} : vector<16x64xf32> to vector<16x9xf32>
    %162 = vector.extract_strided_slice %152 {offsets = [0, 0], sizes = [16, 55], strides = [1, 1]} : vector<16x64xf32> to vector<16x55xf32>
    %163 = tpu.concatenate %161, %162 in 1 : vector<16x9xf32>, vector<16x55xf32> -> vector<16x64xf32>
    %164 = vector.extract_strided_slice %0 {offsets = [0, 0], sizes = [1, 64], strides = [1, 1]} : vector<9x64xf32> to vector<1x64xf32>
    %165 = vector.broadcast %164 : vector<1x64xf32> to vector<16x64xf32>
    %166 = arith.mulf %163, %165 : vector<16x64xf32>
    %167 = vector.extract_strided_slice %152 {offsets = [0, 56], sizes = [16, 8], strides = [1, 1]} : vector<16x64xf32> to vector<16x8xf32>
    %168 = vector.extract_strided_slice %152 {offsets = [0, 0], sizes = [16, 56], strides = [1, 1]} : vector<16x64xf32> to vector<16x56xf32>
    %169 = tpu.concatenate %167, %168 in 1 : vector<16x8xf32>, vector<16x56xf32> -> vector<16x64xf32>
    %170 = vector.extract_strided_slice %0 {offsets = [1, 0], sizes = [1, 64], strides = [1, 1]} : vector<9x64xf32> to vector<1x64xf32>
    %171 = vector.broadcast %170 : vector<1x64xf32> to vector<16x64xf32>
    %172 = arith.mulf %169, %171 : vector<16x64xf32>
    %173 = vector.extract_strided_slice %152 {offsets = [0, 57], sizes = [16, 7], strides = [1, 1]} : vector<16x64xf32> to vector<16x7xf32>
    %174 = vector.extract_strided_slice %152 {offsets = [0, 0], sizes = [16, 57], strides = [1, 1]} : vector<16x64xf32> to vector<16x57xf32>
    %175 = tpu.concatenate %173, %174 in 1 : vector<16x7xf32>, vector<16x57xf32> -> vector<16x64xf32>
    %176 = vector.extract_strided_slice %0 {offsets = [2, 0], sizes = [1, 64], strides = [1, 1]} : vector<9x64xf32> to vector<1x64xf32>
    %177 = vector.broadcast %176 : vector<1x64xf32> to vector<16x64xf32>
    %178 = arith.mulf %175, %177 : vector<16x64xf32>
    %179 = vector.extract_strided_slice %152 {offsets = [0, 63], sizes = [16, 1], strides = [1, 1]} : vector<16x64xf32> to vector<16x1xf32>
    %180 = vector.extract_strided_slice %152 {offsets = [0, 0], sizes = [16, 63], strides = [1, 1]} : vector<16x64xf32> to vector<16x63xf32>
    %181 = tpu.concatenate %179, %180 in 1 : vector<16x1xf32>, vector<16x63xf32> -> vector<16x64xf32>
    %182 = vector.extract_strided_slice %0 {offsets = [3, 0], sizes = [1, 64], strides = [1, 1]} : vector<9x64xf32> to vector<1x64xf32>
    %183 = vector.broadcast %182 : vector<1x64xf32> to vector<16x64xf32>
    %184 = arith.mulf %181, %183 : vector<16x64xf32>
    %185 = vector.extract_strided_slice %0 {offsets = [4, 0], sizes = [1, 64], strides = [1, 1]} : vector<9x64xf32> to vector<1x64xf32>
    %186 = vector.broadcast %185 : vector<1x64xf32> to vector<16x64xf32>
    %187 = arith.mulf %152, %186 : vector<16x64xf32>
    %188 = vector.extract_strided_slice %152 {offsets = [0, 1], sizes = [16, 63], strides = [1, 1]} : vector<16x64xf32> to vector<16x63xf32>
    %189 = vector.extract_strided_slice %152 {offsets = [0, 0], sizes = [16, 1], strides = [1, 1]} : vector<16x64xf32> to vector<16x1xf32>
    %190 = tpu.concatenate %188, %189 in 1 : vector<16x63xf32>, vector<16x1xf32> -> vector<16x64xf32>
    %191 = vector.extract_strided_slice %0 {offsets = [5, 0], sizes = [1, 64], strides = [1, 1]} : vector<9x64xf32> to vector<1x64xf32>
    %192 = vector.broadcast %191 : vector<1x64xf32> to vector<16x64xf32>
    %193 = arith.mulf %190, %192 : vector<16x64xf32>
    %194 = vector.extract_strided_slice %152 {offsets = [0, 7], sizes = [16, 57], strides = [1, 1]} : vector<16x64xf32> to vector<16x57xf32>
    %195 = vector.extract_strided_slice %152 {offsets = [0, 0], sizes = [16, 7], strides = [1, 1]} : vector<16x64xf32> to vector<16x7xf32>
    %196 = tpu.concatenate %194, %195 in 1 : vector<16x57xf32>, vector<16x7xf32> -> vector<16x64xf32>
    %197 = vector.extract_strided_slice %0 {offsets = [6, 0], sizes = [1, 64], strides = [1, 1]} : vector<9x64xf32> to vector<1x64xf32>
    %198 = vector.broadcast %197 : vector<1x64xf32> to vector<16x64xf32>
    %199 = arith.mulf %196, %198 : vector<16x64xf32>
    %200 = vector.extract_strided_slice %152 {offsets = [0, 8], sizes = [16, 56], strides = [1, 1]} : vector<16x64xf32> to vector<16x56xf32>
    %201 = vector.extract_strided_slice %152 {offsets = [0, 0], sizes = [16, 8], strides = [1, 1]} : vector<16x64xf32> to vector<16x8xf32>
    %202 = tpu.concatenate %200, %201 in 1 : vector<16x56xf32>, vector<16x8xf32> -> vector<16x64xf32>
    %203 = vector.extract_strided_slice %0 {offsets = [7, 0], sizes = [1, 64], strides = [1, 1]} : vector<9x64xf32> to vector<1x64xf32>
    %204 = vector.broadcast %203 : vector<1x64xf32> to vector<16x64xf32>
    %205 = arith.mulf %202, %204 : vector<16x64xf32>
    %206 = vector.extract_strided_slice %152 {offsets = [0, 9], sizes = [16, 55], strides = [1, 1]} : vector<16x64xf32> to vector<16x55xf32>
    %207 = vector.extract_strided_slice %152 {offsets = [0, 0], sizes = [16, 9], strides = [1, 1]} : vector<16x64xf32> to vector<16x9xf32>
    %208 = tpu.concatenate %206, %207 in 1 : vector<16x55xf32>, vector<16x9xf32> -> vector<16x64xf32>
    %209 = vector.extract_strided_slice %0 {offsets = [8, 0], sizes = [1, 64], strides = [1, 1]} : vector<9x64xf32> to vector<1x64xf32>
    %210 = vector.broadcast %209 : vector<1x64xf32> to vector<16x64xf32>
    %211 = arith.mulf %208, %210 : vector<16x64xf32>
    %212 = tpu.concatenate %166, %172, %178, %184, %187, %193, %199, %205, %211 in 0 : vector<16x64xf32>, vector<16x64xf32>, vector<16x64xf32>, vector<16x64xf32>, vector<16x64xf32>, vector<16x64xf32>, vector<16x64xf32>, vector<16x64xf32>, vector<16x64xf32> -> vector<144x64xf32>
    %213 = arith.truncf %212 : vector<144x64xf32> to vector<144x64xbf16>
    %cst_26 = arith.constant dense<0.000000e+00> : vector<16x64xf32>
    %214 = tpu.matmul %160, %213, %cst_26 {dimension_numbers = #tpu.dot_dimension_numbers<[1], [0], [0], [1], [0, 0, 1, 1], [], []>} : vector<16x144xbf16>, vector<144x64xbf16>, vector<16x64xf32> -> vector<16x64xf32>
    %215 = vector.extract_strided_slice %158 {offsets = [0, 55], sizes = [16, 9], strides = [1, 1]} : vector<16x64xf32> to vector<16x9xf32>
    %216 = vector.extract_strided_slice %158 {offsets = [0, 0], sizes = [16, 55], strides = [1, 1]} : vector<16x64xf32> to vector<16x55xf32>
    %217 = tpu.concatenate %215, %216 in 1 : vector<16x9xf32>, vector<16x55xf32> -> vector<16x64xf32>
    %218 = vector.extract_strided_slice %0 {offsets = [0, 0], sizes = [1, 64], strides = [1, 1]} : vector<9x64xf32> to vector<1x64xf32>
    %219 = vector.broadcast %218 : vector<1x64xf32> to vector<16x64xf32>
    %220 = arith.mulf %217, %219 : vector<16x64xf32>
    %221 = vector.extract_strided_slice %158 {offsets = [0, 56], sizes = [16, 8], strides = [1, 1]} : vector<16x64xf32> to vector<16x8xf32>
    %222 = vector.extract_strided_slice %158 {offsets = [0, 0], sizes = [16, 56], strides = [1, 1]} : vector<16x64xf32> to vector<16x56xf32>
    %223 = tpu.concatenate %221, %222 in 1 : vector<16x8xf32>, vector<16x56xf32> -> vector<16x64xf32>
    %224 = vector.extract_strided_slice %0 {offsets = [1, 0], sizes = [1, 64], strides = [1, 1]} : vector<9x64xf32> to vector<1x64xf32>
    %225 = vector.broadcast %224 : vector<1x64xf32> to vector<16x64xf32>
    %226 = arith.mulf %223, %225 : vector<16x64xf32>
    %227 = vector.extract_strided_slice %158 {offsets = [0, 57], sizes = [16, 7], strides = [1, 1]} : vector<16x64xf32> to vector<16x7xf32>
    %228 = vector.extract_strided_slice %158 {offsets = [0, 0], sizes = [16, 57], strides = [1, 1]} : vector<16x64xf32> to vector<16x57xf32>
    %229 = tpu.concatenate %227, %228 in 1 : vector<16x7xf32>, vector<16x57xf32> -> vector<16x64xf32>
    %230 = vector.extract_strided_slice %0 {offsets = [2, 0], sizes = [1, 64], strides = [1, 1]} : vector<9x64xf32> to vector<1x64xf32>
    %231 = vector.broadcast %230 : vector<1x64xf32> to vector<16x64xf32>
    %232 = arith.mulf %229, %231 : vector<16x64xf32>
    %233 = vector.extract_strided_slice %158 {offsets = [0, 63], sizes = [16, 1], strides = [1, 1]} : vector<16x64xf32> to vector<16x1xf32>
    %234 = vector.extract_strided_slice %158 {offsets = [0, 0], sizes = [16, 63], strides = [1, 1]} : vector<16x64xf32> to vector<16x63xf32>
    %235 = tpu.concatenate %233, %234 in 1 : vector<16x1xf32>, vector<16x63xf32> -> vector<16x64xf32>
    %236 = vector.extract_strided_slice %0 {offsets = [3, 0], sizes = [1, 64], strides = [1, 1]} : vector<9x64xf32> to vector<1x64xf32>
    %237 = vector.broadcast %236 : vector<1x64xf32> to vector<16x64xf32>
    %238 = arith.mulf %235, %237 : vector<16x64xf32>
    %239 = vector.extract_strided_slice %0 {offsets = [4, 0], sizes = [1, 64], strides = [1, 1]} : vector<9x64xf32> to vector<1x64xf32>
    %240 = vector.broadcast %239 : vector<1x64xf32> to vector<16x64xf32>
    %241 = arith.mulf %158, %240 : vector<16x64xf32>
    %242 = vector.extract_strided_slice %158 {offsets = [0, 1], sizes = [16, 63], strides = [1, 1]} : vector<16x64xf32> to vector<16x63xf32>
    %243 = vector.extract_strided_slice %158 {offsets = [0, 0], sizes = [16, 1], strides = [1, 1]} : vector<16x64xf32> to vector<16x1xf32>
    %244 = tpu.concatenate %242, %243 in 1 : vector<16x63xf32>, vector<16x1xf32> -> vector<16x64xf32>
    %245 = vector.extract_strided_slice %0 {offsets = [5, 0], sizes = [1, 64], strides = [1, 1]} : vector<9x64xf32> to vector<1x64xf32>
    %246 = vector.broadcast %245 : vector<1x64xf32> to vector<16x64xf32>
    %247 = arith.mulf %244, %246 : vector<16x64xf32>
    %248 = vector.extract_strided_slice %158 {offsets = [0, 7], sizes = [16, 57], strides = [1, 1]} : vector<16x64xf32> to vector<16x57xf32>
    %249 = vector.extract_strided_slice %158 {offsets = [0, 0], sizes = [16, 7], strides = [1, 1]} : vector<16x64xf32> to vector<16x7xf32>
    %250 = tpu.concatenate %248, %249 in 1 : vector<16x57xf32>, vector<16x7xf32> -> vector<16x64xf32>
    %251 = vector.extract_strided_slice %0 {offsets = [6, 0], sizes = [1, 64], strides = [1, 1]} : vector<9x64xf32> to vector<1x64xf32>
    %252 = vector.broadcast %251 : vector<1x64xf32> to vector<16x64xf32>
    %253 = arith.mulf %250, %252 : vector<16x64xf32>
    %254 = vector.extract_strided_slice %158 {offsets = [0, 8], sizes = [16, 56], strides = [1, 1]} : vector<16x64xf32> to vector<16x56xf32>
    %255 = vector.extract_strided_slice %158 {offsets = [0, 0], sizes = [16, 8], strides = [1, 1]} : vector<16x64xf32> to vector<16x8xf32>
    %256 = tpu.concatenate %254, %255 in 1 : vector<16x56xf32>, vector<16x8xf32> -> vector<16x64xf32>
    %257 = vector.extract_strided_slice %0 {offsets = [7, 0], sizes = [1, 64], strides = [1, 1]} : vector<9x64xf32> to vector<1x64xf32>
    %258 = vector.broadcast %257 : vector<1x64xf32> to vector<16x64xf32>
    %259 = arith.mulf %256, %258 : vector<16x64xf32>
    %260 = vector.extract_strided_slice %158 {offsets = [0, 9], sizes = [16, 55], strides = [1, 1]} : vector<16x64xf32> to vector<16x55xf32>
    %261 = vector.extract_strided_slice %158 {offsets = [0, 0], sizes = [16, 9], strides = [1, 1]} : vector<16x64xf32> to vector<16x9xf32>
    %262 = tpu.concatenate %260, %261 in 1 : vector<16x55xf32>, vector<16x9xf32> -> vector<16x64xf32>
    %263 = vector.extract_strided_slice %0 {offsets = [8, 0], sizes = [1, 64], strides = [1, 1]} : vector<9x64xf32> to vector<1x64xf32>
    %264 = vector.broadcast %263 : vector<1x64xf32> to vector<16x64xf32>
    %265 = arith.mulf %262, %264 : vector<16x64xf32>
    %266 = tpu.concatenate %220, %226, %232, %238, %241, %247, %253, %259, %265 in 0 : vector<16x64xf32>, vector<16x64xf32>, vector<16x64xf32>, vector<16x64xf32>, vector<16x64xf32>, vector<16x64xf32>, vector<16x64xf32>, vector<16x64xf32>, vector<16x64xf32> -> vector<144x64xf32>
    %267 = arith.truncf %266 : vector<144x64xf32> to vector<144x64xbf16>
    %cst_27 = arith.constant dense<0.000000e+00> : vector<16x64xf32>
    %268 = tpu.matmul %160, %267, %cst_27 {dimension_numbers = #tpu.dot_dimension_numbers<[1], [0], [0], [1], [0, 0, 1, 1], [], []>} : vector<16x144xbf16>, vector<144x64xbf16>, vector<16x64xf32> -> vector<16x64xf32>
    %cst_28 = arith.constant dense<0.000000e+00> : vector<16xf32>
    %269 = vector.multi_reduction <add>, %214, %cst_28 [1] : vector<16x64xf32> to vector<16xf32>
    %270 = vector.shape_cast %269 : vector<16xf32> to vector<16x1xf32>
    %cst_29 = arith.constant 0.000000e+00 : f32
    %271 = vector.broadcast %cst_29 : f32 to vector<16x1xf32>
    %272 = arith.addf %271, %270 : vector<16x1xf32>
    %cst_30 = arith.constant dense<0.000000e+00> : vector<16xf32>
    %273 = vector.multi_reduction <add>, %268, %cst_30 [1] : vector<16x64xf32> to vector<16xf32>
    %274 = vector.shape_cast %273 : vector<16xf32> to vector<16x1xf32>
    %275 = arith.addf %272, %274 : vector<16x1xf32>
    %cst_31 = arith.constant 7.812500e-03 : f32
    %276 = vector.broadcast %cst_31 : f32 to vector<16x1xf32>
    %277 = arith.mulf %275, %276 : vector<16x1xf32>
    %278 = vector.broadcast %277 : vector<16x1xf32> to vector<16x64xf32>
    %279 = arith.subf %214, %278 : vector<16x64xf32>
    %280 = arith.mulf %279, %279 : vector<16x64xf32>
    %cst_32 = arith.constant dense<0.000000e+00> : vector<16xf32>
    %281 = vector.multi_reduction <add>, %280, %cst_32 [1] : vector<16x64xf32> to vector<16xf32>
    %282 = vector.shape_cast %281 : vector<16xf32> to vector<16x1xf32>
    %cst_33 = arith.constant 0.000000e+00 : f32
    %283 = vector.broadcast %cst_33 : f32 to vector<16x1xf32>
    %284 = arith.addf %283, %282 : vector<16x1xf32>
    %285 = vector.broadcast %277 : vector<16x1xf32> to vector<16x64xf32>
    %286 = arith.subf %268, %285 : vector<16x64xf32>
    %287 = arith.mulf %286, %286 : vector<16x64xf32>
    %cst_34 = arith.constant dense<0.000000e+00> : vector<16xf32>
    %288 = vector.multi_reduction <add>, %287, %cst_34 [1] : vector<16x64xf32> to vector<16xf32>
    %289 = vector.shape_cast %288 : vector<16xf32> to vector<16x1xf32>
    %290 = arith.addf %284, %289 : vector<16x1xf32>
    %cst_35 = arith.constant 7.812500e-03 : f32
    %291 = vector.broadcast %cst_35 : f32 to vector<16x1xf32>
    %292 = arith.mulf %290, %291 : vector<16x1xf32>
    %c0_36 = arith.constant 0 : index
    %c0_37 = arith.constant 0 : index
    %293 = vector.load %arg7[%c0_36, %c0_37] : memref<16x1xf32, #tpu.memory_space<vmem>>, vector<16x1xf32>
    %cst_38 = arith.constant 9.99999974E-6 : f32
    %294 = vector.broadcast %cst_38 : f32 to vector<16x1xf32>
    %295 = arith.addf %292, %294 : vector<16x1xf32>
    %296 = math.rsqrt %295 : vector<16x1xf32>
    %297 = arith.mulf %293, %296 : vector<16x1xf32>
    %c0_39 = arith.constant 0 : index
    %c0_40 = arith.constant 0 : index
    %298 = vector.load %arg8[%c0_39, %c0_40] : memref<16x1xf32, #tpu.memory_space<vmem>>, vector<16x1xf32>
    %299 = arith.mulf %277, %297 : vector<16x1xf32>
    %300 = arith.subf %298, %299 : vector<16x1xf32>
    %301 = vector.broadcast %297 : vector<16x1xf32> to vector<16x64xf32>
    %302 = arith.mulf %214, %301 : vector<16x64xf32>
    %303 = vector.broadcast %300 : vector<16x1xf32> to vector<16x64xf32>
    %304 = arith.addf %302, %303 : vector<16x64xf32>
    %cst_41 = arith.constant 0.000000e+00 : f32
    %305 = vector.broadcast %cst_41 : f32 to vector<16x64xf32>
    %306 = arith.maximumf %304, %305 : vector<16x64xf32>
    %307 = vector.broadcast %297 : vector<16x1xf32> to vector<16x64xf32>
    %308 = arith.mulf %268, %307 : vector<16x64xf32>
    %309 = vector.broadcast %300 : vector<16x1xf32> to vector<16x64xf32>
    %310 = arith.addf %308, %309 : vector<16x64xf32>
    %cst_42 = arith.constant 0.000000e+00 : f32
    %311 = vector.broadcast %cst_42 : f32 to vector<16x64xf32>
    %312 = arith.maximumf %310, %311 : vector<16x64xf32>
    %c0_43 = arith.constant 0 : index
    %c0_44 = arith.constant 0 : index
    %313 = vector.load %arg9[%c0_43, %c0_44] : memref<64x288xf32, #tpu.memory_space<vmem>>, vector<64x288xf32>
    %314 = arith.truncf %313 : vector<64x288xf32> to vector<64x288xbf16>
    %c0_45 = arith.constant 0 : index
    %c0_46 = arith.constant 0 : index
    %315 = vector.load %arg11[%c0_45, %c0_46] : memref<64x288xf32, #tpu.memory_space<vmem>>, vector<64x288xf32>
    %316 = arith.truncf %315 : vector<64x288xf32> to vector<64x288xbf16>
    %c0_47 = arith.constant 0 : index
    %c0_48 = arith.constant 0 : index
    %317 = vector.load %arg10[%c0_47, %c0_48] : memref<64x1xf32, #tpu.memory_space<vmem>>, vector<64x1xf32>
    %c0_49 = arith.constant 0 : index
    %c0_50 = arith.constant 0 : index
    %318 = vector.load %arg12[%c0_49, %c0_50] : memref<64x1xf32, #tpu.memory_space<vmem>>, vector<64x1xf32>
    %c0_51 = arith.constant 0 : index
    %c0_52 = arith.constant 0 : index
    %319 = vector.load %arg2[%c0_51, %c0_52] : memref<64x16xf32, #tpu.memory_space<vmem>>, vector<64x16xf32>
    %cst_53 = arith.constant 0.000000e+00 : f32
    %320 = vector.broadcast %cst_53 : f32 to vector<16x64xf32>
    %321 = vector.extract_strided_slice %306 {offsets = [0, 55], sizes = [16, 9], strides = [1, 1]} : vector<16x64xf32> to vector<16x9xf32>
    %322 = vector.extract_strided_slice %306 {offsets = [0, 0], sizes = [16, 55], strides = [1, 1]} : vector<16x64xf32> to vector<16x55xf32>
    %323 = tpu.concatenate %321, %322 in 1 : vector<16x9xf32>, vector<16x55xf32> -> vector<16x64xf32>
    %324 = vector.extract_strided_slice %0 {offsets = [0, 0], sizes = [1, 64], strides = [1, 1]} : vector<9x64xf32> to vector<1x64xf32>
    %325 = vector.broadcast %324 : vector<1x64xf32> to vector<16x64xf32>
    %326 = arith.mulf %323, %325 : vector<16x64xf32>
    %327 = vector.extract_strided_slice %306 {offsets = [0, 56], sizes = [16, 8], strides = [1, 1]} : vector<16x64xf32> to vector<16x8xf32>
    %328 = vector.extract_strided_slice %306 {offsets = [0, 0], sizes = [16, 56], strides = [1, 1]} : vector<16x64xf32> to vector<16x56xf32>
    %329 = tpu.concatenate %327, %328 in 1 : vector<16x8xf32>, vector<16x56xf32> -> vector<16x64xf32>
    %330 = vector.extract_strided_slice %0 {offsets = [1, 0], sizes = [1, 64], strides = [1, 1]} : vector<9x64xf32> to vector<1x64xf32>
    %331 = vector.broadcast %330 : vector<1x64xf32> to vector<16x64xf32>
    %332 = arith.mulf %329, %331 : vector<16x64xf32>
    %333 = vector.extract_strided_slice %306 {offsets = [0, 57], sizes = [16, 7], strides = [1, 1]} : vector<16x64xf32> to vector<16x7xf32>
    %334 = vector.extract_strided_slice %306 {offsets = [0, 0], sizes = [16, 57], strides = [1, 1]} : vector<16x64xf32> to vector<16x57xf32>
    %335 = tpu.concatenate %333, %334 in 1 : vector<16x7xf32>, vector<16x57xf32> -> vector<16x64xf32>
    %336 = vector.extract_strided_slice %0 {offsets = [2, 0], sizes = [1, 64], strides = [1, 1]} : vector<9x64xf32> to vector<1x64xf32>
    %337 = vector.broadcast %336 : vector<1x64xf32> to vector<16x64xf32>
    %338 = arith.mulf %335, %337 : vector<16x64xf32>
    %339 = vector.extract_strided_slice %306 {offsets = [0, 63], sizes = [16, 1], strides = [1, 1]} : vector<16x64xf32> to vector<16x1xf32>
    %340 = vector.extract_strided_slice %306 {offsets = [0, 0], sizes = [16, 63], strides = [1, 1]} : vector<16x64xf32> to vector<16x63xf32>
    %341 = tpu.concatenate %339, %340 in 1 : vector<16x1xf32>, vector<16x63xf32> -> vector<16x64xf32>
    %342 = vector.extract_strided_slice %0 {offsets = [3, 0], sizes = [1, 64], strides = [1, 1]} : vector<9x64xf32> to vector<1x64xf32>
    %343 = vector.broadcast %342 : vector<1x64xf32> to vector<16x64xf32>
    %344 = arith.mulf %341, %343 : vector<16x64xf32>
    %345 = vector.extract_strided_slice %0 {offsets = [4, 0], sizes = [1, 64], strides = [1, 1]} : vector<9x64xf32> to vector<1x64xf32>
    %346 = vector.broadcast %345 : vector<1x64xf32> to vector<16x64xf32>
    %347 = arith.mulf %306, %346 : vector<16x64xf32>
    %348 = vector.extract_strided_slice %306 {offsets = [0, 1], sizes = [16, 63], strides = [1, 1]} : vector<16x64xf32> to vector<16x63xf32>
    %349 = vector.extract_strided_slice %306 {offsets = [0, 0], sizes = [16, 1], strides = [1, 1]} : vector<16x64xf32> to vector<16x1xf32>
    %350 = tpu.concatenate %348, %349 in 1 : vector<16x63xf32>, vector<16x1xf32> -> vector<16x64xf32>
    %351 = vector.extract_strided_slice %0 {offsets = [5, 0], sizes = [1, 64], strides = [1, 1]} : vector<9x64xf32> to vector<1x64xf32>
    %352 = vector.broadcast %351 : vector<1x64xf32> to vector<16x64xf32>
    %353 = arith.mulf %350, %352 : vector<16x64xf32>
    %354 = vector.extract_strided_slice %306 {offsets = [0, 7], sizes = [16, 57], strides = [1, 1]} : vector<16x64xf32> to vector<16x57xf32>
    %355 = vector.extract_strided_slice %306 {offsets = [0, 0], sizes = [16, 7], strides = [1, 1]} : vector<16x64xf32> to vector<16x7xf32>
    %356 = tpu.concatenate %354, %355 in 1 : vector<16x57xf32>, vector<16x7xf32> -> vector<16x64xf32>
    %357 = vector.extract_strided_slice %0 {offsets = [6, 0], sizes = [1, 64], strides = [1, 1]} : vector<9x64xf32> to vector<1x64xf32>
    %358 = vector.broadcast %357 : vector<1x64xf32> to vector<16x64xf32>
    %359 = arith.mulf %356, %358 : vector<16x64xf32>
    %360 = vector.extract_strided_slice %306 {offsets = [0, 8], sizes = [16, 56], strides = [1, 1]} : vector<16x64xf32> to vector<16x56xf32>
    %361 = vector.extract_strided_slice %306 {offsets = [0, 0], sizes = [16, 8], strides = [1, 1]} : vector<16x64xf32> to vector<16x8xf32>
    %362 = tpu.concatenate %360, %361 in 1 : vector<16x56xf32>, vector<16x8xf32> -> vector<16x64xf32>
    %363 = vector.extract_strided_slice %0 {offsets = [7, 0], sizes = [1, 64], strides = [1, 1]} : vector<9x64xf32> to vector<1x64xf32>
    %364 = vector.broadcast %363 : vector<1x64xf32> to vector<16x64xf32>
    %365 = arith.mulf %362, %364 : vector<16x64xf32>
    %366 = vector.extract_strided_slice %306 {offsets = [0, 9], sizes = [16, 55], strides = [1, 1]} : vector<16x64xf32> to vector<16x55xf32>
    %367 = vector.extract_strided_slice %306 {offsets = [0, 0], sizes = [16, 9], strides = [1, 1]} : vector<16x64xf32> to vector<16x9xf32>
    %368 = tpu.concatenate %366, %367 in 1 : vector<16x55xf32>, vector<16x9xf32> -> vector<16x64xf32>
    %369 = vector.extract_strided_slice %0 {offsets = [8, 0], sizes = [1, 64], strides = [1, 1]} : vector<9x64xf32> to vector<1x64xf32>
    %370 = vector.broadcast %369 : vector<1x64xf32> to vector<16x64xf32>
    %371 = arith.mulf %368, %370 : vector<16x64xf32>
    %372 = tpu.concatenate %326, %332, %338, %344, %347, %353, %359, %365, %371 in 0 : vector<16x64xf32>, vector<16x64xf32>, vector<16x64xf32>, vector<16x64xf32>, vector<16x64xf32>, vector<16x64xf32>, vector<16x64xf32>, vector<16x64xf32>, vector<16x64xf32> -> vector<144x64xf32>
    %373 = vector.extract_strided_slice %320 {offsets = [0, 55], sizes = [16, 9], strides = [1, 1]} : vector<16x64xf32> to vector<16x9xf32>
    %374 = vector.extract_strided_slice %320 {offsets = [0, 0], sizes = [16, 55], strides = [1, 1]} : vector<16x64xf32> to vector<16x55xf32>
    %375 = tpu.concatenate %373, %374 in 1 : vector<16x9xf32>, vector<16x55xf32> -> vector<16x64xf32>
    %376 = vector.extract_strided_slice %0 {offsets = [0, 0], sizes = [1, 64], strides = [1, 1]} : vector<9x64xf32> to vector<1x64xf32>
    %377 = vector.broadcast %376 : vector<1x64xf32> to vector<16x64xf32>
    %378 = arith.mulf %375, %377 : vector<16x64xf32>
    %379 = vector.extract_strided_slice %320 {offsets = [0, 56], sizes = [16, 8], strides = [1, 1]} : vector<16x64xf32> to vector<16x8xf32>
    %380 = vector.extract_strided_slice %320 {offsets = [0, 0], sizes = [16, 56], strides = [1, 1]} : vector<16x64xf32> to vector<16x56xf32>
    %381 = tpu.concatenate %379, %380 in 1 : vector<16x8xf32>, vector<16x56xf32> -> vector<16x64xf32>
    %382 = vector.extract_strided_slice %0 {offsets = [1, 0], sizes = [1, 64], strides = [1, 1]} : vector<9x64xf32> to vector<1x64xf32>
    %383 = vector.broadcast %382 : vector<1x64xf32> to vector<16x64xf32>
    %384 = arith.mulf %381, %383 : vector<16x64xf32>
    %385 = vector.extract_strided_slice %320 {offsets = [0, 57], sizes = [16, 7], strides = [1, 1]} : vector<16x64xf32> to vector<16x7xf32>
    %386 = vector.extract_strided_slice %320 {offsets = [0, 0], sizes = [16, 57], strides = [1, 1]} : vector<16x64xf32> to vector<16x57xf32>
    %387 = tpu.concatenate %385, %386 in 1 : vector<16x7xf32>, vector<16x57xf32> -> vector<16x64xf32>
    %388 = vector.extract_strided_slice %0 {offsets = [2, 0], sizes = [1, 64], strides = [1, 1]} : vector<9x64xf32> to vector<1x64xf32>
    %389 = vector.broadcast %388 : vector<1x64xf32> to vector<16x64xf32>
    %390 = arith.mulf %387, %389 : vector<16x64xf32>
    %391 = vector.extract_strided_slice %320 {offsets = [0, 63], sizes = [16, 1], strides = [1, 1]} : vector<16x64xf32> to vector<16x1xf32>
    %392 = vector.extract_strided_slice %320 {offsets = [0, 0], sizes = [16, 63], strides = [1, 1]} : vector<16x64xf32> to vector<16x63xf32>
    %393 = tpu.concatenate %391, %392 in 1 : vector<16x1xf32>, vector<16x63xf32> -> vector<16x64xf32>
    %394 = vector.extract_strided_slice %0 {offsets = [3, 0], sizes = [1, 64], strides = [1, 1]} : vector<9x64xf32> to vector<1x64xf32>
    %395 = vector.broadcast %394 : vector<1x64xf32> to vector<16x64xf32>
    %396 = arith.mulf %393, %395 : vector<16x64xf32>
    %397 = vector.extract_strided_slice %0 {offsets = [4, 0], sizes = [1, 64], strides = [1, 1]} : vector<9x64xf32> to vector<1x64xf32>
    %398 = vector.broadcast %397 : vector<1x64xf32> to vector<16x64xf32>
    %399 = arith.mulf %320, %398 : vector<16x64xf32>
    %400 = vector.extract_strided_slice %320 {offsets = [0, 1], sizes = [16, 63], strides = [1, 1]} : vector<16x64xf32> to vector<16x63xf32>
    %401 = vector.extract_strided_slice %320 {offsets = [0, 0], sizes = [16, 1], strides = [1, 1]} : vector<16x64xf32> to vector<16x1xf32>
    %402 = tpu.concatenate %400, %401 in 1 : vector<16x63xf32>, vector<16x1xf32> -> vector<16x64xf32>
    %403 = vector.extract_strided_slice %0 {offsets = [5, 0], sizes = [1, 64], strides = [1, 1]} : vector<9x64xf32> to vector<1x64xf32>
    %404 = vector.broadcast %403 : vector<1x64xf32> to vector<16x64xf32>
    %405 = arith.mulf %402, %404 : vector<16x64xf32>
    %406 = vector.extract_strided_slice %320 {offsets = [0, 7], sizes = [16, 57], strides = [1, 1]} : vector<16x64xf32> to vector<16x57xf32>
    %407 = vector.extract_strided_slice %320 {offsets = [0, 0], sizes = [16, 7], strides = [1, 1]} : vector<16x64xf32> to vector<16x7xf32>
    %408 = tpu.concatenate %406, %407 in 1 : vector<16x57xf32>, vector<16x7xf32> -> vector<16x64xf32>
    %409 = vector.extract_strided_slice %0 {offsets = [6, 0], sizes = [1, 64], strides = [1, 1]} : vector<9x64xf32> to vector<1x64xf32>
    %410 = vector.broadcast %409 : vector<1x64xf32> to vector<16x64xf32>
    %411 = arith.mulf %408, %410 : vector<16x64xf32>
    %412 = vector.extract_strided_slice %320 {offsets = [0, 8], sizes = [16, 56], strides = [1, 1]} : vector<16x64xf32> to vector<16x56xf32>
    %413 = vector.extract_strided_slice %320 {offsets = [0, 0], sizes = [16, 8], strides = [1, 1]} : vector<16x64xf32> to vector<16x8xf32>
    %414 = tpu.concatenate %412, %413 in 1 : vector<16x56xf32>, vector<16x8xf32> -> vector<16x64xf32>
    %415 = vector.extract_strided_slice %0 {offsets = [7, 0], sizes = [1, 64], strides = [1, 1]} : vector<9x64xf32> to vector<1x64xf32>
    %416 = vector.broadcast %415 : vector<1x64xf32> to vector<16x64xf32>
    %417 = arith.mulf %414, %416 : vector<16x64xf32>
    %418 = vector.extract_strided_slice %320 {offsets = [0, 9], sizes = [16, 55], strides = [1, 1]} : vector<16x64xf32> to vector<16x55xf32>
    %419 = vector.extract_strided_slice %320 {offsets = [0, 0], sizes = [16, 9], strides = [1, 1]} : vector<16x64xf32> to vector<16x9xf32>
    %420 = tpu.concatenate %418, %419 in 1 : vector<16x55xf32>, vector<16x9xf32> -> vector<16x64xf32>
    %421 = vector.extract_strided_slice %0 {offsets = [8, 0], sizes = [1, 64], strides = [1, 1]} : vector<9x64xf32> to vector<1x64xf32>
    %422 = vector.broadcast %421 : vector<1x64xf32> to vector<16x64xf32>
    %423 = arith.mulf %420, %422 : vector<16x64xf32>
    %424 = tpu.concatenate %378, %384, %390, %396, %399, %405, %411, %417, %423 in 0 : vector<16x64xf32>, vector<16x64xf32>, vector<16x64xf32>, vector<16x64xf32>, vector<16x64xf32>, vector<16x64xf32>, vector<16x64xf32>, vector<16x64xf32>, vector<16x64xf32> -> vector<144x64xf32>
    %425 = tpu.concatenate %372, %424 in 0 : vector<144x64xf32>, vector<144x64xf32> -> vector<288x64xf32>
    %426 = arith.truncf %425 : vector<288x64xf32> to vector<288x64xbf16>
    %cst_54 = arith.constant dense<0.000000e+00> : vector<64x64xf32>
    %427 = tpu.matmul %314, %426, %cst_54 {dimension_numbers = #tpu.dot_dimension_numbers<[1], [0], [0], [1], [0, 0, 1, 1], [], []>} : vector<64x288xbf16>, vector<288x64xbf16>, vector<64x64xf32> -> vector<64x64xf32>
    %428 = vector.broadcast %317 : vector<64x1xf32> to vector<64x64xf32>
    %429 = arith.addf %427, %428 : vector<64x64xf32>
    %430 = vector.extract_strided_slice %429 {offsets = [0, 0], sizes = [16, 64], strides = [1, 1]} : vector<64x64xf32> to vector<16x64xf32>
    %431 = arith.negf %430 : vector<16x64xf32>
    %432 = math.exp %431 : vector<16x64xf32>
    %cst_55 = arith.constant 1.000000e+00 : f32
    %433 = vector.broadcast %cst_55 : f32 to vector<16x64xf32>
    %434 = arith.addf %433, %432 : vector<16x64xf32>
    %435 = arith.divf %433, %434 : vector<16x64xf32>
    %436 = vector.extract_strided_slice %429 {offsets = [16, 0], sizes = [16, 64], strides = [1, 1]} : vector<64x64xf32> to vector<16x64xf32>
    %437 = arith.negf %436 : vector<16x64xf32>
    %438 = math.exp %437 : vector<16x64xf32>
    %cst_56 = arith.constant 1.000000e+00 : f32
    %439 = vector.broadcast %cst_56 : f32 to vector<16x64xf32>
    %440 = arith.addf %439, %438 : vector<16x64xf32>
    %441 = arith.divf %439, %440 : vector<16x64xf32>
    %442 = vector.extract_strided_slice %429 {offsets = [32, 0], sizes = [16, 64], strides = [1, 1]} : vector<64x64xf32> to vector<16x64xf32>
    %443 = arith.negf %442 : vector<16x64xf32>
    %444 = math.exp %443 : vector<16x64xf32>
    %cst_57 = arith.constant 1.000000e+00 : f32
    %445 = vector.broadcast %cst_57 : f32 to vector<16x64xf32>
    %446 = arith.addf %445, %444 : vector<16x64xf32>
    %447 = arith.divf %445, %446 : vector<16x64xf32>
    %448 = vector.extract_strided_slice %429 {offsets = [48, 0], sizes = [16, 64], strides = [1, 1]} : vector<64x64xf32> to vector<16x64xf32>
    %449 = math.tanh %448 : vector<16x64xf32>
    %450 = arith.mulf %441, %320 : vector<16x64xf32>
    %451 = arith.mulf %435, %449 : vector<16x64xf32>
    %452 = arith.addf %450, %451 : vector<16x64xf32>
    %453 = math.tanh %452 : vector<16x64xf32>
    %454 = arith.mulf %447, %453 : vector<16x64xf32>
    %455 = vector.extract_strided_slice %454 {offsets = [0, 55], sizes = [16, 9], strides = [1, 1]} : vector<16x64xf32> to vector<16x9xf32>
    %456 = vector.extract_strided_slice %454 {offsets = [0, 0], sizes = [16, 55], strides = [1, 1]} : vector<16x64xf32> to vector<16x55xf32>
    %457 = tpu.concatenate %455, %456 in 1 : vector<16x9xf32>, vector<16x55xf32> -> vector<16x64xf32>
    %458 = vector.extract_strided_slice %0 {offsets = [0, 0], sizes = [1, 64], strides = [1, 1]} : vector<9x64xf32> to vector<1x64xf32>
    %459 = vector.broadcast %458 : vector<1x64xf32> to vector<16x64xf32>
    %460 = arith.mulf %457, %459 : vector<16x64xf32>
    %461 = vector.extract_strided_slice %454 {offsets = [0, 56], sizes = [16, 8], strides = [1, 1]} : vector<16x64xf32> to vector<16x8xf32>
    %462 = vector.extract_strided_slice %454 {offsets = [0, 0], sizes = [16, 56], strides = [1, 1]} : vector<16x64xf32> to vector<16x56xf32>
    %463 = tpu.concatenate %461, %462 in 1 : vector<16x8xf32>, vector<16x56xf32> -> vector<16x64xf32>
    %464 = vector.extract_strided_slice %0 {offsets = [1, 0], sizes = [1, 64], strides = [1, 1]} : vector<9x64xf32> to vector<1x64xf32>
    %465 = vector.broadcast %464 : vector<1x64xf32> to vector<16x64xf32>
    %466 = arith.mulf %463, %465 : vector<16x64xf32>
    %467 = vector.extract_strided_slice %454 {offsets = [0, 57], sizes = [16, 7], strides = [1, 1]} : vector<16x64xf32> to vector<16x7xf32>
    %468 = vector.extract_strided_slice %454 {offsets = [0, 0], sizes = [16, 57], strides = [1, 1]} : vector<16x64xf32> to vector<16x57xf32>
    %469 = tpu.concatenate %467, %468 in 1 : vector<16x7xf32>, vector<16x57xf32> -> vector<16x64xf32>
    %470 = vector.extract_strided_slice %0 {offsets = [2, 0], sizes = [1, 64], strides = [1, 1]} : vector<9x64xf32> to vector<1x64xf32>
    %471 = vector.broadcast %470 : vector<1x64xf32> to vector<16x64xf32>
    %472 = arith.mulf %469, %471 : vector<16x64xf32>
    %473 = vector.extract_strided_slice %454 {offsets = [0, 63], sizes = [16, 1], strides = [1, 1]} : vector<16x64xf32> to vector<16x1xf32>
    %474 = vector.extract_strided_slice %454 {offsets = [0, 0], sizes = [16, 63], strides = [1, 1]} : vector<16x64xf32> to vector<16x63xf32>
    %475 = tpu.concatenate %473, %474 in 1 : vector<16x1xf32>, vector<16x63xf32> -> vector<16x64xf32>
    %476 = vector.extract_strided_slice %0 {offsets = [3, 0], sizes = [1, 64], strides = [1, 1]} : vector<9x64xf32> to vector<1x64xf32>
    %477 = vector.broadcast %476 : vector<1x64xf32> to vector<16x64xf32>
    %478 = arith.mulf %475, %477 : vector<16x64xf32>
    %479 = vector.extract_strided_slice %0 {offsets = [4, 0], sizes = [1, 64], strides = [1, 1]} : vector<9x64xf32> to vector<1x64xf32>
    %480 = vector.broadcast %479 : vector<1x64xf32> to vector<16x64xf32>
    %481 = arith.mulf %454, %480 : vector<16x64xf32>
    %482 = vector.extract_strided_slice %454 {offsets = [0, 1], sizes = [16, 63], strides = [1, 1]} : vector<16x64xf32> to vector<16x63xf32>
    %483 = vector.extract_strided_slice %454 {offsets = [0, 0], sizes = [16, 1], strides = [1, 1]} : vector<16x64xf32> to vector<16x1xf32>
    %484 = tpu.concatenate %482, %483 in 1 : vector<16x63xf32>, vector<16x1xf32> -> vector<16x64xf32>
    %485 = vector.extract_strided_slice %0 {offsets = [5, 0], sizes = [1, 64], strides = [1, 1]} : vector<9x64xf32> to vector<1x64xf32>
    %486 = vector.broadcast %485 : vector<1x64xf32> to vector<16x64xf32>
    %487 = arith.mulf %484, %486 : vector<16x64xf32>
    %488 = vector.extract_strided_slice %454 {offsets = [0, 7], sizes = [16, 57], strides = [1, 1]} : vector<16x64xf32> to vector<16x57xf32>
    %489 = vector.extract_strided_slice %454 {offsets = [0, 0], sizes = [16, 7], strides = [1, 1]} : vector<16x64xf32> to vector<16x7xf32>
    %490 = tpu.concatenate %488, %489 in 1 : vector<16x57xf32>, vector<16x7xf32> -> vector<16x64xf32>
    %491 = vector.extract_strided_slice %0 {offsets = [6, 0], sizes = [1, 64], strides = [1, 1]} : vector<9x64xf32> to vector<1x64xf32>
    %492 = vector.broadcast %491 : vector<1x64xf32> to vector<16x64xf32>
    %493 = arith.mulf %490, %492 : vector<16x64xf32>
    %494 = vector.extract_strided_slice %454 {offsets = [0, 8], sizes = [16, 56], strides = [1, 1]} : vector<16x64xf32> to vector<16x56xf32>
    %495 = vector.extract_strided_slice %454 {offsets = [0, 0], sizes = [16, 8], strides = [1, 1]} : vector<16x64xf32> to vector<16x8xf32>
    %496 = tpu.concatenate %494, %495 in 1 : vector<16x56xf32>, vector<16x8xf32> -> vector<16x64xf32>
    %497 = vector.extract_strided_slice %0 {offsets = [7, 0], sizes = [1, 64], strides = [1, 1]} : vector<9x64xf32> to vector<1x64xf32>
    %498 = vector.broadcast %497 : vector<1x64xf32> to vector<16x64xf32>
    %499 = arith.mulf %496, %498 : vector<16x64xf32>
    %500 = vector.extract_strided_slice %454 {offsets = [0, 9], sizes = [16, 55], strides = [1, 1]} : vector<16x64xf32> to vector<16x55xf32>
    %501 = vector.extract_strided_slice %454 {offsets = [0, 0], sizes = [16, 9], strides = [1, 1]} : vector<16x64xf32> to vector<16x9xf32>
    %502 = tpu.concatenate %500, %501 in 1 : vector<16x55xf32>, vector<16x9xf32> -> vector<16x64xf32>
    %503 = vector.extract_strided_slice %0 {offsets = [8, 0], sizes = [1, 64], strides = [1, 1]} : vector<9x64xf32> to vector<1x64xf32>
    %504 = vector.broadcast %503 : vector<1x64xf32> to vector<16x64xf32>
    %505 = arith.mulf %502, %504 : vector<16x64xf32>
    %506 = tpu.concatenate %460, %466, %472, %478, %481, %487, %493, %499, %505 in 0 : vector<16x64xf32>, vector<16x64xf32>, vector<16x64xf32>, vector<16x64xf32>, vector<16x64xf32>, vector<16x64xf32>, vector<16x64xf32>, vector<16x64xf32>, vector<16x64xf32> -> vector<144x64xf32>
    %507 = vector.extract_strided_slice %320 {offsets = [0, 55], sizes = [16, 9], strides = [1, 1]} : vector<16x64xf32> to vector<16x9xf32>
    %508 = vector.extract_strided_slice %320 {offsets = [0, 0], sizes = [16, 55], strides = [1, 1]} : vector<16x64xf32> to vector<16x55xf32>
    %509 = tpu.concatenate %507, %508 in 1 : vector<16x9xf32>, vector<16x55xf32> -> vector<16x64xf32>
    %510 = vector.extract_strided_slice %0 {offsets = [0, 0], sizes = [1, 64], strides = [1, 1]} : vector<9x64xf32> to vector<1x64xf32>
    %511 = vector.broadcast %510 : vector<1x64xf32> to vector<16x64xf32>
    %512 = arith.mulf %509, %511 : vector<16x64xf32>
    %513 = vector.extract_strided_slice %320 {offsets = [0, 56], sizes = [16, 8], strides = [1, 1]} : vector<16x64xf32> to vector<16x8xf32>
    %514 = vector.extract_strided_slice %320 {offsets = [0, 0], sizes = [16, 56], strides = [1, 1]} : vector<16x64xf32> to vector<16x56xf32>
    %515 = tpu.concatenate %513, %514 in 1 : vector<16x8xf32>, vector<16x56xf32> -> vector<16x64xf32>
    %516 = vector.extract_strided_slice %0 {offsets = [1, 0], sizes = [1, 64], strides = [1, 1]} : vector<9x64xf32> to vector<1x64xf32>
    %517 = vector.broadcast %516 : vector<1x64xf32> to vector<16x64xf32>
    %518 = arith.mulf %515, %517 : vector<16x64xf32>
    %519 = vector.extract_strided_slice %320 {offsets = [0, 57], sizes = [16, 7], strides = [1, 1]} : vector<16x64xf32> to vector<16x7xf32>
    %520 = vector.extract_strided_slice %320 {offsets = [0, 0], sizes = [16, 57], strides = [1, 1]} : vector<16x64xf32> to vector<16x57xf32>
    %521 = tpu.concatenate %519, %520 in 1 : vector<16x7xf32>, vector<16x57xf32> -> vector<16x64xf32>
    %522 = vector.extract_strided_slice %0 {offsets = [2, 0], sizes = [1, 64], strides = [1, 1]} : vector<9x64xf32> to vector<1x64xf32>
    %523 = vector.broadcast %522 : vector<1x64xf32> to vector<16x64xf32>
    %524 = arith.mulf %521, %523 : vector<16x64xf32>
    %525 = vector.extract_strided_slice %320 {offsets = [0, 63], sizes = [16, 1], strides = [1, 1]} : vector<16x64xf32> to vector<16x1xf32>
    %526 = vector.extract_strided_slice %320 {offsets = [0, 0], sizes = [16, 63], strides = [1, 1]} : vector<16x64xf32> to vector<16x63xf32>
    %527 = tpu.concatenate %525, %526 in 1 : vector<16x1xf32>, vector<16x63xf32> -> vector<16x64xf32>
    %528 = vector.extract_strided_slice %0 {offsets = [3, 0], sizes = [1, 64], strides = [1, 1]} : vector<9x64xf32> to vector<1x64xf32>
    %529 = vector.broadcast %528 : vector<1x64xf32> to vector<16x64xf32>
    %530 = arith.mulf %527, %529 : vector<16x64xf32>
    %531 = vector.extract_strided_slice %0 {offsets = [4, 0], sizes = [1, 64], strides = [1, 1]} : vector<9x64xf32> to vector<1x64xf32>
    %532 = vector.broadcast %531 : vector<1x64xf32> to vector<16x64xf32>
    %533 = arith.mulf %320, %532 : vector<16x64xf32>
    %534 = vector.extract_strided_slice %320 {offsets = [0, 1], sizes = [16, 63], strides = [1, 1]} : vector<16x64xf32> to vector<16x63xf32>
    %535 = vector.extract_strided_slice %320 {offsets = [0, 0], sizes = [16, 1], strides = [1, 1]} : vector<16x64xf32> to vector<16x1xf32>
    %536 = tpu.concatenate %534, %535 in 1 : vector<16x63xf32>, vector<16x1xf32> -> vector<16x64xf32>
    %537 = vector.extract_strided_slice %0 {offsets = [5, 0], sizes = [1, 64], strides = [1, 1]} : vector<9x64xf32> to vector<1x64xf32>
    %538 = vector.broadcast %537 : vector<1x64xf32> to vector<16x64xf32>
    %539 = arith.mulf %536, %538 : vector<16x64xf32>
    %540 = vector.extract_strided_slice %320 {offsets = [0, 7], sizes = [16, 57], strides = [1, 1]} : vector<16x64xf32> to vector<16x57xf32>
    %541 = vector.extract_strided_slice %320 {offsets = [0, 0], sizes = [16, 7], strides = [1, 1]} : vector<16x64xf32> to vector<16x7xf32>
    %542 = tpu.concatenate %540, %541 in 1 : vector<16x57xf32>, vector<16x7xf32> -> vector<16x64xf32>
    %543 = vector.extract_strided_slice %0 {offsets = [6, 0], sizes = [1, 64], strides = [1, 1]} : vector<9x64xf32> to vector<1x64xf32>
    %544 = vector.broadcast %543 : vector<1x64xf32> to vector<16x64xf32>
    %545 = arith.mulf %542, %544 : vector<16x64xf32>
    %546 = vector.extract_strided_slice %320 {offsets = [0, 8], sizes = [16, 56], strides = [1, 1]} : vector<16x64xf32> to vector<16x56xf32>
    %547 = vector.extract_strided_slice %320 {offsets = [0, 0], sizes = [16, 8], strides = [1, 1]} : vector<16x64xf32> to vector<16x8xf32>
    %548 = tpu.concatenate %546, %547 in 1 : vector<16x56xf32>, vector<16x8xf32> -> vector<16x64xf32>
    %549 = vector.extract_strided_slice %0 {offsets = [7, 0], sizes = [1, 64], strides = [1, 1]} : vector<9x64xf32> to vector<1x64xf32>
    %550 = vector.broadcast %549 : vector<1x64xf32> to vector<16x64xf32>
    %551 = arith.mulf %548, %550 : vector<16x64xf32>
    %552 = vector.extract_strided_slice %320 {offsets = [0, 9], sizes = [16, 55], strides = [1, 1]} : vector<16x64xf32> to vector<16x55xf32>
    %553 = vector.extract_strided_slice %320 {offsets = [0, 0], sizes = [16, 9], strides = [1, 1]} : vector<16x64xf32> to vector<16x9xf32>
    %554 = tpu.concatenate %552, %553 in 1 : vector<16x55xf32>, vector<16x9xf32> -> vector<16x64xf32>
    %555 = vector.extract_strided_slice %0 {offsets = [8, 0], sizes = [1, 64], strides = [1, 1]} : vector<9x64xf32> to vector<1x64xf32>
    %556 = vector.broadcast %555 : vector<1x64xf32> to vector<16x64xf32>
    %557 = arith.mulf %554, %556 : vector<16x64xf32>
    %558 = tpu.concatenate %512, %518, %524, %530, %533, %539, %545, %551, %557 in 0 : vector<16x64xf32>, vector<16x64xf32>, vector<16x64xf32>, vector<16x64xf32>, vector<16x64xf32>, vector<16x64xf32>, vector<16x64xf32>, vector<16x64xf32>, vector<16x64xf32> -> vector<144x64xf32>
    %559 = tpu.concatenate %506, %558 in 0 : vector<144x64xf32>, vector<144x64xf32> -> vector<288x64xf32>
    %560 = arith.truncf %559 : vector<288x64xf32> to vector<288x64xbf16>
    %cst_58 = arith.constant dense<0.000000e+00> : vector<64x64xf32>
    %561 = tpu.matmul %316, %560, %cst_58 {dimension_numbers = #tpu.dot_dimension_numbers<[1], [0], [0], [1], [0, 0, 1, 1], [], []>} : vector<64x288xbf16>, vector<288x64xbf16>, vector<64x64xf32> -> vector<64x64xf32>
    %562 = vector.broadcast %318 : vector<64x1xf32> to vector<64x64xf32>
    %563 = arith.addf %561, %562 : vector<64x64xf32>
    %564 = vector.extract_strided_slice %563 {offsets = [0, 0], sizes = [16, 64], strides = [1, 1]} : vector<64x64xf32> to vector<16x64xf32>
    %565 = arith.negf %564 : vector<16x64xf32>
    %566 = math.exp %565 : vector<16x64xf32>
    %cst_59 = arith.constant 1.000000e+00 : f32
    %567 = vector.broadcast %cst_59 : f32 to vector<16x64xf32>
    %568 = arith.addf %567, %566 : vector<16x64xf32>
    %569 = arith.divf %567, %568 : vector<16x64xf32>
    %570 = vector.extract_strided_slice %563 {offsets = [16, 0], sizes = [16, 64], strides = [1, 1]} : vector<64x64xf32> to vector<16x64xf32>
    %571 = arith.negf %570 : vector<16x64xf32>
    %572 = math.exp %571 : vector<16x64xf32>
    %cst_60 = arith.constant 1.000000e+00 : f32
    %573 = vector.broadcast %cst_60 : f32 to vector<16x64xf32>
    %574 = arith.addf %573, %572 : vector<16x64xf32>
    %575 = arith.divf %573, %574 : vector<16x64xf32>
    %576 = vector.extract_strided_slice %563 {offsets = [32, 0], sizes = [16, 64], strides = [1, 1]} : vector<64x64xf32> to vector<16x64xf32>
    %577 = arith.negf %576 : vector<16x64xf32>
    %578 = math.exp %577 : vector<16x64xf32>
    %cst_61 = arith.constant 1.000000e+00 : f32
    %579 = vector.broadcast %cst_61 : f32 to vector<16x64xf32>
    %580 = arith.addf %579, %578 : vector<16x64xf32>
    %581 = arith.divf %579, %580 : vector<16x64xf32>
    %582 = vector.extract_strided_slice %563 {offsets = [48, 0], sizes = [16, 64], strides = [1, 1]} : vector<64x64xf32> to vector<16x64xf32>
    %583 = math.tanh %582 : vector<16x64xf32>
    %584 = arith.mulf %575, %320 : vector<16x64xf32>
    %585 = arith.mulf %569, %583 : vector<16x64xf32>
    %586 = arith.addf %584, %585 : vector<16x64xf32>
    %587 = math.tanh %586 : vector<16x64xf32>
    %588 = arith.mulf %581, %587 : vector<16x64xf32>
    %c0_62 = arith.constant 0 : index
    %c0_63 = arith.constant 0 : index
    %c0_64 = arith.constant 0 : index
    %589 = vector.load %arg13[%c0_62, %c0_63, %c0_64] : memref<2x16x64xf32, #tpu.memory_space<vmem>>, vector<1x16x64xf32>
    %590 = vector.shape_cast %589 : vector<1x16x64xf32> to vector<16x64xf32>
    %591 = vector.shape_cast %588 : vector<16x64xf32> to vector<1x16x64xf32>
    tpu.vector_store %arg13[%c0_62, %c0_63, %c0_64], %591 {strides = array<i32>} : memref<2x16x64xf32, #tpu.memory_space<vmem>>, vector<1x16x64xf32>,
    %592 = vector.extract_strided_slice %588 {offsets = [0, 1], sizes = [16, 63], strides = [1, 1]} : vector<16x64xf32> to vector<16x63xf32>
    %593 = vector.extract_strided_slice %588 {offsets = [0, 0], sizes = [16, 1], strides = [1, 1]} : vector<16x64xf32> to vector<16x1xf32>
    %594 = tpu.concatenate %592, %593 in 1 : vector<16x63xf32>, vector<16x1xf32> -> vector<16x64xf32>
    %595 = arith.maximumf %588, %594 : vector<16x64xf32>
    %596 = vector.extract_strided_slice %595 {offsets = [0, 8], sizes = [16, 56], strides = [1, 1]} : vector<16x64xf32> to vector<16x56xf32>
    %597 = vector.extract_strided_slice %595 {offsets = [0, 0], sizes = [16, 8], strides = [1, 1]} : vector<16x64xf32> to vector<16x8xf32>
    %598 = tpu.concatenate %596, %597 in 1 : vector<16x56xf32>, vector<16x8xf32> -> vector<16x64xf32>
    %599 = arith.maximumf %595, %598 : vector<16x64xf32>
    %cst_65 = arith.constant dense<0.000000e+00> : vector<16x16xf32>
    %600 = tpu.matmul %599, %319, %cst_65 {dimension_numbers = #tpu.dot_dimension_numbers<[1], [0], [0], [1], [0, 0, 1, 1], [], []>} : vector<16x64xf32>, vector<64x16xf32>, vector<16x16xf32> -> vector<16x16xf32>
    %c0_66 = arith.constant 0 : index
    %c0_67 = arith.constant 0 : index
    %c0_68 = arith.constant 0 : index
    %601 = vector.load %arg14[%c0_66, %c0_67, %c0_68] : memref<2x16x16xf32, #tpu.memory_space<vmem>>, vector<1x16x16xf32>
    %602 = vector.shape_cast %601 : vector<1x16x16xf32> to vector<16x16xf32>
    %603 = vector.shape_cast %600 : vector<16x16xf32> to vector<1x16x16xf32>
    tpu.vector_store %arg14[%c0_66, %c0_67, %c0_68], %603 {strides = array<i32>} : memref<2x16x16xf32, #tpu.memory_space<vmem>>, vector<1x16x16xf32>,
    %604 = vector.extract_strided_slice %312 {offsets = [0, 55], sizes = [16, 9], strides = [1, 1]} : vector<16x64xf32> to vector<16x9xf32>
    %605 = vector.extract_strided_slice %312 {offsets = [0, 0], sizes = [16, 55], strides = [1, 1]} : vector<16x64xf32> to vector<16x55xf32>
    %606 = tpu.concatenate %604, %605 in 1 : vector<16x9xf32>, vector<16x55xf32> -> vector<16x64xf32>
    %607 = vector.extract_strided_slice %0 {offsets = [0, 0], sizes = [1, 64], strides = [1, 1]} : vector<9x64xf32> to vector<1x64xf32>
    %608 = vector.broadcast %607 : vector<1x64xf32> to vector<16x64xf32>
    %609 = arith.mulf %606, %608 : vector<16x64xf32>
    %610 = vector.extract_strided_slice %312 {offsets = [0, 56], sizes = [16, 8], strides = [1, 1]} : vector<16x64xf32> to vector<16x8xf32>
    %611 = vector.extract_strided_slice %312 {offsets = [0, 0], sizes = [16, 56], strides = [1, 1]} : vector<16x64xf32> to vector<16x56xf32>
    %612 = tpu.concatenate %610, %611 in 1 : vector<16x8xf32>, vector<16x56xf32> -> vector<16x64xf32>
    %613 = vector.extract_strided_slice %0 {offsets = [1, 0], sizes = [1, 64], strides = [1, 1]} : vector<9x64xf32> to vector<1x64xf32>
    %614 = vector.broadcast %613 : vector<1x64xf32> to vector<16x64xf32>
    %615 = arith.mulf %612, %614 : vector<16x64xf32>
    %616 = vector.extract_strided_slice %312 {offsets = [0, 57], sizes = [16, 7], strides = [1, 1]} : vector<16x64xf32> to vector<16x7xf32>
    %617 = vector.extract_strided_slice %312 {offsets = [0, 0], sizes = [16, 57], strides = [1, 1]} : vector<16x64xf32> to vector<16x57xf32>
    %618 = tpu.concatenate %616, %617 in 1 : vector<16x7xf32>, vector<16x57xf32> -> vector<16x64xf32>
    %619 = vector.extract_strided_slice %0 {offsets = [2, 0], sizes = [1, 64], strides = [1, 1]} : vector<9x64xf32> to vector<1x64xf32>
    %620 = vector.broadcast %619 : vector<1x64xf32> to vector<16x64xf32>
    %621 = arith.mulf %618, %620 : vector<16x64xf32>
    %622 = vector.extract_strided_slice %312 {offsets = [0, 63], sizes = [16, 1], strides = [1, 1]} : vector<16x64xf32> to vector<16x1xf32>
    %623 = vector.extract_strided_slice %312 {offsets = [0, 0], sizes = [16, 63], strides = [1, 1]} : vector<16x64xf32> to vector<16x63xf32>
    %624 = tpu.concatenate %622, %623 in 1 : vector<16x1xf32>, vector<16x63xf32> -> vector<16x64xf32>
    %625 = vector.extract_strided_slice %0 {offsets = [3, 0], sizes = [1, 64], strides = [1, 1]} : vector<9x64xf32> to vector<1x64xf32>
    %626 = vector.broadcast %625 : vector<1x64xf32> to vector<16x64xf32>
    %627 = arith.mulf %624, %626 : vector<16x64xf32>
    %628 = vector.extract_strided_slice %0 {offsets = [4, 0], sizes = [1, 64], strides = [1, 1]} : vector<9x64xf32> to vector<1x64xf32>
    %629 = vector.broadcast %628 : vector<1x64xf32> to vector<16x64xf32>
    %630 = arith.mulf %312, %629 : vector<16x64xf32>
    %631 = vector.extract_strided_slice %312 {offsets = [0, 1], sizes = [16, 63], strides = [1, 1]} : vector<16x64xf32> to vector<16x63xf32>
    %632 = vector.extract_strided_slice %312 {offsets = [0, 0], sizes = [16, 1], strides = [1, 1]} : vector<16x64xf32> to vector<16x1xf32>
    %633 = tpu.concatenate %631, %632 in 1 : vector<16x63xf32>, vector<16x1xf32> -> vector<16x64xf32>
    %634 = vector.extract_strided_slice %0 {offsets = [5, 0], sizes = [1, 64], strides = [1, 1]} : vector<9x64xf32> to vector<1x64xf32>
    %635 = vector.broadcast %634 : vector<1x64xf32> to vector<16x64xf32>
    %636 = arith.mulf %633, %635 : vector<16x64xf32>
    %637 = vector.extract_strided_slice %312 {offsets = [0, 7], sizes = [16, 57], strides = [1, 1]} : vector<16x64xf32> to vector<16x57xf32>
    %638 = vector.extract_strided_slice %312 {offsets = [0, 0], sizes = [16, 7], strides = [1, 1]} : vector<16x64xf32> to vector<16x7xf32>
    %639 = tpu.concatenate %637, %638 in 1 : vector<16x57xf32>, vector<16x7xf32> -> vector<16x64xf32>
    %640 = vector.extract_strided_slice %0 {offsets = [6, 0], sizes = [1, 64], strides = [1, 1]} : vector<9x64xf32> to vector<1x64xf32>
    %641 = vector.broadcast %640 : vector<1x64xf32> to vector<16x64xf32>
    %642 = arith.mulf %639, %641 : vector<16x64xf32>
    %643 = vector.extract_strided_slice %312 {offsets = [0, 8], sizes = [16, 56], strides = [1, 1]} : vector<16x64xf32> to vector<16x56xf32>
    %644 = vector.extract_strided_slice %312 {offsets = [0, 0], sizes = [16, 8], strides = [1, 1]} : vector<16x64xf32> to vector<16x8xf32>
    %645 = tpu.concatenate %643, %644 in 1 : vector<16x56xf32>, vector<16x8xf32> -> vector<16x64xf32>
    %646 = vector.extract_strided_slice %0 {offsets = [7, 0], sizes = [1, 64], strides = [1, 1]} : vector<9x64xf32> to vector<1x64xf32>
    %647 = vector.broadcast %646 : vector<1x64xf32> to vector<16x64xf32>
    %648 = arith.mulf %645, %647 : vector<16x64xf32>
    %649 = vector.extract_strided_slice %312 {offsets = [0, 9], sizes = [16, 55], strides = [1, 1]} : vector<16x64xf32> to vector<16x55xf32>
    %650 = vector.extract_strided_slice %312 {offsets = [0, 0], sizes = [16, 9], strides = [1, 1]} : vector<16x64xf32> to vector<16x9xf32>
    %651 = tpu.concatenate %649, %650 in 1 : vector<16x55xf32>, vector<16x9xf32> -> vector<16x64xf32>
    %652 = vector.extract_strided_slice %0 {offsets = [8, 0], sizes = [1, 64], strides = [1, 1]} : vector<9x64xf32> to vector<1x64xf32>
    %653 = vector.broadcast %652 : vector<1x64xf32> to vector<16x64xf32>
    %654 = arith.mulf %651, %653 : vector<16x64xf32>
    %655 = tpu.concatenate %609, %615, %621, %627, %630, %636, %642, %648, %654 in 0 : vector<16x64xf32>, vector<16x64xf32>, vector<16x64xf32>, vector<16x64xf32>, vector<16x64xf32>, vector<16x64xf32>, vector<16x64xf32>, vector<16x64xf32>, vector<16x64xf32> -> vector<144x64xf32>
    %656 = vector.extract_strided_slice %454 {offsets = [0, 55], sizes = [16, 9], strides = [1, 1]} : vector<16x64xf32> to vector<16x9xf32>
    %657 = vector.extract_strided_slice %454 {offsets = [0, 0], sizes = [16, 55], strides = [1, 1]} : vector<16x64xf32> to vector<16x55xf32>
    %658 = tpu.concatenate %656, %657 in 1 : vector<16x9xf32>, vector<16x55xf32> -> vector<16x64xf32>
    %659 = vector.extract_strided_slice %0 {offsets = [0, 0], sizes = [1, 64], strides = [1, 1]} : vector<9x64xf32> to vector<1x64xf32>
    %660 = vector.broadcast %659 : vector<1x64xf32> to vector<16x64xf32>
    %661 = arith.mulf %658, %660 : vector<16x64xf32>
    %662 = vector.extract_strided_slice %454 {offsets = [0, 56], sizes = [16, 8], strides = [1, 1]} : vector<16x64xf32> to vector<16x8xf32>
    %663 = vector.extract_strided_slice %454 {offsets = [0, 0], sizes = [16, 56], strides = [1, 1]} : vector<16x64xf32> to vector<16x56xf32>
    %664 = tpu.concatenate %662, %663 in 1 : vector<16x8xf32>, vector<16x56xf32> -> vector<16x64xf32>
    %665 = vector.extract_strided_slice %0 {offsets = [1, 0], sizes = [1, 64], strides = [1, 1]} : vector<9x64xf32> to vector<1x64xf32>
    %666 = vector.broadcast %665 : vector<1x64xf32> to vector<16x64xf32>
    %667 = arith.mulf %664, %666 : vector<16x64xf32>
    %668 = vector.extract_strided_slice %454 {offsets = [0, 57], sizes = [16, 7], strides = [1, 1]} : vector<16x64xf32> to vector<16x7xf32>
    %669 = vector.extract_strided_slice %454 {offsets = [0, 0], sizes = [16, 57], strides = [1, 1]} : vector<16x64xf32> to vector<16x57xf32>
    %670 = tpu.concatenate %668, %669 in 1 : vector<16x7xf32>, vector<16x57xf32> -> vector<16x64xf32>
    %671 = vector.extract_strided_slice %0 {offsets = [2, 0], sizes = [1, 64], strides = [1, 1]} : vector<9x64xf32> to vector<1x64xf32>
    %672 = vector.broadcast %671 : vector<1x64xf32> to vector<16x64xf32>
    %673 = arith.mulf %670, %672 : vector<16x64xf32>
    %674 = vector.extract_strided_slice %454 {offsets = [0, 63], sizes = [16, 1], strides = [1, 1]} : vector<16x64xf32> to vector<16x1xf32>
    %675 = vector.extract_strided_slice %454 {offsets = [0, 0], sizes = [16, 63], strides = [1, 1]} : vector<16x64xf32> to vector<16x63xf32>
    %676 = tpu.concatenate %674, %675 in 1 : vector<16x1xf32>, vector<16x63xf32> -> vector<16x64xf32>
    %677 = vector.extract_strided_slice %0 {offsets = [3, 0], sizes = [1, 64], strides = [1, 1]} : vector<9x64xf32> to vector<1x64xf32>
    %678 = vector.broadcast %677 : vector<1x64xf32> to vector<16x64xf32>
    %679 = arith.mulf %676, %678 : vector<16x64xf32>
    %680 = vector.extract_strided_slice %0 {offsets = [4, 0], sizes = [1, 64], strides = [1, 1]} : vector<9x64xf32> to vector<1x64xf32>
    %681 = vector.broadcast %680 : vector<1x64xf32> to vector<16x64xf32>
    %682 = arith.mulf %454, %681 : vector<16x64xf32>
    %683 = vector.extract_strided_slice %454 {offsets = [0, 1], sizes = [16, 63], strides = [1, 1]} : vector<16x64xf32> to vector<16x63xf32>
    %684 = vector.extract_strided_slice %454 {offsets = [0, 0], sizes = [16, 1], strides = [1, 1]} : vector<16x64xf32> to vector<16x1xf32>
    %685 = tpu.concatenate %683, %684 in 1 : vector<16x63xf32>, vector<16x1xf32> -> vector<16x64xf32>
    %686 = vector.extract_strided_slice %0 {offsets = [5, 0], sizes = [1, 64], strides = [1, 1]} : vector<9x64xf32> to vector<1x64xf32>
    %687 = vector.broadcast %686 : vector<1x64xf32> to vector<16x64xf32>
    %688 = arith.mulf %685, %687 : vector<16x64xf32>
    %689 = vector.extract_strided_slice %454 {offsets = [0, 7], sizes = [16, 57], strides = [1, 1]} : vector<16x64xf32> to vector<16x57xf32>
    %690 = vector.extract_strided_slice %454 {offsets = [0, 0], sizes = [16, 7], strides = [1, 1]} : vector<16x64xf32> to vector<16x7xf32>
    %691 = tpu.concatenate %689, %690 in 1 : vector<16x57xf32>, vector<16x7xf32> -> vector<16x64xf32>
    %692 = vector.extract_strided_slice %0 {offsets = [6, 0], sizes = [1, 64], strides = [1, 1]} : vector<9x64xf32> to vector<1x64xf32>
    %693 = vector.broadcast %692 : vector<1x64xf32> to vector<16x64xf32>
    %694 = arith.mulf %691, %693 : vector<16x64xf32>
    %695 = vector.extract_strided_slice %454 {offsets = [0, 8], sizes = [16, 56], strides = [1, 1]} : vector<16x64xf32> to vector<16x56xf32>
    %696 = vector.extract_strided_slice %454 {offsets = [0, 0], sizes = [16, 8], strides = [1, 1]} : vector<16x64xf32> to vector<16x8xf32>
    %697 = tpu.concatenate %695, %696 in 1 : vector<16x56xf32>, vector<16x8xf32> -> vector<16x64xf32>
    %698 = vector.extract_strided_slice %0 {offsets = [7, 0], sizes = [1, 64], strides = [1, 1]} : vector<9x64xf32> to vector<1x64xf32>
    %699 = vector.broadcast %698 : vector<1x64xf32> to vector<16x64xf32>
    %700 = arith.mulf %697, %699 : vector<16x64xf32>
    %701 = vector.extract_strided_slice %454 {offsets = [0, 9], sizes = [16, 55], strides = [1, 1]} : vector<16x64xf32> to vector<16x55xf32>
    %702 = vector.extract_strided_slice %454 {offsets = [0, 0], sizes = [16, 9], strides = [1, 1]} : vector<16x64xf32> to vector<16x9xf32>
    %703 = tpu.concatenate %701, %702 in 1 : vector<16x55xf32>, vector<16x9xf32> -> vector<16x64xf32>
    %704 = vector.extract_strided_slice %0 {offsets = [8, 0], sizes = [1, 64], strides = [1, 1]} : vector<9x64xf32> to vector<1x64xf32>
    %705 = vector.broadcast %704 : vector<1x64xf32> to vector<16x64xf32>
    %706 = arith.mulf %703, %705 : vector<16x64xf32>
    %707 = tpu.concatenate %661, %667, %673, %679, %682, %688, %694, %700, %706 in 0 : vector<16x64xf32>, vector<16x64xf32>, vector<16x64xf32>, vector<16x64xf32>, vector<16x64xf32>, vector<16x64xf32>, vector<16x64xf32>, vector<16x64xf32>, vector<16x64xf32> -> vector<144x64xf32>
    %708 = tpu.concatenate %655, %707 in 0 : vector<144x64xf32>, vector<144x64xf32> -> vector<288x64xf32>
    %709 = arith.truncf %708 : vector<288x64xf32> to vector<288x64xbf16>
    %cst_69 = arith.constant dense<0.000000e+00> : vector<64x64xf32>
    %710 = tpu.matmul %314, %709, %cst_69 {dimension_numbers = #tpu.dot_dimension_numbers<[1], [0], [0], [1], [0, 0, 1, 1], [], []>} : vector<64x288xbf16>, vector<288x64xbf16>, vector<64x64xf32> -> vector<64x64xf32>
    %711 = vector.broadcast %317 : vector<64x1xf32> to vector<64x64xf32>
    %712 = arith.addf %710, %711 : vector<64x64xf32>
    %713 = vector.extract_strided_slice %712 {offsets = [0, 0], sizes = [16, 64], strides = [1, 1]} : vector<64x64xf32> to vector<16x64xf32>
    %714 = arith.negf %713 : vector<16x64xf32>
    %715 = math.exp %714 : vector<16x64xf32>
    %cst_70 = arith.constant 1.000000e+00 : f32
    %716 = vector.broadcast %cst_70 : f32 to vector<16x64xf32>
    %717 = arith.addf %716, %715 : vector<16x64xf32>
    %718 = arith.divf %716, %717 : vector<16x64xf32>
    %719 = vector.extract_strided_slice %712 {offsets = [16, 0], sizes = [16, 64], strides = [1, 1]} : vector<64x64xf32> to vector<16x64xf32>
    %720 = arith.negf %719 : vector<16x64xf32>
    %721 = math.exp %720 : vector<16x64xf32>
    %cst_71 = arith.constant 1.000000e+00 : f32
    %722 = vector.broadcast %cst_71 : f32 to vector<16x64xf32>
    %723 = arith.addf %722, %721 : vector<16x64xf32>
    %724 = arith.divf %722, %723 : vector<16x64xf32>
    %725 = vector.extract_strided_slice %712 {offsets = [32, 0], sizes = [16, 64], strides = [1, 1]} : vector<64x64xf32> to vector<16x64xf32>
    %726 = arith.negf %725 : vector<16x64xf32>
    %727 = math.exp %726 : vector<16x64xf32>
    %cst_72 = arith.constant 1.000000e+00 : f32
    %728 = vector.broadcast %cst_72 : f32 to vector<16x64xf32>
    %729 = arith.addf %728, %727 : vector<16x64xf32>
    %730 = arith.divf %728, %729 : vector<16x64xf32>
    %731 = vector.extract_strided_slice %712 {offsets = [48, 0], sizes = [16, 64], strides = [1, 1]} : vector<64x64xf32> to vector<16x64xf32>
    %732 = math.tanh %731 : vector<16x64xf32>
    %733 = arith.mulf %724, %452 : vector<16x64xf32>
    %734 = arith.mulf %718, %732 : vector<16x64xf32>
    %735 = arith.addf %733, %734 : vector<16x64xf32>
    %736 = math.tanh %735 : vector<16x64xf32>
    %737 = arith.mulf %730, %736 : vector<16x64xf32>
    %738 = vector.extract_strided_slice %737 {offsets = [0, 55], sizes = [16, 9], strides = [1, 1]} : vector<16x64xf32> to vector<16x9xf32>
    %739 = vector.extract_strided_slice %737 {offsets = [0, 0], sizes = [16, 55], strides = [1, 1]} : vector<16x64xf32> to vector<16x55xf32>
    %740 = tpu.concatenate %738, %739 in 1 : vector<16x9xf32>, vector<16x55xf32> -> vector<16x64xf32>
    %741 = vector.extract_strided_slice %0 {offsets = [0, 0], sizes = [1, 64], strides = [1, 1]} : vector<9x64xf32> to vector<1x64xf32>
    %742 = vector.broadcast %741 : vector<1x64xf32> to vector<16x64xf32>
    %743 = arith.mulf %740, %742 : vector<16x64xf32>
    %744 = vector.extract_strided_slice %737 {offsets = [0, 56], sizes = [16, 8], strides = [1, 1]} : vector<16x64xf32> to vector<16x8xf32>
    %745 = vector.extract_strided_slice %737 {offsets = [0, 0], sizes = [16, 56], strides = [1, 1]} : vector<16x64xf32> to vector<16x56xf32>
    %746 = tpu.concatenate %744, %745 in 1 : vector<16x8xf32>, vector<16x56xf32> -> vector<16x64xf32>
    %747 = vector.extract_strided_slice %0 {offsets = [1, 0], sizes = [1, 64], strides = [1, 1]} : vector<9x64xf32> to vector<1x64xf32>
    %748 = vector.broadcast %747 : vector<1x64xf32> to vector<16x64xf32>
    %749 = arith.mulf %746, %748 : vector<16x64xf32>
    %750 = vector.extract_strided_slice %737 {offsets = [0, 57], sizes = [16, 7], strides = [1, 1]} : vector<16x64xf32> to vector<16x7xf32>
    %751 = vector.extract_strided_slice %737 {offsets = [0, 0], sizes = [16, 57], strides = [1, 1]} : vector<16x64xf32> to vector<16x57xf32>
    %752 = tpu.concatenate %750, %751 in 1 : vector<16x7xf32>, vector<16x57xf32> -> vector<16x64xf32>
    %753 = vector.extract_strided_slice %0 {offsets = [2, 0], sizes = [1, 64], strides = [1, 1]} : vector<9x64xf32> to vector<1x64xf32>
    %754 = vector.broadcast %753 : vector<1x64xf32> to vector<16x64xf32>
    %755 = arith.mulf %752, %754 : vector<16x64xf32>
    %756 = vector.extract_strided_slice %737 {offsets = [0, 63], sizes = [16, 1], strides = [1, 1]} : vector<16x64xf32> to vector<16x1xf32>
    %757 = vector.extract_strided_slice %737 {offsets = [0, 0], sizes = [16, 63], strides = [1, 1]} : vector<16x64xf32> to vector<16x63xf32>
    %758 = tpu.concatenate %756, %757 in 1 : vector<16x1xf32>, vector<16x63xf32> -> vector<16x64xf32>
    %759 = vector.extract_strided_slice %0 {offsets = [3, 0], sizes = [1, 64], strides = [1, 1]} : vector<9x64xf32> to vector<1x64xf32>
    %760 = vector.broadcast %759 : vector<1x64xf32> to vector<16x64xf32>
    %761 = arith.mulf %758, %760 : vector<16x64xf32>
    %762 = vector.extract_strided_slice %0 {offsets = [4, 0], sizes = [1, 64], strides = [1, 1]} : vector<9x64xf32> to vector<1x64xf32>
    %763 = vector.broadcast %762 : vector<1x64xf32> to vector<16x64xf32>
    %764 = arith.mulf %737, %763 : vector<16x64xf32>
    %765 = vector.extract_strided_slice %737 {offsets = [0, 1], sizes = [16, 63], strides = [1, 1]} : vector<16x64xf32> to vector<16x63xf32>
    %766 = vector.extract_strided_slice %737 {offsets = [0, 0], sizes = [16, 1], strides = [1, 1]} : vector<16x64xf32> to vector<16x1xf32>
    %767 = tpu.concatenate %765, %766 in 1 : vector<16x63xf32>, vector<16x1xf32> -> vector<16x64xf32>
    %768 = vector.extract_strided_slice %0 {offsets = [5, 0], sizes = [1, 64], strides = [1, 1]} : vector<9x64xf32> to vector<1x64xf32>
    %769 = vector.broadcast %768 : vector<1x64xf32> to vector<16x64xf32>
    %770 = arith.mulf %767, %769 : vector<16x64xf32>
    %771 = vector.extract_strided_slice %737 {offsets = [0, 7], sizes = [16, 57], strides = [1, 1]} : vector<16x64xf32> to vector<16x57xf32>
    %772 = vector.extract_strided_slice %737 {offsets = [0, 0], sizes = [16, 7], strides = [1, 1]} : vector<16x64xf32> to vector<16x7xf32>
    %773 = tpu.concatenate %771, %772 in 1 : vector<16x57xf32>, vector<16x7xf32> -> vector<16x64xf32>
    %774 = vector.extract_strided_slice %0 {offsets = [6, 0], sizes = [1, 64], strides = [1, 1]} : vector<9x64xf32> to vector<1x64xf32>
    %775 = vector.broadcast %774 : vector<1x64xf32> to vector<16x64xf32>
    %776 = arith.mulf %773, %775 : vector<16x64xf32>
    %777 = vector.extract_strided_slice %737 {offsets = [0, 8], sizes = [16, 56], strides = [1, 1]} : vector<16x64xf32> to vector<16x56xf32>
    %778 = vector.extract_strided_slice %737 {offsets = [0, 0], sizes = [16, 8], strides = [1, 1]} : vector<16x64xf32> to vector<16x8xf32>
    %779 = tpu.concatenate %777, %778 in 1 : vector<16x56xf32>, vector<16x8xf32> -> vector<16x64xf32>
    %780 = vector.extract_strided_slice %0 {offsets = [7, 0], sizes = [1, 64], strides = [1, 1]} : vector<9x64xf32> to vector<1x64xf32>
    %781 = vector.broadcast %780 : vector<1x64xf32> to vector<16x64xf32>
    %782 = arith.mulf %779, %781 : vector<16x64xf32>
    %783 = vector.extract_strided_slice %737 {offsets = [0, 9], sizes = [16, 55], strides = [1, 1]} : vector<16x64xf32> to vector<16x55xf32>
    %784 = vector.extract_strided_slice %737 {offsets = [0, 0], sizes = [16, 9], strides = [1, 1]} : vector<16x64xf32> to vector<16x9xf32>
    %785 = tpu.concatenate %783, %784 in 1 : vector<16x55xf32>, vector<16x9xf32> -> vector<16x64xf32>
    %786 = vector.extract_strided_slice %0 {offsets = [8, 0], sizes = [1, 64], strides = [1, 1]} : vector<9x64xf32> to vector<1x64xf32>
    %787 = vector.broadcast %786 : vector<1x64xf32> to vector<16x64xf32>
    %788 = arith.mulf %785, %787 : vector<16x64xf32>
    %789 = tpu.concatenate %743, %749, %755, %761, %764, %770, %776, %782, %788 in 0 : vector<16x64xf32>, vector<16x64xf32>, vector<16x64xf32>, vector<16x64xf32>, vector<16x64xf32>, vector<16x64xf32>, vector<16x64xf32>, vector<16x64xf32>, vector<16x64xf32> -> vector<144x64xf32>
    %790 = vector.extract_strided_slice %588 {offsets = [0, 55], sizes = [16, 9], strides = [1, 1]} : vector<16x64xf32> to vector<16x9xf32>
    %791 = vector.extract_strided_slice %588 {offsets = [0, 0], sizes = [16, 55], strides = [1, 1]} : vector<16x64xf32> to vector<16x55xf32>
    %792 = tpu.concatenate %790, %791 in 1 : vector<16x9xf32>, vector<16x55xf32> -> vector<16x64xf32>
    %793 = vector.extract_strided_slice %0 {offsets = [0, 0], sizes = [1, 64], strides = [1, 1]} : vector<9x64xf32> to vector<1x64xf32>
    %794 = vector.broadcast %793 : vector<1x64xf32> to vector<16x64xf32>
    %795 = arith.mulf %792, %794 : vector<16x64xf32>
    %796 = vector.extract_strided_slice %588 {offsets = [0, 56], sizes = [16, 8], strides = [1, 1]} : vector<16x64xf32> to vector<16x8xf32>
    %797 = vector.extract_strided_slice %588 {offsets = [0, 0], sizes = [16, 56], strides = [1, 1]} : vector<16x64xf32> to vector<16x56xf32>
    %798 = tpu.concatenate %796, %797 in 1 : vector<16x8xf32>, vector<16x56xf32> -> vector<16x64xf32>
    %799 = vector.extract_strided_slice %0 {offsets = [1, 0], sizes = [1, 64], strides = [1, 1]} : vector<9x64xf32> to vector<1x64xf32>
    %800 = vector.broadcast %799 : vector<1x64xf32> to vector<16x64xf32>
    %801 = arith.mulf %798, %800 : vector<16x64xf32>
    %802 = vector.extract_strided_slice %588 {offsets = [0, 57], sizes = [16, 7], strides = [1, 1]} : vector<16x64xf32> to vector<16x7xf32>
    %803 = vector.extract_strided_slice %588 {offsets = [0, 0], sizes = [16, 57], strides = [1, 1]} : vector<16x64xf32> to vector<16x57xf32>
    %804 = tpu.concatenate %802, %803 in 1 : vector<16x7xf32>, vector<16x57xf32> -> vector<16x64xf32>
    %805 = vector.extract_strided_slice %0 {offsets = [2, 0], sizes = [1, 64], strides = [1, 1]} : vector<9x64xf32> to vector<1x64xf32>
    %806 = vector.broadcast %805 : vector<1x64xf32> to vector<16x64xf32>
    %807 = arith.mulf %804, %806 : vector<16x64xf32>
    %808 = vector.extract_strided_slice %588 {offsets = [0, 63], sizes = [16, 1], strides = [1, 1]} : vector<16x64xf32> to vector<16x1xf32>
    %809 = vector.extract_strided_slice %588 {offsets = [0, 0], sizes = [16, 63], strides = [1, 1]} : vector<16x64xf32> to vector<16x63xf32>
    %810 = tpu.concatenate %808, %809 in 1 : vector<16x1xf32>, vector<16x63xf32> -> vector<16x64xf32>
    %811 = vector.extract_strided_slice %0 {offsets = [3, 0], sizes = [1, 64], strides = [1, 1]} : vector<9x64xf32> to vector<1x64xf32>
    %812 = vector.broadcast %811 : vector<1x64xf32> to vector<16x64xf32>
    %813 = arith.mulf %810, %812 : vector<16x64xf32>
    %814 = vector.extract_strided_slice %0 {offsets = [4, 0], sizes = [1, 64], strides = [1, 1]} : vector<9x64xf32> to vector<1x64xf32>
    %815 = vector.broadcast %814 : vector<1x64xf32> to vector<16x64xf32>
    %816 = arith.mulf %588, %815 : vector<16x64xf32>
    %817 = vector.extract_strided_slice %588 {offsets = [0, 1], sizes = [16, 63], strides = [1, 1]} : vector<16x64xf32> to vector<16x63xf32>
    %818 = vector.extract_strided_slice %588 {offsets = [0, 0], sizes = [16, 1], strides = [1, 1]} : vector<16x64xf32> to vector<16x1xf32>
    %819 = tpu.concatenate %817, %818 in 1 : vector<16x63xf32>, vector<16x1xf32> -> vector<16x64xf32>
    %820 = vector.extract_strided_slice %0 {offsets = [5, 0], sizes = [1, 64], strides = [1, 1]} : vector<9x64xf32> to vector<1x64xf32>
    %821 = vector.broadcast %820 : vector<1x64xf32> to vector<16x64xf32>
    %822 = arith.mulf %819, %821 : vector<16x64xf32>
    %823 = vector.extract_strided_slice %588 {offsets = [0, 7], sizes = [16, 57], strides = [1, 1]} : vector<16x64xf32> to vector<16x57xf32>
    %824 = vector.extract_strided_slice %588 {offsets = [0, 0], sizes = [16, 7], strides = [1, 1]} : vector<16x64xf32> to vector<16x7xf32>
    %825 = tpu.concatenate %823, %824 in 1 : vector<16x57xf32>, vector<16x7xf32> -> vector<16x64xf32>
    %826 = vector.extract_strided_slice %0 {offsets = [6, 0], sizes = [1, 64], strides = [1, 1]} : vector<9x64xf32> to vector<1x64xf32>
    %827 = vector.broadcast %826 : vector<1x64xf32> to vector<16x64xf32>
    %828 = arith.mulf %825, %827 : vector<16x64xf32>
    %829 = vector.extract_strided_slice %588 {offsets = [0, 8], sizes = [16, 56], strides = [1, 1]} : vector<16x64xf32> to vector<16x56xf32>
    %830 = vector.extract_strided_slice %588 {offsets = [0, 0], sizes = [16, 8], strides = [1, 1]} : vector<16x64xf32> to vector<16x8xf32>
    %831 = tpu.concatenate %829, %830 in 1 : vector<16x56xf32>, vector<16x8xf32> -> vector<16x64xf32>
    %832 = vector.extract_strided_slice %0 {offsets = [7, 0], sizes = [1, 64], strides = [1, 1]} : vector<9x64xf32> to vector<1x64xf32>
    %833 = vector.broadcast %832 : vector<1x64xf32> to vector<16x64xf32>
    %834 = arith.mulf %831, %833 : vector<16x64xf32>
    %835 = vector.extract_strided_slice %588 {offsets = [0, 9], sizes = [16, 55], strides = [1, 1]} : vector<16x64xf32> to vector<16x55xf32>
    %836 = vector.extract_strided_slice %588 {offsets = [0, 0], sizes = [16, 9], strides = [1, 1]} : vector<16x64xf32> to vector<16x9xf32>
    %837 = tpu.concatenate %835, %836 in 1 : vector<16x55xf32>, vector<16x9xf32> -> vector<16x64xf32>
    %838 = vector.extract_strided_slice %0 {offsets = [8, 0], sizes = [1, 64], strides = [1, 1]} : vector<9x64xf32> to vector<1x64xf32>
    %839 = vector.broadcast %838 : vector<1x64xf32> to vector<16x64xf32>
    %840 = arith.mulf %837, %839 : vector<16x64xf32>
    %841 = tpu.concatenate %795, %801, %807, %813, %816, %822, %828, %834, %840 in 0 : vector<16x64xf32>, vector<16x64xf32>, vector<16x64xf32>, vector<16x64xf32>, vector<16x64xf32>, vector<16x64xf32>, vector<16x64xf32>, vector<16x64xf32>, vector<16x64xf32> -> vector<144x64xf32>
    %842 = tpu.concatenate %789, %841 in 0 : vector<144x64xf32>, vector<144x64xf32> -> vector<288x64xf32>
    %843 = arith.truncf %842 : vector<288x64xf32> to vector<288x64xbf16>
    %cst_73 = arith.constant dense<0.000000e+00> : vector<64x64xf32>
    %844 = tpu.matmul %316, %843, %cst_73 {dimension_numbers = #tpu.dot_dimension_numbers<[1], [0], [0], [1], [0, 0, 1, 1], [], []>} : vector<64x288xbf16>, vector<288x64xbf16>, vector<64x64xf32> -> vector<64x64xf32>
    %845 = vector.broadcast %318 : vector<64x1xf32> to vector<64x64xf32>
    %846 = arith.addf %844, %845 : vector<64x64xf32>
    %847 = vector.extract_strided_slice %846 {offsets = [0, 0], sizes = [16, 64], strides = [1, 1]} : vector<64x64xf32> to vector<16x64xf32>
    %848 = arith.negf %847 : vector<16x64xf32>
    %849 = math.exp %848 : vector<16x64xf32>
    %cst_74 = arith.constant 1.000000e+00 : f32
    %850 = vector.broadcast %cst_74 : f32 to vector<16x64xf32>
    %851 = arith.addf %850, %849 : vector<16x64xf32>
    %852 = arith.divf %850, %851 : vector<16x64xf32>
    %853 = vector.extract_strided_slice %846 {offsets = [16, 0], sizes = [16, 64], strides = [1, 1]} : vector<64x64xf32> to vector<16x64xf32>
    %854 = arith.negf %853 : vector<16x64xf32>
    %855 = math.exp %854 : vector<16x64xf32>
    %cst_75 = arith.constant 1.000000e+00 : f32
    %856 = vector.broadcast %cst_75 : f32 to vector<16x64xf32>
    %857 = arith.addf %856, %855 : vector<16x64xf32>
    %858 = arith.divf %856, %857 : vector<16x64xf32>
    %859 = vector.extract_strided_slice %846 {offsets = [32, 0], sizes = [16, 64], strides = [1, 1]} : vector<64x64xf32> to vector<16x64xf32>
    %860 = arith.negf %859 : vector<16x64xf32>
    %861 = math.exp %860 : vector<16x64xf32>
    %cst_76 = arith.constant 1.000000e+00 : f32
    %862 = vector.broadcast %cst_76 : f32 to vector<16x64xf32>
    %863 = arith.addf %862, %861 : vector<16x64xf32>
    %864 = arith.divf %862, %863 : vector<16x64xf32>
    %865 = vector.extract_strided_slice %846 {offsets = [48, 0], sizes = [16, 64], strides = [1, 1]} : vector<64x64xf32> to vector<16x64xf32>
    %866 = math.tanh %865 : vector<16x64xf32>
    %867 = arith.mulf %858, %586 : vector<16x64xf32>
    %868 = arith.mulf %852, %866 : vector<16x64xf32>
    %869 = arith.addf %867, %868 : vector<16x64xf32>
    %870 = math.tanh %869 : vector<16x64xf32>
    %871 = arith.mulf %864, %870 : vector<16x64xf32>
    %c1_77 = arith.constant 1 : index
    %c0_78 = arith.constant 0 : index
    %c0_79 = arith.constant 0 : index
    %872 = vector.load %arg13[%c1_77, %c0_78, %c0_79] : memref<2x16x64xf32, #tpu.memory_space<vmem>>, vector<1x16x64xf32>
    %873 = vector.shape_cast %872 : vector<1x16x64xf32> to vector<16x64xf32>
    %874 = vector.shape_cast %871 : vector<16x64xf32> to vector<1x16x64xf32>
    tpu.vector_store %arg13[%c1_77, %c0_78, %c0_79], %874 {strides = array<i32>} : memref<2x16x64xf32, #tpu.memory_space<vmem>>, vector<1x16x64xf32>,
    %875 = vector.extract_strided_slice %871 {offsets = [0, 1], sizes = [16, 63], strides = [1, 1]} : vector<16x64xf32> to vector<16x63xf32>
    %876 = vector.extract_strided_slice %871 {offsets = [0, 0], sizes = [16, 1], strides = [1, 1]} : vector<16x64xf32> to vector<16x1xf32>
    %877 = tpu.concatenate %875, %876 in 1 : vector<16x63xf32>, vector<16x1xf32> -> vector<16x64xf32>
    %878 = arith.maximumf %871, %877 : vector<16x64xf32>
    %879 = vector.extract_strided_slice %878 {offsets = [0, 8], sizes = [16, 56], strides = [1, 1]} : vector<16x64xf32> to vector<16x56xf32>
    %880 = vector.extract_strided_slice %878 {offsets = [0, 0], sizes = [16, 8], strides = [1, 1]} : vector<16x64xf32> to vector<16x8xf32>
    %881 = tpu.concatenate %879, %880 in 1 : vector<16x56xf32>, vector<16x8xf32> -> vector<16x64xf32>
    %882 = arith.maximumf %878, %881 : vector<16x64xf32>
    %cst_80 = arith.constant dense<0.000000e+00> : vector<16x16xf32>
    %883 = tpu.matmul %882, %319, %cst_80 {dimension_numbers = #tpu.dot_dimension_numbers<[1], [0], [0], [1], [0, 0, 1, 1], [], []>} : vector<16x64xf32>, vector<64x16xf32>, vector<16x16xf32> -> vector<16x16xf32>
    %c1_81 = arith.constant 1 : index
    %c0_82 = arith.constant 0 : index
    %c0_83 = arith.constant 0 : index
    %884 = vector.load %arg14[%c1_81, %c0_82, %c0_83] : memref<2x16x16xf32, #tpu.memory_space<vmem>>, vector<1x16x16xf32>
    %885 = vector.shape_cast %884 : vector<1x16x16xf32> to vector<16x16xf32>
    %886 = vector.shape_cast %883 : vector<16x16xf32> to vector<1x16x16xf32>
    tpu.vector_store %arg14[%c1_81, %c0_82, %c0_83], %886 {strides = array<i32>} : memref<2x16x16xf32, #tpu.memory_space<vmem>>, vector<1x16x16xf32>,
    return
  }
}

</mosaic_0001>

<llo_original>
// kernel: _lambda_.3
$region0: #{_lambda_.3}
  #allocation0 [shape = 'u32[]', space=smem, size = 0x4, offset = 0x4, fixed_abs, tag = 'smem constant byte address 0x4 - core index']
  #allocation1 [shape = 'u32[144,128]{1,0:T(1,128)}', space=vmem, size = 0x12000, scoped, tag = 'internal scratch']
  %s0 = inlined_call_operand.vmem [shape: f32[2,8,64], index: 0, kind: input, shape index: {}]
  %s1 = inlined_call_operand.vmem [shape: f32[9,64], index: 1, kind: input, shape index: {}]
  %s2 = inlined_call_operand.vmem [shape: f32[64,16], index: 2, kind: input, shape index: {}]
  %s3 = inlined_call_operand.vmem [shape: f32[16,72], index: 3, kind: input, shape index: {}]
  %s4 = inlined_call_operand.vmem [shape: f32[16,1], index: 4, kind: input, shape index: {}, may-alias: {4,7}]
  %s5 = inlined_call_operand.vmem [shape: f32[16,1], index: 5, kind: input, shape index: {}, may-alias: {5,8}]
  %s6 = inlined_call_operand.vmem [shape: f32[16,144], index: 6, kind: input, shape index: {}]
  %s7 = inlined_call_operand.vmem [shape: f32[16,1], index: 7, kind: input, shape index: {}, may-alias: {4,7}]
  %s8 = inlined_call_operand.vmem [shape: f32[16,1], index: 8, kind: input, shape index: {}, may-alias: {5,8}]
  %s9 = inlined_call_operand.vmem [shape: f32[64,288], index: 9, kind: input, shape index: {}]
  %s10 = inlined_call_operand.vmem [shape: f32[64,1], index: 10, kind: input, shape index: {}, may-alias: {10,12}]
  %s11 = inlined_call_operand.vmem [shape: f32[64,288], index: 11, kind: input, shape index: {}]
  %s12 = inlined_call_operand.vmem [shape: f32[64,1], index: 12, kind: input, shape index: {}, may-alias: {10,12}]
  %s13 = inlined_call_operand.vmem [shape: f32[2,16,64], index: 13, kind: output, shape index: {0}]
  %s14 = inlined_call_operand.vmem [shape: f32[2,16,16], index: 14, kind: output, shape index: {1}]
  %15 = xla_tuple %s13, %s14
  %s16 = sld [smem:[#allocation0]]
  $region70: #{_lambda_.3} parent=0
    _
  %s18 = ssub.s32 1, %s16
  %s19 = scalar_select 0, %s18, %s16
  // Predicated region
  $region2: #{_lambda_.3} parent=0 // pred_check
    _
  $region3: #{_lambda_.3} parent=0 // pred_check_branch
    %21 = sbr.rel (0) target = $region5
  $region4: #{_lambda_.3} parent=0 // pred_region
    _
  $region5: #{_lambda_.3} parent=0 // pred_fallthru
    _
  // Predicated region
  $region6: #{_lambda_.3} parent=0 // pred_check
    _
  $region7: #{_lambda_.3} parent=0 // pred_check_branch
    %23 = sbr.rel (0) target = $region9
  $region8: #{_lambda_.3} parent=0 // pred_region
    _
  $region9: #{_lambda_.3} parent=0 // pred_fallthru
    _
  // Predicated region
  $region10: #{_lambda_.3} parent=0 // pred_check
    _
  $region11: #{_lambda_.3} parent=0 // pred_check_branch
    %25 = sbr.rel (0) target = $region13
  $region12: #{_lambda_.3} parent=0 // pred_region
    _
  $region13: #{_lambda_.3} parent=0 // pred_fallthru
    _
  // Predicated region
  $region14: #{_lambda_.3} parent=0 // pred_check
    _
  $region15: #{_lambda_.3} parent=0 // pred_check_branch
    %27 = sbr.rel (0) target = $region17
  $region16: #{_lambda_.3} parent=0 // pred_region
    _
  $region17: #{_lambda_.3} parent=0 // pred_fallthru
    _
  // Predicated region
  $region18: #{_lambda_.3} parent=0 // pred_check
    _
  $region19: #{_lambda_.3} parent=0 // pred_check_branch
    %29 = sbr.rel (0) target = $region21
  $region20: #{_lambda_.3} parent=0 // pred_region
    _
  $region21: #{_lambda_.3} parent=0 // pred_fallthru
    _
  // Predicated region
  $region22: #{_lambda_.3} parent=0 // pred_check
    _
  $region23: #{_lambda_.3} parent=0 // pred_check_branch
    %31 = sbr.rel (0) target = $region25
  $region24: #{_lambda_.3} parent=0 // pred_region
    _
  $region25: #{_lambda_.3} parent=0 // pred_fallthru
    _
  // Predicated region
  $region26: #{_lambda_.3} parent=0 // pred_check
    _
  $region27: #{_lambda_.3} parent=0 // pred_check_branch
    %33 = sbr.rel (0) target = $region29
  $region28: #{_lambda_.3} parent=0 // pred_region
    _
  $region29: #{_lambda_.3} parent=0 // pred_fallthru
    _
  // Predicated region
  $region30: #{_lambda_.3} parent=0 // pred_check
    _
  $region31: #{_lambda_.3} parent=0 // pred_check_branch
    %35 = sbr.rel (0) target = $region33
  $region32: #{_lambda_.3} parent=0 // pred_region
    _
  $region33: #{_lambda_.3} parent=0 // pred_fallthru
    _
  // Predicated region
  $region34: #{_lambda_.3} parent=0 // pred_check
    _
  $region35: #{_lambda_.3} parent=0 // pred_check_branch
    %37 = sbr.rel (0) target = $region37
  $region36: #{_lambda_.3} parent=0 // pred_region
    _
  $region37: #{_lambda_.3} parent=0 // pred_fallthru
    _
  // Predicated region
  $region38: #{_lambda_.3} parent=0 // pred_check
    _
  $region39: #{_lambda_.3} parent=0 // pred_check_branch
    %39 = sbr.rel (0) target = $region41
  $region40: #{_lambda_.3} parent=0 // pred_region
    _
  $region41: #{_lambda_.3} parent=0 // pred_fallthru
    _
  // Predicated region
  $region42: #{_lambda_.3} parent=0 // pred_check
    _
  $region43: #{_lambda_.3} parent=0 // pred_check_branch
    %41 = sbr.rel (0) target = $region45
  $region44: #{_lambda_.3} parent=0 // pred_region
    _
  $region45: #{_lambda_.3} parent=0 // pred_fallthru
    _
  // Predicated region
  $region46: #{_lambda_.3} parent=0 // pred_check
    _
  $region47: #{_lambda_.3} parent=0 // pred_check_branch
    %43 = sbr.rel (0) target = $region49
  $region48: #{_lambda_.3} parent=0 // pred_region
    _
  $region49: #{_lambda_.3} parent=0 // pred_fallthru
    _
  // Predicated region
  $region50: #{_lambda_.3} parent=0 // pred_check
    _
  $region51: #{_lambda_.3} parent=0 // pred_check_branch
    %45 = sbr.rel (0) target = $region53
  $region52: #{_lambda_.3} parent=0 // pred_region
    _
  $region53: #{_lambda_.3} parent=0 // pred_fallthru
    _
  %v47 = vld [vmem:[%s1] sm:$0xff]
  %v48 = vld [vmem:[%s1 + $0x8] sm:$0x1]
  %v49 = vld [vmem:[%s0] sm:$0xff]
  %s50 = scalar_lea.vmem %s0, 8
  %v51 = vld [vmem:[%s50] sm:$0xff]
  %v52 = vld [vmem:[%s3] sm:$0xff]
  %v53 = vld [vmem:[%s3 + $0x8] sm:$0xff]
  %v54 = vpack.c.bf16 %v53, %v52
  %56 = vrot.lane.b32.xlu0 %v49, 73
  %v57 = vpop.permute.xlu0 %56
  %59 = vrot.lane.b32.xlu0 %v49, 9
  %v60 = vpop.permute.xlu0 %59
  %vm62 = vcmask 72704
  %v63 = vsel %vm62, %v57, %v60
  %v64 = vlaneseq
  %v65 = vshrl.u32 %v64, 7
  %v66 = vsub.s32 0, %v65
  %v67 = vrot.slane %v47, %v66
  %v68 = vmul.f32 %v63, %v67
  %69 = vrot.lane.b32.xlu0 %v49, 72
  %v70 = vpop.permute.xlu0 %69
  %72 = vrot.lane.b32.xlu0 %v49, 8
  %v73 = vpop.permute.xlu0 %72
  %vm75 = vcmask 64512
  %v76 = vsel %vm75, %v70, %v73
  %v77 = vlaneseq
  %v78 = vshrl.u32 %v77, 7
  %v79 = vsub.s32 1, %v78
  %v80 = vrot.slane %v47, %v79
  %v81 = vmul.f32 %v76, %v80
  %82 = vrot.lane.b32.xlu0 %v49, 71
  %v83 = vpop.permute.xlu0 %82
  %85 = vrot.lane.b32.xlu0 %v49, 7
  %v86 = vpop.permute.xlu0 %85
  %vm88 = vcmask 56320
  %v89 = vsel %vm88, %v83, %v86
  %v90 = vlaneseq
  %v91 = vshrl.u32 %v90, 7
  %v92 = vsub.s32 2, %v91
  %v93 = vrot.slane %v47, %v92
  %v94 = vmul.f32 %v89, %v93
  %95 = vrot.lane.b32.xlu0 %v49, 65
  %v96 = vpop.permute.xlu0 %95
  %98 = vrot.lane.b32.xlu0 %v49, 1
  %v99 = vpop.permute.xlu0 %98
  %vm101 = vcmask 7168
  %v102 = vsel %vm101, %v96, %v99
  %v103 = vlaneseq
  %v104 = vshrl.u32 %v103, 7
  %v105 = vsub.s32 3, %v104
  %v106 = vrot.slane %v47, %v105
  %v107 = vmul.f32 %v102, %v106
  %v108 = vlaneseq
  %v109 = vshrl.u32 %v108, 7
  %v110 = vsub.s32 4, %v109
  %v111 = vrot.slane %v47, %v110
  %v112 = vmul.f32 %v49, %v111
  %113 = vrot.lane.b32.xlu0 %v49, 127
  %v114 = vpop.permute.xlu0 %113
  %116 = vrot.lane.b32.xlu0 %v49, 63
  %v117 = vpop.permute.xlu0 %116
  %vm119 = vcmask 515072
  %v120 = vsel %vm119, %v114, %v117
  %v121 = vlaneseq
  %v122 = vshrl.u32 %v121, 7
  %v123 = vsub.s32 5, %v122
  %v124 = vrot.slane %v47, %v123
  %v125 = vmul.f32 %v120, %v124
  %126 = vrot.lane.b32.xlu0 %v49, 121
  %v127 = vpop.permute.xlu0 %126
  %129 = vrot.lane.b32.xlu0 %v49, 57
  %v130 = vpop.permute.xlu0 %129
  %vm132 = vcmask 465920
  %v133 = vsel %vm132, %v127, %v130
  %v134 = vlaneseq
  %v135 = vshrl.u32 %v134, 7
  %v136 = vsub.s32 6, %v135
  %v137 = vrot.slane %v47, %v136
  %v138 = vmul.f32 %v133, %v137
  %139 = vrot.lane.b32.xlu0 %v49, 120
  %v140 = vpop.permute.xlu0 %139
  %142 = vrot.lane.b32.xlu0 %v49, 56
  %v143 = vpop.permute.xlu0 %142
  %vm145 = vcmask 457728
  %v146 = vsel %vm145, %v140, %v143
  %v147 = vlaneseq
  %v148 = vshrl.u32 %v147, 7
  %v149 = vsub.s32 7, %v148
  %v150 = vrot.slane %v47, %v149
  %v151 = vmul.f32 %v146, %v150
  %152 = vrot.lane.b32.xlu0 %v49, 119
  %v153 = vpop.permute.xlu0 %152
  %155 = vrot.lane.b32.xlu0 %v49, 55
  %v156 = vpop.permute.xlu0 %155
  %vm158 = vcmask 449536
  %v159 = vsel %vm158, %v153, %v156
  %v160 = vlaneseq
  %v161 = vshrl.u32 %v160, 7
  %v162 = vsub.s32 0, %v161
  %v163 = vrot.slane %v48, %v162
  %v164 = vmul.f32 %v159, %v163
  %v165 = vpack.c.bf16 %v81, %v68
  %v166 = vpack.c.bf16 %v107, %v94
  %v167 = vpack.c.bf16 %v125, %v112
  %v168 = vpack.c.bf16 %v151, %v138
  %v169 = vpack.c.bf16 %v164, %v164
  %vm170 = vcmask 588800
  %v172 = vsel %vm170, %v54, 0
  %vm174 = vcmask 1043456
  %v176 = vsel %vm174, %v169, 0
  %178 = vmatprep.subr.bf16.mxu0 0
  %179 = vmatpush1.bf16.msra.mxu0 %v165
  %180 = vmatprep.subr.bf16.mxu0 0
  %181 = vmatpush1.bf16.msra.mxu0 %v166
  %182 = vmatprep.subr.bf16.mxu0 0
  %183 = vmatpush1.bf16.msra.mxu0 %v167
  %184 = vmatprep.subr.bf16.mxu0 0
  %185 = vmatpush1.bf16.msra.mxu0 %v168
  %186 = vmatprep.subr.bf16.mxu0 0
  %187 = vmatpush1.bf16.msra.mxu0 %v176
  %188 = vmatprep.subr.bf16.mxu0 0
  %189 = vmatpush1.bf16.msra.mxu0 0
  %190 = vmatprep.subr.bf16.mxu0 0
  %191 = vmatpush1.bf16.msra.mxu0 0
  %192 = vmatprep.subr.bf16.mxu0 0
  %193 = vmatpush1.bf16.msra.mxu0 0
  %194 = vmatprep.subr.bf16.mxu0 0
  %195 = vmatpush1.bf16.msra.mxu0 0
  %196 = vmatprep.subr.bf16.mxu0 0
  %197 = vmatpush1.bf16.msra.mxu0 0
  %198 = vmatprep.subr.bf16.mxu0 0
  %199 = vmatpush1.bf16.msra.mxu0 0
  %200 = vmatprep.subr.bf16.mxu0 0
  %201 = vmatpush1.bf16.msra.mxu0 0
  %202 = vmatprep.subr.bf16.mxu0 0
  %203 = vmatpush1.bf16.msra.mxu0 0
  %204 = vmatprep.subr.bf16.mxu0 0
  %205 = vmatpush1.bf16.msra.mxu0 0
  %206 = vmatprep.subr.bf16.mxu0 0
  %207 = vmatpush1.bf16.msra.mxu0 0
  %208 = vmatprep.subr.bf16.mxu0 0
  %209 = vmatpush1.bf16.msra.mxu0 0
  %210 = vmatprep.mubr.bf16.mxu0 0
  %211 = vmatmul.mubr.bf16.gmra.mrb[0].mxu0 %v172
  %v212 = vpop.f32.mrb[0].mxu0
  %v213 = vadd.f32 0.0, %v212
  %v214 = vpop.f32.mrb[0].mxu0
  %v215 = vpop.f32.mrb[0].mxu0
  %v216 = vadd.f32 0.0, %v215
  %v217 = vpop.f32.mrb[0].mxu0
  %218 = vdwg.mxu0
  %220 = vrot.lane.b32.xlu0 %v51, 73
  %v221 = vpop.permute.xlu0 %220
  %223 = vrot.lane.b32.xlu0 %v51, 9
  %v224 = vpop.permute.xlu0 %223
  %v226 = vsel %vm62, %v221, %v224
  %v227 = vmul.f32 %v226, %v67
  %228 = vrot.lane.b32.xlu0 %v51, 72
  %v229 = vpop.permute.xlu0 %228
  %231 = vrot.lane.b32.xlu0 %v51, 8
  %v232 = vpop.permute.xlu0 %231
  %v234 = vsel %vm75, %v229, %v232
  %v235 = vmul.f32 %v234, %v80
  %236 = vrot.lane.b32.xlu0 %v51, 71
  %v237 = vpop.permute.xlu0 %236
  %239 = vrot.lane.b32.xlu0 %v51, 7
  %v240 = vpop.permute.xlu0 %239
  %v242 = vsel %vm88, %v237, %v240
  %v243 = vmul.f32 %v242, %v93
  %244 = vrot.lane.b32.xlu0 %v51, 65
  %v245 = vpop.permute.xlu0 %244
  %247 = vrot.lane.b32.xlu0 %v51, 1
  %v248 = vpop.permute.xlu0 %247
  %v250 = vsel %vm101, %v245, %v248
  %v251 = vmul.f32 %v250, %v106
  %v252 = vmul.f32 %v51, %v111
  %253 = vrot.lane.b32.xlu0 %v51, 127
  %v254 = vpop.permute.xlu0 %253
  %256 = vrot.lane.b32.xlu0 %v51, 63
  %v257 = vpop.permute.xlu0 %256
  %v259 = vsel %vm119, %v254, %v257
  %v260 = vmul.f32 %v259, %v124
  %261 = vrot.lane.b32.xlu0 %v51, 121
  %v262 = vpop.permute.xlu0 %261
  %264 = vrot.lane.b32.xlu0 %v51, 57
  %v265 = vpop.permute.xlu0 %264
  %v267 = vsel %vm132, %v262, %v265
  %v268 = vmul.f32 %v267, %v137
  %269 = vrot.lane.b32.xlu0 %v51, 120
  %v270 = vpop.permute.xlu0 %269
  %272 = vrot.lane.b32.xlu0 %v51, 56
  %v273 = vpop.permute.xlu0 %272
  %v275 = vsel %vm145, %v270, %v273
  %v276 = vmul.f32 %v275, %v150
  %277 = vrot.lane.b32.xlu0 %v51, 119
  %v278 = vpop.permute.xlu0 %277
  %280 = vrot.lane.b32.xlu0 %v51, 55
  %v281 = vpop.permute.xlu0 %280
  %v283 = vsel %vm158, %v278, %v281
  %v284 = vmul.f32 %v283, %v163
  %v285 = vpack.c.bf16 %v235, %v227
  %v286 = vpack.c.bf16 %v251, %v243
  %v287 = vpack.c.bf16 %v260, %v252
  %v288 = vpack.c.bf16 %v276, %v268
  %v289 = vpack.c.bf16 %v284, %v284
  %v291 = vsel %vm174, %v289, 0
  %293 = vmatprep.subr.bf16.mxu0 0
  %294 = vmatpush1.bf16.msra.mxu0 %v285
  %295 = vmatprep.subr.bf16.mxu0 0
  %296 = vmatpush1.bf16.msra.mxu0 %v286
  %297 = vmatprep.subr.bf16.mxu0 0
  %298 = vmatpush1.bf16.msra.mxu0 %v287
  %299 = vmatprep.subr.bf16.mxu0 0
  %300 = vmatpush1.bf16.msra.mxu0 %v288
  %301 = vmatprep.subr.bf16.mxu0 0
  %302 = vmatpush1.bf16.msra.mxu0 %v291
  %303 = vmatprep.subr.bf16.mxu0 0
  %304 = vmatpush1.bf16.msra.mxu0 0
  %305 = vmatprep.subr.bf16.mxu0 0
  %306 = vmatpush1.bf16.msra.mxu0 0
  %307 = vmatprep.subr.bf16.mxu0 0
  %308 = vmatpush1.bf16.msra.mxu0 0
  %309 = vmatprep.subr.bf16.mxu0 0
  %310 = vmatpush1.bf16.msra.mxu0 0
  %311 = vmatprep.subr.bf16.mxu0 0
  %312 = vmatpush1.bf16.msra.mxu0 0
  %313 = vmatprep.subr.bf16.mxu0 0
  %314 = vmatpush1.bf16.msra.mxu0 0
  %315 = vmatprep.subr.bf16.mxu0 0
  %316 = vmatpush1.bf16.msra.mxu0 0
  %317 = vmatprep.subr.bf16.mxu0 0
  %318 = vmatpush1.bf16.msra.mxu0 0
  %319 = vmatprep.subr.bf16.mxu0 0
  %320 = vmatpush1.bf16.msra.mxu0 0
  %321 = vmatprep.subr.bf16.mxu0 0
  %322 = vmatpush1.bf16.msra.mxu0 0
  %323 = vmatprep.subr.bf16.mxu0 0
  %324 = vmatpush1.bf16.msra.mxu0 0
  %325 = vmatprep.mubr.bf16.mxu0 0
  %326 = vmatmul.mubr.bf16.gmra.mrb[0].mxu0 %v172
  %v327 = vpop.f32.mrb[0].mxu0
  %v328 = vadd.f32 0.0, %v327
  %v329 = vpop.f32.mrb[0].mxu0
  %v330 = vpop.f32.mrb[0].mxu0
  %v331 = vadd.f32 0.0, %v330
  %v332 = vpop.f32.mrb[0].mxu0
  %333 = vdwg.mxu0
  %vm334 = vcmask 523264
  %v335 = vsel %vm334, %v213, 0.0
  %336 = vadd.xlane.f32.xlu0 %v335
  %v337 = vpop.xlane.xlu0 %336
  %v338 = vsel %vm334, %v216, 0.0
  %339 = vadd.xlane.f32.xlu0 %v338
  %v340 = vpop.xlane.xlu0 %339
  %v341 = vadd.f32 %v337, 0.0
  %v342 = vadd.f32 %v340, 0.0
  %v343 = vsel %vm334, %v328, 0.0
  %344 = vadd.xlane.f32.xlu0 %v343
  %v345 = vpop.xlane.xlu0 %344
  %v346 = vsel %vm334, %v331, 0.0
  %347 = vadd.xlane.f32.xlu0 %v346
  %v348 = vpop.xlane.xlu0 %347
  %v349 = vadd.f32 %v341, %v345
  %v350 = vadd.f32 %v342, %v348
  %v351 = vmul.f32 %v349, 0.0078125
  %v352 = vmul.f32 %v350, 0.0078125
  %v353 = vsub.f32 %v213, %v351
  %v354 = vsub.f32 %v216, %v352
  %v355 = vmul.f32 %v353, %v353
  %v356 = vmul.f32 %v354, %v354
  %v357 = vsel %vm334, %v355, 0.0
  %358 = vadd.xlane.f32.xlu0 %v357
  %v359 = vpop.xlane.xlu0 %358
  %v360 = vsel %vm334, %v356, 0.0
  %361 = vadd.xlane.f32.xlu0 %v360
  %v362 = vpop.xlane.xlu0 %361
  %v363 = vadd.f32 %v359, 0.0
  %v364 = vadd.f32 %v362, 0.0
  %v365 = vsub.f32 %v328, %v351
  %v366 = vsub.f32 %v331, %v352
  %v367 = vmul.f32 %v365, %v365
  %v368 = vmul.f32 %v366, %v366
  %v369 = vsel %vm334, %v367, 0.0
  %370 = vadd.xlane.f32.xlu0 %v369
  %v371 = vpop.xlane.xlu0 %370
  %v372 = vsel %vm334, %v368, 0.0
  %373 = vadd.xlane.f32.xlu0 %v372
  %v374 = vpop.xlane.xlu0 %373
  %v375 = vadd.f32 %v363, %v371
  %v376 = vadd.f32 %v364, %v374
  %v377 = vmul.f32 %v375, 0.0078125
  %v378 = vmul.f32 %v376, 0.0078125
  %v379 = vld [vmem:[%s4] sm:$0xff]
  %v380 = vld [vmem:[%s4 + $0x8] sm:$0xff]
  %v381 = vadd.f32 %v377, 1e-05
  %v382 = vadd.f32 %v378, 1e-05
  %v383 = vrsqrt.pop %v381
  %v384 = vrsqrt.pop %v382
  %v385 = vmul.f32 %v379, %v383
  %v386 = vmul.f32 %v380, %v384
  %v387 = vld [vmem:[%s5] sm:$0xff]
  %v388 = vld [vmem:[%s5 + $0x8] sm:$0xff]
  %v389 = vmul.f32 %v351, %v385
  %v390 = vmul.f32 %v352, %v386
  %v391 = vsub.f32 %v387, %v389
  %v392 = vsub.f32 %v388, %v390
  %394 = vset.pattern.permute.xlu0 0
  %395 = vperm.xlu0 %394, %v385
  %v396 = vpop.permute.xlu0 %395
  %399 = vset.pattern.permute.xlu0 0
  %400 = vperm.xlu0 %399, %v386
  %v401 = vpop.permute.xlu0 %400
  %v403 = vmul.f32 %v213, %v396
  %v404 = vmul.f32 %v216, %v401
  %406 = vset.pattern.permute.xlu0 0
  %407 = vperm.xlu0 %406, %v391
  %v408 = vpop.permute.xlu0 %407
  %411 = vset.pattern.permute.xlu0 0
  %412 = vperm.xlu0 %411, %v392
  %v413 = vpop.permute.xlu0 %412
  %v415 = vadd.f32 %v403, %v408
  %v416 = vadd.f32 %v404, %v413
  %v417 = vmax.f32 %v415, 0.0
  %v418 = vmax.f32 %v416, 0.0
  %v419 = vmul.f32 %v328, %v396
  %v420 = vmul.f32 %v331, %v401
  %v421 = vadd.f32 %v419, %v408
  %v422 = vadd.f32 %v420, %v413
  %v423 = vmax.f32 %v421, 0.0
  %v424 = vmax.f32 %v422, 0.0
  %v425 = vld [vmem:[%s6] sm:$0xff]
  %v426 = vld [vmem:[%s6 + $0x8] sm:$0xff]
  %v427 = vld [vmem:[%s6 + $0x10] sm:$0xff]
  %v428 = vld [vmem:[%s6 + $0x18] sm:$0xff]
  %v429 = vpack.c.bf16 %v427, %v425
  %v430 = vpack.c.bf16 %v428, %v426
  %433 = vrot.lane.b32.xlu0 %v417, 73
  %v434 = vpop.permute.xlu0 %433
  %435 = vrot.lane.b32.xlu0 %v418, 73
  %v436 = vpop.permute.xlu0 %435
  %439 = vrot.lane.b32.xlu0 %v417, 9
  %v440 = vpop.permute.xlu0 %439
  %441 = vrot.lane.b32.xlu0 %v418, 9
  %v442 = vpop.permute.xlu0 %441
  %v445 = vsel %vm62, %v434, %v440
  %v446 = vsel %vm62, %v436, %v442
  %v447 = vmul.f32 %v445, %v67
  %v448 = vmul.f32 %v446, %v67
  %449 = vrot.lane.b32.xlu0 %v417, 72
  %v450 = vpop.permute.xlu0 %449
  %451 = vrot.lane.b32.xlu0 %v418, 72
  %v452 = vpop.permute.xlu0 %451
  %455 = vrot.lane.b32.xlu0 %v417, 8
  %v456 = vpop.permute.xlu0 %455
  %457 = vrot.lane.b32.xlu0 %v418, 8
  %v458 = vpop.permute.xlu0 %457
  %v461 = vsel %vm75, %v450, %v456
  %v462 = vsel %vm75, %v452, %v458
  %v463 = vmul.f32 %v461, %v80
  %v464 = vmul.f32 %v462, %v80
  %465 = vrot.lane.b32.xlu0 %v417, 71
  %v466 = vpop.permute.xlu0 %465
  %467 = vrot.lane.b32.xlu0 %v418, 71
  %v468 = vpop.permute.xlu0 %467
  %471 = vrot.lane.b32.xlu0 %v417, 7
  %v472 = vpop.permute.xlu0 %471
  %473 = vrot.lane.b32.xlu0 %v418, 7
  %v474 = vpop.permute.xlu0 %473
  %v477 = vsel %vm88, %v466, %v472
  %v478 = vsel %vm88, %v468, %v474
  %v479 = vmul.f32 %v477, %v93
  %v480 = vmul.f32 %v478, %v93
  %481 = vrot.lane.b32.xlu0 %v417, 65
  %v482 = vpop.permute.xlu0 %481
  %483 = vrot.lane.b32.xlu0 %v418, 65
  %v484 = vpop.permute.xlu0 %483
  %487 = vrot.lane.b32.xlu0 %v417, 1
  %v488 = vpop.permute.xlu0 %487
  %489 = vrot.lane.b32.xlu0 %v418, 1
  %v490 = vpop.permute.xlu0 %489
  %v493 = vsel %vm101, %v482, %v488
  %v494 = vsel %vm101, %v484, %v490
  %v495 = vmul.f32 %v493, %v106
  %v496 = vmul.f32 %v494, %v106
  %v497 = vmul.f32 %v417, %v111
  %v498 = vmul.f32 %v418, %v111
  %499 = vrot.lane.b32.xlu0 %v417, 127
  %v500 = vpop.permute.xlu0 %499
  %501 = vrot.lane.b32.xlu0 %v418, 127
  %v502 = vpop.permute.xlu0 %501
  %505 = vrot.lane.b32.xlu0 %v417, 63
  %v506 = vpop.permute.xlu0 %505
  %507 = vrot.lane.b32.xlu0 %v418, 63
  %v508 = vpop.permute.xlu0 %507
  %v511 = vsel %vm119, %v500, %v506
  %v512 = vsel %vm119, %v502, %v508
  %v513 = vmul.f32 %v511, %v124
  %v514 = vmul.f32 %v512, %v124
  %515 = vrot.lane.b32.xlu0 %v417, 121
  %v516 = vpop.permute.xlu0 %515
  %517 = vrot.lane.b32.xlu0 %v418, 121
  %v518 = vpop.permute.xlu0 %517
  %521 = vrot.lane.b32.xlu0 %v417, 57
  %v522 = vpop.permute.xlu0 %521
  %523 = vrot.lane.b32.xlu0 %v418, 57
  %v524 = vpop.permute.xlu0 %523
  %v527 = vsel %vm132, %v516, %v522
  %v528 = vsel %vm132, %v518, %v524
  %v529 = vmul.f32 %v527, %v137
  %v530 = vmul.f32 %v528, %v137
  %531 = vrot.lane.b32.xlu0 %v417, 120
  %v532 = vpop.permute.xlu0 %531
  %533 = vrot.lane.b32.xlu0 %v418, 120
  %v534 = vpop.permute.xlu0 %533
  %537 = vrot.lane.b32.xlu0 %v417, 56
  %v538 = vpop.permute.xlu0 %537
  %539 = vrot.lane.b32.xlu0 %v418, 56
  %v540 = vpop.permute.xlu0 %539
  %v543 = vsel %vm145, %v532, %v538
  %v544 = vsel %vm145, %v534, %v540
  %v545 = vmul.f32 %v543, %v150
  %v546 = vmul.f32 %v544, %v150
  %547 = vrot.lane.b32.xlu0 %v417, 119
  %v548 = vpop.permute.xlu0 %547
  %549 = vrot.lane.b32.xlu0 %v418, 119
  %v550 = vpop.permute.xlu0 %549
  %553 = vrot.lane.b32.xlu0 %v417, 55
  %v554 = vpop.permute.xlu0 %553
  %555 = vrot.lane.b32.xlu0 %v418, 55
  %v556 = vpop.permute.xlu0 %555
  %v559 = vsel %vm158, %v548, %v554
  %v560 = vsel %vm158, %v550, %v556
  %v561 = vmul.f32 %v559, %v163
  %v562 = vmul.f32 %v560, %v163
  %v563 = vpack.c.bf16 %v448, %v447
  %v564 = vpack.c.bf16 %v464, %v463
  %v565 = vpack.c.bf16 %v480, %v479
  %v566 = vpack.c.bf16 %v496, %v495
  %v567 = vpack.c.bf16 %v498, %v497
  %v568 = vpack.c.bf16 %v514, %v513
  %v569 = vpack.c.bf16 %v530, %v529
  %v570 = vpack.c.bf16 %v546, %v545
  %v571 = vpack.c.bf16 %v562, %v561
  %vm572 = vcmask 130048
  %v574 = vsel %vm572, %v430, 0
  %576 = vmatprep.subr.bf16.mxu0 0
  %577 = vmatpush1.bf16.msra.mxu0 %v563
  %578 = vmatprep.subr.bf16.mxu0 0
  %579 = vmatpush1.bf16.msra.mxu0 %v564
  %580 = vmatprep.subr.bf16.mxu0 0
  %581 = vmatpush1.bf16.msra.mxu0 %v565
  %582 = vmatprep.subr.bf16.mxu0 0
  %583 = vmatpush1.bf16.msra.mxu0 %v566
  %584 = vmatprep.subr.bf16.mxu0 0
  %585 = vmatpush1.bf16.msra.mxu0 %v567
  %586 = vmatprep.subr.bf16.mxu0 0
  %587 = vmatpush1.bf16.msra.mxu0 %v568
  %588 = vmatprep.subr.bf16.mxu0 0
  %589 = vmatpush1.bf16.msra.mxu0 %v569
  %590 = vmatprep.subr.bf16.mxu0 0
  %591 = vmatpush1.bf16.msra.mxu0 %v570
  %592 = vmatprep.subr.bf16.mxu0 0
  %593 = vmatpush1.bf16.msra.mxu0 %v571
  %594 = vmatprep.subr.bf16.mxu0 0
  %595 = vmatpush1.bf16.msra.mxu0 0
  %596 = vmatprep.subr.bf16.mxu0 0
  %597 = vmatpush1.bf16.msra.mxu0 0
  %598 = vmatprep.subr.bf16.mxu0 0
  %599 = vmatpush1.bf16.msra.mxu0 0
  %600 = vmatprep.subr.bf16.mxu0 0
  %601 = vmatpush1.bf16.msra.mxu0 0
  %602 = vmatprep.subr.bf16.mxu0 0
  %603 = vmatpush1.bf16.msra.mxu0 0
  %604 = vmatprep.subr.bf16.mxu0 0
  %605 = vmatpush1.bf16.msra.mxu0 0
  %606 = vmatprep.subr.bf16.mxu0 0
  %607 = vmatpush1.bf16.msra.mxu0 0
  %608 = vmatprep.mubr.bf16.mxu0 %v574
  %609 = vmatmul.mubr.bf16.gmra.mrb[0].mxu0 %v429
  %v610 = vpop.f32.mrb[0].mxu0
  %v611 = vadd.f32 0.0, %v610
  %v612 = vpop.f32.mrb[0].mxu0
  %v613 = vpop.f32.mrb[0].mxu0
  %v614 = vadd.f32 0.0, %v613
  %v615 = vpop.f32.mrb[0].mxu0
  %616 = vdwg.mxu0
  %619 = vrot.lane.b32.xlu0 %v423, 73
  %v620 = vpop.permute.xlu0 %619
  %621 = vrot.lane.b32.xlu0 %v424, 73
  %v622 = vpop.permute.xlu0 %621
  %625 = vrot.lane.b32.xlu0 %v423, 9
  %v626 = vpop.permute.xlu0 %625
  %627 = vrot.lane.b32.xlu0 %v424, 9
  %v628 = vpop.permute.xlu0 %627
  %v631 = vsel %vm62, %v620, %v626
  %v632 = vsel %vm62, %v622, %v628
  %v633 = vmul.f32 %v631, %v67
  %v634 = vmul.f32 %v632, %v67
  %635 = vrot.lane.b32.xlu0 %v423, 72
  %v636 = vpop.permute.xlu0 %635
  %637 = vrot.lane.b32.xlu0 %v424, 72
  %v638 = vpop.permute.xlu0 %637
  %641 = vrot.lane.b32.xlu0 %v423, 8
  %v642 = vpop.permute.xlu0 %641
  %643 = vrot.lane.b32.xlu0 %v424, 8
  %v644 = vpop.permute.xlu0 %643
  %v647 = vsel %vm75, %v636, %v642
  %v648 = vsel %vm75, %v638, %v644
  %v649 = vmul.f32 %v647, %v80
  %v650 = vmul.f32 %v648, %v80
  %651 = vrot.lane.b32.xlu0 %v423, 71
  %v652 = vpop.permute.xlu0 %651
  %653 = vrot.lane.b32.xlu0 %v424, 71
  %v654 = vpop.permute.xlu0 %653
  %657 = vrot.lane.b32.xlu0 %v423, 7
  %v658 = vpop.permute.xlu0 %657
  %659 = vrot.lane.b32.xlu0 %v424, 7
  %v660 = vpop.permute.xlu0 %659
  %v663 = vsel %vm88, %v652, %v658
  %v664 = vsel %vm88, %v654, %v660
  %v665 = vmul.f32 %v663, %v93
  %v666 = vmul.f32 %v664, %v93
  %667 = vrot.lane.b32.xlu0 %v423, 65
  %v668 = vpop.permute.xlu0 %667
  %669 = vrot.lane.b32.xlu0 %v424, 65
  %v670 = vpop.permute.xlu0 %669
  %673 = vrot.lane.b32.xlu0 %v423, 1
  %v674 = vpop.permute.xlu0 %673
  %675 = vrot.lane.b32.xlu0 %v424, 1
  %v676 = vpop.permute.xlu0 %675
  %v679 = vsel %vm101, %v668, %v674
  %v680 = vsel %vm101, %v670, %v676
  %v681 = vmul.f32 %v679, %v106
  %v682 = vmul.f32 %v680, %v106
  %v683 = vmul.f32 %v423, %v111
  %v684 = vmul.f32 %v424, %v111
  %685 = vrot.lane.b32.xlu0 %v423, 127
  %v686 = vpop.permute.xlu0 %685
  %687 = vrot.lane.b32.xlu0 %v424, 127
  %v688 = vpop.permute.xlu0 %687
  %691 = vrot.lane.b32.xlu0 %v423, 63
  %v692 = vpop.permute.xlu0 %691
  %693 = vrot.lane.b32.xlu0 %v424, 63
  %v694 = vpop.permute.xlu0 %693
  %v697 = vsel %vm119, %v686, %v692
  %v698 = vsel %vm119, %v688, %v694
  %v699 = vmul.f32 %v697, %v124
  %v700 = vmul.f32 %v698, %v124
  %701 = vrot.lane.b32.xlu0 %v423, 121
  %v702 = vpop.permute.xlu0 %701
  %703 = vrot.lane.b32.xlu0 %v424, 121
  %v704 = vpop.permute.xlu0 %703
  %707 = vrot.lane.b32.xlu0 %v423, 57
  %v708 = vpop.permute.xlu0 %707
  %709 = vrot.lane.b32.xlu0 %v424, 57
  %v710 = vpop.permute.xlu0 %709
  %v713 = vsel %vm132, %v702, %v708
  %v714 = vsel %vm132, %v704, %v710
  %v715 = vmul.f32 %v713, %v137
  %v716 = vmul.f32 %v714, %v137
  %717 = vrot.lane.b32.xlu0 %v423, 120
  %v718 = vpop.permute.xlu0 %717
  %719 = vrot.lane.b32.xlu0 %v424, 120
  %v720 = vpop.permute.xlu0 %719
  %723 = vrot.lane.b32.xlu0 %v423, 56
  %v724 = vpop.permute.xlu0 %723
  %725 = vrot.lane.b32.xlu0 %v424, 56
  %v726 = vpop.permute.xlu0 %725
  %v729 = vsel %vm145, %v718, %v724
  %v730 = vsel %vm145, %v720, %v726
  %v731 = vmul.f32 %v729, %v150
  %v732 = vmul.f32 %v730, %v150
  %733 = vrot.lane.b32.xlu0 %v423, 119
  %v734 = vpop.permute.xlu0 %733
  %735 = vrot.lane.b32.xlu0 %v424, 119
  %v736 = vpop.permute.xlu0 %735
  %739 = vrot.lane.b32.xlu0 %v423, 55
  %v740 = vpop.permute.xlu0 %739
  %741 = vrot.lane.b32.xlu0 %v424, 55
  %v742 = vpop.permute.xlu0 %741
  %v745 = vsel %vm158, %v734, %v740
  %v746 = vsel %vm158, %v736, %v742
  %v747 = vmul.f32 %v745, %v163
  %v748 = vmul.f32 %v746, %v163
  %v749 = vpack.c.bf16 %v634, %v633
  %v750 = vpack.c.bf16 %v650, %v649
  %v751 = vpack.c.bf16 %v666, %v665
  %v752 = vpack.c.bf16 %v682, %v681
  %v753 = vpack.c.bf16 %v684, %v683
  %v754 = vpack.c.bf16 %v700, %v699
  %v755 = vpack.c.bf16 %v716, %v715
  %v756 = vpack.c.bf16 %v732, %v731
  %v757 = vpack.c.bf16 %v748, %v747
  %758 = vmatprep.subr.bf16.mxu0 0
  %759 = vmatpush1.bf16.msra.mxu0 %v749
  %760 = vmatprep.subr.bf16.mxu0 0
  %761 = vmatpush1.bf16.msra.mxu0 %v750
  %762 = vmatprep.subr.bf16.mxu0 0
  %763 = vmatpush1.bf16.msra.mxu0 %v751
  %764 = vmatprep.subr.bf16.mxu0 0
  %765 = vmatpush1.bf16.msra.mxu0 %v752
  %766 = vmatprep.subr.bf16.mxu0 0
  %767 = vmatpush1.bf16.msra.mxu0 %v753
  %768 = vmatprep.subr.bf16.mxu0 0
  %769 = vmatpush1.bf16.msra.mxu0 %v754
  %770 = vmatprep.subr.bf16.mxu0 0
  %771 = vmatpush1.bf16.msra.mxu0 %v755
  %772 = vmatprep.subr.bf16.mxu0 0
  %773 = vmatpush1.bf16.msra.mxu0 %v756
  %774 = vmatprep.subr.bf16.mxu0 0
  %775 = vmatpush1.bf16.msra.mxu0 %v757
  %776 = vmatprep.subr.bf16.mxu0 0
  %777 = vmatpush1.bf16.msra.mxu0 0
  %778 = vmatprep.subr.bf16.mxu0 0
  %779 = vmatpush1.bf16.msra.mxu0 0
  %780 = vmatprep.subr.bf16.mxu0 0
  %781 = vmatpush1.bf16.msra.mxu0 0
  %782 = vmatprep.subr.bf16.mxu0 0
  %783 = vmatpush1.bf16.msra.mxu0 0
  %784 = vmatprep.subr.bf16.mxu0 0
  %785 = vmatpush1.bf16.msra.mxu0 0
  %786 = vmatprep.subr.bf16.mxu0 0
  %787 = vmatpush1.bf16.msra.mxu0 0
  %788 = vmatprep.subr.bf16.mxu0 0
  %789 = vmatpush1.bf16.msra.mxu0 0
  %790 = vmatprep.mubr.bf16.mxu0 %v574
  %791 = vmatmul.mubr.bf16.gmra.mrb[0].mxu0 %v429
  %v792 = vpop.f32.mrb[0].mxu0
  %v793 = vadd.f32 0.0, %v792
  %v794 = vpop.f32.mrb[0].mxu0
  %v795 = vpop.f32.mrb[0].mxu0
  %v796 = vadd.f32 0.0, %v795
  %v797 = vpop.f32.mrb[0].mxu0
  %798 = vdwg.mxu0
  %v799 = vsel %vm334, %v611, 0.0
  %800 = vadd.xlane.f32.xlu0 %v799
  %v801 = vpop.xlane.xlu0 %800
  %v802 = vsel %vm334, %v614, 0.0
  %803 = vadd.xlane.f32.xlu0 %v802
  %v804 = vpop.xlane.xlu0 %803
  %v805 = vadd.f32 %v801, 0.0
  %v806 = vadd.f32 %v804, 0.0
  %v807 = vsel %vm334, %v793, 0.0
  %808 = vadd.xlane.f32.xlu0 %v807
  %v809 = vpop.xlane.xlu0 %808
  %v810 = vsel %vm334, %v796, 0.0
  %811 = vadd.xlane.f32.xlu0 %v810
  %v812 = vpop.xlane.xlu0 %811
  %v813 = vadd.f32 %v805, %v809
  %v814 = vadd.f32 %v806, %v812
  %v815 = vmul.f32 %v813, 0.0078125
  %v816 = vmul.f32 %v814, 0.0078125
  %v817 = vsub.f32 %v611, %v815
  %v818 = vsub.f32 %v614, %v816
  %v819 = vmul.f32 %v817, %v817
  %v820 = vmul.f32 %v818, %v818
  %v821 = vsel %vm334, %v819, 0.0
  %822 = vadd.xlane.f32.xlu0 %v821
  %v823 = vpop.xlane.xlu0 %822
  %v824 = vsel %vm334, %v820, 0.0
  %825 = vadd.xlane.f32.xlu0 %v824
  %v826 = vpop.xlane.xlu0 %825
  %v827 = vadd.f32 %v823, 0.0
  %v828 = vadd.f32 %v826, 0.0
  %v829 = vsub.f32 %v793, %v815
  %v830 = vsub.f32 %v796, %v816
  %v831 = vmul.f32 %v829, %v829
  %v832 = vmul.f32 %v830, %v830
  %v833 = vsel %vm334, %v831, 0.0
  %834 = vadd.xlane.f32.xlu0 %v833
  %v835 = vpop.xlane.xlu0 %834
  %v836 = vsel %vm334, %v832, 0.0
  %837 = vadd.xlane.f32.xlu0 %v836
  %v838 = vpop.xlane.xlu0 %837
  %v839 = vadd.f32 %v827, %v835
  %v840 = vadd.f32 %v828, %v838
  %v841 = vmul.f32 %v839, 0.0078125
  %v842 = vmul.f32 %v840, 0.0078125
  %v843 = vld [vmem:[%s7] sm:$0xff]
  %v844 = vld [vmem:[%s7 + $0x8] sm:$0xff]
  %v845 = vadd.f32 %v841, 1e-05
  %v846 = vadd.f32 %v842, 1e-05
  %v847 = vrsqrt.pop %v845
  %v848 = vrsqrt.pop %v846
  %v849 = vmul.f32 %v843, %v847
  %v850 = vmul.f32 %v844, %v848
  %v851 = vld [vmem:[%s8] sm:$0xff]
  %v852 = vld [vmem:[%s8 + $0x8] sm:$0xff]
  %v853 = vmul.f32 %v815, %v849
  %v854 = vmul.f32 %v816, %v850
  %v855 = vsub.f32 %v851, %v853
  %v856 = vsub.f32 %v852, %v854
  %858 = vset.pattern.permute.xlu0 0
  %859 = vperm.xlu0 %858, %v849
  %v860 = vpop.permute.xlu0 %859
  %863 = vset.pattern.permute.xlu0 0
  %864 = vperm.xlu0 %863, %v850
  %v865 = vpop.permute.xlu0 %864
  %v867 = vmul.f32 %v611, %v860
  %v868 = vmul.f32 %v614, %v865
  %870 = vset.pattern.permute.xlu0 0
  %871 = vperm.xlu0 %870, %v855
  %v872 = vpop.permute.xlu0 %871
  %875 = vset.pattern.permute.xlu0 0
  %876 = vperm.xlu0 %875, %v856
  %v877 = vpop.permute.xlu0 %876
  %v879 = vadd.f32 %v867, %v872
  %v880 = vadd.f32 %v868, %v877
  %v881 = vmax.f32 %v879, 0.0
  %v882 = vmax.f32 %v880, 0.0
  %v883 = vmul.f32 %v793, %v860
  %v884 = vmul.f32 %v796, %v865
  %v885 = vadd.f32 %v883, %v872
  %v886 = vadd.f32 %v884, %v877
  %v887 = vmax.f32 %v885, 0.0
  %v888 = vmax.f32 %v886, 0.0
  %v889 = vld [vmem:[%s9] sm:$0xff]
  %v890 = vld [vmem:[%s9 + $0x8] sm:$0xff]
  %v891 = vld [vmem:[%s9 + $0x10] sm:$0xff]
  %v892 = vld [vmem:[%s9 + $0x18] sm:$0xff]
  %v893 = vld [vmem:[%s9 + $0x20] sm:$0xff]
  %v894 = vld [vmem:[%s9 + $0x28] sm:$0xff]
  %v895 = vld [vmem:[%s9 + $0x30] sm:$0xff]
  %v896 = vld [vmem:[%s9 + $0x38] sm:$0xff]
  %v897 = vld [vmem:[%s9 + $0x40] sm:$0xff]
  %v898 = vld [vmem:[%s9 + $0x48] sm:$0xff]
  %v899 = vld [vmem:[%s9 + $0x50] sm:$0xff]
  %v900 = vld [vmem:[%s9 + $0x58] sm:$0xff]
  %v901 = vld [vmem:[%s9 + $0x60] sm:$0xff]
  %v902 = vld [vmem:[%s9 + $0x68] sm:$0xff]
  %v903 = vld [vmem:[%s9 + $0x70] sm:$0xff]
  %v904 = vld [vmem:[%s9 + $0x78] sm:$0xff]
  %v905 = vld [vmem:[%s9 + $0x80] sm:$0xff]
  %v906 = vld [vmem:[%s9 + $0x88] sm:$0xff]
  %v907 = vld [vmem:[%s9 + $0x90] sm:$0xff]
  %v908 = vld [vmem:[%s9 + $0x98] sm:$0xff]
  %v909 = vld [vmem:[%s9 + $0xa0] sm:$0xff]
  %v910 = vld [vmem:[%s9 + $0xa8] sm:$0xff]
  %v911 = vld [vmem:[%s9 + $0xb0] sm:$0xff]
  %v912 = vld [vmem:[%s9 + $0xb8] sm:$0xff]
  %v913 = vpack.c.bf16 %v892, %v889
  %v914 = vpack.c.bf16 %v893, %v890
  %v915 = vpack.c.bf16 %v894, %v891
  %v916 = vpack.c.bf16 %v898, %v895
  %v917 = vpack.c.bf16 %v899, %v896
  %v918 = vpack.c.bf16 %v900, %v897
  %v919 = vpack.c.bf16 %v904, %v901
  %v920 = vpack.c.bf16 %v905, %v902
  %v921 = vpack.c.bf16 %v906, %v903
  %v922 = vpack.c.bf16 %v910, %v907
  %v923 = vpack.c.bf16 %v911, %v908
  %v924 = vpack.c.bf16 %v912, %v909
  %v925 = vld [vmem:[%s11] sm:$0xff]
  %v926 = vld [vmem:[%s11 + $0x8] sm:$0xff]
  %v927 = vld [vmem:[%s11 + $0x10] sm:$0xff]
  %v928 = vld [vmem:[%s11 + $0x18] sm:$0xff]
  %v929 = vld [vmem:[%s11 + $0x20] sm:$0xff]
  %v930 = vld [vmem:[%s11 + $0x28] sm:$0xff]
  %v931 = vld [vmem:[%s11 + $0x30] sm:$0xff]
  %v932 = vld [vmem:[%s11 + $0x38] sm:$0xff]
  %v933 = vld [vmem:[%s11 + $0x40] sm:$0xff]
  %v934 = vld [vmem:[%s11 + $0x48] sm:$0xff]
  %v935 = vld [vmem:[%s11 + $0x50] sm:$0xff]
  %v936 = vld [vmem:[%s11 + $0x58] sm:$0xff]
  %v937 = vld [vmem:[%s11 + $0x60] sm:$0xff]
  %v938 = vld [vmem:[%s11 + $0x68] sm:$0xff]
  %v939 = vld [vmem:[%s11 + $0x70] sm:$0xff]
  %v940 = vld [vmem:[%s11 + $0x78] sm:$0xff]
  %v941 = vld [vmem:[%s11 + $0x80] sm:$0xff]
  %v942 = vld [vmem:[%s11 + $0x88] sm:$0xff]
  %v943 = vld [vmem:[%s11 + $0x90] sm:$0xff]
  %v944 = vld [vmem:[%s11 + $0x98] sm:$0xff]
  %v945 = vld [vmem:[%s11 + $0xa0] sm:$0xff]
  %v946 = vld [vmem:[%s11 + $0xa8] sm:$0xff]
  %v947 = vld [vmem:[%s11 + $0xb0] sm:$0xff]
  %v948 = vld [vmem:[%s11 + $0xb8] sm:$0xff]
  %v949 = vpack.c.bf16 %v928, %v925
  %v950 = vpack.c.bf16 %v929, %v926
  %v951 = vpack.c.bf16 %v930, %v927
  %v952 = vpack.c.bf16 %v934, %v931
  %v953 = vpack.c.bf16 %v935, %v932
  %v954 = vpack.c.bf16 %v936, %v933
  %v955 = vpack.c.bf16 %v940, %v937
  %v956 = vpack.c.bf16 %v941, %v938
  %v957 = vpack.c.bf16 %v942, %v939
  %v958 = vpack.c.bf16 %v946, %v943
  %v959 = vpack.c.bf16 %v947, %v944
  %v960 = vpack.c.bf16 %v948, %v945
  %v961 = vld [vmem:[%s10] sm:$0xff]
  %v962 = vld [vmem:[%s10 + $0x8] sm:$0xff]
  %v963 = vld [vmem:[%s10 + $0x10] sm:$0xff]
  %v964 = vld [vmem:[%s10 + $0x18] sm:$0xff]
  %v965 = vld [vmem:[%s10 + $0x20] sm:$0xff]
  %v966 = vld [vmem:[%s10 + $0x28] sm:$0xff]
  %v967 = vld [vmem:[%s10 + $0x30] sm:$0xff]
  %v968 = vld [vmem:[%s10 + $0x38] sm:$0xff]
  %v969 = vld [vmem:[%s12] sm:$0xff]
  %v970 = vld [vmem:[%s12 + $0x8] sm:$0xff]
  %v971 = vld [vmem:[%s12 + $0x10] sm:$0xff]
  %v972 = vld [vmem:[%s12 + $0x18] sm:$0xff]
  %v973 = vld [vmem:[%s12 + $0x20] sm:$0xff]
  %v974 = vld [vmem:[%s12 + $0x28] sm:$0xff]
  %v975 = vld [vmem:[%s12 + $0x30] sm:$0xff]
  %v976 = vld [vmem:[%s12 + $0x38] sm:$0xff]
  %v977 = vld [vmem:[%s2] sm:$0xff]
  %v978 = vld [vmem:[%s2 + $0x8] sm:$0xff]
  %v979 = vld [vmem:[%s2 + $0x10] sm:$0xff]
  %v980 = vld [vmem:[%s2 + $0x18] sm:$0xff]
  %v981 = vld [vmem:[%s2 + $0x20] sm:$0xff]
  %v982 = vld [vmem:[%s2 + $0x28] sm:$0xff]
  %v983 = vld [vmem:[%s2 + $0x30] sm:$0xff]
  %v984 = vld [vmem:[%s2 + $0x38] sm:$0xff]
  %987 = vrot.lane.b32.xlu0 %v881, 73
  %v988 = vpop.permute.xlu0 %987
  %989 = vrot.lane.b32.xlu0 %v882, 73
  %v990 = vpop.permute.xlu0 %989
  %993 = vrot.lane.b32.xlu0 %v881, 9
  %v994 = vpop.permute.xlu0 %993
  %995 = vrot.lane.b32.xlu0 %v882, 9
  %v996 = vpop.permute.xlu0 %995
  %v999 = vsel %vm62, %v988, %v994
  %v1000 = vsel %vm62, %v990, %v996
  %v1001 = vmul.f32 %v999, %v67
  %v1002 = vmul.f32 %v1000, %v67
  %1003 = vrot.lane.b32.xlu0 %v881, 72
  %v1004 = vpop.permute.xlu0 %1003
  %1005 = vrot.lane.b32.xlu0 %v882, 72
  %v1006 = vpop.permute.xlu0 %1005
  %1009 = vrot.lane.b32.xlu0 %v881, 8
  %v1010 = vpop.permute.xlu0 %1009
  %1011 = vrot.lane.b32.xlu0 %v882, 8
  %v1012 = vpop.permute.xlu0 %1011
  %v1015 = vsel %vm75, %v1004, %v1010
  %v1016 = vsel %vm75, %v1006, %v1012
  %v1017 = vmul.f32 %v1015, %v80
  %v1018 = vmul.f32 %v1016, %v80
  %1019 = vrot.lane.b32.xlu0 %v881, 71
  %v1020 = vpop.permute.xlu0 %1019
  %1021 = vrot.lane.b32.xlu0 %v882, 71
  %v1022 = vpop.permute.xlu0 %1021
  %1025 = vrot.lane.b32.xlu0 %v881, 7
  %v1026 = vpop.permute.xlu0 %1025
  %1027 = vrot.lane.b32.xlu0 %v882, 7
  %v1028 = vpop.permute.xlu0 %1027
  %v1031 = vsel %vm88, %v1020, %v1026
  %v1032 = vsel %vm88, %v1022, %v1028
  %v1033 = vmul.f32 %v1031, %v93
  %v1034 = vmul.f32 %v1032, %v93
  %1035 = vrot.lane.b32.xlu0 %v881, 65
  %v1036 = vpop.permute.xlu0 %1035
  %1037 = vrot.lane.b32.xlu0 %v882, 65
  %v1038 = vpop.permute.xlu0 %1037
  %1041 = vrot.lane.b32.xlu0 %v881, 1
  %v1042 = vpop.permute.xlu0 %1041
  %1043 = vrot.lane.b32.xlu0 %v882, 1
  %v1044 = vpop.permute.xlu0 %1043
  %v1047 = vsel %vm101, %v1036, %v1042
  %v1048 = vsel %vm101, %v1038, %v1044
  %v1049 = vmul.f32 %v1047, %v106
  %v1050 = vmul.f32 %v1048, %v106
  %v1051 = vmul.f32 %v881, %v111
  %v1052 = vmul.f32 %v882, %v111
  %1053 = vrot.lane.b32.xlu0 %v881, 127
  %v1054 = vpop.permute.xlu0 %1053
  %1055 = vrot.lane.b32.xlu0 %v882, 127
  %v1056 = vpop.permute.xlu0 %1055
  %1059 = vrot.lane.b32.xlu0 %v881, 63
  %v1060 = vpop.permute.xlu0 %1059
  %1061 = vrot.lane.b32.xlu0 %v882, 63
  %v1062 = vpop.permute.xlu0 %1061
  %v1065 = vsel %vm119, %v1054, %v1060
  %v1066 = vsel %vm119, %v1056, %v1062
  %v1067 = vmul.f32 %v1065, %v124
  %v1068 = vmul.f32 %v1066, %v124
  %1069 = vrot.lane.b32.xlu0 %v881, 121
  %v1070 = vpop.permute.xlu0 %1069
  %1071 = vrot.lane.b32.xlu0 %v882, 121
  %v1072 = vpop.permute.xlu0 %1071
  %1075 = vrot.lane.b32.xlu0 %v881, 57
  %v1076 = vpop.permute.xlu0 %1075
  %1077 = vrot.lane.b32.xlu0 %v882, 57
  %v1078 = vpop.permute.xlu0 %1077
  %v1081 = vsel %vm132, %v1070, %v1076
  %v1082 = vsel %vm132, %v1072, %v1078
  %v1083 = vmul.f32 %v1081, %v137
  %v1084 = vmul.f32 %v1082, %v137
  %1085 = vrot.lane.b32.xlu0 %v881, 120
  %v1086 = vpop.permute.xlu0 %1085
  %1087 = vrot.lane.b32.xlu0 %v882, 120
  %v1088 = vpop.permute.xlu0 %1087
  %1091 = vrot.lane.b32.xlu0 %v881, 56
  %v1092 = vpop.permute.xlu0 %1091
  %1093 = vrot.lane.b32.xlu0 %v882, 56
  %v1094 = vpop.permute.xlu0 %1093
  %v1097 = vsel %vm145, %v1086, %v1092
  %v1098 = vsel %vm145, %v1088, %v1094
  %v1099 = vmul.f32 %v1097, %v150
  %v1100 = vmul.f32 %v1098, %v150
  %1101 = vrot.lane.b32.xlu0 %v881, 119
  %v1102 = vpop.permute.xlu0 %1101
  %1103 = vrot.lane.b32.xlu0 %v882, 119
  %v1104 = vpop.permute.xlu0 %1103
  %1107 = vrot.lane.b32.xlu0 %v881, 55
  %v1108 = vpop.permute.xlu0 %1107
  %1109 = vrot.lane.b32.xlu0 %v882, 55
  %v1110 = vpop.permute.xlu0 %1109
  %v1113 = vsel %vm158, %v1102, %v1108
  %v1114 = vsel %vm158, %v1104, %v1110
  %v1115 = vmul.f32 %v1113, %v163
  %v1116 = vmul.f32 %v1114, %v163
  %v1117 = vmul.f32 %v67, 0.0
  %v1118 = vmul.f32 %v80, 0.0
  %v1119 = vmul.f32 %v93, 0.0
  %v1120 = vmul.f32 %v106, 0.0
  %v1121 = vmul.f32 %v111, 0.0
  %v1122 = vmul.f32 %v124, 0.0
  %v1123 = vmul.f32 %v137, 0.0
  %v1124 = vmul.f32 %v150, 0.0
  %v1125 = vmul.f32 %v163, 0.0
  %v1126 = vpack.c.bf16 %v1002, %v1001
  %v1127 = vpack.c.bf16 %v1018, %v1017
  %v1128 = vpack.c.bf16 %v1034, %v1033
  %v1129 = vpack.c.bf16 %v1050, %v1049
  %v1130 = vpack.c.bf16 %v1052, %v1051
  %v1131 = vpack.c.bf16 %v1068, %v1067
  %v1132 = vpack.c.bf16 %v1084, %v1083
  %v1133 = vpack.c.bf16 %v1100, %v1099
  %v1134 = vpack.c.bf16 %v1116, %v1115
  %v1135 = vpack.c.bf16 %v1117, %v1117
  %v1136 = vpack.c.bf16 %v1118, %v1118
  %v1137 = vpack.c.bf16 %v1119, %v1119
  %v1138 = vpack.c.bf16 %v1120, %v1120
  %v1139 = vpack.c.bf16 %v1121, %v1121
  %v1140 = vpack.c.bf16 %v1122, %v1122
  %v1141 = vpack.c.bf16 %v1123, %v1123
  %v1142 = vpack.c.bf16 %v1124, %v1124
  %v1143 = vpack.c.bf16 %v1125, %v1125
  %1145 = vset.pattern.permute.xlu0 0
  %1146 = vperm.xlu0 %1145, %v961
  %v1147 = vpop.permute.xlu0 %1146
  %1150 = vset.pattern.permute.xlu0 0
  %1151 = vperm.xlu0 %1150, %v962
  %v1152 = vpop.permute.xlu0 %1151
  %1155 = vset.pattern.permute.xlu0 0
  %1156 = vperm.xlu0 %1155, %v963
  %v1157 = vpop.permute.xlu0 %1156
  %1160 = vset.pattern.permute.xlu0 0
  %1161 = vperm.xlu0 %1160, %v964
  %v1162 = vpop.permute.xlu0 %1161
  %1165 = vset.pattern.permute.xlu0 0
  %1166 = vperm.xlu0 %1165, %v965
  %v1167 = vpop.permute.xlu0 %1166
  %1170 = vset.pattern.permute.xlu0 0
  %1171 = vperm.xlu0 %1170, %v966
  %v1172 = vpop.permute.xlu0 %1171
  %1175 = vset.pattern.permute.xlu0 0
  %1176 = vperm.xlu0 %1175, %v967
  %v1177 = vpop.permute.xlu0 %1176
  %1180 = vset.pattern.permute.xlu0 0
  %1181 = vperm.xlu0 %1180, %v968
  %v1182 = vpop.permute.xlu0 %1181
  %vm1184 = vcmask 261120
  %v1186 = vsel %vm1184, %v915, 0
  %v1189 = vsel %vm1184, %v918, 0
  %v1192 = vsel %vm1184, %v921, 0
  %v1195 = vsel %vm1184, %v924, 0
  %1197 = vmatprep.subr.bf16.mxu0 0
  %1198 = vmatpush1.bf16.msra.mxu0 %v1126
  %1199 = vmatprep.subr.bf16.mxu0 0
  %1200 = vmatpush1.bf16.msra.mxu0 %v1127
  %1201 = vmatprep.subr.bf16.mxu0 0
  %1202 = vmatpush1.bf16.msra.mxu0 %v1128
  %1203 = vmatprep.subr.bf16.mxu0 0
  %1204 = vmatpush1.bf16.msra.mxu0 %v1129
  %1205 = vmatprep.subr.bf16.mxu0 0
  %1206 = vmatpush1.bf16.msra.mxu0 %v1130
  %1207 = vmatprep.subr.bf16.mxu0 0
  %1208 = vmatpush1.bf16.msra.mxu0 %v1131
  %1209 = vmatprep.subr.bf16.mxu0 0
  %1210 = vmatpush1.bf16.msra.mxu0 %v1132
  %1211 = vmatprep.subr.bf16.mxu0 0
  %1212 = vmatpush1.bf16.msra.mxu0 %v1133
  %1213 = vmatprep.subr.bf16.mxu0 0
  %1214 = vmatpush1.bf16.msra.mxu0 %v1134
  %1215 = vmatprep.subr.bf16.mxu0 0
  %1216 = vmatpush1.bf16.msra.mxu0 %v1135
  %1217 = vmatprep.subr.bf16.mxu0 0
  %1218 = vmatpush1.bf16.msra.mxu0 %v1136
  %1219 = vmatprep.subr.bf16.mxu0 0
  %1220 = vmatpush1.bf16.msra.mxu0 %v1137
  %1221 = vmatprep.subr.bf16.mxu0 0
  %1222 = vmatpush1.bf16.msra.mxu0 %v1138
  %1223 = vmatprep.subr.bf16.mxu0 0
  %1224 = vmatpush1.bf16.msra.mxu0 %v1139
  %1225 = vmatprep.subr.bf16.mxu0 0
  %1226 = vmatpush1.bf16.msra.mxu0 %v1140
  %1227 = vmatprep.subr.bf16.mxu0 0
  %1228 = vmatpush1.bf16.msra.mxu0 %v1141
  %1229 = vmatprep.mubr.bf16.mxu0 %v914
  %1230 = vmatmul.mubr.bf16.gmra.mrb[0].mxu0 %v913
  %v1231 = vpop.f32.mrb[0].mxu0
  %v1232 = vadd.f32 %v1147, %v1231
  %v1233 = vpop.f32.mrb[0].mxu0
  %v1234 = vpop.f32.mrb[0].mxu0
  %v1235 = vadd.f32 %v1152, %v1234
  %v1236 = vpop.f32.mrb[0].mxu0
  %1237 = vmatprep.mubr.bf16.mxu0 %v917
  %1238 = vmatmul.mubr.bf16.gmra.mrb[0].mxu0 %v916
  %v1239 = vpop.f32.mrb[0].mxu0
  %v1240 = vadd.f32 %v1157, %v1239
  %v1241 = vpop.f32.mrb[0].mxu0
  %v1242 = vpop.f32.mrb[0].mxu0
  %v1243 = vadd.f32 %v1162, %v1242
  %v1244 = vpop.f32.mrb[0].mxu0
  %1245 = vmatprep.mubr.bf16.mxu0 %v920
  %1246 = vmatmul.mubr.bf16.gmra.mrb[0].mxu0 %v919
  %v1247 = vpop.f32.mrb[0].mxu0
  %v1248 = vadd.f32 %v1167, %v1247
  %v1249 = vpop.f32.mrb[0].mxu0
  %v1250 = vpop.f32.mrb[0].mxu0
  %v1251 = vadd.f32 %v1172, %v1250
  %v1252 = vpop.f32.mrb[0].mxu0
  %1253 = vmatprep.mubr.bf16.mxu0 %v923
  %1254 = vmatmul.mubr.bf16.gmra.mrb[0].mxu0 %v922
  %v1255 = vpop.f32.mrb[0].mxu0
  %v1256 = vadd.f32 %v1177, %v1255
  %v1257 = vpop.f32.mrb[0].mxu0
  %v1258 = vpop.f32.mrb[0].mxu0
  %v1259 = vadd.f32 %v1182, %v1258
  %v1260 = vpop.f32.mrb[0].mxu0
  %1261 = vdwg.mxu0
  %1262 = vmatprep.subr.bf16.mxu0 0
  %1263 = vmatpush1.bf16.msra.mxu0 %v1142
  %1264 = vmatprep.subr.bf16.mxu0 0
  %1265 = vmatpush1.bf16.msra.mxu0 %v1143
  %1266 = vmatprep.subr.bf16.mxu0 0
  %1267 = vmatpush1.bf16.msra.mxu0 0
  %1268 = vmatprep.subr.bf16.mxu0 0
  %1269 = vmatpush1.bf16.msra.mxu0 0
  %1270 = vmatprep.subr.bf16.mxu0 0
  %1271 = vmatpush1.bf16.msra.mxu0 0
  %1272 = vmatprep.subr.bf16.mxu0 0
  %1273 = vmatpush1.bf16.msra.mxu0 0
  %1274 = vmatprep.subr.bf16.mxu0 0
  %1275 = vmatpush1.bf16.msra.mxu0 0
  %1276 = vmatprep.subr.bf16.mxu0 0
  %1277 = vmatpush1.bf16.msra.mxu0 0
  %1278 = vmatprep.subr.bf16.mxu0 0
  %1279 = vmatpush1.bf16.msra.mxu0 0
  %1280 = vmatprep.subr.bf16.mxu0 0
  %1281 = vmatpush1.bf16.msra.mxu0 0
  %1282 = vmatprep.subr.bf16.mxu0 0
  %1283 = vmatpush1.bf16.msra.mxu0 0
  %1284 = vmatprep.subr.bf16.mxu0 0
  %1285 = vmatpush1.bf16.msra.mxu0 0
  %1286 = vmatprep.subr.bf16.mxu0 0
  %1287 = vmatpush1.bf16.msra.mxu0 0
  %1288 = vmatprep.subr.bf16.mxu0 0
  %1289 = vmatpush1.bf16.msra.mxu0 0
  %1290 = vmatprep.subr.bf16.mxu0 0
  %1291 = vmatpush1.bf16.msra.mxu0 0
  %1292 = vmatprep.subr.bf16.mxu0 0
  %1293 = vmatpush1.bf16.msra.mxu0 0
  %1294 = vmatprep.mubr.bf16.mxu0 0
  %1295 = vmatmul.mubr.bf16.gmra.mrb[0].mxu0 %v1186
  %v1296 = vpop.f32.mrb[0].mxu0
  %v1297 = vadd.f32 %v1232, %v1296
  %v1298 = vpop.f32.mrb[0].mxu0
  %v1299 = vpop.f32.mrb[0].mxu0
  %v1300 = vadd.f32 %v1235, %v1299
  %v1301 = vpop.f32.mrb[0].mxu0
  %1302 = vmatprep.mubr.bf16.mxu0 0
  %1303 = vmatmul.mubr.bf16.gmra.mrb[0].mxu0 %v1189
  %v1304 = vpop.f32.mrb[0].mxu0
  %v1305 = vadd.f32 %v1240, %v1304
  %v1306 = vpop.f32.mrb[0].mxu0
  %v1307 = vpop.f32.mrb[0].mxu0
  %v1308 = vadd.f32 %v1243, %v1307
  %v1309 = vpop.f32.mrb[0].mxu0
  %1310 = vmatprep.mubr.bf16.mxu0 0
  %1311 = vmatmul.mubr.bf16.gmra.mrb[0].mxu0 %v1192
  %v1312 = vpop.f32.mrb[0].mxu0
  %v1313 = vadd.f32 %v1248, %v1312
  %v1314 = vpop.f32.mrb[0].mxu0
  %v1315 = vpop.f32.mrb[0].mxu0
  %v1316 = vadd.f32 %v1251, %v1315
  %v1317 = vpop.f32.mrb[0].mxu0
  %1318 = vmatprep.mubr.bf16.mxu0 0
  %1319 = vmatmul.mubr.bf16.gmra.mrb[0].mxu0 %v1195
  %v1320 = vpop.f32.mrb[0].mxu0
  %v1321 = vadd.f32 %v1256, %v1320
  %v1322 = vpop.f32.mrb[0].mxu0
  %v1323 = vpop.f32.mrb[0].mxu0
  %v1324 = vadd.f32 %v1259, %v1323
  %v1325 = vpop.f32.mrb[0].mxu0
  %1326 = vdwg.mxu0
  %v1327 = vxor.u32 %v1297, 2147483648
  %v1328 = vxor.u32 %v1300, 2147483648
  %v1329 = vmul.f32 %v1327, 1.442695
  %v1330 = vpow.pop %v1329
  %v1331 = vmul.f32 %v1328, 1.442695
  %v1332 = vpow.pop %v1331
  %v1333 = vadd.f32 %v1330, 1.0
  %v1334 = vadd.f32 %v1332, 1.0
  %v1335 = vrcp.pop %v1333
  %v1336 = vmul.f32 1.0, %v1335
  %v1337 = vrcp.pop %v1334
  %v1338 = vmul.f32 1.0, %v1337
  %v1339 = vxor.u32 %v1305, 2147483648
  %v1340 = vxor.u32 %v1308, 2147483648
  %v1341 = vmul.f32 %v1339, 1.442695
  %v1342 = vpow.pop %v1341
  %v1343 = vmul.f32 %v1340, 1.442695
  %v1344 = vpow.pop %v1343
  %v1345 = vadd.f32 %v1342, 1.0
  %v1346 = vadd.f32 %v1344, 1.0
  %v1347 = vrcp.pop %v1345
  %v1348 = vmul.f32 1.0, %v1347
  %v1349 = vrcp.pop %v1346
  %v1350 = vmul.f32 1.0, %v1349
  %v1351 = vxor.u32 %v1313, 2147483648
  %v1352 = vxor.u32 %v1316, 2147483648
  %v1353 = vmul.f32 %v1351, 1.442695
  %v1354 = vpow.pop %v1353
  %v1355 = vmul.f32 %v1352, 1.442695
  %v1356 = vpow.pop %v1355
  %v1357 = vadd.f32 %v1354, 1.0
  %v1358 = vadd.f32 %v1356, 1.0
  %v1359 = vrcp.pop %v1357
  %v1360 = vmul.f32 1.0, %v1359
  %v1361 = vrcp.pop %v1358
  %v1362 = vmul.f32 1.0, %v1361
  %v1363 = vtanh.pop %v1321
  %v1364 = vtanh.pop %v1324
  %v1365 = vmul.f32 %v1348, 0.0
  %v1366 = vmul.f32 %v1350, 0.0
  %v1367 = vmul.f32 %v1336, %v1363
  %v1368 = vmul.f32 %v1338, %v1364
  %v1369 = vadd.f32 %v1365, %v1367
  %v1370 = vadd.f32 %v1366, %v1368
  %v1371 = vtanh.pop %v1369
  %v1372 = vtanh.pop %v1370
  %v1373 = vmul.f32 %v1360, %v1371
  %v1374 = vmul.f32 %v1362, %v1372
  %1377 = vrot.lane.b32.xlu0 %v1373, 73
  %v1378 = vpop.permute.xlu0 %1377
  %1379 = vrot.lane.b32.xlu0 %v1374, 73
  %v1380 = vpop.permute.xlu0 %1379
  %1383 = vrot.lane.b32.xlu0 %v1373, 9
  %v1384 = vpop.permute.xlu0 %1383
  %1385 = vrot.lane.b32.xlu0 %v1374, 9
  %v1386 = vpop.permute.xlu0 %1385
  %v1389 = vsel %vm62, %v1378, %v1384
  %v1390 = vsel %vm62, %v1380, %v1386
  %v1391 = vmul.f32 %v1389, %v67
  %v1392 = vmul.f32 %v1390, %v67
  %1393 = vrot.lane.b32.xlu0 %v1373, 72
  %v1394 = vpop.permute.xlu0 %1393
  %1395 = vrot.lane.b32.xlu0 %v1374, 72
  %v1396 = vpop.permute.xlu0 %1395
  %1399 = vrot.lane.b32.xlu0 %v1373, 8
  %v1400 = vpop.permute.xlu0 %1399
  %1401 = vrot.lane.b32.xlu0 %v1374, 8
  %v1402 = vpop.permute.xlu0 %1401
  %v1405 = vsel %vm75, %v1394, %v1400
  %v1406 = vsel %vm75, %v1396, %v1402
  %v1407 = vmul.f32 %v1405, %v80
  %v1408 = vmul.f32 %v1406, %v80
  %1409 = vrot.lane.b32.xlu0 %v1373, 71
  %v1410 = vpop.permute.xlu0 %1409
  %1411 = vrot.lane.b32.xlu0 %v1374, 71
  %v1412 = vpop.permute.xlu0 %1411
  %1415 = vrot.lane.b32.xlu0 %v1373, 7
  %v1416 = vpop.permute.xlu0 %1415
  %1417 = vrot.lane.b32.xlu0 %v1374, 7
  %v1418 = vpop.permute.xlu0 %1417
  %v1421 = vsel %vm88, %v1410, %v1416
  %v1422 = vsel %vm88, %v1412, %v1418
  %v1423 = vmul.f32 %v1421, %v93
  %v1424 = vmul.f32 %v1422, %v93
  %1425 = vrot.lane.b32.xlu0 %v1373, 65
  %v1426 = vpop.permute.xlu0 %1425
  %1427 = vrot.lane.b32.xlu0 %v1374, 65
  %v1428 = vpop.permute.xlu0 %1427
  %1431 = vrot.lane.b32.xlu0 %v1373, 1
  %v1432 = vpop.permute.xlu0 %1431
  %1433 = vrot.lane.b32.xlu0 %v1374, 1
  %v1434 = vpop.permute.xlu0 %1433
  %v1437 = vsel %vm101, %v1426, %v1432
  %v1438 = vsel %vm101, %v1428, %v1434
  %v1439 = vmul.f32 %v1437, %v106
  %v1440 = vmul.f32 %v1438, %v106
  %v1441 = vmul.f32 %v1373, %v111
  %v1442 = vmul.f32 %v1374, %v111
  %1443 = vrot.lane.b32.xlu0 %v1373, 127
  %v1444 = vpop.permute.xlu0 %1443
  %1445 = vrot.lane.b32.xlu0 %v1374, 127
  %v1446 = vpop.permute.xlu0 %1445
  %1449 = vrot.lane.b32.xlu0 %v1373, 63
  %v1450 = vpop.permute.xlu0 %1449
  %1451 = vrot.lane.b32.xlu0 %v1374, 63
  %v1452 = vpop.permute.xlu0 %1451
  %v1455 = vsel %vm119, %v1444, %v1450
  %v1456 = vsel %vm119, %v1446, %v1452
  %v1457 = vmul.f32 %v1455, %v124
  %v1458 = vmul.f32 %v1456, %v124
  %1459 = vrot.lane.b32.xlu0 %v1373, 121
  %v1460 = vpop.permute.xlu0 %1459
  %1461 = vrot.lane.b32.xlu0 %v1374, 121
  %v1462 = vpop.permute.xlu0 %1461
  %1465 = vrot.lane.b32.xlu0 %v1373, 57
  %v1466 = vpop.permute.xlu0 %1465
  %1467 = vrot.lane.b32.xlu0 %v1374, 57
  %v1468 = vpop.permute.xlu0 %1467
  %v1471 = vsel %vm132, %v1460, %v1466
  %v1472 = vsel %vm132, %v1462, %v1468
  %v1473 = vmul.f32 %v1471, %v137
  %v1474 = vmul.f32 %v1472, %v137
  %1475 = vrot.lane.b32.xlu0 %v1373, 120
  %v1476 = vpop.permute.xlu0 %1475
  %1477 = vrot.lane.b32.xlu0 %v1374, 120
  %v1478 = vpop.permute.xlu0 %1477
  %1481 = vrot.lane.b32.xlu0 %v1373, 56
  %v1482 = vpop.permute.xlu0 %1481
  %1483 = vrot.lane.b32.xlu0 %v1374, 56
  %v1484 = vpop.permute.xlu0 %1483
  %v1487 = vsel %vm145, %v1476, %v1482
  %v1488 = vsel %vm145, %v1478, %v1484
  %v1489 = vmul.f32 %v1487, %v150
  %v1490 = vmul.f32 %v1488, %v150
  %1491 = vrot.lane.b32.xlu0 %v1373, 119
  %v1492 = vpop.permute.xlu0 %1491
  %1493 = vrot.lane.b32.xlu0 %v1374, 119
  %v1494 = vpop.permute.xlu0 %1493
  %1497 = vrot.lane.b32.xlu0 %v1373, 55
  %v1498 = vpop.permute.xlu0 %1497
  %1499 = vrot.lane.b32.xlu0 %v1374, 55
  %v1500 = vpop.permute.xlu0 %1499
  %v1503 = vsel %vm158, %v1492, %v1498
  %v1504 = vsel %vm158, %v1494, %v1500
  %v1505 = vmul.f32 %v1503, %v163
  %v1506 = vmul.f32 %v1504, %v163
  %v1507 = vpack.c.bf16 %v1392, %v1391
  %v1508 = vpack.c.bf16 %v1408, %v1407
  %v1509 = vpack.c.bf16 %v1424, %v1423
  %v1510 = vpack.c.bf16 %v1440, %v1439
  %v1511 = vpack.c.bf16 %v1442, %v1441
  %v1512 = vpack.c.bf16 %v1458, %v1457
  %v1513 = vpack.c.bf16 %v1474, %v1473
  %v1514 = vpack.c.bf16 %v1490, %v1489
  %v1515 = vpack.c.bf16 %v1506, %v1505
  %1517 = vset.pattern.permute.xlu0 0
  %1518 = vperm.xlu0 %1517, %v969
  %v1519 = vpop.permute.xlu0 %1518
  %1522 = vset.pattern.permute.xlu0 0
  %1523 = vperm.xlu0 %1522, %v970
  %v1524 = vpop.permute.xlu0 %1523
  %1527 = vset.pattern.permute.xlu0 0
  %1528 = vperm.xlu0 %1527, %v971
  %v1529 = vpop.permute.xlu0 %1528
  %1532 = vset.pattern.permute.xlu0 0
  %1533 = vperm.xlu0 %1532, %v972
  %v1534 = vpop.permute.xlu0 %1533
  %1537 = vset.pattern.permute.xlu0 0
  %1538 = vperm.xlu0 %1537, %v973
  %v1539 = vpop.permute.xlu0 %1538
  %1542 = vset.pattern.permute.xlu0 0
  %1543 = vperm.xlu0 %1542, %v974
  %v1544 = vpop.permute.xlu0 %1543
  %1547 = vset.pattern.permute.xlu0 0
  %1548 = vperm.xlu0 %1547, %v975
  %v1549 = vpop.permute.xlu0 %1548
  %1552 = vset.pattern.permute.xlu0 0
  %1553 = vperm.xlu0 %1552, %v976
  %v1554 = vpop.permute.xlu0 %1553
  %v1557 = vsel %vm1184, %v951, 0
  %v1560 = vsel %vm1184, %v954, 0
  %v1563 = vsel %vm1184, %v957, 0
  %v1566 = vsel %vm1184, %v960, 0
  %1568 = vmatprep.subr.bf16.mxu0 0
  %1569 = vmatpush1.bf16.msra.mxu0 %v1507
  %1570 = vmatprep.subr.bf16.mxu0 0
  %1571 = vmatpush1.bf16.msra.mxu0 %v1508
  %1572 = vmatprep.subr.bf16.mxu0 0
  %1573 = vmatpush1.bf16.msra.mxu0 %v1509
  %1574 = vmatprep.subr.bf16.mxu0 0
  %1575 = vmatpush1.bf16.msra.mxu0 %v1510
  %1576 = vmatprep.subr.bf16.mxu0 0
  %1577 = vmatpush1.bf16.msra.mxu0 %v1511
  %1578 = vmatprep.subr.bf16.mxu0 0
  %1579 = vmatpush1.bf16.msra.mxu0 %v1512
  %1580 = vmatprep.subr.bf16.mxu0 0
  %1581 = vmatpush1.bf16.msra.mxu0 %v1513
  %1582 = vmatprep.subr.bf16.mxu0 0
  %1583 = vmatpush1.bf16.msra.mxu0 %v1514
  %1584 = vmatprep.subr.bf16.mxu0 0
  %1585 = vmatpush1.bf16.msra.mxu0 %v1515
  %1586 = vmatprep.subr.bf16.mxu0 0
  %1587 = vmatpush1.bf16.msra.mxu0 %v1135
  %1588 = vmatprep.subr.bf16.mxu0 0
  %1589 = vmatpush1.bf16.msra.mxu0 %v1136
  %1590 = vmatprep.subr.bf16.mxu0 0
  %1591 = vmatpush1.bf16.msra.mxu0 %v1137
  %1592 = vmatprep.subr.bf16.mxu0 0
  %1593 = vmatpush1.bf16.msra.mxu0 %v1138
  %1594 = vmatprep.subr.bf16.mxu0 0
  %1595 = vmatpush1.bf16.msra.mxu0 %v1139
  %1596 = vmatprep.subr.bf16.mxu0 0
  %1597 = vmatpush1.bf16.msra.mxu0 %v1140
  %1598 = vmatprep.subr.bf16.mxu0 0
  %1599 = vmatpush1.bf16.msra.mxu0 %v1141
  %1600 = vmatprep.mubr.bf16.mxu0 %v950
  %1601 = vmatmul.mubr.bf16.gmra.mrb[0].mxu0 %v949
  %v1602 = vpop.f32.mrb[0].mxu0
  %v1603 = vadd.f32 %v1519, %v1602
  %v1604 = vpop.f32.mrb[0].mxu0
  %v1605 = vpop.f32.mrb[0].mxu0
  %v1606 = vadd.f32 %v1524, %v1605
  %v1607 = vpop.f32.mrb[0].mxu0
  %1608 = vmatprep.mubr.bf16.mxu0 %v953
  %1609 = vmatmul.mubr.bf16.gmra.mrb[0].mxu0 %v952
  %v1610 = vpop.f32.mrb[0].mxu0
  %v1611 = vadd.f32 %v1529, %v1610
  %v1612 = vpop.f32.mrb[0].mxu0
  %v1613 = vpop.f32.mrb[0].mxu0
  %v1614 = vadd.f32 %v1534, %v1613
  %v1615 = vpop.f32.mrb[0].mxu0
  %1616 = vmatprep.mubr.bf16.mxu0 %v956
  %1617 = vmatmul.mubr.bf16.gmra.mrb[0].mxu0 %v955
  %v1618 = vpop.f32.mrb[0].mxu0
  %v1619 = vadd.f32 %v1539, %v1618
  %v1620 = vpop.f32.mrb[0].mxu0
  %v1621 = vpop.f32.mrb[0].mxu0
  %v1622 = vadd.f32 %v1544, %v1621
  %v1623 = vpop.f32.mrb[0].mxu0
  %1624 = vmatprep.mubr.bf16.mxu0 %v959
  %1625 = vmatmul.mubr.bf16.gmra.mrb[0].mxu0 %v958
  %v1626 = vpop.f32.mrb[0].mxu0
  %v1627 = vadd.f32 %v1549, %v1626
  %v1628 = vpop.f32.mrb[0].mxu0
  %v1629 = vpop.f32.mrb[0].mxu0
  %v1630 = vadd.f32 %v1554, %v1629
  %v1631 = vpop.f32.mrb[0].mxu0
  %1632 = vdwg.mxu0
  %1633 = vmatprep.subr.bf16.mxu0 0
  %1634 = vmatpush1.bf16.msra.mxu0 %v1142
  %1635 = vmatprep.subr.bf16.mxu0 0
  %1636 = vmatpush1.bf16.msra.mxu0 %v1143
  %1637 = vmatprep.subr.bf16.mxu0 0
  %1638 = vmatpush1.bf16.msra.mxu0 0
  %1639 = vmatprep.subr.bf16.mxu0 0
  %1640 = vmatpush1.bf16.msra.mxu0 0
  %1641 = vmatprep.subr.bf16.mxu0 0
  %1642 = vmatpush1.bf16.msra.mxu0 0
  %1643 = vmatprep.subr.bf16.mxu0 0
  %1644 = vmatpush1.bf16.msra.mxu0 0
  %1645 = vmatprep.subr.bf16.mxu0 0
  %1646 = vmatpush1.bf16.msra.mxu0 0
  %1647 = vmatprep.subr.bf16.mxu0 0
  %1648 = vmatpush1.bf16.msra.mxu0 0
  %1649 = vmatprep.subr.bf16.mxu0 0
  %1650 = vmatpush1.bf16.msra.mxu0 0
  %1651 = vmatprep.subr.bf16.mxu0 0
  %1652 = vmatpush1.bf16.msra.mxu0 0
  %1653 = vmatprep.subr.bf16.mxu0 0
  %1654 = vmatpush1.bf16.msra.mxu0 0
  %1655 = vmatprep.subr.bf16.mxu0 0
  %1656 = vmatpush1.bf16.msra.mxu0 0
  %1657 = vmatprep.subr.bf16.mxu0 0
  %1658 = vmatpush1.bf16.msra.mxu0 0
  %1659 = vmatprep.subr.bf16.mxu0 0
  %1660 = vmatpush1.bf16.msra.mxu0 0
  %1661 = vmatprep.subr.bf16.mxu0 0
  %1662 = vmatpush1.bf16.msra.mxu0 0
  %1663 = vmatprep.subr.bf16.mxu0 0
  %1664 = vmatpush1.bf16.msra.mxu0 0
  %1665 = vmatprep.mubr.bf16.mxu0 0
  %1666 = vmatmul.mubr.bf16.gmra.mrb[0].mxu0 %v1557
  %v1667 = vpop.f32.mrb[0].mxu0
  %v1668 = vadd.f32 %v1603, %v1667
  %v1669 = vpop.f32.mrb[0].mxu0
  %v1670 = vpop.f32.mrb[0].mxu0
  %v1671 = vadd.f32 %v1606, %v1670
  %v1672 = vpop.f32.mrb[0].mxu0
  %1673 = vmatprep.mubr.bf16.mxu0 0
  %1674 = vmatmul.mubr.bf16.gmra.mrb[0].mxu0 %v1560
  %v1675 = vpop.f32.mrb[0].mxu0
  %v1676 = vadd.f32 %v1611, %v1675
  %v1677 = vpop.f32.mrb[0].mxu0
  %v1678 = vpop.f32.mrb[0].mxu0
  %v1679 = vadd.f32 %v1614, %v1678
  %v1680 = vpop.f32.mrb[0].mxu0
  %1681 = vmatprep.mubr.bf16.mxu0 0
  %1682 = vmatmul.mubr.bf16.gmra.mrb[0].mxu0 %v1563
  %v1683 = vpop.f32.mrb[0].mxu0
  %v1684 = vadd.f32 %v1619, %v1683
  %v1685 = vpop.f32.mrb[0].mxu0
  %v1686 = vpop.f32.mrb[0].mxu0
  %v1687 = vadd.f32 %v1622, %v1686
  %v1688 = vpop.f32.mrb[0].mxu0
  %1689 = vmatprep.mubr.bf16.mxu0 0
  %1690 = vmatmul.mubr.bf16.gmra.mrb[0].mxu0 %v1566
  %v1691 = vpop.f32.mrb[0].mxu0
  %v1692 = vadd.f32 %v1627, %v1691
  %v1693 = vpop.f32.mrb[0].mxu0
  %v1694 = vpop.f32.mrb[0].mxu0
  %v1695 = vadd.f32 %v1630, %v1694
  %v1696 = vpop.f32.mrb[0].mxu0
  %1697 = vdwg.mxu0
  %v1698 = vxor.u32 %v1668, 2147483648
  %v1699 = vxor.u32 %v1671, 2147483648
  %v1700 = vmul.f32 %v1698, 1.442695
  %v1701 = vpow.pop %v1700
  %v1702 = vmul.f32 %v1699, 1.442695
  %v1703 = vpow.pop %v1702
  %v1704 = vadd.f32 %v1701, 1.0
  %v1705 = vadd.f32 %v1703, 1.0
  %v1706 = vrcp.pop %v1704
  %v1707 = vmul.f32 1.0, %v1706
  %v1708 = vrcp.pop %v1705
  %v1709 = vmul.f32 1.0, %v1708
  %v1710 = vxor.u32 %v1676, 2147483648
  %v1711 = vxor.u32 %v1679, 2147483648
  %v1712 = vmul.f32 %v1710, 1.442695
  %v1713 = vpow.pop %v1712
  %v1714 = vmul.f32 %v1711, 1.442695
  %v1715 = vpow.pop %v1714
  %v1716 = vadd.f32 %v1713, 1.0
  %v1717 = vadd.f32 %v1715, 1.0
  %v1718 = vrcp.pop %v1716
  %v1719 = vmul.f32 1.0, %v1718
  %v1720 = vrcp.pop %v1717
  %v1721 = vmul.f32 1.0, %v1720
  %v1722 = vxor.u32 %v1684, 2147483648
  %v1723 = vxor.u32 %v1687, 2147483648
  %v1724 = vmul.f32 %v1722, 1.442695
  %v1725 = vpow.pop %v1724
  %v1726 = vmul.f32 %v1723, 1.442695
  %v1727 = vpow.pop %v1726
  %v1728 = vadd.f32 %v1725, 1.0
  %v1729 = vadd.f32 %v1727, 1.0
  %v1730 = vrcp.pop %v1728
  %v1731 = vmul.f32 1.0, %v1730
  %v1732 = vrcp.pop %v1729
  %v1733 = vmul.f32 1.0, %v1732
  %v1734 = vtanh.pop %v1692
  %v1735 = vtanh.pop %v1695
  %v1736 = vmul.f32 %v1719, 0.0
  %v1737 = vmul.f32 %v1721, 0.0
  %v1738 = vmul.f32 %v1707, %v1734
  %v1739 = vmul.f32 %v1709, %v1735
  %v1740 = vadd.f32 %v1736, %v1738
  %v1741 = vadd.f32 %v1737, %v1739
  %v1742 = vtanh.pop %v1740
  %v1743 = vtanh.pop %v1741
  %v1744 = vmul.f32 %v1731, %v1742
  %v1745 = vmul.f32 %v1733, %v1743
  %1746 = vst.msk [vmem:[%s13] sm:$0xff] %vm334, %v1744
  %1747 = vst.msk [vmem:[%s13 + $0x8] sm:$0xff] %vm334, %v1745
  %1750 = vrot.lane.b32.xlu0 %v1744, 127
  %v1751 = vpop.permute.xlu0 %1750
  %1752 = vrot.lane.b32.xlu0 %v1745, 127
  %v1753 = vpop.permute.xlu0 %1752
  %1756 = vrot.lane.b32.xlu0 %v1744, 63
  %v1757 = vpop.permute.xlu0 %1756
  %1758 = vrot.lane.b32.xlu0 %v1745, 63
  %v1759 = vpop.permute.xlu0 %1758
  %v1762 = vsel %vm119, %v1751, %v1757
  %v1763 = vsel %vm119, %v1753, %v1759
  %v1764 = vmax.f32 %v1744, %v1762
  %v1765 = vmax.f32 %v1745, %v1763
  %1768 = vrot.lane.b32.xlu0 %v1764, 120
  %v1769 = vpop.permute.xlu0 %1768
  %1770 = vrot.lane.b32.xlu0 %v1765, 120
  %v1771 = vpop.permute.xlu0 %1770
  %1774 = vrot.lane.b32.xlu0 %v1764, 56
  %v1775 = vpop.permute.xlu0 %1774
  %1776 = vrot.lane.b32.xlu0 %v1765, 56
  %v1777 = vpop.permute.xlu0 %1776
  %v1780 = vsel %vm145, %v1769, %v1775
  %v1781 = vsel %vm145, %v1771, %v1777
  %v1782 = vmax.f32 %v1764, %v1780
  %v1783 = vmax.f32 %v1765, %v1781
  %v1785 = vsel %vm334, %v1782, 0
  %v1788 = vsel %vm334, %v1783, 0
  %1790 = vmatprep.subr.mxu0 0.0
  %1791 = vmatpush1.msra.mxu0 %v977
  %1792 = vmatprep.subr.mxu0 0.0
  %1793 = vmatpush1.msra.mxu0 %v978
  %1794 = vmatprep.subr.mxu0 0.0
  %1795 = vmatpush1.msra.mxu0 %v979
  %1796 = vmatprep.subr.mxu0 0.0
  %1797 = vmatpush1.msra.mxu0 %v980
  %1798 = vmatprep.subr.mxu0 0.0
  %1799 = vmatpush1.msra.mxu0 %v981
  %1800 = vmatprep.subr.mxu0 0.0
  %1801 = vmatpush1.msra.mxu0 %v982
  %1802 = vmatprep.subr.mxu0 0.0
  %1803 = vmatpush1.msra.mxu0 %v983
  %1804 = vmatprep.subr.mxu0 0.0
  %1805 = vmatpush1.msra.mxu0 %v984
  %1806 = vmatprep.subr.mxu0 0.0
  %1807 = vmatpush1.msra.mxu0 0.0
  %1808 = vmatprep.subr.mxu0 0.0
  %1809 = vmatpush1.msra.mxu0 0.0
  %1810 = vmatprep.subr.mxu0 0.0
  %1811 = vmatpush1.msra.mxu0 0.0
  %1812 = vmatprep.subr.mxu0 0.0
  %1813 = vmatpush1.msra.mxu0 0.0
  %1814 = vmatprep.subr.mxu0 0.0
  %1815 = vmatpush1.msra.mxu0 0.0
  %1816 = vmatprep.subr.mxu0 0.0
  %1817 = vmatpush1.msra.mxu0 0.0
  %1818 = vmatprep.subr.mxu0 0.0
  %1819 = vmatpush1.msra.mxu0 0.0
  %1820 = vmatprep.subr.mxu0 0.0
  %1821 = vmatpush1.msra.mxu0 0.0
  %1822 = vmatprep.subr.mxu0 0.0
  %1823 = vmatpush1.msra.mxu0 0.0
  %1824 = vmatprep.subr.mxu0 0.0
  %1825 = vmatpush1.msra.mxu0 0.0
  %1826 = vmatprep.subr.mxu0 0.0
  %1827 = vmatpush1.msra.mxu0 0.0
  %1828 = vmatprep.subr.mxu0 0.0
  %1829 = vmatpush1.msra.mxu0 0.0
  %1830 = vmatprep.subr.mxu0 0.0
  %1831 = vmatpush1.msra.mxu0 0.0
  %1832 = vmatprep.subr.mxu0 0.0
  %1833 = vmatpush1.msra.mxu0 0.0
  %1834 = vmatprep.subr.mxu0 0.0
  %1835 = vmatpush1.msra.mxu0 0.0
  %1836 = vmatprep.subr.mxu0 0.0
  %1837 = vmatpush1.msra.mxu0 0.0
  %1838 = vmatprep.subr.mxu0 0.0
  %1839 = vmatpush1.msra.mxu0 0.0
  %1840 = vmatprep.subr.mxu0 0.0
  %1841 = vmatpush1.msra.mxu0 0.0
  %1842 = vmatprep.subr.mxu0 0.0
  %1843 = vmatpush1.msra.mxu0 0.0
  %1844 = vmatprep.subr.mxu0 0.0
  %1845 = vmatpush1.msra.mxu0 0.0
  %1846 = vmatprep.subr.mxu0 0.0
  %1847 = vmatpush1.msra.mxu0 0.0
  %1848 = vmatprep.subr.mxu0 0.0
  %1849 = vmatpush1.msra.mxu0 0.0
  %1850 = vmatprep.subr.mxu0 0.0
  %1851 = vmatpush1.msra.mxu0 0.0
  %1852 = vmatprep.subr.mxu0 0.0
  %1853 = vmatpush1.msra.mxu0 0.0
  %1854 = vmatprep.mubr.f32.mxu0 0.0
  %1855 = vmatmul.mubr.f32.gmra.mrb[0].mxu0 %v1785
  %v1856 = vpop.f32.mrb[0].mxu0
  %v1857 = vadd.f32 0.0, %v1856
  %v1858 = vpop.f32.mrb[0].mxu0
  %1859 = vmatprep.mubr.f32.mxu0 0.0
  %1860 = vmatmul.mubr.f32.gmra.mrb[0].mxu0 %v1788
  %v1861 = vpop.f32.mrb[0].mxu0
  %v1862 = vadd.f32 0.0, %v1861
  %v1863 = vpop.f32.mrb[0].mxu0
  %1864 = vdwg.mxu0
  %1865 = vst.msk [vmem:[%s14] sm:$0xff] %vm572, %v1857
  %1866 = vst.msk [vmem:[%s14 + $0x8] sm:$0xff] %vm572, %v1862
  %1869 = vrot.lane.b32.xlu0 %v887, 73
  %v1870 = vpop.permute.xlu0 %1869
  %1871 = vrot.lane.b32.xlu0 %v888, 73
  %v1872 = vpop.permute.xlu0 %1871
  %1875 = vrot.lane.b32.xlu0 %v887, 9
  %v1876 = vpop.permute.xlu0 %1875
  %1877 = vrot.lane.b32.xlu0 %v888, 9
  %v1878 = vpop.permute.xlu0 %1877
  %v1881 = vsel %vm62, %v1870, %v1876
  %v1882 = vsel %vm62, %v1872, %v1878
  %v1883 = vmul.f32 %v1881, %v67
  %v1884 = vmul.f32 %v1882, %v67
  %1885 = vrot.lane.b32.xlu0 %v887, 72
  %v1886 = vpop.permute.xlu0 %1885
  %1887 = vrot.lane.b32.xlu0 %v888, 72
  %v1888 = vpop.permute.xlu0 %1887
  %1891 = vrot.lane.b32.xlu0 %v887, 8
  %v1892 = vpop.permute.xlu0 %1891
  %1893 = vrot.lane.b32.xlu0 %v888, 8
  %v1894 = vpop.permute.xlu0 %1893
  %v1897 = vsel %vm75, %v1886, %v1892
  %v1898 = vsel %vm75, %v1888, %v1894
  %v1899 = vmul.f32 %v1897, %v80
  %v1900 = vmul.f32 %v1898, %v80
  %1901 = vrot.lane.b32.xlu0 %v887, 71
  %v1902 = vpop.permute.xlu0 %1901
  %1903 = vrot.lane.b32.xlu0 %v888, 71
  %v1904 = vpop.permute.xlu0 %1903
  %1907 = vrot.lane.b32.xlu0 %v887, 7
  %v1908 = vpop.permute.xlu0 %1907
  %1909 = vrot.lane.b32.xlu0 %v888, 7
  %v1910 = vpop.permute.xlu0 %1909
  %v1913 = vsel %vm88, %v1902, %v1908
  %v1914 = vsel %vm88, %v1904, %v1910
  %v1915 = vmul.f32 %v1913, %v93
  %v1916 = vmul.f32 %v1914, %v93
  %1917 = vrot.lane.b32.xlu0 %v887, 65
  %v1918 = vpop.permute.xlu0 %1917
  %1919 = vrot.lane.b32.xlu0 %v888, 65
  %v1920 = vpop.permute.xlu0 %1919
  %1923 = vrot.lane.b32.xlu0 %v887, 1
  %v1924 = vpop.permute.xlu0 %1923
  %1925 = vrot.lane.b32.xlu0 %v888, 1
  %v1926 = vpop.permute.xlu0 %1925
  %v1929 = vsel %vm101, %v1918, %v1924
  %v1930 = vsel %vm101, %v1920, %v1926
  %v1931 = vmul.f32 %v1929, %v106
  %v1932 = vmul.f32 %v1930, %v106
  %v1933 = vmul.f32 %v887, %v111
  %v1934 = vmul.f32 %v888, %v111
  %1935 = vrot.lane.b32.xlu0 %v887, 127
  %v1936 = vpop.permute.xlu0 %1935
  %1937 = vrot.lane.b32.xlu0 %v888, 127
  %v1938 = vpop.permute.xlu0 %1937
  %1941 = vrot.lane.b32.xlu0 %v887, 63
  %v1942 = vpop.permute.xlu0 %1941
  %1943 = vrot.lane.b32.xlu0 %v888, 63
  %v1944 = vpop.permute.xlu0 %1943
  %v1947 = vsel %vm119, %v1936, %v1942
  %v1948 = vsel %vm119, %v1938, %v1944
  %v1949 = vmul.f32 %v1947, %v124
  %v1950 = vmul.f32 %v1948, %v124
  %1951 = vrot.lane.b32.xlu0 %v887, 121
  %v1952 = vpop.permute.xlu0 %1951
  %1953 = vrot.lane.b32.xlu0 %v888, 121
  %v1954 = vpop.permute.xlu0 %1953
  %1957 = vrot.lane.b32.xlu0 %v887, 57
  %v1958 = vpop.permute.xlu0 %1957
  %1959 = vrot.lane.b32.xlu0 %v888, 57
  %v1960 = vpop.permute.xlu0 %1959
  %v1963 = vsel %vm132, %v1952, %v1958
  %v1964 = vsel %vm132, %v1954, %v1960
  %v1965 = vmul.f32 %v1963, %v137
  %v1966 = vmul.f32 %v1964, %v137
  %1967 = vrot.lane.b32.xlu0 %v887, 120
  %v1968 = vpop.permute.xlu0 %1967
  %1969 = vrot.lane.b32.xlu0 %v888, 120
  %v1970 = vpop.permute.xlu0 %1969
  %1973 = vrot.lane.b32.xlu0 %v887, 56
  %v1974 = vpop.permute.xlu0 %1973
  %1975 = vrot.lane.b32.xlu0 %v888, 56
  %v1976 = vpop.permute.xlu0 %1975
  %v1979 = vsel %vm145, %v1968, %v1974
  %v1980 = vsel %vm145, %v1970, %v1976
  %v1981 = vmul.f32 %v1979, %v150
  %v1982 = vmul.f32 %v1980, %v150
  %1983 = vrot.lane.b32.xlu0 %v887, 119
  %v1984 = vpop.permute.xlu0 %1983
  %1985 = vrot.lane.b32.xlu0 %v888, 119
  %v1986 = vpop.permute.xlu0 %1985
  %1989 = vrot.lane.b32.xlu0 %v887, 55
  %v1990 = vpop.permute.xlu0 %1989
  %1991 = vrot.lane.b32.xlu0 %v888, 55
  %v1992 = vpop.permute.xlu0 %1991
  %v1995 = vsel %vm158, %v1984, %v1990
  %v1996 = vsel %vm158, %v1986, %v1992
  %v1997 = vmul.f32 %v1995, %v163
  %v1998 = vmul.f32 %v1996, %v163
  %v1999 = vpack.c.bf16 %v1884, %v1883
  %v2000 = vpack.c.bf16 %v1900, %v1899
  %v2001 = vpack.c.bf16 %v1916, %v1915
  %v2002 = vpack.c.bf16 %v1932, %v1931
  %v2003 = vpack.c.bf16 %v1934, %v1933
  %v2004 = vpack.c.bf16 %v1950, %v1949
  %v2005 = vpack.c.bf16 %v1966, %v1965
  %v2006 = vpack.c.bf16 %v1982, %v1981
  %v2007 = vpack.c.bf16 %v1998, %v1997
  %2008 = vmatprep.subr.bf16.mxu0 0
  %2009 = vmatpush1.bf16.msra.mxu0 %v1999
  %2010 = vmatprep.subr.bf16.mxu0 0
  %2011 = vmatpush1.bf16.msra.mxu0 %v2000
  %2012 = vmatprep.subr.bf16.mxu0 0
  %2013 = vmatpush1.bf16.msra.mxu0 %v2001
  %2014 = vmatprep.subr.bf16.mxu0 0
  %2015 = vmatpush1.bf16.msra.mxu0 %v2002
  %2016 = vmatprep.subr.bf16.mxu0 0
  %2017 = vmatpush1.bf16.msra.mxu0 %v2003
  %2018 = vmatprep.subr.bf16.mxu0 0
  %2019 = vmatpush1.bf16.msra.mxu0 %v2004
  %2020 = vmatprep.subr.bf16.mxu0 0
  %2021 = vmatpush1.bf16.msra.mxu0 %v2005
  %2022 = vmatprep.subr.bf16.mxu0 0
  %2023 = vmatpush1.bf16.msra.mxu0 %v2006
  %2024 = vmatprep.subr.bf16.mxu0 0
  %2025 = vmatpush1.bf16.msra.mxu0 %v2007
  %2026 = vmatprep.subr.bf16.mxu0 0
  %2027 = vmatpush1.bf16.msra.mxu0 %v1507
  %2028 = vmatprep.subr.bf16.mxu0 0
  %2029 = vmatpush1.bf16.msra.mxu0 %v1508
  %2030 = vmatprep.subr.bf16.mxu0 0
  %2031 = vmatpush1.bf16.msra.mxu0 %v1509
  %2032 = vmatprep.subr.bf16.mxu0 0
  %2033 = vmatpush1.bf16.msra.mxu0 %v1510
  %2034 = vmatprep.subr.bf16.mxu0 0
  %2035 = vmatpush1.bf16.msra.mxu0 %v1511
  %2036 = vmatprep.subr.bf16.mxu0 0
  %2037 = vmatpush1.bf16.msra.mxu0 %v1512
  %2038 = vmatprep.subr.bf16.mxu0 0
  %2039 = vmatpush1.bf16.msra.mxu0 %v1513
  %2040 = vmatprep.mubr.bf16.mxu0 %v914
  %2041 = vmatmul.mubr.bf16.gmra.mrb[0].mxu0 %v913
  %v2042 = vpop.f32.mrb[0].mxu0
  %v2043 = vadd.f32 %v1147, %v2042
  %v2044 = vpop.f32.mrb[0].mxu0
  %v2045 = vpop.f32.mrb[0].mxu0
  %v2046 = vadd.f32 %v1152, %v2045
  %v2047 = vpop.f32.mrb[0].mxu0
  %2048 = vmatprep.mubr.bf16.mxu0 %v917
  %2049 = vmatmul.mubr.bf16.gmra.mrb[0].mxu0 %v916
  %v2050 = vpop.f32.mrb[0].mxu0
  %v2051 = vadd.f32 %v1157, %v2050
  %v2052 = vpop.f32.mrb[0].mxu0
  %v2053 = vpop.f32.mrb[0].mxu0
  %v2054 = vadd.f32 %v1162, %v2053
  %v2055 = vpop.f32.mrb[0].mxu0
  %2056 = vmatprep.mubr.bf16.mxu0 %v920
  %2057 = vmatmul.mubr.bf16.gmra.mrb[0].mxu0 %v919
  %v2058 = vpop.f32.mrb[0].mxu0
  %v2059 = vadd.f32 %v1167, %v2058
  %v2060 = vpop.f32.mrb[0].mxu0
  %v2061 = vpop.f32.mrb[0].mxu0
  %v2062 = vadd.f32 %v1172, %v2061
  %v2063 = vpop.f32.mrb[0].mxu0
  %2064 = vmatprep.mubr.bf16.mxu0 %v923
  %2065 = vmatmul.mubr.bf16.gmra.mrb[0].mxu0 %v922
  %v2066 = vpop.f32.mrb[0].mxu0
  %v2067 = vadd.f32 %v1177, %v2066
  %v2068 = vpop.f32.mrb[0].mxu0
  %v2069 = vpop.f32.mrb[0].mxu0
  %v2070 = vadd.f32 %v1182, %v2069
  %v2071 = vpop.f32.mrb[0].mxu0
  %2072 = vdwg.mxu0
  %2073 = vmatprep.subr.bf16.mxu0 0
  %2074 = vmatpush1.bf16.msra.mxu0 %v1514
  %2075 = vmatprep.subr.bf16.mxu0 0
  %2076 = vmatpush1.bf16.msra.mxu0 %v1515
  %2077 = vmatprep.subr.bf16.mxu0 0
  %2078 = vmatpush1.bf16.msra.mxu0 0
  %2079 = vmatprep.subr.bf16.mxu0 0
  %2080 = vmatpush1.bf16.msra.mxu0 0
  %2081 = vmatprep.subr.bf16.mxu0 0
  %2082 = vmatpush1.bf16.msra.mxu0 0
  %2083 = vmatprep.subr.bf16.mxu0 0
  %2084 = vmatpush1.bf16.msra.mxu0 0
  %2085 = vmatprep.subr.bf16.mxu0 0
  %2086 = vmatpush1.bf16.msra.mxu0 0
  %2087 = vmatprep.subr.bf16.mxu0 0
  %2088 = vmatpush1.bf16.msra.mxu0 0
  %2089 = vmatprep.subr.bf16.mxu0 0
  %2090 = vmatpush1.bf16.msra.mxu0 0
  %2091 = vmatprep.subr.bf16.mxu0 0
  %2092 = vmatpush1.bf16.msra.mxu0 0
  %2093 = vmatprep.subr.bf16.mxu0 0
  %2094 = vmatpush1.bf16.msra.mxu0 0
  %2095 = vmatprep.subr.bf16.mxu0 0
  %2096 = vmatpush1.bf16.msra.mxu0 0
  %2097 = vmatprep.subr.bf16.mxu0 0
  %2098 = vmatpush1.bf16.msra.mxu0 0
  %2099 = vmatprep.subr.bf16.mxu0 0
  %2100 = vmatpush1.bf16.msra.mxu0 0
  %2101 = vmatprep.subr.bf16.mxu0 0
  %2102 = vmatpush1.bf16.msra.mxu0 0
  %2103 = vmatprep.subr.bf16.mxu0 0
  %2104 = vmatpush1.bf16.msra.mxu0 0
  %2105 = vmatprep.mubr.bf16.mxu0 0
  %2106 = vmatmul.mubr.bf16.gmra.mrb[0].mxu0 %v1186
  %v2107 = vpop.f32.mrb[0].mxu0
  %v2108 = vadd.f32 %v2043, %v2107
  %v2109 = vpop.f32.mrb[0].mxu0
  %v2110 = vpop.f32.mrb[0].mxu0
  %v2111 = vadd.f32 %v2046, %v2110
  %v2112 = vpop.f32.mrb[0].mxu0
  %2113 = vmatprep.mubr.bf16.mxu0 0
  %2114 = vmatmul.mubr.bf16.gmra.mrb[0].mxu0 %v1189
  %v2115 = vpop.f32.mrb[0].mxu0
  %v2116 = vadd.f32 %v2051, %v2115
  %v2117 = vpop.f32.mrb[0].mxu0
  %v2118 = vpop.f32.mrb[0].mxu0
  %v2119 = vadd.f32 %v2054, %v2118
  %v2120 = vpop.f32.mrb[0].mxu0
  %2121 = vmatprep.mubr.bf16.mxu0 0
  %2122 = vmatmul.mubr.bf16.gmra.mrb[0].mxu0 %v1192
  %v2123 = vpop.f32.mrb[0].mxu0
  %v2124 = vadd.f32 %v2059, %v2123
  %v2125 = vpop.f32.mrb[0].mxu0
  %v2126 = vpop.f32.mrb[0].mxu0
  %v2127 = vadd.f32 %v2062, %v2126
  %v2128 = vpop.f32.mrb[0].mxu0
  %2129 = vmatprep.mubr.bf16.mxu0 0
  %2130 = vmatmul.mubr.bf16.gmra.mrb[0].mxu0 %v1195
  %v2131 = vpop.f32.mrb[0].mxu0
  %v2132 = vadd.f32 %v2067, %v2131
  %v2133 = vpop.f32.mrb[0].mxu0
  %v2134 = vpop.f32.mrb[0].mxu0
  %v2135 = vadd.f32 %v2070, %v2134
  %v2136 = vpop.f32.mrb[0].mxu0
  %2137 = vdwg.mxu0
  %v2138 = vxor.u32 %v2108, 2147483648
  %v2139 = vxor.u32 %v2111, 2147483648
  %v2140 = vmul.f32 %v2138, 1.442695
  %v2141 = vpow.pop %v2140
  %v2142 = vmul.f32 %v2139, 1.442695
  %v2143 = vpow.pop %v2142
  %v2144 = vadd.f32 %v2141, 1.0
  %v2145 = vadd.f32 %v2143, 1.0
  %v2146 = vrcp.pop %v2144
  %v2147 = vmul.f32 1.0, %v2146
  %v2148 = vrcp.pop %v2145
  %v2149 = vmul.f32 1.0, %v2148
  %v2150 = vxor.u32 %v2116, 2147483648
  %v2151 = vxor.u32 %v2119, 2147483648
  %v2152 = vmul.f32 %v2150, 1.442695
  %v2153 = vpow.pop %v2152
  %v2154 = vmul.f32 %v2151, 1.442695
  %v2155 = vpow.pop %v2154
  %v2156 = vadd.f32 %v2153, 1.0
  %v2157 = vadd.f32 %v2155, 1.0
  %v2158 = vrcp.pop %v2156
  %v2159 = vmul.f32 1.0, %v2158
  %v2160 = vrcp.pop %v2157
  %v2161 = vmul.f32 1.0, %v2160
  %v2162 = vxor.u32 %v2124, 2147483648
  %v2163 = vxor.u32 %v2127, 2147483648
  %v2164 = vmul.f32 %v2162, 1.442695
  %v2165 = vpow.pop %v2164
  %v2166 = vmul.f32 %v2163, 1.442695
  %v2167 = vpow.pop %v2166
  %v2168 = vadd.f32 %v2165, 1.0
  %v2169 = vadd.f32 %v2167, 1.0
  %v2170 = vrcp.pop %v2168
  %v2171 = vmul.f32 1.0, %v2170
  %v2172 = vrcp.pop %v2169
  %v2173 = vmul.f32 1.0, %v2172
  %v2174 = vtanh.pop %v2132
  %v2175 = vtanh.pop %v2135
  %v2176 = vmul.f32 %v2159, %v1369
  %v2177 = vmul.f32 %v2161, %v1370
  %v2178 = vmul.f32 %v2147, %v2174
  %v2179 = vmul.f32 %v2149, %v2175
  %v2180 = vadd.f32 %v2176, %v2178
  %v2181 = vadd.f32 %v2177, %v2179
  %v2182 = vtanh.pop %v2180
  %v2183 = vtanh.pop %v2181
  %v2184 = vmul.f32 %v2171, %v2182
  %v2185 = vmul.f32 %v2173, %v2183
  %2188 = vrot.lane.b32.xlu0 %v2184, 73
  %v2189 = vpop.permute.xlu0 %2188
  %2190 = vrot.lane.b32.xlu0 %v2185, 73
  %v2191 = vpop.permute.xlu0 %2190
  %2194 = vrot.lane.b32.xlu0 %v2184, 9
  %v2195 = vpop.permute.xlu0 %2194
  %2196 = vrot.lane.b32.xlu0 %v2185, 9
  %v2197 = vpop.permute.xlu0 %2196
  %v2200 = vsel %vm62, %v2189, %v2195
  %v2201 = vsel %vm62, %v2191, %v2197
  %v2202 = vmul.f32 %v2200, %v67
  %v2203 = vmul.f32 %v2201, %v67
  %2204 = vrot.lane.b32.xlu0 %v2184, 72
  %v2205 = vpop.permute.xlu0 %2204
  %2206 = vrot.lane.b32.xlu0 %v2185, 72
  %v2207 = vpop.permute.xlu0 %2206
  %2210 = vrot.lane.b32.xlu0 %v2184, 8
  %v2211 = vpop.permute.xlu0 %2210
  %2212 = vrot.lane.b32.xlu0 %v2185, 8
  %v2213 = vpop.permute.xlu0 %2212
  %v2216 = vsel %vm75, %v2205, %v2211
  %v2217 = vsel %vm75, %v2207, %v2213
  %v2218 = vmul.f32 %v2216, %v80
  %v2219 = vmul.f32 %v2217, %v80
  %2220 = vrot.lane.b32.xlu0 %v2184, 71
  %v2221 = vpop.permute.xlu0 %2220
  %2222 = vrot.lane.b32.xlu0 %v2185, 71
  %v2223 = vpop.permute.xlu0 %2222
  %2226 = vrot.lane.b32.xlu0 %v2184, 7
  %v2227 = vpop.permute.xlu0 %2226
  %2228 = vrot.lane.b32.xlu0 %v2185, 7
  %v2229 = vpop.permute.xlu0 %2228
  %v2232 = vsel %vm88, %v2221, %v2227
  %v2233 = vsel %vm88, %v2223, %v2229
  %v2234 = vmul.f32 %v2232, %v93
  %v2235 = vmul.f32 %v2233, %v93
  %2236 = vrot.lane.b32.xlu0 %v2184, 65
  %v2237 = vpop.permute.xlu0 %2236
  %2238 = vrot.lane.b32.xlu0 %v2185, 65
  %v2239 = vpop.permute.xlu0 %2238
  %2242 = vrot.lane.b32.xlu0 %v2184, 1
  %v2243 = vpop.permute.xlu0 %2242
  %2244 = vrot.lane.b32.xlu0 %v2185, 1
  %v2245 = vpop.permute.xlu0 %2244
  %v2248 = vsel %vm101, %v2237, %v2243
  %v2249 = vsel %vm101, %v2239, %v2245
  %v2250 = vmul.f32 %v2248, %v106
  %v2251 = vmul.f32 %v2249, %v106
  %v2252 = vmul.f32 %v2184, %v111
  %v2253 = vmul.f32 %v2185, %v111
  %2254 = vrot.lane.b32.xlu0 %v2184, 127
  %v2255 = vpop.permute.xlu0 %2254
  %2256 = vrot.lane.b32.xlu0 %v2185, 127
  %v2257 = vpop.permute.xlu0 %2256
  %2260 = vrot.lane.b32.xlu0 %v2184, 63
  %v2261 = vpop.permute.xlu0 %2260
  %2262 = vrot.lane.b32.xlu0 %v2185, 63
  %v2263 = vpop.permute.xlu0 %2262
  %v2266 = vsel %vm119, %v2255, %v2261
  %v2267 = vsel %vm119, %v2257, %v2263
  %v2268 = vmul.f32 %v2266, %v124
  %v2269 = vmul.f32 %v2267, %v124
  %2270 = vrot.lane.b32.xlu0 %v2184, 121
  %v2271 = vpop.permute.xlu0 %2270
  %2272 = vrot.lane.b32.xlu0 %v2185, 121
  %v2273 = vpop.permute.xlu0 %2272
  %2276 = vrot.lane.b32.xlu0 %v2184, 57
  %v2277 = vpop.permute.xlu0 %2276
  %2278 = vrot.lane.b32.xlu0 %v2185, 57
  %v2279 = vpop.permute.xlu0 %2278
  %v2282 = vsel %vm132, %v2271, %v2277
  %v2283 = vsel %vm132, %v2273, %v2279
  %v2284 = vmul.f32 %v2282, %v137
  %v2285 = vmul.f32 %v2283, %v137
  %2286 = vrot.lane.b32.xlu0 %v2184, 120
  %v2287 = vpop.permute.xlu0 %2286
  %2288 = vrot.lane.b32.xlu0 %v2185, 120
  %v2289 = vpop.permute.xlu0 %2288
  %2292 = vrot.lane.b32.xlu0 %v2184, 56
  %v2293 = vpop.permute.xlu0 %2292
  %2294 = vrot.lane.b32.xlu0 %v2185, 56
  %v2295 = vpop.permute.xlu0 %2294
  %v2298 = vsel %vm145, %v2287, %v2293
  %v2299 = vsel %vm145, %v2289, %v2295
  %v2300 = vmul.f32 %v2298, %v150
  %v2301 = vmul.f32 %v2299, %v150
  %2302 = vrot.lane.b32.xlu0 %v2184, 119
  %v2303 = vpop.permute.xlu0 %2302
  %2304 = vrot.lane.b32.xlu0 %v2185, 119
  %v2305 = vpop.permute.xlu0 %2304
  %2308 = vrot.lane.b32.xlu0 %v2184, 55
  %v2309 = vpop.permute.xlu0 %2308
  %2310 = vrot.lane.b32.xlu0 %v2185, 55
  %v2311 = vpop.permute.xlu0 %2310
  %v2314 = vsel %vm158, %v2303, %v2309
  %v2315 = vsel %vm158, %v2305, %v2311
  %v2316 = vmul.f32 %v2314, %v163
  %v2317 = vmul.f32 %v2315, %v163
  %2318 = vrot.lane.b32.xlu0 %v1744, 73
  %v2319 = vpop.permute.xlu0 %2318
  %2320 = vrot.lane.b32.xlu0 %v1745, 73
  %v2321 = vpop.permute.xlu0 %2320
  %2324 = vrot.lane.b32.xlu0 %v1744, 9
  %v2325 = vpop.permute.xlu0 %2324
  %2326 = vrot.lane.b32.xlu0 %v1745, 9
  %v2327 = vpop.permute.xlu0 %2326
  %v2330 = vsel %vm62, %v2319, %v2325
  %v2331 = vsel %vm62, %v2321, %v2327
  %v2332 = vmul.f32 %v2330, %v67
  %v2333 = vmul.f32 %v2331, %v67
  %2334 = vrot.lane.b32.xlu0 %v1744, 72
  %v2335 = vpop.permute.xlu0 %2334
  %2336 = vrot.lane.b32.xlu0 %v1745, 72
  %v2337 = vpop.permute.xlu0 %2336
  %2340 = vrot.lane.b32.xlu0 %v1744, 8
  %v2341 = vpop.permute.xlu0 %2340
  %2342 = vrot.lane.b32.xlu0 %v1745, 8
  %v2343 = vpop.permute.xlu0 %2342
  %v2346 = vsel %vm75, %v2335, %v2341
  %v2347 = vsel %vm75, %v2337, %v2343
  %v2348 = vmul.f32 %v2346, %v80
  %v2349 = vmul.f32 %v2347, %v80
  %2350 = vrot.lane.b32.xlu0 %v1744, 71
  %v2351 = vpop.permute.xlu0 %2350
  %2352 = vrot.lane.b32.xlu0 %v1745, 71
  %v2353 = vpop.permute.xlu0 %2352
  %2356 = vrot.lane.b32.xlu0 %v1744, 7
  %v2357 = vpop.permute.xlu0 %2356
  %2358 = vrot.lane.b32.xlu0 %v1745, 7
  %v2359 = vpop.permute.xlu0 %2358
  %v2362 = vsel %vm88, %v2351, %v2357
  %v2363 = vsel %vm88, %v2353, %v2359
  %v2364 = vmul.f32 %v2362, %v93
  %v2365 = vmul.f32 %v2363, %v93
  %2366 = vrot.lane.b32.xlu0 %v1744, 65
  %v2367 = vpop.permute.xlu0 %2366
  %2368 = vrot.lane.b32.xlu0 %v1745, 65
  %v2369 = vpop.permute.xlu0 %2368
  %2372 = vrot.lane.b32.xlu0 %v1744, 1
  %v2373 = vpop.permute.xlu0 %2372
  %2374 = vrot.lane.b32.xlu0 %v1745, 1
  %v2375 = vpop.permute.xlu0 %2374
  %v2378 = vsel %vm101, %v2367, %v2373
  %v2379 = vsel %vm101, %v2369, %v2375
  %v2380 = vmul.f32 %v2378, %v106
  %v2381 = vmul.f32 %v2379, %v106
  %v2382 = vmul.f32 %v1744, %v111
  %v2383 = vmul.f32 %v1745, %v111
  %v2384 = vmul.f32 %v1762, %v124
  %v2385 = vmul.f32 %v1763, %v124
  %2386 = vrot.lane.b32.xlu0 %v1744, 121
  %v2387 = vpop.permute.xlu0 %2386
  %2388 = vrot.lane.b32.xlu0 %v1745, 121
  %v2389 = vpop.permute.xlu0 %2388
  %2392 = vrot.lane.b32.xlu0 %v1744, 57
  %v2393 = vpop.permute.xlu0 %2392
  %2394 = vrot.lane.b32.xlu0 %v1745, 57
  %v2395 = vpop.permute.xlu0 %2394
  %v2398 = vsel %vm132, %v2387, %v2393
  %v2399 = vsel %vm132, %v2389, %v2395
  %v2400 = vmul.f32 %v2398, %v137
  %v2401 = vmul.f32 %v2399, %v137
  %2402 = vrot.lane.b32.xlu0 %v1744, 120
  %v2403 = vpop.permute.xlu0 %2402
  %2404 = vrot.lane.b32.xlu0 %v1745, 120
  %v2405 = vpop.permute.xlu0 %2404
  %2408 = vrot.lane.b32.xlu0 %v1744, 56
  %v2409 = vpop.permute.xlu0 %2408
  %2410 = vrot.lane.b32.xlu0 %v1745, 56
  %v2411 = vpop.permute.xlu0 %2410
  %v2414 = vsel %vm145, %v2403, %v2409
  %v2415 = vsel %vm145, %v2405, %v2411
  %v2416 = vmul.f32 %v2414, %v150
  %v2417 = vmul.f32 %v2415, %v150
  %2418 = vrot.lane.b32.xlu0 %v1744, 119
  %v2419 = vpop.permute.xlu0 %2418
  %2420 = vrot.lane.b32.xlu0 %v1745, 119
  %v2421 = vpop.permute.xlu0 %2420
  %2424 = vrot.lane.b32.xlu0 %v1744, 55
  %v2425 = vpop.permute.xlu0 %2424
  %2426 = vrot.lane.b32.xlu0 %v1745, 55
  %v2427 = vpop.permute.xlu0 %2426
  %v2430 = vsel %vm158, %v2419, %v2425
  %v2431 = vsel %vm158, %v2421, %v2427
  %v2432 = vmul.f32 %v2430, %v163
  %v2433 = vmul.f32 %v2431, %v163
  %v2434 = vpack.c.bf16 %v2203, %v2202
  %v2435 = vpack.c.bf16 %v2219, %v2218
  %v2436 = vpack.c.bf16 %v2235, %v2234
  %v2437 = vpack.c.bf16 %v2251, %v2250
  %v2438 = vpack.c.bf16 %v2253, %v2252
  %v2439 = vpack.c.bf16 %v2269, %v2268
  %v2440 = vpack.c.bf16 %v2285, %v2284
  %v2441 = vpack.c.bf16 %v2301, %v2300
  %v2442 = vpack.c.bf16 %v2317, %v2316
  %v2443 = vpack.c.bf16 %v2333, %v2332
  %v2444 = vpack.c.bf16 %v2349, %v2348
  %v2445 = vpack.c.bf16 %v2365, %v2364
  %v2446 = vpack.c.bf16 %v2381, %v2380
  %v2447 = vpack.c.bf16 %v2383, %v2382
  %v2448 = vpack.c.bf16 %v2385, %v2384
  %v2449 = vpack.c.bf16 %v2401, %v2400
  %v2450 = vpack.c.bf16 %v2417, %v2416
  %v2451 = vpack.c.bf16 %v2433, %v2432
  %2452 = vmatprep.subr.bf16.mxu0 0
  %2453 = vmatpush1.bf16.msra.mxu0 %v2434
  %2454 = vmatprep.subr.bf16.mxu0 0
  %2455 = vmatpush1.bf16.msra.mxu0 %v2435
  %2456 = vmatprep.subr.bf16.mxu0 0
  %2457 = vmatpush1.bf16.msra.mxu0 %v2436
  %2458 = vmatprep.subr.bf16.mxu0 0
  %2459 = vmatpush1.bf16.msra.mxu0 %v2437
  %2460 = vmatprep.subr.bf16.mxu0 0
  %2461 = vmatpush1.bf16.msra.mxu0 %v2438
  %2462 = vmatprep.subr.bf16.mxu0 0
  %2463 = vmatpush1.bf16.msra.mxu0 %v2439
  %2464 = vmatprep.subr.bf16.mxu0 0
  %2465 = vmatpush1.bf16.msra.mxu0 %v2440
  %2466 = vmatprep.subr.bf16.mxu0 0
  %2467 = vmatpush1.bf16.msra.mxu0 %v2441
  %2468 = vmatprep.subr.bf16.mxu0 0
  %2469 = vmatpush1.bf16.msra.mxu0 %v2442
  %2470 = vmatprep.subr.bf16.mxu0 0
  %2471 = vmatpush1.bf16.msra.mxu0 %v2443
  %2472 = vmatprep.subr.bf16.mxu0 0
  %2473 = vmatpush1.bf16.msra.mxu0 %v2444
  %2474 = vmatprep.subr.bf16.mxu0 0
  %2475 = vmatpush1.bf16.msra.mxu0 %v2445
  %2476 = vmatprep.subr.bf16.mxu0 0
  %2477 = vmatpush1.bf16.msra.mxu0 %v2446
  %2478 = vmatprep.subr.bf16.mxu0 0
  %2479 = vmatpush1.bf16.msra.mxu0 %v2447
  %2480 = vmatprep.subr.bf16.mxu0 0
  %2481 = vmatpush1.bf16.msra.mxu0 %v2448
  %2482 = vmatprep.subr.bf16.mxu0 0
  %2483 = vmatpush1.bf16.msra.mxu0 %v2449
  %2484 = vmatprep.mubr.bf16.mxu0 %v950
  %2485 = vmatmul.mubr.bf16.gmra.mrb[0].mxu0 %v949
  %v2486 = vpop.f32.mrb[0].mxu0
  %v2487 = vadd.f32 %v1519, %v2486
  %v2488 = vpop.f32.mrb[0].mxu0
  %v2489 = vpop.f32.mrb[0].mxu0
  %v2490 = vadd.f32 %v1524, %v2489
  %v2491 = vpop.f32.mrb[0].mxu0
  %2492 = vmatprep.mubr.bf16.mxu0 %v953
  %2493 = vmatmul.mubr.bf16.gmra.mrb[0].mxu0 %v952
  %v2494 = vpop.f32.mrb[0].mxu0
  %v2495 = vadd.f32 %v1529, %v2494
  %v2496 = vpop.f32.mrb[0].mxu0
  %v2497 = vpop.f32.mrb[0].mxu0
  %v2498 = vadd.f32 %v1534, %v2497
  %v2499 = vpop.f32.mrb[0].mxu0
  %2500 = vmatprep.mubr.bf16.mxu0 %v956
  %2501 = vmatmul.mubr.bf16.gmra.mrb[0].mxu0 %v955
  %v2502 = vpop.f32.mrb[0].mxu0
  %v2503 = vadd.f32 %v1539, %v2502
  %v2504 = vpop.f32.mrb[0].mxu0
  %v2505 = vpop.f32.mrb[0].mxu0
  %v2506 = vadd.f32 %v1544, %v2505
  %v2507 = vpop.f32.mrb[0].mxu0
  %2508 = vmatprep.mubr.bf16.mxu0 %v959
  %2509 = vmatmul.mubr.bf16.gmra.mrb[0].mxu0 %v958
  %v2510 = vpop.f32.mrb[0].mxu0
  %v2511 = vadd.f32 %v1549, %v2510
  %v2512 = vpop.f32.mrb[0].mxu0
  %v2513 = vpop.f32.mrb[0].mxu0
  %v2514 = vadd.f32 %v1554, %v2513
  %v2515 = vpop.f32.mrb[0].mxu0
  %2516 = vdwg.mxu0
  %2517 = vmatprep.subr.bf16.mxu0 0
  %2518 = vmatpush1.bf16.msra.mxu0 %v2450
  %2519 = vmatprep.subr.bf16.mxu0 0
  %2520 = vmatpush1.bf16.msra.mxu0 %v2451
  %2521 = vmatprep.subr.bf16.mxu0 0
  %2522 = vmatpush1.bf16.msra.mxu0 0
  %2523 = vmatprep.subr.bf16.mxu0 0
  %2524 = vmatpush1.bf16.msra.mxu0 0
  %2525 = vmatprep.subr.bf16.mxu0 0
  %2526 = vmatpush1.bf16.msra.mxu0 0
  %2527 = vmatprep.subr.bf16.mxu0 0
  %2528 = vmatpush1.bf16.msra.mxu0 0
  %2529 = vmatprep.subr.bf16.mxu0 0
  %2530 = vmatpush1.bf16.msra.mxu0 0
  %2531 = vmatprep.subr.bf16.mxu0 0
  %2532 = vmatpush1.bf16.msra.mxu0 0
  %2533 = vmatprep.subr.bf16.mxu0 0
  %2534 = vmatpush1.bf16.msra.mxu0 0
  %2535 = vmatprep.subr.bf16.mxu0 0
  %2536 = vmatpush1.bf16.msra.mxu0 0
  %2537 = vmatprep.subr.bf16.mxu0 0
  %2538 = vmatpush1.bf16.msra.mxu0 0
  %2539 = vmatprep.subr.bf16.mxu0 0
  %2540 = vmatpush1.bf16.msra.mxu0 0
  %2541 = vmatprep.subr.bf16.mxu0 0
  %2542 = vmatpush1.bf16.msra.mxu0 0
  %2543 = vmatprep.subr.bf16.mxu0 0
  %2544 = vmatpush1.bf16.msra.mxu0 0
  %2545 = vmatprep.subr.bf16.mxu0 0
  %2546 = vmatpush1.bf16.msra.mxu0 0
  %2547 = vmatprep.subr.bf16.mxu0 0
  %2548 = vmatpush1.bf16.msra.mxu0 0
  %2549 = vmatprep.mubr.bf16.mxu0 0
  %2550 = vmatmul.mubr.bf16.gmra.mrb[0].mxu0 %v1557
  %v2551 = vpop.f32.mrb[0].mxu0
  %v2552 = vadd.f32 %v2487, %v2551
  %v2553 = vpop.f32.mrb[0].mxu0
  %v2554 = vpop.f32.mrb[0].mxu0
  %v2555 = vadd.f32 %v2490, %v2554
  %v2556 = vpop.f32.mrb[0].mxu0
  %2557 = vmatprep.mubr.bf16.mxu0 0
  %2558 = vmatmul.mubr.bf16.gmra.mrb[0].mxu0 %v1560
  %v2559 = vpop.f32.mrb[0].mxu0
  %v2560 = vadd.f32 %v2495, %v2559
  %v2561 = vpop.f32.mrb[0].mxu0
  %v2562 = vpop.f32.mrb[0].mxu0
  %v2563 = vadd.f32 %v2498, %v2562
  %v2564 = vpop.f32.mrb[0].mxu0
  %2565 = vmatprep.mubr.bf16.mxu0 0
  %2566 = vmatmul.mubr.bf16.gmra.mrb[0].mxu0 %v1563
  %v2567 = vpop.f32.mrb[0].mxu0
  %v2568 = vadd.f32 %v2503, %v2567
  %v2569 = vpop.f32.mrb[0].mxu0
  %v2570 = vpop.f32.mrb[0].mxu0
  %v2571 = vadd.f32 %v2506, %v2570
  %v2572 = vpop.f32.mrb[0].mxu0
  %2573 = vmatprep.mubr.bf16.mxu0 0
  %2574 = vmatmul.mubr.bf16.gmra.mrb[0].mxu0 %v1566
  %v2575 = vpop.f32.mrb[0].mxu0
  %v2576 = vadd.f32 %v2511, %v2575
  %v2577 = vpop.f32.mrb[0].mxu0
  %v2578 = vpop.f32.mrb[0].mxu0
  %v2579 = vadd.f32 %v2514, %v2578
  %v2580 = vpop.f32.mrb[0].mxu0
  %2581 = vdwg.mxu0
  %v2582 = vxor.u32 %v2552, 2147483648
  %v2583 = vxor.u32 %v2555, 2147483648
  %v2584 = vmul.f32 %v2582, 1.442695
  %v2585 = vpow.pop %v2584
  %v2586 = vmul.f32 %v2583, 1.442695
  %v2587 = vpow.pop %v2586
  %v2588 = vadd.f32 %v2585, 1.0
  %v2589 = vadd.f32 %v2587, 1.0
  %v2590 = vrcp.pop %v2588
  %v2591 = vmul.f32 1.0, %v2590
  %v2592 = vrcp.pop %v2589
  %v2593 = vmul.f32 1.0, %v2592
  %v2594 = vxor.u32 %v2560, 2147483648
  %v2595 = vxor.u32 %v2563, 2147483648
  %v2596 = vmul.f32 %v2594, 1.442695
  %v2597 = vpow.pop %v2596
  %v2598 = vmul.f32 %v2595, 1.442695
  %v2599 = vpow.pop %v2598
  %v2600 = vadd.f32 %v2597, 1.0
  %v2601 = vadd.f32 %v2599, 1.0
  %v2602 = vrcp.pop %v2600
  %v2603 = vmul.f32 1.0, %v2602
  %v2604 = vrcp.pop %v2601
  %v2605 = vmul.f32 1.0, %v2604
  %v2606 = vxor.u32 %v2568, 2147483648
  %v2607 = vxor.u32 %v2571, 2147483648
  %v2608 = vmul.f32 %v2606, 1.442695
  %v2609 = vpow.pop %v2608
  %v2610 = vmul.f32 %v2607, 1.442695
  %v2611 = vpow.pop %v2610
  %v2612 = vadd.f32 %v2609, 1.0
  %v2613 = vadd.f32 %v2611, 1.0
  %v2614 = vrcp.pop %v2612
  %v2615 = vmul.f32 1.0, %v2614
  %v2616 = vrcp.pop %v2613
  %v2617 = vmul.f32 1.0, %v2616
  %v2618 = vtanh.pop %v2576
  %v2619 = vtanh.pop %v2579
  %v2620 = vmul.f32 %v2603, %v1740
  %v2621 = vmul.f32 %v2605, %v1741
  %v2622 = vmul.f32 %v2591, %v2618
  %v2623 = vmul.f32 %v2593, %v2619
  %v2624 = vadd.f32 %v2620, %v2622
  %v2625 = vadd.f32 %v2621, %v2623
  %v2626 = vtanh.pop %v2624
  %v2627 = vtanh.pop %v2625
  %v2628 = vmul.f32 %v2615, %v2626
  %v2629 = vmul.f32 %v2617, %v2627
  %s2630 = scalar_lea.vmem %s13, 16
  %2631 = vst.msk [vmem:[%s2630] sm:$0xff] %vm334, %v2628
  %2632 = vst.msk [vmem:[%s2630 + $0x8] sm:$0xff] %vm334, %v2629
  %2635 = vrot.lane.b32.xlu0 %v2628, 127
  %v2636 = vpop.permute.xlu0 %2635
  %2637 = vrot.lane.b32.xlu0 %v2629, 127
  %v2638 = vpop.permute.xlu0 %2637
  %2641 = vrot.lane.b32.xlu0 %v2628, 63
  %v2642 = vpop.permute.xlu0 %2641
  %2643 = vrot.lane.b32.xlu0 %v2629, 63
  %v2644 = vpop.permute.xlu0 %2643
  %v2647 = vsel %vm119, %v2636, %v2642
  %v2648 = vsel %vm119, %v2638, %v2644
  %v2649 = vmax.f32 %v2628, %v2647
  %v2650 = vmax.f32 %v2629, %v2648
  %2653 = vrot.lane.b32.xlu0 %v2649, 120
  %v2654 = vpop.permute.xlu0 %2653
  %2655 = vrot.lane.b32.xlu0 %v2650, 120
  %v2656 = vpop.permute.xlu0 %2655
  %2659 = vrot.lane.b32.xlu0 %v2649, 56
  %v2660 = vpop.permute.xlu0 %2659
  %2661 = vrot.lane.b32.xlu0 %v2650, 56
  %v2662 = vpop.permute.xlu0 %2661
  %v2665 = vsel %vm145, %v2654, %v2660
  %v2666 = vsel %vm145, %v2656, %v2662
  %v2667 = vmax.f32 %v2649, %v2665
  %v2668 = vmax.f32 %v2650, %v2666
  %v2670 = vsel %vm334, %v2667, 0
  %v2673 = vsel %vm334, %v2668, 0
  %2675 = vmatprep.subr.mxu0 0.0
  %2676 = vmatpush1.msra.mxu0 %v977
  %2677 = vmatprep.subr.mxu0 0.0
  %2678 = vmatpush1.msra.mxu0 %v978
  %2679 = vmatprep.subr.mxu0 0.0
  %2680 = vmatpush1.msra.mxu0 %v979
  %2681 = vmatprep.subr.mxu0 0.0
  %2682 = vmatpush1.msra.mxu0 %v980
  %2683 = vmatprep.subr.mxu0 0.0
  %2684 = vmatpush1.msra.mxu0 %v981
  %2685 = vmatprep.subr.mxu0 0.0
  %2686 = vmatpush1.msra.mxu0 %v982
  %2687 = vmatprep.subr.mxu0 0.0
  %2688 = vmatpush1.msra.mxu0 %v983
  %2689 = vmatprep.subr.mxu0 0.0
  %2690 = vmatpush1.msra.mxu0 %v984
  %2691 = vmatprep.subr.mxu0 0.0
  %2692 = vmatpush1.msra.mxu0 0.0
  %2693 = vmatprep.subr.mxu0 0.0
  %2694 = vmatpush1.msra.mxu0 0.0
  %2695 = vmatprep.subr.mxu0 0.0
  %2696 = vmatpush1.msra.mxu0 0.0
  %2697 = vmatprep.subr.mxu0 0.0
  %2698 = vmatpush1.msra.mxu0 0.0
  %2699 = vmatprep.subr.mxu0 0.0
  %2700 = vmatpush1.msra.mxu0 0.0
  %2701 = vmatprep.subr.mxu0 0.0
  %2702 = vmatpush1.msra.mxu0 0.0
  %2703 = vmatprep.subr.mxu0 0.0
  %2704 = vmatpush1.msra.mxu0 0.0
  %2705 = vmatprep.subr.mxu0 0.0
  %2706 = vmatpush1.msra.mxu0 0.0
  %2707 = vmatprep.subr.mxu0 0.0
  %2708 = vmatpush1.msra.mxu0 0.0
  %2709 = vmatprep.subr.mxu0 0.0
  %2710 = vmatpush1.msra.mxu0 0.0
  %2711 = vmatprep.subr.mxu0 0.0
  %2712 = vmatpush1.msra.mxu0 0.0
  %2713 = vmatprep.subr.mxu0 0.0
  %2714 = vmatpush1.msra.mxu0 0.0
  %2715 = vmatprep.subr.mxu0 0.0
  %2716 = vmatpush1.msra.mxu0 0.0
  %2717 = vmatprep.subr.mxu0 0.0
  %2718 = vmatpush1.msra.mxu0 0.0
  %2719 = vmatprep.subr.mxu0 0.0
  %2720 = vmatpush1.msra.mxu0 0.0
  %2721 = vmatprep.subr.mxu0 0.0
  %2722 = vmatpush1.msra.mxu0 0.0
  %2723 = vmatprep.subr.mxu0 0.0
  %2724 = vmatpush1.msra.mxu0 0.0
  %2725 = vmatprep.subr.mxu0 0.0
  %2726 = vmatpush1.msra.mxu0 0.0
  %2727 = vmatprep.subr.mxu0 0.0
  %2728 = vmatpush1.msra.mxu0 0.0
  %2729 = vmatprep.subr.mxu0 0.0
  %2730 = vmatpush1.msra.mxu0 0.0
  %2731 = vmatprep.subr.mxu0 0.0
  %2732 = vmatpush1.msra.mxu0 0.0
  %2733 = vmatprep.subr.mxu0 0.0
  %2734 = vmatpush1.msra.mxu0 0.0
  %2735 = vmatprep.subr.mxu0 0.0
  %2736 = vmatpush1.msra.mxu0 0.0
  %2737 = vmatprep.subr.mxu0 0.0
  %2738 = vmatpush1.msra.mxu0 0.0
  %2739 = vmatprep.mubr.f32.mxu0 0.0
  %2740 = vmatmul.mubr.f32.gmra.mrb[0].mxu0 %v2670
  %v2741 = vpop.f32.mrb[0].mxu0
  %v2742 = vadd.f32 0.0, %v2741
  %v2743 = vpop.f32.mrb[0].mxu0
  %2744 = vmatprep.mubr.f32.mxu0 0.0
  %2745 = vmatmul.mubr.f32.gmra.mrb[0].mxu0 %v2673
  %v2746 = vpop.f32.mrb[0].mxu0
  %v2747 = vadd.f32 0.0, %v2746
  %v2748 = vpop.f32.mrb[0].mxu0
  %2749 = vdwg.mxu0
  %s2750 = scalar_lea.vmem %s14, 16
  %2751 = vst.msk [vmem:[%s2750] sm:$0xff] %vm572, %v2742
  %2752 = vst.msk [vmem:[%s2750 + $0x8] sm:$0xff] %vm572, %v2747
  // Predicated region
  $region54: #{_lambda_.3} parent=0 // pred_check
    _
  $region55: #{_lambda_.3} parent=0 // pred_check_branch
    %2754 = sbr.rel (0) target = $region57
  $region56: #{_lambda_.3} parent=0 // pred_region
    _
  $region57: #{_lambda_.3} parent=0 // pred_fallthru
    _
  // Predicated region
  $region58: #{_lambda_.3} parent=0 // pred_check
    _
  $region59: #{_lambda_.3} parent=0 // pred_check_branch
    %2756 = sbr.rel (0) target = $region61
  $region60: #{_lambda_.3} parent=0 // pred_region
    _
  $region61: #{_lambda_.3} parent=0 // pred_fallthru
    _
  // Predicated region
  $region62: #{_lambda_.3} parent=0 // pred_check
    _
  $region63: #{_lambda_.3} parent=0 // pred_check_branch
    %2758 = sbr.rel (0) target = $region65
  $region64: #{_lambda_.3} parent=0 // pred_region
    _
  $region65: #{_lambda_.3} parent=0 // pred_fallthru
    _
  // Predicated region
  $region66: #{_lambda_.3} parent=0 // pred_check
    _
  $region67: #{_lambda_.3} parent=0 // pred_check_branch
    %2760 = sbr.rel (0) target = $region69
  $region68: #{_lambda_.3} parent=0 // pred_region
    _
  $region69: #{_lambda_.3} parent=0 // pred_fallthru
    _

// kernel: _lambda_.2
$region0: #{_lambda_.2}
  #allocation0 [shape = 'u32[]', space=smem, size = 0x4, offset = 0x4, fixed_abs, tag = 'smem constant byte address 0x4 - core index']
  #allocation1 [shape = 'u32[144,128]{1,0:T(1,128)}', space=vmem, size = 0x12000, scoped, tag = 'internal scratch']
  %s0 = inlined_call_operand.vmem [shape: f32[2,4,256], index: 0, kind: input, shape index: {}]
  %s1 = inlined_call_operand.vmem [shape: f32[9,256], index: 1, kind: input, shape index: {}]
  %s2 = inlined_call_operand.vmem [shape: f32[256,64], index: 2, kind: input, shape index: {}]
  %s3 = inlined_call_operand.vmem [shape: f32[8,36], index: 3, kind: input, shape index: {}]
  %s4 = inlined_call_operand.vmem [shape: f32[8,1], index: 4, kind: input, shape index: {}, may-alias: {4,7}]
  %s5 = inlined_call_operand.vmem [shape: f32[8,1], index: 5, kind: input, shape index: {}, may-alias: {5,8}]
  %s6 = inlined_call_operand.vmem [shape: f32[8,72], index: 6, kind: input, shape index: {}]
  %s7 = inlined_call_operand.vmem [shape: f32[8,1], index: 7, kind: input, shape index: {}, may-alias: {4,7}]
  %s8 = inlined_call_operand.vmem [shape: f32[8,1], index: 8, kind: input, shape index: {}, may-alias: {5,8}]
  %s9 = inlined_call_operand.vmem [shape: f32[32,144], index: 9, kind: input, shape index: {}]
  %s10 = inlined_call_operand.vmem [shape: f32[32,1], index: 10, kind: input, shape index: {}, may-alias: {10,12}]
  %s11 = inlined_call_operand.vmem [shape: f32[32,144], index: 11, kind: input, shape index: {}]
  %s12 = inlined_call_operand.vmem [shape: f32[32,1], index: 12, kind: input, shape index: {}, may-alias: {10,12}]
  %s13 = inlined_call_operand.vmem [shape: f32[2,8,256], index: 13, kind: output, shape index: {0}]
  %s14 = inlined_call_operand.vmem [shape: f32[2,8,64], index: 14, kind: output, shape index: {1}]
  %15 = xla_tuple %s13, %s14
  %s16 = sld [smem:[#allocation0]]
  $region70: #{_lambda_.2} parent=0
    _
  %s18 = ssub.s32 1, %s16
  %s19 = scalar_select 0, %s18, %s16
  // Predicated region
  $region2: #{_lambda_.2} parent=0 // pred_check
    _
  $region3: #{_lambda_.2} parent=0 // pred_check_branch
    %21 = sbr.rel (0) target = $region5
  $region4: #{_lambda_.2} parent=0 // pred_region
    _
  $region5: #{_lambda_.2} parent=0 // pred_fallthru
    _
  // Predicated region
  $region6: #{_lambda_.2} parent=0 // pred_check
    _
  $region7: #{_lambda_.2} parent=0 // pred_check_branch
    %23 = sbr.rel (0) target = $region9
  $region8: #{_lambda_.2} parent=0 // pred_region
    _
  $region9: #{_lambda_.2} parent=0 // pred_fallthru
    _
  // Predicated region
  $region10: #{_lambda_.2} parent=0 // pred_check
    _
  $region11: #{_lambda_.2} parent=0 // pred_check_branch
    %25 = sbr.rel (0) target = $region13
  $region12: #{_lambda_.2} parent=0 // pred_region
    _
  $region13: #{_lambda_.2} parent=0 // pred_fallthru
    _
  // Predicated region
  $region14: #{_lambda_.2} parent=0 // pred_check
    _
  $region15: #{_lambda_.2} parent=0 // pred_check_branch
    %27 = sbr.rel (0) target = $region17
  $region16: #{_lambda_.2} parent=0 // pred_region
    _
  $region17: #{_lambda_.2} parent=0 // pred_fallthru
    _
  // Predicated region
  $region18: #{_lambda_.2} parent=0 // pred_check
    _
  $region19: #{_lambda_.2} parent=0 // pred_check_branch
    %29 = sbr.rel (0) target = $region21
  $region20: #{_lambda_.2} parent=0 // pred_region
    _
  $region21: #{_lambda_.2} parent=0 // pred_fallthru
    _
  // Predicated region
  $region22: #{_lambda_.2} parent=0 // pred_check
    _
  $region23: #{_lambda_.2} parent=0 // pred_check_branch
    %31 = sbr.rel (0) target = $region25
  $region24: #{_lambda_.2} parent=0 // pred_region
    _
  $region25: #{_lambda_.2} parent=0 // pred_fallthru
    _
  // Predicated region
  $region26: #{_lambda_.2} parent=0 // pred_check
    _
  $region27: #{_lambda_.2} parent=0 // pred_check_branch
    %33 = sbr.rel (0) target = $region29
  $region28: #{_lambda_.2} parent=0 // pred_region
    _
  $region29: #{_lambda_.2} parent=0 // pred_fallthru
    _
  // Predicated region
  $region30: #{_lambda_.2} parent=0 // pred_check
    _
  $region31: #{_lambda_.2} parent=0 // pred_check_branch
    %35 = sbr.rel (0) target = $region33
  $region32: #{_lambda_.2} parent=0 // pred_region
    _
  $region33: #{_lambda_.2} parent=0 // pred_fallthru
    _
  // Predicated region
  $region34: #{_lambda_.2} parent=0 // pred_check
    _
  $region35: #{_lambda_.2} parent=0 // pred_check_branch
    %37 = sbr.rel (0) target = $region37
  $region36: #{_lambda_.2} parent=0 // pred_region
    _
  $region37: #{_lambda_.2} parent=0 // pred_fallthru
    _
  // Predicated region
  $region38: #{_lambda_.2} parent=0 // pred_check
    _
  $region39: #{_lambda_.2} parent=0 // pred_check_branch
    %39 = sbr.rel (0) target = $region41
  $region40: #{_lambda_.2} parent=0 // pred_region
    _
  $region41: #{_lambda_.2} parent=0 // pred_fallthru
    _
  // Predicated region
  $region42: #{_lambda_.2} parent=0 // pred_check
    _
  $region43: #{_lambda_.2} parent=0 // pred_check_branch
    %41 = sbr.rel (0) target = $region45
  $region44: #{_lambda_.2} parent=0 // pred_region
    _
  $region45: #{_lambda_.2} parent=0 // pred_fallthru
    _
  // Predicated region
  $region46: #{_lambda_.2} parent=0 // pred_check
    _
  $region47: #{_lambda_.2} parent=0 // pred_check_branch
    %43 = sbr.rel (0) target = $region49
  $region48: #{_lambda_.2} parent=0 // pred_region
    _
  $region49: #{_lambda_.2} parent=0 // pred_fallthru
    _
  // Predicated region
  $region50: #{_lambda_.2} parent=0 // pred_check
    _
  $region51: #{_lambda_.2} parent=0 // pred_check_branch
    %45 = sbr.rel (0) target = $region53
  $region52: #{_lambda_.2} parent=0 // pred_region
    _
  $region53: #{_lambda_.2} parent=0 // pred_fallthru
    _
  %v47 = vld [vmem:[%s1] sm:$0xff]
  %v48 = vld [vmem:[%s1 + $0x8] sm:$0xff]
  %v49 = vld [vmem:[%s1 + $0x10] sm:$0x1]
  %v50 = vld [vmem:[%s1 + $0x18] sm:$0x1]
  %v51 = vld [vmem:[%s0] sm:$0xff]
  %s52 = scalar_lea.vmem %s0, 8
  %v53 = vld [vmem:[%s52] sm:$0xff]
  %v54 = vld [vmem:[%s3] sm:$0xff]
  %v55 = vpack.c.bf16 %v54, %v54
  %v57 = vcombine.high %v51, %v51
  %58 = vrot.lane.b32.xlu0 %v57, 17
  %v59 = vpop.permute.xlu0 %58
  %61 = vrot.lane.b32.xlu0 %v51, 17
  %v62 = vpop.permute.xlu0 %61
  %vm63 = vcmask 138240
  %v64 = vsel %vm63, %v62, %v59
  %v67 = vsel %vm63, %v59, %v62
  %v68 = vlaneseq
  %v69 = vshrl.u32 %v68, 7
  %v70 = vsub.s32 0, %v69
  %v71 = vrot.slane %v47, %v70
  %v72 = vlaneseq
  %v73 = vshrl.u32 %v72, 7
  %v74 = vsub.s32 0, %v73
  %v75 = vrot.slane %v48, %v74
  %v76 = vmul.f32 %v67, %v71
  %v77 = vmul.f32 %v64, %v75
  %78 = vrot.lane.b32.xlu0 %v57, 16
  %v79 = vpop.permute.xlu0 %78
  %81 = vrot.lane.b32.xlu0 %v51, 16
  %v82 = vpop.permute.xlu0 %81
  %vm83 = vcmask 130048
  %v84 = vsel %vm83, %v82, %v79
  %v87 = vsel %vm83, %v79, %v82
  %v88 = vlaneseq
  %v89 = vshrl.u32 %v88, 7
  %v90 = vsub.s32 1, %v89
  %v91 = vrot.slane %v47, %v90
  %v92 = vlaneseq
  %v93 = vshrl.u32 %v92, 7
  %v94 = vsub.s32 1, %v93
  %v95 = vrot.slane %v48, %v94
  %v96 = vmul.f32 %v87, %v91
  %v97 = vmul.f32 %v84, %v95
  %98 = vrot.lane.b32.xlu0 %v57, 15
  %v99 = vpop.permute.xlu0 %98
  %101 = vrot.lane.b32.xlu0 %v51, 15
  %v102 = vpop.permute.xlu0 %101
  %vm103 = vcmask 121856
  %v104 = vsel %vm103, %v102, %v99
  %v107 = vsel %vm103, %v99, %v102
  %v108 = vlaneseq
  %v109 = vshrl.u32 %v108, 7
  %v110 = vsub.s32 2, %v109
  %v111 = vrot.slane %v47, %v110
  %v112 = vlaneseq
  %v113 = vshrl.u32 %v112, 7
  %v114 = vsub.s32 2, %v113
  %v115 = vrot.slane %v48, %v114
  %v116 = vmul.f32 %v107, %v111
  %v117 = vmul.f32 %v104, %v115
  %118 = vrot.lane.b32.xlu0 %v57, 1
  %v119 = vpop.permute.xlu0 %118
  %121 = vrot.lane.b32.xlu0 %v51, 1
  %v122 = vpop.permute.xlu0 %121
  %vm123 = vcmask 7168
  %v124 = vsel %vm123, %v122, %v119
  %v127 = vsel %vm123, %v119, %v122
  %v128 = vlaneseq
  %v129 = vshrl.u32 %v128, 7
  %v130 = vsub.s32 3, %v129
  %v131 = vrot.slane %v47, %v130
  %v132 = vlaneseq
  %v133 = vshrl.u32 %v132, 7
  %v134 = vsub.s32 3, %v133
  %v135 = vrot.slane %v48, %v134
  %v136 = vmul.f32 %v127, %v131
  %v137 = vmul.f32 %v124, %v135
  %v138 = vlaneseq
  %v139 = vshrl.u32 %v138, 7
  %v140 = vsub.s32 4, %v139
  %v141 = vrot.slane %v47, %v140
  %v142 = vlaneseq
  %v143 = vshrl.u32 %v142, 7
  %v144 = vsub.s32 4, %v143
  %v145 = vrot.slane %v48, %v144
  %v148 = vcombine.low %v141, %v145
  %v150 = vmul.f32 %v51, %v148
  %151 = vrot.lane.b32.xlu0 %v51, 127
  %v152 = vpop.permute.xlu0 %151
  %153 = vrot.lane.b32.xlu0 %v57, 127
  %v154 = vpop.permute.xlu0 %153
  %vm155 = vcmask 1039360
  %v156 = vsel %vm155, %v152, %v154
  %v160 = vsel %vm155, %v154, %v152
  %v161 = vlaneseq
  %v162 = vshrl.u32 %v161, 7
  %v163 = vsub.s32 5, %v162
  %v164 = vrot.slane %v47, %v163
  %v165 = vlaneseq
  %v166 = vshrl.u32 %v165, 7
  %v167 = vsub.s32 5, %v166
  %v168 = vrot.slane %v48, %v167
  %v169 = vmul.f32 %v156, %v164
  %v170 = vmul.f32 %v160, %v168
  %171 = vrot.lane.b32.xlu0 %v51, 113
  %v172 = vpop.permute.xlu0 %171
  %173 = vrot.lane.b32.xlu0 %v57, 113
  %v174 = vpop.permute.xlu0 %173
  %vm175 = vcmask 924672
  %v176 = vsel %vm175, %v172, %v174
  %v180 = vsel %vm175, %v174, %v172
  %v181 = vlaneseq
  %v182 = vshrl.u32 %v181, 7
  %v183 = vsub.s32 6, %v182
  %v184 = vrot.slane %v47, %v183
  %v185 = vlaneseq
  %v186 = vshrl.u32 %v185, 7
  %v187 = vsub.s32 6, %v186
  %v188 = vrot.slane %v48, %v187
  %v189 = vmul.f32 %v176, %v184
  %v190 = vmul.f32 %v180, %v188
  %191 = vrot.lane.b32.xlu0 %v51, 112
  %v192 = vpop.permute.xlu0 %191
  %193 = vrot.lane.b32.xlu0 %v57, 112
  %v194 = vpop.permute.xlu0 %193
  %vm195 = vcmask 916480
  %v196 = vsel %vm195, %v192, %v194
  %v200 = vsel %vm195, %v194, %v192
  %v201 = vlaneseq
  %v202 = vshrl.u32 %v201, 7
  %v203 = vsub.s32 7, %v202
  %v204 = vrot.slane %v47, %v203
  %v205 = vlaneseq
  %v206 = vshrl.u32 %v205, 7
  %v207 = vsub.s32 7, %v206
  %v208 = vrot.slane %v48, %v207
  %v209 = vmul.f32 %v196, %v204
  %v210 = vmul.f32 %v200, %v208
  %211 = vrot.lane.b32.xlu0 %v51, 111
  %v212 = vpop.permute.xlu0 %211
  %213 = vrot.lane.b32.xlu0 %v57, 111
  %v214 = vpop.permute.xlu0 %213
  %vm215 = vcmask 908288
  %v216 = vsel %vm215, %v212, %v214
  %v220 = vsel %vm215, %v214, %v212
  %v221 = vlaneseq
  %v222 = vshrl.u32 %v221, 7
  %v223 = vsub.s32 0, %v222
  %v224 = vrot.slane %v49, %v223
  %v225 = vlaneseq
  %v226 = vshrl.u32 %v225, 7
  %v227 = vsub.s32 0, %v226
  %v228 = vrot.slane %v50, %v227
  %v229 = vmul.f32 %v216, %v224
  %v230 = vmul.f32 %v220, %v228
  %v233 = vrot.slane %v96, 4
  %v234 = vrot.slane %v97, 4
  %v239 = vrot.slane %v136, 4
  %v240 = vrot.slane %v137, 4
  %v244 = vcombine.high %v150, %v150
  %v248 = vrot.slane %v169, 4
  %v249 = vrot.slane %v170, 4
  %v254 = vrot.slane %v209, 4
  %v255 = vrot.slane %v210, 4
  %vm258 = vcmask 1043456
  %v259 = vsel %vm258, %v76, %v233
  %v260 = vsel %vm258, %v77, %v234
  %v261 = vsel %vm258, %v116, %v239
  %v262 = vsel %vm258, %v117, %v240
  %v263 = vsel %vm258, %v150, %v248
  %v264 = vsel %vm258, %v244, %v249
  %v265 = vsel %vm258, %v189, %v254
  %v266 = vsel %vm258, %v190, %v255
  %v267 = vpack.c.bf16 %v261, %v259
  %v268 = vpack.c.bf16 %v262, %v260
  %v269 = vpack.c.bf16 %v265, %v263
  %v270 = vpack.c.bf16 %v266, %v264
  %v271 = vpack.c.bf16 %v229, %v229
  %v272 = vpack.c.bf16 %v230, %v230
  %vm273 = vcmask 293888
  %v275 = vsel %vm273, %v55, 0
  %vm277 = vcmask 1041408
  %v279 = vsel %vm277, %v271, 0
  %v282 = vsel %vm277, %v272, 0
  %284 = vmatprep.subr.bf16.mxu0 %v268
  %285 = vmatpush1.bf16.msra.mxu0 %v267
  %286 = vmatprep.subr.bf16.mxu0 %v270
  %287 = vmatpush1.bf16.msra.mxu0 %v269
  %288 = vmatprep.subr.bf16.mxu0 %v282
  %289 = vmatpush1.bf16.msra.mxu0 %v279
  %290 = vmatprep.subr.bf16.mxu0 0
  %291 = vmatpush1.bf16.msra.mxu0 0
  %292 = vmatprep.subr.bf16.mxu0 0
  %293 = vmatpush1.bf16.msra.mxu0 0
  %294 = vmatprep.subr.bf16.mxu0 0
  %295 = vmatpush1.bf16.msra.mxu0 0
  %296 = vmatprep.subr.bf16.mxu0 0
  %297 = vmatpush1.bf16.msra.mxu0 0
  %298 = vmatprep.subr.bf16.mxu0 0
  %299 = vmatpush1.bf16.msra.mxu0 0
  %300 = vmatprep.subr.bf16.mxu0 0
  %301 = vmatpush1.bf16.msra.mxu0 0
  %302 = vmatprep.subr.bf16.mxu0 0
  %303 = vmatpush1.bf16.msra.mxu0 0
  %304 = vmatprep.subr.bf16.mxu0 0
  %305 = vmatpush1.bf16.msra.mxu0 0
  %306 = vmatprep.subr.bf16.mxu0 0
  %307 = vmatpush1.bf16.msra.mxu0 0
  %308 = vmatprep.subr.bf16.mxu0 0
  %309 = vmatpush1.bf16.msra.mxu0 0
  %310 = vmatprep.subr.bf16.mxu0 0
  %311 = vmatpush1.bf16.msra.mxu0 0
  %312 = vmatprep.subr.bf16.mxu0 0
  %313 = vmatpush1.bf16.msra.mxu0 0
  %314 = vmatprep.subr.bf16.mxu0 0
  %315 = vmatpush1.bf16.msra.mxu0 0
  %316 = vmatprep.mubr.bf16.mxu0 0
  %317 = vmatmul.mubr.bf16.gmra.mrb[0].mxu0 %v275
  %v318 = vpop.f32.mrb[0].mxu0
  %v319 = vadd.f32 0.0, %v318
  %v320 = vpop.f32.mrb[0].mxu0
  %v321 = vadd.f32 0.0, %v320
  %v322 = vpop.f32.mrb[0].mxu0
  %v323 = vpop.f32.mrb[0].mxu0
  %324 = vdwg.mxu0
  %v326 = vcombine.high %v53, %v53
  %327 = vrot.lane.b32.xlu0 %v326, 17
  %v328 = vpop.permute.xlu0 %327
  %330 = vrot.lane.b32.xlu0 %v53, 17
  %v331 = vpop.permute.xlu0 %330
  %v332 = vsel %vm63, %v331, %v328
  %v335 = vsel %vm63, %v328, %v331
  %v336 = vmul.f32 %v335, %v71
  %v337 = vmul.f32 %v332, %v75
  %338 = vrot.lane.b32.xlu0 %v326, 16
  %v339 = vpop.permute.xlu0 %338
  %341 = vrot.lane.b32.xlu0 %v53, 16
  %v342 = vpop.permute.xlu0 %341
  %v343 = vsel %vm83, %v342, %v339
  %v346 = vsel %vm83, %v339, %v342
  %v347 = vmul.f32 %v346, %v91
  %v348 = vmul.f32 %v343, %v95
  %349 = vrot.lane.b32.xlu0 %v326, 15
  %v350 = vpop.permute.xlu0 %349
  %352 = vrot.lane.b32.xlu0 %v53, 15
  %v353 = vpop.permute.xlu0 %352
  %v354 = vsel %vm103, %v353, %v350
  %v357 = vsel %vm103, %v350, %v353
  %v358 = vmul.f32 %v357, %v111
  %v359 = vmul.f32 %v354, %v115
  %360 = vrot.lane.b32.xlu0 %v326, 1
  %v361 = vpop.permute.xlu0 %360
  %363 = vrot.lane.b32.xlu0 %v53, 1
  %v364 = vpop.permute.xlu0 %363
  %v365 = vsel %vm123, %v364, %v361
  %v368 = vsel %vm123, %v361, %v364
  %v369 = vmul.f32 %v368, %v131
  %v370 = vmul.f32 %v365, %v135
  %v371 = vmul.f32 %v53, %v148
  %372 = vrot.lane.b32.xlu0 %v53, 127
  %v373 = vpop.permute.xlu0 %372
  %374 = vrot.lane.b32.xlu0 %v326, 127
  %v375 = vpop.permute.xlu0 %374
  %v376 = vsel %vm155, %v373, %v375
  %v380 = vsel %vm155, %v375, %v373
  %v381 = vmul.f32 %v376, %v164
  %v382 = vmul.f32 %v380, %v168
  %383 = vrot.lane.b32.xlu0 %v53, 113
  %v384 = vpop.permute.xlu0 %383
  %385 = vrot.lane.b32.xlu0 %v326, 113
  %v386 = vpop.permute.xlu0 %385
  %v387 = vsel %vm175, %v384, %v386
  %v391 = vsel %vm175, %v386, %v384
  %v392 = vmul.f32 %v387, %v184
  %v393 = vmul.f32 %v391, %v188
  %394 = vrot.lane.b32.xlu0 %v53, 112
  %v395 = vpop.permute.xlu0 %394
  %396 = vrot.lane.b32.xlu0 %v326, 112
  %v397 = vpop.permute.xlu0 %396
  %v398 = vsel %vm195, %v395, %v397
  %v402 = vsel %vm195, %v397, %v395
  %v403 = vmul.f32 %v398, %v204
  %v404 = vmul.f32 %v402, %v208
  %405 = vrot.lane.b32.xlu0 %v53, 111
  %v406 = vpop.permute.xlu0 %405
  %407 = vrot.lane.b32.xlu0 %v326, 111
  %v408 = vpop.permute.xlu0 %407
  %v409 = vsel %vm215, %v406, %v408
  %v413 = vsel %vm215, %v408, %v406
  %v414 = vmul.f32 %v409, %v224
  %v415 = vmul.f32 %v413, %v228
  %v418 = vrot.slane %v347, 4
  %v419 = vrot.slane %v348, 4
  %v424 = vrot.slane %v369, 4
  %v425 = vrot.slane %v370, 4
  %v429 = vcombine.high %v371, %v371
  %v433 = vrot.slane %v381, 4
  %v434 = vrot.slane %v382, 4
  %v439 = vrot.slane %v403, 4
  %v440 = vrot.slane %v404, 4
  %v443 = vsel %vm258, %v336, %v418
  %v444 = vsel %vm258, %v337, %v419
  %v445 = vsel %vm258, %v358, %v424
  %v446 = vsel %vm258, %v359, %v425
  %v447 = vsel %vm258, %v371, %v433
  %v448 = vsel %vm258, %v429, %v434
  %v449 = vsel %vm258, %v392, %v439
  %v450 = vsel %vm258, %v393, %v440
  %v451 = vpack.c.bf16 %v445, %v443
  %v452 = vpack.c.bf16 %v446, %v444
  %v453 = vpack.c.bf16 %v449, %v447
  %v454 = vpack.c.bf16 %v450, %v448
  %v455 = vpack.c.bf16 %v414, %v414
  %v456 = vpack.c.bf16 %v415, %v415
  %v458 = vsel %vm277, %v455, 0
  %v461 = vsel %vm277, %v456, 0
  %463 = vmatprep.subr.bf16.mxu0 %v452
  %464 = vmatpush1.bf16.msra.mxu0 %v451
  %465 = vmatprep.subr.bf16.mxu0 %v454
  %466 = vmatpush1.bf16.msra.mxu0 %v453
  %467 = vmatprep.subr.bf16.mxu0 %v461
  %468 = vmatpush1.bf16.msra.mxu0 %v458
  %469 = vmatprep.subr.bf16.mxu0 0
  %470 = vmatpush1.bf16.msra.mxu0 0
  %471 = vmatprep.subr.bf16.mxu0 0
  %472 = vmatpush1.bf16.msra.mxu0 0
  %473 = vmatprep.subr.bf16.mxu0 0
  %474 = vmatpush1.bf16.msra.mxu0 0
  %475 = vmatprep.subr.bf16.mxu0 0
  %476 = vmatpush1.bf16.msra.mxu0 0
  %477 = vmatprep.subr.bf16.mxu0 0
  %478 = vmatpush1.bf16.msra.mxu0 0
  %479 = vmatprep.subr.bf16.mxu0 0
  %480 = vmatpush1.bf16.msra.mxu0 0
  %481 = vmatprep.subr.bf16.mxu0 0
  %482 = vmatpush1.bf16.msra.mxu0 0
  %483 = vmatprep.subr.bf16.mxu0 0
  %484 = vmatpush1.bf16.msra.mxu0 0
  %485 = vmatprep.subr.bf16.mxu0 0
  %486 = vmatpush1.bf16.msra.mxu0 0
  %487 = vmatprep.subr.bf16.mxu0 0
  %488 = vmatpush1.bf16.msra.mxu0 0
  %489 = vmatprep.subr.bf16.mxu0 0
  %490 = vmatpush1.bf16.msra.mxu0 0
  %491 = vmatprep.subr.bf16.mxu0 0
  %492 = vmatpush1.bf16.msra.mxu0 0
  %493 = vmatprep.subr.bf16.mxu0 0
  %494 = vmatpush1.bf16.msra.mxu0 0
  %495 = vmatprep.mubr.bf16.mxu0 0
  %496 = vmatmul.mubr.bf16.gmra.mrb[0].mxu0 %v275
  %v497 = vpop.f32.mrb[0].mxu0
  %v498 = vadd.f32 0.0, %v497
  %v499 = vpop.f32.mrb[0].mxu0
  %v500 = vadd.f32 0.0, %v499
  %v501 = vpop.f32.mrb[0].mxu0
  %v502 = vpop.f32.mrb[0].mxu0
  %503 = vdwg.mxu0
  %v504 = vadd.f32 %v319, %v321
  %505 = vadd.xlane.f32.xlu0 %v504
  %v506 = vpop.xlane.xlu0 %505
  %v507 = vadd.f32 %v506, 0.0
  %v508 = vadd.f32 %v498, %v500
  %509 = vadd.xlane.f32.xlu0 %v508
  %v510 = vpop.xlane.xlu0 %509
  %v511 = vadd.f32 %v507, %v510
  %v512 = vmul.f32 %v511, 0.001953125
  %v513 = vsub.f32 %v319, %v512
  %v514 = vsub.f32 %v321, %v512
  %v515 = vmul.f32 %v513, %v513
  %v516 = vmul.f32 %v514, %v514
  %v517 = vadd.f32 %v515, %v516
  %518 = vadd.xlane.f32.xlu0 %v517
  %v519 = vpop.xlane.xlu0 %518
  %v520 = vadd.f32 %v519, 0.0
  %v521 = vsub.f32 %v498, %v512
  %v522 = vsub.f32 %v500, %v512
  %v523 = vmul.f32 %v521, %v521
  %v524 = vmul.f32 %v522, %v522
  %v525 = vadd.f32 %v523, %v524
  %526 = vadd.xlane.f32.xlu0 %v525
  %v527 = vpop.xlane.xlu0 %526
  %v528 = vadd.f32 %v520, %v527
  %v529 = vmul.f32 %v528, 0.001953125
  %v530 = vld [vmem:[%s4] sm:$0xff]
  %v531 = vadd.f32 %v529, 1e-05
  %v532 = vrsqrt.pop %v531
  %v533 = vmul.f32 %v530, %v532
  %v534 = vld [vmem:[%s5] sm:$0xff]
  %v535 = vmul.f32 %v512, %v533
  %v536 = vsub.f32 %v534, %v535
  %538 = vset.pattern.permute.xlu0 0
  %539 = vperm.xlu0 %538, %v533
  %v540 = vpop.permute.xlu0 %539
  %v542 = vmul.f32 %v319, %v540
  %v543 = vmul.f32 %v321, %v540
  %545 = vset.pattern.permute.xlu0 0
  %546 = vperm.xlu0 %545, %v536
  %v547 = vpop.permute.xlu0 %546
  %v549 = vadd.f32 %v542, %v547
  %v550 = vadd.f32 %v543, %v547
  %v551 = vmax.f32 %v549, 0.0
  %v552 = vmax.f32 %v550, 0.0
  %v553 = vmul.f32 %v498, %v540
  %v554 = vmul.f32 %v500, %v540
  %v555 = vadd.f32 %v553, %v547
  %v556 = vadd.f32 %v554, %v547
  %v557 = vmax.f32 %v555, 0.0
  %v558 = vmax.f32 %v556, 0.0
  %v559 = vld [vmem:[%s6] sm:$0xff]
  %v560 = vpack.c.bf16 %v559, %v559
  %562 = vrot.lane.b32.xlu0 %v552, 17
  %v563 = vpop.permute.xlu0 %562
  %566 = vrot.lane.b32.xlu0 %v551, 17
  %v567 = vpop.permute.xlu0 %566
  %v568 = vsel %vm63, %v567, %v563
  %v571 = vsel %vm63, %v563, %v567
  %v572 = vmul.f32 %v571, %v71
  %v573 = vmul.f32 %v568, %v75
  %574 = vrot.lane.b32.xlu0 %v552, 16
  %v575 = vpop.permute.xlu0 %574
  %577 = vrot.lane.b32.xlu0 %v551, 16
  %v578 = vpop.permute.xlu0 %577
  %v579 = vsel %vm83, %v578, %v575
  %v582 = vsel %vm83, %v575, %v578
  %v583 = vmul.f32 %v582, %v91
  %v584 = vmul.f32 %v579, %v95
  %585 = vrot.lane.b32.xlu0 %v552, 15
  %v586 = vpop.permute.xlu0 %585
  %588 = vrot.lane.b32.xlu0 %v551, 15
  %v589 = vpop.permute.xlu0 %588
  %v590 = vsel %vm103, %v589, %v586
  %v593 = vsel %vm103, %v586, %v589
  %v594 = vmul.f32 %v593, %v111
  %v595 = vmul.f32 %v590, %v115
  %596 = vrot.lane.b32.xlu0 %v552, 1
  %v597 = vpop.permute.xlu0 %596
  %599 = vrot.lane.b32.xlu0 %v551, 1
  %v600 = vpop.permute.xlu0 %599
  %v601 = vsel %vm123, %v600, %v597
  %v604 = vsel %vm123, %v597, %v600
  %v605 = vmul.f32 %v604, %v131
  %v606 = vmul.f32 %v601, %v135
  %v607 = vmul.f32 %v551, %v141
  %v608 = vmul.f32 %v552, %v145
  %609 = vrot.lane.b32.xlu0 %v551, 127
  %v610 = vpop.permute.xlu0 %609
  %611 = vrot.lane.b32.xlu0 %v552, 127
  %v612 = vpop.permute.xlu0 %611
  %v613 = vsel %vm155, %v610, %v612
  %v617 = vsel %vm155, %v612, %v610
  %v618 = vmul.f32 %v613, %v164
  %v619 = vmul.f32 %v617, %v168
  %620 = vrot.lane.b32.xlu0 %v551, 113
  %v621 = vpop.permute.xlu0 %620
  %622 = vrot.lane.b32.xlu0 %v552, 113
  %v623 = vpop.permute.xlu0 %622
  %v624 = vsel %vm175, %v621, %v623
  %v628 = vsel %vm175, %v623, %v621
  %v629 = vmul.f32 %v624, %v184
  %v630 = vmul.f32 %v628, %v188
  %631 = vrot.lane.b32.xlu0 %v551, 112
  %v632 = vpop.permute.xlu0 %631
  %633 = vrot.lane.b32.xlu0 %v552, 112
  %v634 = vpop.permute.xlu0 %633
  %v635 = vsel %vm195, %v632, %v634
  %v639 = vsel %vm195, %v634, %v632
  %v640 = vmul.f32 %v635, %v204
  %v641 = vmul.f32 %v639, %v208
  %642 = vrot.lane.b32.xlu0 %v551, 111
  %v643 = vpop.permute.xlu0 %642
  %644 = vrot.lane.b32.xlu0 %v552, 111
  %v645 = vpop.permute.xlu0 %644
  %v646 = vsel %vm215, %v643, %v645
  %v650 = vsel %vm215, %v645, %v643
  %v651 = vmul.f32 %v646, %v224
  %v652 = vmul.f32 %v650, %v228
  %v653 = vpack.c.bf16 %v583, %v572
  %v654 = vpack.c.bf16 %v584, %v573
  %v655 = vpack.c.bf16 %v605, %v594
  %v656 = vpack.c.bf16 %v606, %v595
  %v657 = vpack.c.bf16 %v618, %v607
  %v658 = vpack.c.bf16 %v619, %v608
  %v659 = vpack.c.bf16 %v640, %v629
  %v660 = vpack.c.bf16 %v641, %v630
  %v661 = vpack.c.bf16 %v651, %v651
  %v662 = vpack.c.bf16 %v652, %v652
  %vm663 = vcmask 588800
  %v665 = vsel %vm663, %v560, 0
  %v668 = vsel %vm258, %v661, 0
  %v671 = vsel %vm258, %v662, 0
  %673 = vmatprep.subr.bf16.mxu0 %v654
  %674 = vmatpush1.bf16.msra.mxu0 %v653
  %675 = vmatprep.subr.bf16.mxu0 %v656
  %676 = vmatpush1.bf16.msra.mxu0 %v655
  %677 = vmatprep.subr.bf16.mxu0 %v658
  %678 = vmatpush1.bf16.msra.mxu0 %v657
  %679 = vmatprep.subr.bf16.mxu0 %v660
  %680 = vmatpush1.bf16.msra.mxu0 %v659
  %681 = vmatprep.subr.bf16.mxu0 %v671
  %682 = vmatpush1.bf16.msra.mxu0 %v668
  %683 = vmatprep.subr.bf16.mxu0 0
  %684 = vmatpush1.bf16.msra.mxu0 0
  %685 = vmatprep.subr.bf16.mxu0 0
  %686 = vmatpush1.bf16.msra.mxu0 0
  %687 = vmatprep.subr.bf16.mxu0 0
  %688 = vmatpush1.bf16.msra.mxu0 0
  %689 = vmatprep.subr.bf16.mxu0 0
  %690 = vmatpush1.bf16.msra.mxu0 0
  %691 = vmatprep.subr.bf16.mxu0 0
  %692 = vmatpush1.bf16.msra.mxu0 0
  %693 = vmatprep.subr.bf16.mxu0 0
  %694 = vmatpush1.bf16.msra.mxu0 0
  %695 = vmatprep.subr.bf16.mxu0 0
  %696 = vmatpush1.bf16.msra.mxu0 0
  %697 = vmatprep.subr.bf16.mxu0 0
  %698 = vmatpush1.bf16.msra.mxu0 0
  %699 = vmatprep.subr.bf16.mxu0 0
  %700 = vmatpush1.bf16.msra.mxu0 0
  %701 = vmatprep.subr.bf16.mxu0 0
  %702 = vmatpush1.bf16.msra.mxu0 0
  %703 = vmatprep.subr.bf16.mxu0 0
  %704 = vmatpush1.bf16.msra.mxu0 0
  %705 = vmatprep.mubr.bf16.mxu0 0
  %706 = vmatmul.mubr.bf16.gmra.mrb[0].mxu0 %v665
  %v707 = vpop.f32.mrb[0].mxu0
  %v708 = vadd.f32 0.0, %v707
  %v709 = vpop.f32.mrb[0].mxu0
  %v710 = vadd.f32 0.0, %v709
  %v711 = vpop.f32.mrb[0].mxu0
  %v712 = vpop.f32.mrb[0].mxu0
  %713 = vdwg.mxu0
  %715 = vrot.lane.b32.xlu0 %v558, 17
  %v716 = vpop.permute.xlu0 %715
  %719 = vrot.lane.b32.xlu0 %v557, 17
  %v720 = vpop.permute.xlu0 %719
  %v721 = vsel %vm63, %v720, %v716
  %v724 = vsel %vm63, %v716, %v720
  %v725 = vmul.f32 %v724, %v71
  %v726 = vmul.f32 %v721, %v75
  %727 = vrot.lane.b32.xlu0 %v558, 16
  %v728 = vpop.permute.xlu0 %727
  %730 = vrot.lane.b32.xlu0 %v557, 16
  %v731 = vpop.permute.xlu0 %730
  %v732 = vsel %vm83, %v731, %v728
  %v735 = vsel %vm83, %v728, %v731
  %v736 = vmul.f32 %v735, %v91
  %v737 = vmul.f32 %v732, %v95
  %738 = vrot.lane.b32.xlu0 %v558, 15
  %v739 = vpop.permute.xlu0 %738
  %741 = vrot.lane.b32.xlu0 %v557, 15
  %v742 = vpop.permute.xlu0 %741
  %v743 = vsel %vm103, %v742, %v739
  %v746 = vsel %vm103, %v739, %v742
  %v747 = vmul.f32 %v746, %v111
  %v748 = vmul.f32 %v743, %v115
  %749 = vrot.lane.b32.xlu0 %v558, 1
  %v750 = vpop.permute.xlu0 %749
  %752 = vrot.lane.b32.xlu0 %v557, 1
  %v753 = vpop.permute.xlu0 %752
  %v754 = vsel %vm123, %v753, %v750
  %v757 = vsel %vm123, %v750, %v753
  %v758 = vmul.f32 %v757, %v131
  %v759 = vmul.f32 %v754, %v135
  %v760 = vmul.f32 %v557, %v141
  %v761 = vmul.f32 %v558, %v145
  %762 = vrot.lane.b32.xlu0 %v557, 127
  %v763 = vpop.permute.xlu0 %762
  %764 = vrot.lane.b32.xlu0 %v558, 127
  %v765 = vpop.permute.xlu0 %764
  %v766 = vsel %vm155, %v763, %v765
  %v770 = vsel %vm155, %v765, %v763
  %v771 = vmul.f32 %v766, %v164
  %v772 = vmul.f32 %v770, %v168
  %773 = vrot.lane.b32.xlu0 %v557, 113
  %v774 = vpop.permute.xlu0 %773
  %775 = vrot.lane.b32.xlu0 %v558, 113
  %v776 = vpop.permute.xlu0 %775
  %v777 = vsel %vm175, %v774, %v776
  %v781 = vsel %vm175, %v776, %v774
  %v782 = vmul.f32 %v777, %v184
  %v783 = vmul.f32 %v781, %v188
  %784 = vrot.lane.b32.xlu0 %v557, 112
  %v785 = vpop.permute.xlu0 %784
  %786 = vrot.lane.b32.xlu0 %v558, 112
  %v787 = vpop.permute.xlu0 %786
  %v788 = vsel %vm195, %v785, %v787
  %v792 = vsel %vm195, %v787, %v785
  %v793 = vmul.f32 %v788, %v204
  %v794 = vmul.f32 %v792, %v208
  %795 = vrot.lane.b32.xlu0 %v557, 111
  %v796 = vpop.permute.xlu0 %795
  %797 = vrot.lane.b32.xlu0 %v558, 111
  %v798 = vpop.permute.xlu0 %797
  %v799 = vsel %vm215, %v796, %v798
  %v803 = vsel %vm215, %v798, %v796
  %v804 = vmul.f32 %v799, %v224
  %v805 = vmul.f32 %v803, %v228
  %v806 = vpack.c.bf16 %v736, %v725
  %v807 = vpack.c.bf16 %v737, %v726
  %v808 = vpack.c.bf16 %v758, %v747
  %v809 = vpack.c.bf16 %v759, %v748
  %v810 = vpack.c.bf16 %v771, %v760
  %v811 = vpack.c.bf16 %v772, %v761
  %v812 = vpack.c.bf16 %v793, %v782
  %v813 = vpack.c.bf16 %v794, %v783
  %v814 = vpack.c.bf16 %v804, %v804
  %v815 = vpack.c.bf16 %v805, %v805
  %v817 = vsel %vm258, %v814, 0
  %v820 = vsel %vm258, %v815, 0
  %822 = vmatprep.subr.bf16.mxu0 %v807
  %823 = vmatpush1.bf16.msra.mxu0 %v806
  %824 = vmatprep.subr.bf16.mxu0 %v809
  %825 = vmatpush1.bf16.msra.mxu0 %v808
  %826 = vmatprep.subr.bf16.mxu0 %v811
  %827 = vmatpush1.bf16.msra.mxu0 %v810
  %828 = vmatprep.subr.bf16.mxu0 %v813
  %829 = vmatpush1.bf16.msra.mxu0 %v812
  %830 = vmatprep.subr.bf16.mxu0 %v820
  %831 = vmatpush1.bf16.msra.mxu0 %v817
  %832 = vmatprep.subr.bf16.mxu0 0
  %833 = vmatpush1.bf16.msra.mxu0 0
  %834 = vmatprep.subr.bf16.mxu0 0
  %835 = vmatpush1.bf16.msra.mxu0 0
  %836 = vmatprep.subr.bf16.mxu0 0
  %837 = vmatpush1.bf16.msra.mxu0 0
  %838 = vmatprep.subr.bf16.mxu0 0
  %839 = vmatpush1.bf16.msra.mxu0 0
  %840 = vmatprep.subr.bf16.mxu0 0
  %841 = vmatpush1.bf16.msra.mxu0 0
  %842 = vmatprep.subr.bf16.mxu0 0
  %843 = vmatpush1.bf16.msra.mxu0 0
  %844 = vmatprep.subr.bf16.mxu0 0
  %845 = vmatpush1.bf16.msra.mxu0 0
  %846 = vmatprep.subr.bf16.mxu0 0
  %847 = vmatpush1.bf16.msra.mxu0 0
  %848 = vmatprep.subr.bf16.mxu0 0
  %849 = vmatpush1.bf16.msra.mxu0 0
  %850 = vmatprep.subr.bf16.mxu0 0
  %851 = vmatpush1.bf16.msra.mxu0 0
  %852 = vmatprep.subr.bf16.mxu0 0
  %853 = vmatpush1.bf16.msra.mxu0 0
  %854 = vmatprep.mubr.bf16.mxu0 0
  %855 = vmatmul.mubr.bf16.gmra.mrb[0].mxu0 %v665
  %v856 = vpop.f32.mrb[0].mxu0
  %v857 = vadd.f32 0.0, %v856
  %v858 = vpop.f32.mrb[0].mxu0
  %v859 = vadd.f32 0.0, %v858
  %v860 = vpop.f32.mrb[0].mxu0
  %v861 = vpop.f32.mrb[0].mxu0
  %862 = vdwg.mxu0
  %v863 = vadd.f32 %v708, %v710
  %864 = vadd.xlane.f32.xlu0 %v863
  %v865 = vpop.xlane.xlu0 %864
  %v866 = vadd.f32 %v865, 0.0
  %v867 = vadd.f32 %v857, %v859
  %868 = vadd.xlane.f32.xlu0 %v867
  %v869 = vpop.xlane.xlu0 %868
  %v870 = vadd.f32 %v866, %v869
  %v871 = vmul.f32 %v870, 0.001953125
  %v872 = vsub.f32 %v708, %v871
  %v873 = vsub.f32 %v710, %v871
  %v874 = vmul.f32 %v872, %v872
  %v875 = vmul.f32 %v873, %v873
  %v876 = vadd.f32 %v874, %v875
  %877 = vadd.xlane.f32.xlu0 %v876
  %v878 = vpop.xlane.xlu0 %877
  %v879 = vadd.f32 %v878, 0.0
  %v880 = vsub.f32 %v857, %v871
  %v881 = vsub.f32 %v859, %v871
  %v882 = vmul.f32 %v880, %v880
  %v883 = vmul.f32 %v881, %v881
  %v884 = vadd.f32 %v882, %v883
  %885 = vadd.xlane.f32.xlu0 %v884
  %v886 = vpop.xlane.xlu0 %885
  %v887 = vadd.f32 %v879, %v886
  %v888 = vmul.f32 %v887, 0.001953125
  %v889 = vld [vmem:[%s7] sm:$0xff]
  %v890 = vadd.f32 %v888, 1e-05
  %v891 = vrsqrt.pop %v890
  %v892 = vmul.f32 %v889, %v891
  %v893 = vld [vmem:[%s8] sm:$0xff]
  %v894 = vmul.f32 %v871, %v892
  %v895 = vsub.f32 %v893, %v894
  %897 = vset.pattern.permute.xlu0 0
  %898 = vperm.xlu0 %897, %v892
  %v899 = vpop.permute.xlu0 %898
  %v901 = vmul.f32 %v708, %v899
  %v902 = vmul.f32 %v710, %v899
  %904 = vset.pattern.permute.xlu0 0
  %905 = vperm.xlu0 %904, %v895
  %v906 = vpop.permute.xlu0 %905
  %v908 = vadd.f32 %v901, %v906
  %v909 = vadd.f32 %v902, %v906
  %v910 = vmax.f32 %v908, 0.0
  %v911 = vmax.f32 %v909, 0.0
  %v912 = vmul.f32 %v857, %v899
  %v913 = vmul.f32 %v859, %v899
  %v914 = vadd.f32 %v912, %v906
  %v915 = vadd.f32 %v913, %v906
  %v916 = vmax.f32 %v914, 0.0
  %v917 = vmax.f32 %v915, 0.0
  %v918 = vld [vmem:[%s9] sm:$0xff]
  %v919 = vld [vmem:[%s9 + $0x8] sm:$0xff]
  %v920 = vld [vmem:[%s9 + $0x10] sm:$0xff]
  %v921 = vld [vmem:[%s9 + $0x18] sm:$0xff]
  %v922 = vld [vmem:[%s9 + $0x20] sm:$0xff]
  %v923 = vld [vmem:[%s9 + $0x28] sm:$0xff]
  %v924 = vld [vmem:[%s9 + $0x30] sm:$0xff]
  %v925 = vld [vmem:[%s9 + $0x38] sm:$0xff]
  %v926 = vpack.c.bf16 %v920, %v918
  %v927 = vpack.c.bf16 %v921, %v919
  %v928 = vpack.c.bf16 %v924, %v922
  %v929 = vpack.c.bf16 %v925, %v923
  %v930 = vld [vmem:[%s11] sm:$0xff]
  %v931 = vld [vmem:[%s11 + $0x8] sm:$0xff]
  %v932 = vld [vmem:[%s11 + $0x10] sm:$0xff]
  %v933 = vld [vmem:[%s11 + $0x18] sm:$0xff]
  %v934 = vld [vmem:[%s11 + $0x20] sm:$0xff]
  %v935 = vld [vmem:[%s11 + $0x28] sm:$0xff]
  %v936 = vld [vmem:[%s11 + $0x30] sm:$0xff]
  %v937 = vld [vmem:[%s11 + $0x38] sm:$0xff]
  %v938 = vpack.c.bf16 %v932, %v930
  %v939 = vpack.c.bf16 %v933, %v931
  %v940 = vpack.c.bf16 %v936, %v934
  %v941 = vpack.c.bf16 %v937, %v935
  %v942 = vld [vmem:[%s10] sm:$0xff]
  %v943 = vld [vmem:[%s10 + $0x8] sm:$0xff]
  %v944 = vld [vmem:[%s10 + $0x10] sm:$0xff]
  %v945 = vld [vmem:[%s10 + $0x18] sm:$0xff]
  %v946 = vld [vmem:[%s12] sm:$0xff]
  %v947 = vld [vmem:[%s12 + $0x8] sm:$0xff]
  %v948 = vld [vmem:[%s12 + $0x10] sm:$0xff]
  %v949 = vld [vmem:[%s12 + $0x18] sm:$0xff]
  %v950 = vld [vmem:[%s2] sm:$0xff]
  %v951 = vld [vmem:[%s2 + $0x8] sm:$0xff]
  %v952 = vld [vmem:[%s2 + $0x10] sm:$0xff]
  %v953 = vld [vmem:[%s2 + $0x18] sm:$0xff]
  %v954 = vld [vmem:[%s2 + $0x20] sm:$0xff]
  %v955 = vld [vmem:[%s2 + $0x28] sm:$0xff]
  %v956 = vld [vmem:[%s2 + $0x30] sm:$0xff]
  %v957 = vld [vmem:[%s2 + $0x38] sm:$0xff]
  %v958 = vld [vmem:[%s2 + $0x40] sm:$0xff]
  %v959 = vld [vmem:[%s2 + $0x48] sm:$0xff]
  %v960 = vld [vmem:[%s2 + $0x50] sm:$0xff]
  %v961 = vld [vmem:[%s2 + $0x58] sm:$0xff]
  %v962 = vld [vmem:[%s2 + $0x60] sm:$0xff]
  %v963 = vld [vmem:[%s2 + $0x68] sm:$0xff]
  %v964 = vld [vmem:[%s2 + $0x70] sm:$0xff]
  %v965 = vld [vmem:[%s2 + $0x78] sm:$0xff]
  %v966 = vld [vmem:[%s2 + $0x80] sm:$0xff]
  %v967 = vld [vmem:[%s2 + $0x88] sm:$0xff]
  %v968 = vld [vmem:[%s2 + $0x90] sm:$0xff]
  %v969 = vld [vmem:[%s2 + $0x98] sm:$0xff]
  %v970 = vld [vmem:[%s2 + $0xa0] sm:$0xff]
  %v971 = vld [vmem:[%s2 + $0xa8] sm:$0xff]
  %v972 = vld [vmem:[%s2 + $0xb0] sm:$0xff]
  %v973 = vld [vmem:[%s2 + $0xb8] sm:$0xff]
  %v974 = vld [vmem:[%s2 + $0xc0] sm:$0xff]
  %v975 = vld [vmem:[%s2 + $0xc8] sm:$0xff]
  %v976 = vld [vmem:[%s2 + $0xd0] sm:$0xff]
  %v977 = vld [vmem:[%s2 + $0xd8] sm:$0xff]
  %v978 = vld [vmem:[%s2 + $0xe0] sm:$0xff]
  %v979 = vld [vmem:[%s2 + $0xe8] sm:$0xff]
  %v980 = vld [vmem:[%s2 + $0xf0] sm:$0xff]
  %v981 = vld [vmem:[%s2 + $0xf8] sm:$0xff]
  %983 = vrot.lane.b32.xlu0 %v911, 17
  %v984 = vpop.permute.xlu0 %983
  %987 = vrot.lane.b32.xlu0 %v910, 17
  %v988 = vpop.permute.xlu0 %987
  %v989 = vsel %vm63, %v988, %v984
  %v992 = vsel %vm63, %v984, %v988
  %v993 = vmul.f32 %v992, %v71
  %v994 = vmul.f32 %v989, %v75
  %995 = vrot.lane.b32.xlu0 %v911, 16
  %v996 = vpop.permute.xlu0 %995
  %998 = vrot.lane.b32.xlu0 %v910, 16
  %v999 = vpop.permute.xlu0 %998
  %v1000 = vsel %vm83, %v999, %v996
  %v1003 = vsel %vm83, %v996, %v999
  %v1004 = vmul.f32 %v1003, %v91
  %v1005 = vmul.f32 %v1000, %v95
  %1006 = vrot.lane.b32.xlu0 %v911, 15
  %v1007 = vpop.permute.xlu0 %1006
  %1009 = vrot.lane.b32.xlu0 %v910, 15
  %v1010 = vpop.permute.xlu0 %1009
  %v1011 = vsel %vm103, %v1010, %v1007
  %v1014 = vsel %vm103, %v1007, %v1010
  %v1015 = vmul.f32 %v1014, %v111
  %v1016 = vmul.f32 %v1011, %v115
  %1017 = vrot.lane.b32.xlu0 %v911, 1
  %v1018 = vpop.permute.xlu0 %1017
  %1020 = vrot.lane.b32.xlu0 %v910, 1
  %v1021 = vpop.permute.xlu0 %1020
  %v1022 = vsel %vm123, %v1021, %v1018
  %v1025 = vsel %vm123, %v1018, %v1021
  %v1026 = vmul.f32 %v1025, %v131
  %v1027 = vmul.f32 %v1022, %v135
  %v1028 = vmul.f32 %v910, %v141
  %v1029 = vmul.f32 %v911, %v145
  %1030 = vrot.lane.b32.xlu0 %v910, 127
  %v1031 = vpop.permute.xlu0 %1030
  %1032 = vrot.lane.b32.xlu0 %v911, 127
  %v1033 = vpop.permute.xlu0 %1032
  %v1034 = vsel %vm155, %v1031, %v1033
  %v1038 = vsel %vm155, %v1033, %v1031
  %v1039 = vmul.f32 %v1034, %v164
  %v1040 = vmul.f32 %v1038, %v168
  %1041 = vrot.lane.b32.xlu0 %v910, 113
  %v1042 = vpop.permute.xlu0 %1041
  %1043 = vrot.lane.b32.xlu0 %v911, 113
  %v1044 = vpop.permute.xlu0 %1043
  %v1045 = vsel %vm175, %v1042, %v1044
  %v1049 = vsel %vm175, %v1044, %v1042
  %v1050 = vmul.f32 %v1045, %v184
  %v1051 = vmul.f32 %v1049, %v188
  %1052 = vrot.lane.b32.xlu0 %v910, 112
  %v1053 = vpop.permute.xlu0 %1052
  %1054 = vrot.lane.b32.xlu0 %v911, 112
  %v1055 = vpop.permute.xlu0 %1054
  %v1056 = vsel %vm195, %v1053, %v1055
  %v1060 = vsel %vm195, %v1055, %v1053
  %v1061 = vmul.f32 %v1056, %v204
  %v1062 = vmul.f32 %v1060, %v208
  %1063 = vrot.lane.b32.xlu0 %v910, 111
  %v1064 = vpop.permute.xlu0 %1063
  %1065 = vrot.lane.b32.xlu0 %v911, 111
  %v1066 = vpop.permute.xlu0 %1065
  %v1067 = vsel %vm215, %v1064, %v1066
  %v1071 = vsel %vm215, %v1066, %v1064
  %v1072 = vmul.f32 %v1067, %v224
  %v1073 = vmul.f32 %v1071, %v228
  %v1074 = vmul.f32 %v71, 0.0
  %v1075 = vmul.f32 %v75, 0.0
  %v1076 = vmul.f32 %v91, 0.0
  %v1077 = vmul.f32 %v95, 0.0
  %v1078 = vmul.f32 %v111, 0.0
  %v1079 = vmul.f32 %v115, 0.0
  %v1080 = vmul.f32 %v131, 0.0
  %v1081 = vmul.f32 %v135, 0.0
  %v1082 = vmul.f32 %v141, 0.0
  %v1083 = vmul.f32 %v145, 0.0
  %v1084 = vmul.f32 %v164, 0.0
  %v1085 = vmul.f32 %v168, 0.0
  %v1086 = vmul.f32 %v184, 0.0
  %v1087 = vmul.f32 %v188, 0.0
  %v1088 = vmul.f32 %v204, 0.0
  %v1089 = vmul.f32 %v208, 0.0
  %v1090 = vmul.f32 %v224, 0.0
  %v1091 = vmul.f32 %v228, 0.0
  %v1092 = vpack.c.bf16 %v1004, %v993
  %v1093 = vpack.c.bf16 %v1005, %v994
  %v1094 = vpack.c.bf16 %v1026, %v1015
  %v1095 = vpack.c.bf16 %v1027, %v1016
  %v1096 = vpack.c.bf16 %v1039, %v1028
  %v1097 = vpack.c.bf16 %v1040, %v1029
  %v1098 = vpack.c.bf16 %v1061, %v1050
  %v1099 = vpack.c.bf16 %v1062, %v1051
  %v1100 = vpack.c.bf16 %v1074, %v1072
  %v1101 = vpack.c.bf16 %v1075, %v1073
  %v1102 = vpack.c.bf16 %v1078, %v1076
  %v1103 = vpack.c.bf16 %v1079, %v1077
  %v1104 = vpack.c.bf16 %v1082, %v1080
  %v1105 = vpack.c.bf16 %v1083, %v1081
  %v1106 = vpack.c.bf16 %v1086, %v1084
  %v1107 = vpack.c.bf16 %v1087, %v1085
  %v1108 = vpack.c.bf16 %v1090, %v1088
  %v1109 = vpack.c.bf16 %v1091, %v1089
  %1111 = vset.pattern.permute.xlu0 0
  %1112 = vperm.xlu0 %1111, %v942
  %v1113 = vpop.permute.xlu0 %1112
  %1116 = vset.pattern.permute.xlu0 0
  %1117 = vperm.xlu0 %1116, %v943
  %v1118 = vpop.permute.xlu0 %1117
  %1121 = vset.pattern.permute.xlu0 0
  %1122 = vperm.xlu0 %1121, %v944
  %v1123 = vpop.permute.xlu0 %1122
  %1126 = vset.pattern.permute.xlu0 0
  %1127 = vperm.xlu0 %1126, %v945
  %v1128 = vpop.permute.xlu0 %1127
  %v1131 = vsel %vm83, %v927, 0
  %v1134 = vsel %vm83, %v929, 0
  %1136 = vmatprep.subr.bf16.mxu0 %v1093
  %1137 = vmatpush1.bf16.msra.mxu0 %v1092
  %1138 = vmatprep.subr.bf16.mxu0 %v1095
  %1139 = vmatpush1.bf16.msra.mxu0 %v1094
  %1140 = vmatprep.subr.bf16.mxu0 %v1097
  %1141 = vmatpush1.bf16.msra.mxu0 %v1096
  %1142 = vmatprep.subr.bf16.mxu0 %v1099
  %1143 = vmatpush1.bf16.msra.mxu0 %v1098
  %1144 = vmatprep.subr.bf16.mxu0 %v1101
  %1145 = vmatpush1.bf16.msra.mxu0 %v1100
  %1146 = vmatprep.subr.bf16.mxu0 %v1103
  %1147 = vmatpush1.bf16.msra.mxu0 %v1102
  %1148 = vmatprep.subr.bf16.mxu0 %v1105
  %1149 = vmatpush1.bf16.msra.mxu0 %v1104
  %1150 = vmatprep.subr.bf16.mxu0 %v1107
  %1151 = vmatpush1.bf16.msra.mxu0 %v1106
  %1152 = vmatprep.subr.bf16.mxu0 %v1109
  %1153 = vmatpush1.bf16.msra.mxu0 %v1108
  %1154 = vmatprep.subr.bf16.mxu0 0
  %1155 = vmatpush1.bf16.msra.mxu0 0
  %1156 = vmatprep.subr.bf16.mxu0 0
  %1157 = vmatpush1.bf16.msra.mxu0 0
  %1158 = vmatprep.subr.bf16.mxu0 0
  %1159 = vmatpush1.bf16.msra.mxu0 0
  %1160 = vmatprep.subr.bf16.mxu0 0
  %1161 = vmatpush1.bf16.msra.mxu0 0
  %1162 = vmatprep.subr.bf16.mxu0 0
  %1163 = vmatpush1.bf16.msra.mxu0 0
  %1164 = vmatprep.subr.bf16.mxu0 0
  %1165 = vmatpush1.bf16.msra.mxu0 0
  %1166 = vmatprep.subr.bf16.mxu0 0
  %1167 = vmatpush1.bf16.msra.mxu0 0
  %1168 = vmatprep.mubr.bf16.mxu0 %v1131
  %1169 = vmatmul.mubr.bf16.gmra.mrb[0].mxu0 %v926
  %v1170 = vpop.f32.mrb[0].mxu0
  %v1171 = vadd.f32 %v1113, %v1170
  %v1172 = vpop.f32.mrb[0].mxu0
  %v1173 = vadd.f32 %v1113, %v1172
  %v1174 = vpop.f32.mrb[0].mxu0
  %v1175 = vadd.f32 %v1118, %v1174
  %v1176 = vpop.f32.mrb[0].mxu0
  %v1177 = vadd.f32 %v1118, %v1176
  %1178 = vmatprep.mubr.bf16.mxu0 %v1134
  %1179 = vmatmul.mubr.bf16.gmra.mrb[0].mxu0 %v928
  %v1180 = vpop.f32.mrb[0].mxu0
  %v1181 = vadd.f32 %v1123, %v1180
  %v1182 = vpop.f32.mrb[0].mxu0
  %v1183 = vadd.f32 %v1123, %v1182
  %v1184 = vpop.f32.mrb[0].mxu0
  %v1185 = vadd.f32 %v1128, %v1184
  %v1186 = vpop.f32.mrb[0].mxu0
  %v1187 = vadd.f32 %v1128, %v1186
  %1188 = vdwg.mxu0
  %v1189 = vxor.u32 %v1171, 2147483648
  %v1190 = vxor.u32 %v1173, 2147483648
  %v1191 = vmul.f32 %v1189, 1.442695
  %v1192 = vpow.pop %v1191
  %v1193 = vmul.f32 %v1190, 1.442695
  %v1194 = vpow.pop %v1193
  %v1195 = vadd.f32 %v1192, 1.0
  %v1196 = vadd.f32 %v1194, 1.0
  %v1197 = vrcp.pop %v1195
  %v1198 = vmul.f32 1.0, %v1197
  %v1199 = vrcp.pop %v1196
  %v1200 = vmul.f32 1.0, %v1199
  %v1201 = vxor.u32 %v1175, 2147483648
  %v1202 = vxor.u32 %v1177, 2147483648
  %v1203 = vmul.f32 %v1201, 1.442695
  %v1204 = vpow.pop %v1203
  %v1205 = vmul.f32 %v1202, 1.442695
  %v1206 = vpow.pop %v1205
  %v1207 = vadd.f32 %v1204, 1.0
  %v1208 = vadd.f32 %v1206, 1.0
  %v1209 = vrcp.pop %v1207
  %v1210 = vmul.f32 1.0, %v1209
  %v1211 = vrcp.pop %v1208
  %v1212 = vmul.f32 1.0, %v1211
  %v1213 = vxor.u32 %v1181, 2147483648
  %v1214 = vxor.u32 %v1183, 2147483648
  %v1215 = vmul.f32 %v1213, 1.442695
  %v1216 = vpow.pop %v1215
  %v1217 = vmul.f32 %v1214, 1.442695
  %v1218 = vpow.pop %v1217
  %v1219 = vadd.f32 %v1216, 1.0
  %v1220 = vadd.f32 %v1218, 1.0
  %v1221 = vrcp.pop %v1219
  %v1222 = vmul.f32 1.0, %v1221
  %v1223 = vrcp.pop %v1220
  %v1224 = vmul.f32 1.0, %v1223
  %v1225 = vtanh.pop %v1185
  %v1226 = vtanh.pop %v1187
  %v1227 = vmul.f32 %v1210, 0.0
  %v1228 = vmul.f32 %v1212, 0.0
  %v1229 = vmul.f32 %v1198, %v1225
  %v1230 = vmul.f32 %v1200, %v1226
  %v1231 = vadd.f32 %v1227, %v1229
  %v1232 = vadd.f32 %v1228, %v1230
  %v1233 = vtanh.pop %v1231
  %v1234 = vtanh.pop %v1232
  %v1235 = vmul.f32 %v1222, %v1233
  %v1236 = vmul.f32 %v1224, %v1234
  %1238 = vrot.lane.b32.xlu0 %v1236, 17
  %v1239 = vpop.permute.xlu0 %1238
  %1242 = vrot.lane.b32.xlu0 %v1235, 17
  %v1243 = vpop.permute.xlu0 %1242
  %v1244 = vsel %vm63, %v1243, %v1239
  %v1247 = vsel %vm63, %v1239, %v1243
  %v1248 = vmul.f32 %v1247, %v71
  %v1249 = vmul.f32 %v1244, %v75
  %1250 = vrot.lane.b32.xlu0 %v1236, 16
  %v1251 = vpop.permute.xlu0 %1250
  %1253 = vrot.lane.b32.xlu0 %v1235, 16
  %v1254 = vpop.permute.xlu0 %1253
  %v1255 = vsel %vm83, %v1254, %v1251
  %v1258 = vsel %vm83, %v1251, %v1254
  %v1259 = vmul.f32 %v1258, %v91
  %v1260 = vmul.f32 %v1255, %v95
  %1261 = vrot.lane.b32.xlu0 %v1236, 15
  %v1262 = vpop.permute.xlu0 %1261
  %1264 = vrot.lane.b32.xlu0 %v1235, 15
  %v1265 = vpop.permute.xlu0 %1264
  %v1266 = vsel %vm103, %v1265, %v1262
  %v1269 = vsel %vm103, %v1262, %v1265
  %v1270 = vmul.f32 %v1269, %v111
  %v1271 = vmul.f32 %v1266, %v115
  %1272 = vrot.lane.b32.xlu0 %v1236, 1
  %v1273 = vpop.permute.xlu0 %1272
  %1275 = vrot.lane.b32.xlu0 %v1235, 1
  %v1276 = vpop.permute.xlu0 %1275
  %v1277 = vsel %vm123, %v1276, %v1273
  %v1280 = vsel %vm123, %v1273, %v1276
  %v1281 = vmul.f32 %v1280, %v131
  %v1282 = vmul.f32 %v1277, %v135
  %v1283 = vmul.f32 %v1235, %v141
  %v1284 = vmul.f32 %v1236, %v145
  %1285 = vrot.lane.b32.xlu0 %v1235, 127
  %v1286 = vpop.permute.xlu0 %1285
  %1287 = vrot.lane.b32.xlu0 %v1236, 127
  %v1288 = vpop.permute.xlu0 %1287
  %v1289 = vsel %vm155, %v1286, %v1288
  %v1293 = vsel %vm155, %v1288, %v1286
  %v1294 = vmul.f32 %v1289, %v164
  %v1295 = vmul.f32 %v1293, %v168
  %1296 = vrot.lane.b32.xlu0 %v1235, 113
  %v1297 = vpop.permute.xlu0 %1296
  %1298 = vrot.lane.b32.xlu0 %v1236, 113
  %v1299 = vpop.permute.xlu0 %1298
  %v1300 = vsel %vm175, %v1297, %v1299
  %v1304 = vsel %vm175, %v1299, %v1297
  %v1305 = vmul.f32 %v1300, %v184
  %v1306 = vmul.f32 %v1304, %v188
  %1307 = vrot.lane.b32.xlu0 %v1235, 112
  %v1308 = vpop.permute.xlu0 %1307
  %1309 = vrot.lane.b32.xlu0 %v1236, 112
  %v1310 = vpop.permute.xlu0 %1309
  %v1311 = vsel %vm195, %v1308, %v1310
  %v1315 = vsel %vm195, %v1310, %v1308
  %v1316 = vmul.f32 %v1311, %v204
  %v1317 = vmul.f32 %v1315, %v208
  %1318 = vrot.lane.b32.xlu0 %v1235, 111
  %v1319 = vpop.permute.xlu0 %1318
  %1320 = vrot.lane.b32.xlu0 %v1236, 111
  %v1321 = vpop.permute.xlu0 %1320
  %v1322 = vsel %vm215, %v1319, %v1321
  %v1326 = vsel %vm215, %v1321, %v1319
  %v1327 = vmul.f32 %v1322, %v224
  %v1328 = vmul.f32 %v1326, %v228
  %v1329 = vpack.c.bf16 %v1259, %v1248
  %v1330 = vpack.c.bf16 %v1260, %v1249
  %v1331 = vpack.c.bf16 %v1281, %v1270
  %v1332 = vpack.c.bf16 %v1282, %v1271
  %v1333 = vpack.c.bf16 %v1294, %v1283
  %v1334 = vpack.c.bf16 %v1295, %v1284
  %v1335 = vpack.c.bf16 %v1316, %v1305
  %v1336 = vpack.c.bf16 %v1317, %v1306
  %v1337 = vpack.c.bf16 %v1074, %v1327
  %v1338 = vpack.c.bf16 %v1075, %v1328
  %1340 = vset.pattern.permute.xlu0 0
  %1341 = vperm.xlu0 %1340, %v946
  %v1342 = vpop.permute.xlu0 %1341
  %1345 = vset.pattern.permute.xlu0 0
  %1346 = vperm.xlu0 %1345, %v947
  %v1347 = vpop.permute.xlu0 %1346
  %1350 = vset.pattern.permute.xlu0 0
  %1351 = vperm.xlu0 %1350, %v948
  %v1352 = vpop.permute.xlu0 %1351
  %1355 = vset.pattern.permute.xlu0 0
  %1356 = vperm.xlu0 %1355, %v949
  %v1357 = vpop.permute.xlu0 %1356
  %v1360 = vsel %vm83, %v939, 0
  %v1363 = vsel %vm83, %v941, 0
  %1365 = vmatprep.subr.bf16.mxu0 %v1330
  %1366 = vmatpush1.bf16.msra.mxu0 %v1329
  %1367 = vmatprep.subr.bf16.mxu0 %v1332
  %1368 = vmatpush1.bf16.msra.mxu0 %v1331
  %1369 = vmatprep.subr.bf16.mxu0 %v1334
  %1370 = vmatpush1.bf16.msra.mxu0 %v1333
  %1371 = vmatprep.subr.bf16.mxu0 %v1336
  %1372 = vmatpush1.bf16.msra.mxu0 %v1335
  %1373 = vmatprep.subr.bf16.mxu0 %v1338
  %1374 = vmatpush1.bf16.msra.mxu0 %v1337
  %1375 = vmatprep.subr.bf16.mxu0 %v1103
  %1376 = vmatpush1.bf16.msra.mxu0 %v1102
  %1377 = vmatprep.subr.bf16.mxu0 %v1105
  %1378 = vmatpush1.bf16.msra.mxu0 %v1104
  %1379 = vmatprep.subr.bf16.mxu0 %v1107
  %1380 = vmatpush1.bf16.msra.mxu0 %v1106
  %1381 = vmatprep.subr.bf16.mxu0 %v1109
  %1382 = vmatpush1.bf16.msra.mxu0 %v1108
  %1383 = vmatprep.subr.bf16.mxu0 0
  %1384 = vmatpush1.bf16.msra.mxu0 0
  %1385 = vmatprep.subr.bf16.mxu0 0
  %1386 = vmatpush1.bf16.msra.mxu0 0
  %1387 = vmatprep.subr.bf16.mxu0 0
  %1388 = vmatpush1.bf16.msra.mxu0 0
  %1389 = vmatprep.subr.bf16.mxu0 0
  %1390 = vmatpush1.bf16.msra.mxu0 0
  %1391 = vmatprep.subr.bf16.mxu0 0
  %1392 = vmatpush1.bf16.msra.mxu0 0
  %1393 = vmatprep.subr.bf16.mxu0 0
  %1394 = vmatpush1.bf16.msra.mxu0 0
  %1395 = vmatprep.subr.bf16.mxu0 0
  %1396 = vmatpush1.bf16.msra.mxu0 0
  %1397 = vmatprep.mubr.bf16.mxu0 %v1360
  %1398 = vmatmul.mubr.bf16.gmra.mrb[0].mxu0 %v938
  %v1399 = vpop.f32.mrb[0].mxu0
  %v1400 = vadd.f32 %v1342, %v1399
  %v1401 = vpop.f32.mrb[0].mxu0
  %v1402 = vadd.f32 %v1342, %v1401
  %v1403 = vpop.f32.mrb[0].mxu0
  %v1404 = vadd.f32 %v1347, %v1403
  %v1405 = vpop.f32.mrb[0].mxu0
  %v1406 = vadd.f32 %v1347, %v1405
  %1407 = vmatprep.mubr.bf16.mxu0 %v1363
  %1408 = vmatmul.mubr.bf16.gmra.mrb[0].mxu0 %v940
  %v1409 = vpop.f32.mrb[0].mxu0
  %v1410 = vadd.f32 %v1352, %v1409
  %v1411 = vpop.f32.mrb[0].mxu0
  %v1412 = vadd.f32 %v1352, %v1411
  %v1413 = vpop.f32.mrb[0].mxu0
  %v1414 = vadd.f32 %v1357, %v1413
  %v1415 = vpop.f32.mrb[0].mxu0
  %v1416 = vadd.f32 %v1357, %v1415
  %1417 = vdwg.mxu0
  %v1418 = vxor.u32 %v1400, 2147483648
  %v1419 = vxor.u32 %v1402, 2147483648
  %v1420 = vmul.f32 %v1418, 1.442695
  %v1421 = vpow.pop %v1420
  %v1422 = vmul.f32 %v1419, 1.442695
  %v1423 = vpow.pop %v1422
  %v1424 = vadd.f32 %v1421, 1.0
  %v1425 = vadd.f32 %v1423, 1.0
  %v1426 = vrcp.pop %v1424
  %v1427 = vmul.f32 1.0, %v1426
  %v1428 = vrcp.pop %v1425
  %v1429 = vmul.f32 1.0, %v1428
  %v1430 = vxor.u32 %v1404, 2147483648
  %v1431 = vxor.u32 %v1406, 2147483648
  %v1432 = vmul.f32 %v1430, 1.442695
  %v1433 = vpow.pop %v1432
  %v1434 = vmul.f32 %v1431, 1.442695
  %v1435 = vpow.pop %v1434
  %v1436 = vadd.f32 %v1433, 1.0
  %v1437 = vadd.f32 %v1435, 1.0
  %v1438 = vrcp.pop %v1436
  %v1439 = vmul.f32 1.0, %v1438
  %v1440 = vrcp.pop %v1437
  %v1441 = vmul.f32 1.0, %v1440
  %v1442 = vxor.u32 %v1410, 2147483648
  %v1443 = vxor.u32 %v1412, 2147483648
  %v1444 = vmul.f32 %v1442, 1.442695
  %v1445 = vpow.pop %v1444
  %v1446 = vmul.f32 %v1443, 1.442695
  %v1447 = vpow.pop %v1446
  %v1448 = vadd.f32 %v1445, 1.0
  %v1449 = vadd.f32 %v1447, 1.0
  %v1450 = vrcp.pop %v1448
  %v1451 = vmul.f32 1.0, %v1450
  %v1452 = vrcp.pop %v1449
  %v1453 = vmul.f32 1.0, %v1452
  %v1454 = vtanh.pop %v1414
  %v1455 = vtanh.pop %v1416
  %v1456 = vmul.f32 %v1439, 0.0
  %v1457 = vmul.f32 %v1441, 0.0
  %v1458 = vmul.f32 %v1427, %v1454
  %v1459 = vmul.f32 %v1429, %v1455
  %v1460 = vadd.f32 %v1456, %v1458
  %v1461 = vadd.f32 %v1457, %v1459
  %v1462 = vtanh.pop %v1460
  %v1463 = vtanh.pop %v1461
  %v1464 = vmul.f32 %v1451, %v1462
  %v1465 = vmul.f32 %v1453, %v1463
  %1466 = vst [vmem:[%s13] sm:$0xff] %v1464
  %1467 = vst [vmem:[%s13 + $0x8] sm:$0xff] %v1465
  %1470 = vrot.lane.b32.xlu0 %v1464, 127
  %v1471 = vpop.permute.xlu0 %1470
  %1472 = vrot.lane.b32.xlu0 %v1465, 127
  %v1473 = vpop.permute.xlu0 %1472
  %v1474 = vsel %vm155, %v1471, %v1473
  %v1478 = vsel %vm155, %v1473, %v1471
  %v1479 = vmax.f32 %v1464, %v1474
  %v1480 = vmax.f32 %v1465, %v1478
  %1483 = vrot.lane.b32.xlu0 %v1479, 112
  %v1484 = vpop.permute.xlu0 %1483
  %1485 = vrot.lane.b32.xlu0 %v1480, 112
  %v1486 = vpop.permute.xlu0 %1485
  %v1487 = vsel %vm195, %v1484, %v1486
  %v1491 = vsel %vm195, %v1486, %v1484
  %v1492 = vmax.f32 %v1479, %v1487
  %v1493 = vmax.f32 %v1480, %v1491
  %1494 = vmatprep.subr.mxu0 0.0
  %1495 = vmatpush1.msra.mxu0 %v950
  %1496 = vmatprep.subr.mxu0 0.0
  %1497 = vmatpush1.msra.mxu0 %v951
  %1498 = vmatprep.subr.mxu0 0.0
  %1499 = vmatpush1.msra.mxu0 %v952
  %1500 = vmatprep.subr.mxu0 0.0
  %1501 = vmatpush1.msra.mxu0 %v953
  %1502 = vmatprep.subr.mxu0 0.0
  %1503 = vmatpush1.msra.mxu0 %v954
  %1504 = vmatprep.subr.mxu0 0.0
  %1505 = vmatpush1.msra.mxu0 %v955
  %1506 = vmatprep.subr.mxu0 0.0
  %1507 = vmatpush1.msra.mxu0 %v956
  %1508 = vmatprep.subr.mxu0 0.0
  %1509 = vmatpush1.msra.mxu0 %v957
  %1510 = vmatprep.subr.mxu0 0.0
  %1511 = vmatpush1.msra.mxu0 %v958
  %1512 = vmatprep.subr.mxu0 0.0
  %1513 = vmatpush1.msra.mxu0 %v959
  %1514 = vmatprep.subr.mxu0 0.0
  %1515 = vmatpush1.msra.mxu0 %v960
  %1516 = vmatprep.subr.mxu0 0.0
  %1517 = vmatpush1.msra.mxu0 %v961
  %1518 = vmatprep.subr.mxu0 0.0
  %1519 = vmatpush1.msra.mxu0 %v962
  %1520 = vmatprep.subr.mxu0 0.0
  %1521 = vmatpush1.msra.mxu0 %v963
  %1522 = vmatprep.subr.mxu0 0.0
  %1523 = vmatpush1.msra.mxu0 %v964
  %1524 = vmatprep.subr.mxu0 0.0
  %1525 = vmatpush1.msra.mxu0 %v965
  %1526 = vmatprep.subr.mxu0 0.0
  %1527 = vmatpush1.msra.mxu0 %v966
  %1528 = vmatprep.subr.mxu0 0.0
  %1529 = vmatpush1.msra.mxu0 %v967
  %1530 = vmatprep.subr.mxu0 0.0
  %1531 = vmatpush1.msra.mxu0 %v968
  %1532 = vmatprep.subr.mxu0 0.0
  %1533 = vmatpush1.msra.mxu0 %v969
  %1534 = vmatprep.subr.mxu0 0.0
  %1535 = vmatpush1.msra.mxu0 %v970
  %1536 = vmatprep.subr.mxu0 0.0
  %1537 = vmatpush1.msra.mxu0 %v971
  %1538 = vmatprep.subr.mxu0 0.0
  %1539 = vmatpush1.msra.mxu0 %v972
  %1540 = vmatprep.subr.mxu0 0.0
  %1541 = vmatpush1.msra.mxu0 %v973
  %1542 = vmatprep.subr.mxu0 0.0
  %1543 = vmatpush1.msra.mxu0 %v974
  %1544 = vmatprep.subr.mxu0 0.0
  %1545 = vmatpush1.msra.mxu0 %v975
  %1546 = vmatprep.subr.mxu0 0.0
  %1547 = vmatpush1.msra.mxu0 %v976
  %1548 = vmatprep.subr.mxu0 0.0
  %1549 = vmatpush1.msra.mxu0 %v977
  %1550 = vmatprep.subr.mxu0 0.0
  %1551 = vmatpush1.msra.mxu0 %v978
  %1552 = vmatprep.subr.mxu0 0.0
  %1553 = vmatpush1.msra.mxu0 %v979
  %1554 = vmatprep.subr.mxu0 0.0
  %1555 = vmatpush1.msra.mxu0 %v980
  %1556 = vmatprep.subr.mxu0 0.0
  %1557 = vmatpush1.msra.mxu0 %v981
  %1558 = vmatprep.mubr.f32.mxu0 %v1493
  %1559 = vmatmul.mubr.f32.gmra.mrb[0].mxu0 %v1492
  %v1560 = vpop.f32.mrb[0].mxu0
  %v1561 = vadd.f32 0.0, %v1560
  %v1562 = vpop.f32.mrb[0].mxu0
  %1563 = vdwg.mxu0
  %vm1564 = vcmask 523264
  %1565 = vst.msk [vmem:[%s14] sm:$0xff] %vm1564, %v1561
  %1567 = vrot.lane.b32.xlu0 %v917, 17
  %v1568 = vpop.permute.xlu0 %1567
  %1571 = vrot.lane.b32.xlu0 %v916, 17
  %v1572 = vpop.permute.xlu0 %1571
  %v1573 = vsel %vm63, %v1572, %v1568
  %v1576 = vsel %vm63, %v1568, %v1572
  %v1577 = vmul.f32 %v1576, %v71
  %v1578 = vmul.f32 %v1573, %v75
  %1579 = vrot.lane.b32.xlu0 %v917, 16
  %v1580 = vpop.permute.xlu0 %1579
  %1582 = vrot.lane.b32.xlu0 %v916, 16
  %v1583 = vpop.permute.xlu0 %1582
  %v1584 = vsel %vm83, %v1583, %v1580
  %v1587 = vsel %vm83, %v1580, %v1583
  %v1588 = vmul.f32 %v1587, %v91
  %v1589 = vmul.f32 %v1584, %v95
  %1590 = vrot.lane.b32.xlu0 %v917, 15
  %v1591 = vpop.permute.xlu0 %1590
  %1593 = vrot.lane.b32.xlu0 %v916, 15
  %v1594 = vpop.permute.xlu0 %1593
  %v1595 = vsel %vm103, %v1594, %v1591
  %v1598 = vsel %vm103, %v1591, %v1594
  %v1599 = vmul.f32 %v1598, %v111
  %v1600 = vmul.f32 %v1595, %v115
  %1601 = vrot.lane.b32.xlu0 %v917, 1
  %v1602 = vpop.permute.xlu0 %1601
  %1604 = vrot.lane.b32.xlu0 %v916, 1
  %v1605 = vpop.permute.xlu0 %1604
  %v1606 = vsel %vm123, %v1605, %v1602
  %v1609 = vsel %vm123, %v1602, %v1605
  %v1610 = vmul.f32 %v1609, %v131
  %v1611 = vmul.f32 %v1606, %v135
  %v1612 = vmul.f32 %v916, %v141
  %v1613 = vmul.f32 %v917, %v145
  %1614 = vrot.lane.b32.xlu0 %v916, 127
  %v1615 = vpop.permute.xlu0 %1614
  %1616 = vrot.lane.b32.xlu0 %v917, 127
  %v1617 = vpop.permute.xlu0 %1616
  %v1618 = vsel %vm155, %v1615, %v1617
  %v1622 = vsel %vm155, %v1617, %v1615
  %v1623 = vmul.f32 %v1618, %v164
  %v1624 = vmul.f32 %v1622, %v168
  %1625 = vrot.lane.b32.xlu0 %v916, 113
  %v1626 = vpop.permute.xlu0 %1625
  %1627 = vrot.lane.b32.xlu0 %v917, 113
  %v1628 = vpop.permute.xlu0 %1627
  %v1629 = vsel %vm175, %v1626, %v1628
  %v1633 = vsel %vm175, %v1628, %v1626
  %v1634 = vmul.f32 %v1629, %v184
  %v1635 = vmul.f32 %v1633, %v188
  %1636 = vrot.lane.b32.xlu0 %v916, 112
  %v1637 = vpop.permute.xlu0 %1636
  %1638 = vrot.lane.b32.xlu0 %v917, 112
  %v1639 = vpop.permute.xlu0 %1638
  %v1640 = vsel %vm195, %v1637, %v1639
  %v1644 = vsel %vm195, %v1639, %v1637
  %v1645 = vmul.f32 %v1640, %v204
  %v1646 = vmul.f32 %v1644, %v208
  %1647 = vrot.lane.b32.xlu0 %v916, 111
  %v1648 = vpop.permute.xlu0 %1647
  %1649 = vrot.lane.b32.xlu0 %v917, 111
  %v1650 = vpop.permute.xlu0 %1649
  %v1651 = vsel %vm215, %v1648, %v1650
  %v1655 = vsel %vm215, %v1650, %v1648
  %v1656 = vmul.f32 %v1651, %v224
  %v1657 = vmul.f32 %v1655, %v228
  %v1658 = vpack.c.bf16 %v1588, %v1577
  %v1659 = vpack.c.bf16 %v1589, %v1578
  %v1660 = vpack.c.bf16 %v1610, %v1599
  %v1661 = vpack.c.bf16 %v1611, %v1600
  %v1662 = vpack.c.bf16 %v1623, %v1612
  %v1663 = vpack.c.bf16 %v1624, %v1613
  %v1664 = vpack.c.bf16 %v1645, %v1634
  %v1665 = vpack.c.bf16 %v1646, %v1635
  %v1666 = vpack.c.bf16 %v1248, %v1656
  %v1667 = vpack.c.bf16 %v1249, %v1657
  %v1668 = vpack.c.bf16 %v1270, %v1259
  %v1669 = vpack.c.bf16 %v1271, %v1260
  %v1670 = vpack.c.bf16 %v1283, %v1281
  %v1671 = vpack.c.bf16 %v1284, %v1282
  %v1672 = vpack.c.bf16 %v1305, %v1294
  %v1673 = vpack.c.bf16 %v1306, %v1295
  %v1674 = vpack.c.bf16 %v1327, %v1316
  %v1675 = vpack.c.bf16 %v1328, %v1317
  %1676 = vmatprep.subr.bf16.mxu0 %v1659
  %1677 = vmatpush1.bf16.msra.mxu0 %v1658
  %1678 = vmatprep.subr.bf16.mxu0 %v1661
  %1679 = vmatpush1.bf16.msra.mxu0 %v1660
  %1680 = vmatprep.subr.bf16.mxu0 %v1663
  %1681 = vmatpush1.bf16.msra.mxu0 %v1662
  %1682 = vmatprep.subr.bf16.mxu0 %v1665
  %1683 = vmatpush1.bf16.msra.mxu0 %v1664
  %1684 = vmatprep.subr.bf16.mxu0 %v1667
  %1685 = vmatpush1.bf16.msra.mxu0 %v1666
  %1686 = vmatprep.subr.bf16.mxu0 %v1669
  %1687 = vmatpush1.bf16.msra.mxu0 %v1668
  %1688 = vmatprep.subr.bf16.mxu0 %v1671
  %1689 = vmatpush1.bf16.msra.mxu0 %v1670
  %1690 = vmatprep.subr.bf16.mxu0 %v1673
  %1691 = vmatpush1.bf16.msra.mxu0 %v1672
  %1692 = vmatprep.subr.bf16.mxu0 %v1675
  %1693 = vmatpush1.bf16.msra.mxu0 %v1674
  %1694 = vmatprep.subr.bf16.mxu0 0
  %1695 = vmatpush1.bf16.msra.mxu0 0
  %1696 = vmatprep.subr.bf16.mxu0 0
  %1697 = vmatpush1.bf16.msra.mxu0 0
  %1698 = vmatprep.subr.bf16.mxu0 0
  %1699 = vmatpush1.bf16.msra.mxu0 0
  %1700 = vmatprep.subr.bf16.mxu0 0
  %1701 = vmatpush1.bf16.msra.mxu0 0
  %1702 = vmatprep.subr.bf16.mxu0 0
  %1703 = vmatpush1.bf16.msra.mxu0 0
  %1704 = vmatprep.subr.bf16.mxu0 0
  %1705 = vmatpush1.bf16.msra.mxu0 0
  %1706 = vmatprep.subr.bf16.mxu0 0
  %1707 = vmatpush1.bf16.msra.mxu0 0
  %1708 = vmatprep.mubr.bf16.mxu0 %v1131
  %1709 = vmatmul.mubr.bf16.gmra.mrb[0].mxu0 %v926
  %v1710 = vpop.f32.mrb[0].mxu0
  %v1711 = vadd.f32 %v1113, %v1710
  %v1712 = vpop.f32.mrb[0].mxu0
  %v1713 = vadd.f32 %v1113, %v1712
  %v1714 = vpop.f32.mrb[0].mxu0
  %v1715 = vadd.f32 %v1118, %v1714
  %v1716 = vpop.f32.mrb[0].mxu0
  %v1717 = vadd.f32 %v1118, %v1716
  %1718 = vmatprep.mubr.bf16.mxu0 %v1134
  %1719 = vmatmul.mubr.bf16.gmra.mrb[0].mxu0 %v928
  %v1720 = vpop.f32.mrb[0].mxu0
  %v1721 = vadd.f32 %v1123, %v1720
  %v1722 = vpop.f32.mrb[0].mxu0
  %v1723 = vadd.f32 %v1123, %v1722
  %v1724 = vpop.f32.mrb[0].mxu0
  %v1725 = vadd.f32 %v1128, %v1724
  %v1726 = vpop.f32.mrb[0].mxu0
  %v1727 = vadd.f32 %v1128, %v1726
  %1728 = vdwg.mxu0
  %v1729 = vxor.u32 %v1711, 2147483648
  %v1730 = vxor.u32 %v1713, 2147483648
  %v1731 = vmul.f32 %v1729, 1.442695
  %v1732 = vpow.pop %v1731
  %v1733 = vmul.f32 %v1730, 1.442695
  %v1734 = vpow.pop %v1733
  %v1735 = vadd.f32 %v1732, 1.0
  %v1736 = vadd.f32 %v1734, 1.0
  %v1737 = vrcp.pop %v1735
  %v1738 = vmul.f32 1.0, %v1737
  %v1739 = vrcp.pop %v1736
  %v1740 = vmul.f32 1.0, %v1739
  %v1741 = vxor.u32 %v1715, 2147483648
  %v1742 = vxor.u32 %v1717, 2147483648
  %v1743 = vmul.f32 %v1741, 1.442695
  %v1744 = vpow.pop %v1743
  %v1745 = vmul.f32 %v1742, 1.442695
  %v1746 = vpow.pop %v1745
  %v1747 = vadd.f32 %v1744, 1.0
  %v1748 = vadd.f32 %v1746, 1.0
  %v1749 = vrcp.pop %v1747
  %v1750 = vmul.f32 1.0, %v1749
  %v1751 = vrcp.pop %v1748
  %v1752 = vmul.f32 1.0, %v1751
  %v1753 = vxor.u32 %v1721, 2147483648
  %v1754 = vxor.u32 %v1723, 2147483648
  %v1755 = vmul.f32 %v1753, 1.442695
  %v1756 = vpow.pop %v1755
  %v1757 = vmul.f32 %v1754, 1.442695
  %v1758 = vpow.pop %v1757
  %v1759 = vadd.f32 %v1756, 1.0
  %v1760 = vadd.f32 %v1758, 1.0
  %v1761 = vrcp.pop %v1759
  %v1762 = vmul.f32 1.0, %v1761
  %v1763 = vrcp.pop %v1760
  %v1764 = vmul.f32 1.0, %v1763
  %v1765 = vtanh.pop %v1725
  %v1766 = vtanh.pop %v1727
  %v1767 = vmul.f32 %v1750, %v1231
  %v1768 = vmul.f32 %v1752, %v1232
  %v1769 = vmul.f32 %v1738, %v1765
  %v1770 = vmul.f32 %v1740, %v1766
  %v1771 = vadd.f32 %v1767, %v1769
  %v1772 = vadd.f32 %v1768, %v1770
  %v1773 = vtanh.pop %v1771
  %v1774 = vtanh.pop %v1772
  %v1775 = vmul.f32 %v1762, %v1773
  %v1776 = vmul.f32 %v1764, %v1774
  %1778 = vrot.lane.b32.xlu0 %v1776, 17
  %v1779 = vpop.permute.xlu0 %1778
  %1782 = vrot.lane.b32.xlu0 %v1775, 17
  %v1783 = vpop.permute.xlu0 %1782
  %v1784 = vsel %vm63, %v1783, %v1779
  %v1787 = vsel %vm63, %v1779, %v1783
  %v1788 = vmul.f32 %v1787, %v71
  %v1789 = vmul.f32 %v1784, %v75
  %1790 = vrot.lane.b32.xlu0 %v1776, 16
  %v1791 = vpop.permute.xlu0 %1790
  %1793 = vrot.lane.b32.xlu0 %v1775, 16
  %v1794 = vpop.permute.xlu0 %1793
  %v1795 = vsel %vm83, %v1794, %v1791
  %v1798 = vsel %vm83, %v1791, %v1794
  %v1799 = vmul.f32 %v1798, %v91
  %v1800 = vmul.f32 %v1795, %v95
  %1801 = vrot.lane.b32.xlu0 %v1776, 15
  %v1802 = vpop.permute.xlu0 %1801
  %1804 = vrot.lane.b32.xlu0 %v1775, 15
  %v1805 = vpop.permute.xlu0 %1804
  %v1806 = vsel %vm103, %v1805, %v1802
  %v1809 = vsel %vm103, %v1802, %v1805
  %v1810 = vmul.f32 %v1809, %v111
  %v1811 = vmul.f32 %v1806, %v115
  %1812 = vrot.lane.b32.xlu0 %v1776, 1
  %v1813 = vpop.permute.xlu0 %1812
  %1815 = vrot.lane.b32.xlu0 %v1775, 1
  %v1816 = vpop.permute.xlu0 %1815
  %v1817 = vsel %vm123, %v1816, %v1813
  %v1820 = vsel %vm123, %v1813, %v1816
  %v1821 = vmul.f32 %v1820, %v131
  %v1822 = vmul.f32 %v1817, %v135
  %v1823 = vmul.f32 %v1775, %v141
  %v1824 = vmul.f32 %v1776, %v145
  %1825 = vrot.lane.b32.xlu0 %v1775, 127
  %v1826 = vpop.permute.xlu0 %1825
  %1827 = vrot.lane.b32.xlu0 %v1776, 127
  %v1828 = vpop.permute.xlu0 %1827
  %v1829 = vsel %vm155, %v1826, %v1828
  %v1833 = vsel %vm155, %v1828, %v1826
  %v1834 = vmul.f32 %v1829, %v164
  %v1835 = vmul.f32 %v1833, %v168
  %1836 = vrot.lane.b32.xlu0 %v1775, 113
  %v1837 = vpop.permute.xlu0 %1836
  %1838 = vrot.lane.b32.xlu0 %v1776, 113
  %v1839 = vpop.permute.xlu0 %1838
  %v1840 = vsel %vm175, %v1837, %v1839
  %v1844 = vsel %vm175, %v1839, %v1837
  %v1845 = vmul.f32 %v1840, %v184
  %v1846 = vmul.f32 %v1844, %v188
  %1847 = vrot.lane.b32.xlu0 %v1775, 112
  %v1848 = vpop.permute.xlu0 %1847
  %1849 = vrot.lane.b32.xlu0 %v1776, 112
  %v1850 = vpop.permute.xlu0 %1849
  %v1851 = vsel %vm195, %v1848, %v1850
  %v1855 = vsel %vm195, %v1850, %v1848
  %v1856 = vmul.f32 %v1851, %v204
  %v1857 = vmul.f32 %v1855, %v208
  %1858 = vrot.lane.b32.xlu0 %v1775, 111
  %v1859 = vpop.permute.xlu0 %1858
  %1860 = vrot.lane.b32.xlu0 %v1776, 111
  %v1861 = vpop.permute.xlu0 %1860
  %v1862 = vsel %vm215, %v1859, %v1861
  %v1866 = vsel %vm215, %v1861, %v1859
  %v1867 = vmul.f32 %v1862, %v224
  %v1868 = vmul.f32 %v1866, %v228
  %1869 = vrot.lane.b32.xlu0 %v1465, 17
  %v1870 = vpop.permute.xlu0 %1869
  %1872 = vrot.lane.b32.xlu0 %v1464, 17
  %v1873 = vpop.permute.xlu0 %1872
  %v1874 = vsel %vm63, %v1873, %v1870
  %v1877 = vsel %vm63, %v1870, %v1873
  %v1878 = vmul.f32 %v1877, %v71
  %v1879 = vmul.f32 %v1874, %v75
  %1880 = vrot.lane.b32.xlu0 %v1465, 16
  %v1881 = vpop.permute.xlu0 %1880
  %1883 = vrot.lane.b32.xlu0 %v1464, 16
  %v1884 = vpop.permute.xlu0 %1883
  %v1885 = vsel %vm83, %v1884, %v1881
  %v1888 = vsel %vm83, %v1881, %v1884
  %v1889 = vmul.f32 %v1888, %v91
  %v1890 = vmul.f32 %v1885, %v95
  %1891 = vrot.lane.b32.xlu0 %v1465, 15
  %v1892 = vpop.permute.xlu0 %1891
  %1894 = vrot.lane.b32.xlu0 %v1464, 15
  %v1895 = vpop.permute.xlu0 %1894
  %v1896 = vsel %vm103, %v1895, %v1892
  %v1899 = vsel %vm103, %v1892, %v1895
  %v1900 = vmul.f32 %v1899, %v111
  %v1901 = vmul.f32 %v1896, %v115
  %1902 = vrot.lane.b32.xlu0 %v1465, 1
  %v1903 = vpop.permute.xlu0 %1902
  %1905 = vrot.lane.b32.xlu0 %v1464, 1
  %v1906 = vpop.permute.xlu0 %1905
  %v1907 = vsel %vm123, %v1906, %v1903
  %v1910 = vsel %vm123, %v1903, %v1906
  %v1911 = vmul.f32 %v1910, %v131
  %v1912 = vmul.f32 %v1907, %v135
  %v1913 = vmul.f32 %v1464, %v141
  %v1914 = vmul.f32 %v1465, %v145
  %v1915 = vmul.f32 %v1474, %v164
  %v1916 = vmul.f32 %v1478, %v168
  %1917 = vrot.lane.b32.xlu0 %v1464, 113
  %v1918 = vpop.permute.xlu0 %1917
  %1919 = vrot.lane.b32.xlu0 %v1465, 113
  %v1920 = vpop.permute.xlu0 %1919
  %v1921 = vsel %vm175, %v1918, %v1920
  %v1925 = vsel %vm175, %v1920, %v1918
  %v1926 = vmul.f32 %v1921, %v184
  %v1927 = vmul.f32 %v1925, %v188
  %1928 = vrot.lane.b32.xlu0 %v1464, 112
  %v1929 = vpop.permute.xlu0 %1928
  %1930 = vrot.lane.b32.xlu0 %v1465, 112
  %v1931 = vpop.permute.xlu0 %1930
  %v1932 = vsel %vm195, %v1929, %v1931
  %v1936 = vsel %vm195, %v1931, %v1929
  %v1937 = vmul.f32 %v1932, %v204
  %v1938 = vmul.f32 %v1936, %v208
  %1939 = vrot.lane.b32.xlu0 %v1464, 111
  %v1940 = vpop.permute.xlu0 %1939
  %1941 = vrot.lane.b32.xlu0 %v1465, 111
  %v1942 = vpop.permute.xlu0 %1941
  %v1943 = vsel %vm215, %v1940, %v1942
  %v1947 = vsel %vm215, %v1942, %v1940
  %v1948 = vmul.f32 %v1943, %v224
  %v1949 = vmul.f32 %v1947, %v228
  %v1950 = vpack.c.bf16 %v1799, %v1788
  %v1951 = vpack.c.bf16 %v1800, %v1789
  %v1952 = vpack.c.bf16 %v1821, %v1810
  %v1953 = vpack.c.bf16 %v1822, %v1811
  %v1954 = vpack.c.bf16 %v1834, %v1823
  %v1955 = vpack.c.bf16 %v1835, %v1824
  %v1956 = vpack.c.bf16 %v1856, %v1845
  %v1957 = vpack.c.bf16 %v1857, %v1846
  %v1958 = vpack.c.bf16 %v1878, %v1867
  %v1959 = vpack.c.bf16 %v1879, %v1868
  %v1960 = vpack.c.bf16 %v1900, %v1889
  %v1961 = vpack.c.bf16 %v1901, %v1890
  %v1962 = vpack.c.bf16 %v1913, %v1911
  %v1963 = vpack.c.bf16 %v1914, %v1912
  %v1964 = vpack.c.bf16 %v1926, %v1915
  %v1965 = vpack.c.bf16 %v1927, %v1916
  %v1966 = vpack.c.bf16 %v1948, %v1937
  %v1967 = vpack.c.bf16 %v1949, %v1938
  %1968 = vmatprep.subr.bf16.mxu0 %v1951
  %1969 = vmatpush1.bf16.msra.mxu0 %v1950
  %1970 = vmatprep.subr.bf16.mxu0 %v1953
  %1971 = vmatpush1.bf16.msra.mxu0 %v1952
  %1972 = vmatprep.subr.bf16.mxu0 %v1955
  %1973 = vmatpush1.bf16.msra.mxu0 %v1954
  %1974 = vmatprep.subr.bf16.mxu0 %v1957
  %1975 = vmatpush1.bf16.msra.mxu0 %v1956
  %1976 = vmatprep.subr.bf16.mxu0 %v1959
  %1977 = vmatpush1.bf16.msra.mxu0 %v1958
  %1978 = vmatprep.subr.bf16.mxu0 %v1961
  %1979 = vmatpush1.bf16.msra.mxu0 %v1960
  %1980 = vmatprep.subr.bf16.mxu0 %v1963
  %1981 = vmatpush1.bf16.msra.mxu0 %v1962
  %1982 = vmatprep.subr.bf16.mxu0 %v1965
  %1983 = vmatpush1.bf16.msra.mxu0 %v1964
  %1984 = vmatprep.subr.bf16.mxu0 %v1967
  %1985 = vmatpush1.bf16.msra.mxu0 %v1966
  %1986 = vmatprep.subr.bf16.mxu0 0
  %1987 = vmatpush1.bf16.msra.mxu0 0
  %1988 = vmatprep.subr.bf16.mxu0 0
  %1989 = vmatpush1.bf16.msra.mxu0 0
  %1990 = vmatprep.subr.bf16.mxu0 0
  %1991 = vmatpush1.bf16.msra.mxu0 0
  %1992 = vmatprep.subr.bf16.mxu0 0
  %1993 = vmatpush1.bf16.msra.mxu0 0
  %1994 = vmatprep.subr.bf16.mxu0 0
  %1995 = vmatpush1.bf16.msra.mxu0 0
  %1996 = vmatprep.subr.bf16.mxu0 0
  %1997 = vmatpush1.bf16.msra.mxu0 0
  %1998 = vmatprep.subr.bf16.mxu0 0
  %1999 = vmatpush1.bf16.msra.mxu0 0
  %2000 = vmatprep.mubr.bf16.mxu0 %v1360
  %2001 = vmatmul.mubr.bf16.gmra.mrb[0].mxu0 %v938
  %v2002 = vpop.f32.mrb[0].mxu0
  %v2003 = vadd.f32 %v1342, %v2002
  %v2004 = vpop.f32.mrb[0].mxu0
  %v2005 = vadd.f32 %v1342, %v2004
  %v2006 = vpop.f32.mrb[0].mxu0
  %v2007 = vadd.f32 %v1347, %v2006
  %v2008 = vpop.f32.mrb[0].mxu0
  %v2009 = vadd.f32 %v1347, %v2008
  %2010 = vmatprep.mubr.bf16.mxu0 %v1363
  %2011 = vmatmul.mubr.bf16.gmra.mrb[0].mxu0 %v940
  %v2012 = vpop.f32.mrb[0].mxu0
  %v2013 = vadd.f32 %v1352, %v2012
  %v2014 = vpop.f32.mrb[0].mxu0
  %v2015 = vadd.f32 %v1352, %v2014
  %v2016 = vpop.f32.mrb[0].mxu0
  %v2017 = vadd.f32 %v1357, %v2016
  %v2018 = vpop.f32.mrb[0].mxu0
  %v2019 = vadd.f32 %v1357, %v2018
  %2020 = vdwg.mxu0
  %v2021 = vxor.u32 %v2003, 2147483648
  %v2022 = vxor.u32 %v2005, 2147483648
  %v2023 = vmul.f32 %v2021, 1.442695
  %v2024 = vpow.pop %v2023
  %v2025 = vmul.f32 %v2022, 1.442695
  %v2026 = vpow.pop %v2025
  %v2027 = vadd.f32 %v2024, 1.0
  %v2028 = vadd.f32 %v2026, 1.0
  %v2029 = vrcp.pop %v2027
  %v2030 = vmul.f32 1.0, %v2029
  %v2031 = vrcp.pop %v2028
  %v2032 = vmul.f32 1.0, %v2031
  %v2033 = vxor.u32 %v2007, 2147483648
  %v2034 = vxor.u32 %v2009, 2147483648
  %v2035 = vmul.f32 %v2033, 1.442695
  %v2036 = vpow.pop %v2035
  %v2037 = vmul.f32 %v2034, 1.442695
  %v2038 = vpow.pop %v2037
  %v2039 = vadd.f32 %v2036, 1.0
  %v2040 = vadd.f32 %v2038, 1.0
  %v2041 = vrcp.pop %v2039
  %v2042 = vmul.f32 1.0, %v2041
  %v2043 = vrcp.pop %v2040
  %v2044 = vmul.f32 1.0, %v2043
  %v2045 = vxor.u32 %v2013, 2147483648
  %v2046 = vxor.u32 %v2015, 2147483648
  %v2047 = vmul.f32 %v2045, 1.442695
  %v2048 = vpow.pop %v2047
  %v2049 = vmul.f32 %v2046, 1.442695
  %v2050 = vpow.pop %v2049
  %v2051 = vadd.f32 %v2048, 1.0
  %v2052 = vadd.f32 %v2050, 1.0
  %v2053 = vrcp.pop %v2051
  %v2054 = vmul.f32 1.0, %v2053
  %v2055 = vrcp.pop %v2052
  %v2056 = vmul.f32 1.0, %v2055
  %v2057 = vtanh.pop %v2017
  %v2058 = vtanh.pop %v2019
  %v2059 = vmul.f32 %v2042, %v1460
  %v2060 = vmul.f32 %v2044, %v1461
  %v2061 = vmul.f32 %v2030, %v2057
  %v2062 = vmul.f32 %v2032, %v2058
  %v2063 = vadd.f32 %v2059, %v2061
  %v2064 = vadd.f32 %v2060, %v2062
  %v2065 = vtanh.pop %v2063
  %v2066 = vtanh.pop %v2064
  %v2067 = vmul.f32 %v2054, %v2065
  %v2068 = vmul.f32 %v2056, %v2066
  %s2069 = scalar_lea.vmem %s13, 16
  %2070 = vst [vmem:[%s2069] sm:$0xff] %v2067
  %2071 = vst [vmem:[%s2069 + $0x8] sm:$0xff] %v2068
  %2074 = vrot.lane.b32.xlu0 %v2067, 127
  %v2075 = vpop.permute.xlu0 %2074
  %2076 = vrot.lane.b32.xlu0 %v2068, 127
  %v2077 = vpop.permute.xlu0 %2076
  %v2078 = vsel %vm155, %v2075, %v2077
  %v2082 = vsel %vm155, %v2077, %v2075
  %v2083 = vmax.f32 %v2067, %v2078
  %v2084 = vmax.f32 %v2068, %v2082
  %2087 = vrot.lane.b32.xlu0 %v2083, 112
  %v2088 = vpop.permute.xlu0 %2087
  %2089 = vrot.lane.b32.xlu0 %v2084, 112
  %v2090 = vpop.permute.xlu0 %2089
  %v2091 = vsel %vm195, %v2088, %v2090
  %v2095 = vsel %vm195, %v2090, %v2088
  %v2096 = vmax.f32 %v2083, %v2091
  %v2097 = vmax.f32 %v2084, %v2095
  %2098 = vmatprep.subr.mxu0 0.0
  %2099 = vmatpush1.msra.mxu0 %v950
  %2100 = vmatprep.subr.mxu0 0.0
  %2101 = vmatpush1.msra.mxu0 %v951
  %2102 = vmatprep.subr.mxu0 0.0
  %2103 = vmatpush1.msra.mxu0 %v952
  %2104 = vmatprep.subr.mxu0 0.0
  %2105 = vmatpush1.msra.mxu0 %v953
  %2106 = vmatprep.subr.mxu0 0.0
  %2107 = vmatpush1.msra.mxu0 %v954
  %2108 = vmatprep.subr.mxu0 0.0
  %2109 = vmatpush1.msra.mxu0 %v955
  %2110 = vmatprep.subr.mxu0 0.0
  %2111 = vmatpush1.msra.mxu0 %v956
  %2112 = vmatprep.subr.mxu0 0.0
  %2113 = vmatpush1.msra.mxu0 %v957
  %2114 = vmatprep.subr.mxu0 0.0
  %2115 = vmatpush1.msra.mxu0 %v958
  %2116 = vmatprep.subr.mxu0 0.0
  %2117 = vmatpush1.msra.mxu0 %v959
  %2118 = vmatprep.subr.mxu0 0.0
  %2119 = vmatpush1.msra.mxu0 %v960
  %2120 = vmatprep.subr.mxu0 0.0
  %2121 = vmatpush1.msra.mxu0 %v961
  %2122 = vmatprep.subr.mxu0 0.0
  %2123 = vmatpush1.msra.mxu0 %v962
  %2124 = vmatprep.subr.mxu0 0.0
  %2125 = vmatpush1.msra.mxu0 %v963
  %2126 = vmatprep.subr.mxu0 0.0
  %2127 = vmatpush1.msra.mxu0 %v964
  %2128 = vmatprep.subr.mxu0 0.0
  %2129 = vmatpush1.msra.mxu0 %v965
  %2130 = vmatprep.subr.mxu0 0.0
  %2131 = vmatpush1.msra.mxu0 %v966
  %2132 = vmatprep.subr.mxu0 0.0
  %2133 = vmatpush1.msra.mxu0 %v967
  %2134 = vmatprep.subr.mxu0 0.0
  %2135 = vmatpush1.msra.mxu0 %v968
  %2136 = vmatprep.subr.mxu0 0.0
  %2137 = vmatpush1.msra.mxu0 %v969
  %2138 = vmatprep.subr.mxu0 0.0
  %2139 = vmatpush1.msra.mxu0 %v970
  %2140 = vmatprep.subr.mxu0 0.0
  %2141 = vmatpush1.msra.mxu0 %v971
  %2142 = vmatprep.subr.mxu0 0.0
  %2143 = vmatpush1.msra.mxu0 %v972
  %2144 = vmatprep.subr.mxu0 0.0
  %2145 = vmatpush1.msra.mxu0 %v973
  %2146 = vmatprep.subr.mxu0 0.0
  %2147 = vmatpush1.msra.mxu0 %v974
  %2148 = vmatprep.subr.mxu0 0.0
  %2149 = vmatpush1.msra.mxu0 %v975
  %2150 = vmatprep.subr.mxu0 0.0
  %2151 = vmatpush1.msra.mxu0 %v976
  %2152 = vmatprep.subr.mxu0 0.0
  %2153 = vmatpush1.msra.mxu0 %v977
  %2154 = vmatprep.subr.mxu0 0.0
  %2155 = vmatpush1.msra.mxu0 %v978
  %2156 = vmatprep.subr.mxu0 0.0
  %2157 = vmatpush1.msra.mxu0 %v979
  %2158 = vmatprep.subr.mxu0 0.0
  %2159 = vmatpush1.msra.mxu0 %v980
  %2160 = vmatprep.subr.mxu0 0.0
  %2161 = vmatpush1.msra.mxu0 %v981
  %2162 = vmatprep.mubr.f32.mxu0 %v2097
  %2163 = vmatmul.mubr.f32.gmra.mrb[0].mxu0 %v2096
  %v2164 = vpop.f32.mrb[0].mxu0
  %v2165 = vadd.f32 0.0, %v2164
  %v2166 = vpop.f32.mrb[0].mxu0
  %2167 = vdwg.mxu0
  %s2168 = scalar_lea.vmem %s14, 8
  %2169 = vst.msk [vmem:[%s2168] sm:$0xff] %vm1564, %v2165
  // Predicated region
  $region54: #{_lambda_.2} parent=0 // pred_check
    _
  $region55: #{_lambda_.2} parent=0 // pred_check_branch
    %2171 = sbr.rel (0) target = $region57
  $region56: #{_lambda_.2} parent=0 // pred_region
    _
  $region57: #{_lambda_.2} parent=0 // pred_fallthru
    _
  // Predicated region
  $region58: #{_lambda_.2} parent=0 // pred_check
    _
  $region59: #{_lambda_.2} parent=0 // pred_check_branch
    %2173 = sbr.rel (0) target = $region61
  $region60: #{_lambda_.2} parent=0 // pred_region
    _
  $region61: #{_lambda_.2} parent=0 // pred_fallthru
    _
  // Predicated region
  $region62: #{_lambda_.2} parent=0 // pred_check
    _
  $region63: #{_lambda_.2} parent=0 // pred_check_branch
    %2175 = sbr.rel (0) target = $region65
  $region64: #{_lambda_.2} parent=0 // pred_region
    _
  $region65: #{_lambda_.2} parent=0 // pred_fallthru
    _
  // Predicated region
  $region66: #{_lambda_.2} parent=0 // pred_check
    _
  $region67: #{_lambda_.2} parent=0 // pred_check_branch
    %2177 = sbr.rel (0) target = $region69
  $region68: #{_lambda_.2} parent=0 // pred_region
    _
  $region69: #{_lambda_.2} parent=0 // pred_fallthru
    _

</llo_original>
